<compile_context>
chip_gen: v7x
topology: tpu7x:2x2x1
jax: 0.10.0
libtpu: 0.0.40
codegen_flags: <defaults>
</compile_context>

<pallas_src>
import functools

import jax
import jax.numpy as jnp
from jax.experimental import pallas as pl
from jax.experimental.pallas import tpu as pltpu


C = 256                                # fixed channel count of the module
DILATIONS = (1, 3, 5, 7, 9)
PADDINGS = (0, 1, 1, 1, 1)
ACT_DTYPE = jnp.bfloat16               # MXU operand / resident-activation dtype


def _lengths(T0):
    """Per-layer time lengths [L0..L5] for kernel_size=3 convs."""
    Ls = [T0]
    for d, p in zip(DILATIONS, PADDINGS):
        Ls.append(Ls[-1] + 2 * p - 2 * d)
    return Ls


# ---------------------------------------------------------------------------
# Fused kernel: all five conv+ReLU layers for one batch element.
#   x_ref : (1, T0, C)   bf16 input (time-major, channels on lanes)
#   w_ref : (15, C, C)   bf16 weights, [layer*3 + tap, cin, cout]
#   b_ref : (5, C)       f32 biases
#   o_ref : (1, L5, C)   f32 output of the last layer
#   buf0/buf1 : (T0+2, C) bf16 ping-pong activation buffers (1-row zero border
#               on each side implements padding=1)
# ---------------------------------------------------------------------------
def _fused_kernel(x_ref, w_ref, b_ref, o_ref, buf0, buf1, *, T0):
    Ls = _lengths(T0)
    bufs = (buf0, buf1)

    # Scratch is uninitialized; the zero border rows are what implement
    # padding=1, so clear both buffers (cheap: ~90 KiB of VPU stores each).
    buf0[...] = jnp.zeros_like(buf0)
    buf1[...] = jnp.zeros_like(buf1)

    for l in range(5):                       # static unroll: shapes differ
        d, p = DILATIONS[l], PADDINGS[l]
        L_out = Ls[l + 1]

        acc = jnp.zeros((L_out, C), jnp.float32)
        for k in range(3):                   # 3 taps -> 3 accumulated matmuls
            if l == 0:
                # First layer (padding=0) reads the input block directly.
                lhs = x_ref[0, k * d:k * d + L_out, :]
            else:
                src = bufs[(l - 1) % 2]
                r0 = 1 + k * d - p           # data lives at rows [1, 1+L_in)
                lhs = src[r0:r0 + L_out, :]
            acc = acc + jnp.dot(lhs, w_ref[3 * l + k],
                                preferred_element_type=jnp.float32)

        acc = jnp.maximum(acc + b_ref[l:l + 1, :], 0.0)

        if l == 4:
            o_ref[0] = acc                   # final layer -> f32 output
        else:
            dst = bufs[l % 2]
            dst[1:1 + L_out, :] = acc.astype(ACT_DTYPE)
            # Re-zero the right border row (buffer may hold stale data there
            # from an earlier, longer layer); the next padding=1 layer reads
            # exactly rows 0 and 1+L_out as its zero padding.
            dst[1 + L_out:2 + L_out, :] = jnp.zeros((1, C), ACT_DTYPE)


def dilated_stack(x_nct, w, b):
    """Forward pass of DilatedResidualLayer.

    x_nct : (B, 256, T) f32  -- PyTorch NCT layout
    w     : (5, 3, 256, 256) f32, [layer, tap, cin, cout]
    b     : (5, 256) f32
    returns (B, 256, T - 44) f32
    """
    B, Cin, T0 = x_nct.shape
    assert Cin == C
    Ls = _lengths(T0)
    L_out = Ls[-1]
    assert L_out > 0, "sequence too short for the 5 valid/dilated convs"

    x = jnp.transpose(x_nct, (0, 2, 1)).astype(ACT_DTYPE)   # (B, T, C)
    w15 = w.reshape(15, C, C).astype(ACT_DTYPE)
    b5 = b.astype(jnp.float32)

    kern = functools.partial(_fused_kernel, T0=T0)
    out = pl.pallas_call(
        kern,
        out_shape=jax.ShapeDtypeStruct((B, L_out, C), jnp.float32),
        grid=(B,),
        in_specs=[
            pl.BlockSpec((1, T0, C), lambda bi: (bi, 0, 0)),
            pl.BlockSpec((15, C, C), lambda bi: (0, 0, 0)),   # weight-resident
            pl.BlockSpec((5, C), lambda bi: (0, 0)),
        ],
        out_specs=pl.BlockSpec((1, L_out, C), lambda bi: (bi, 0, 0)),
        scratch_shapes=[
            pltpu.VMEM((T0 + 2, C), ACT_DTYPE),
            pltpu.VMEM((T0 + 2, C), ACT_DTYPE),
        ],
        compiler_params=pltpu.CompilerParams(
            dimension_semantics=("parallel",)),               # 2 TCs on v7x
    )(x, w15, b5)

    return jnp.transpose(out, (0, 2, 1))                      # back to (B, C, T')


# ---------------------------------------------------------------------------
# Pure-JAX reference mirroring the kernel's precision (bf16 operands, f32
# accumulation) so the comparison validates indexing / dilation / padding /
# bias / ReLU exactly.
# ---------------------------------------------------------------------------
def ref_forward(x_nct, w, b):
    h = jnp.transpose(x_nct, (0, 2, 1)).astype(jnp.float32)   # (B, T, C)
    wb = w.astype(ACT_DTYPE)
    for l in range(5):
        d, p = DILATIONS[l], PADDINGS[l]
        L_out = h.shape[1] + 2 * p - 2 * d
        hp = jnp.pad(h.astype(ACT_DTYPE), ((0, 0), (p, p), (0, 0)))
        acc = b[l][None, None, :].astype(jnp.float32)
        for k in range(3):
            acc = acc + jnp.einsum(
                'btc,cd->btd', hp[:, k * d:k * d + L_out, :], wb[l, k],
                preferred_element_type=jnp.float32)
        h = jnp.maximum(acc, 0.0)
    return jnp.transpose(h, (0, 2, 1))


if __name__ == "__main__":
    key = jax.random.PRNGKey(0)
    kx, kw, kb = jax.random.split(key, 3)

    B, T0 = 2, 172          # 172 - 44 = 128 output steps; every layer has M >= 128
    x = jax.random.normal(kx, (B, C, T0), jnp.float32)
    # He-style fan-in scaling keeps activations O(1) through the ReLU stack.
    w = jax.random.normal(kw, (5, 3, C, C), jnp.float32) * (2.0 / (3 * C)) ** 0.5
    b = jax.random.normal(kb, (5, C), jnp.float32) * 0.01

    out = jax.jit(dilated_stack)(x, w, b)
    out = jax.block_until_ready(out)

    L_final = _lengths(T0)[-1]
    assert out.shape == (B, C, L_final), out.shape
    assert bool(jnp.all(out >= 0.0))                # final ReLU
    assert bool(jnp.all(jnp.isfinite(out)))

    ref = ref_forward(x, w, b)
    err = float(jnp.max(jnp.abs(out - ref)))
    scale = float(jnp.max(jnp.abs(ref))) + 1.0
    assert err <= 1e-2 * scale, (err, scale)

    print("KERNEL_OK")
</pallas_src>

<mosaic_0001>
module attributes {stable_mosaic.version = 11 : i64} {
  func.func @_fused_kernel(%arg0: i32, %arg1: memref<1x172x256xbf16, #tpu.memory_space<vmem>>, %arg2: memref<15x256x256xbf16, #tpu.memory_space<vmem>>, %arg3: memref<5x256xf32, #tpu.memory_space<vmem>>, %arg4: memref<1x130x256xf32, #tpu.memory_space<vmem>>, %arg5: memref<174x256xbf16, #tpu.memory_space<vmem>>, %arg6: memref<174x256xbf16, #tpu.memory_space<vmem>>) attributes {dimension_semantics = [#tpu.dimension_semantics<parallel>], iteration_bounds = array<i64: 2>, scalar_prefetch = 0 : i64, scratch_operands = 2 : i64, tpu.core_type = #tpu.core_type<tc>, window_params = [{transform_indices = @transform_0, window_bounds = array<i64: 1, 172, 256>}, {pipeline_mode = #tpu.pipeline_mode<synchronous>, transform_indices = @transform_1, window_bounds = array<i64: 15, 256, 256>}, {pipeline_mode = #tpu.pipeline_mode<synchronous>, transform_indices = @transform_2, window_bounds = array<i64: 5, 256>}, {transform_indices = @transform_3, window_bounds = array<i64: 1, 130, 256>}]} {
    %cst = arith.constant 0.000000e+00 : bf16
    %0 = vector.broadcast %cst : bf16 to vector<174x256xbf16>
    %c0 = arith.constant 0 : index
    %c0_0 = arith.constant 0 : index
    %1 = vector.load %arg5[%c0, %c0_0] : memref<174x256xbf16, #tpu.memory_space<vmem>>, vector<174x256xbf16>
    tpu.vector_store %arg5[%c0, %c0_0], %0 {strides = array<i32>} : memref<174x256xbf16, #tpu.memory_space<vmem>>, vector<174x256xbf16>,
    %cst_1 = arith.constant 0.000000e+00 : bf16
    %2 = vector.broadcast %cst_1 : bf16 to vector<174x256xbf16>
    %c0_2 = arith.constant 0 : index
    %c0_3 = arith.constant 0 : index
    %3 = vector.load %arg6[%c0_2, %c0_3] : memref<174x256xbf16, #tpu.memory_space<vmem>>, vector<174x256xbf16>
    tpu.vector_store %arg6[%c0_2, %c0_3], %2 {strides = array<i32>} : memref<174x256xbf16, #tpu.memory_space<vmem>>, vector<174x256xbf16>,
    %cst_4 = arith.constant 0.000000e+00 : f32
    %4 = vector.broadcast %cst_4 : f32 to vector<170x256xf32>
    %c0_5 = arith.constant 0 : index
    %c0_6 = arith.constant 0 : index
    %c0_7 = arith.constant 0 : index
    %5 = vector.load %arg1[%c0_5, %c0_6, %c0_7] : memref<1x172x256xbf16, #tpu.memory_space<vmem>>, vector<1x170x256xbf16>
    %6 = vector.shape_cast %5 : vector<1x170x256xbf16> to vector<170x256xbf16>
    %c0_8 = arith.constant 0 : index
    %c0_9 = arith.constant 0 : index
    %c0_10 = arith.constant 0 : index
    %7 = vector.load %arg2[%c0_8, %c0_9, %c0_10] : memref<15x256x256xbf16, #tpu.memory_space<vmem>>, vector<1x256x256xbf16>
    %8 = vector.shape_cast %7 : vector<1x256x256xbf16> to vector<256x256xbf16>
    %cst_11 = arith.constant dense<0.000000e+00> : vector<170x256xf32>
    %9 = tpu.matmul %6, %8, %cst_11 {dimension_numbers = #tpu.dot_dimension_numbers<[1], [0], [0], [1], [0, 0, 1, 1], [], []>} : vector<170x256xbf16>, vector<256x256xbf16>, vector<170x256xf32> -> vector<170x256xf32>
    %10 = arith.addf %4, %9 : vector<170x256xf32>
    %c0_12 = arith.constant 0 : index
    %c1 = arith.constant 1 : index
    %c0_13 = arith.constant 0 : index
    %11 = vector.load %arg1[%c0_12, %c1, %c0_13] : memref<1x172x256xbf16, #tpu.memory_space<vmem>>, vector<1x170x256xbf16>
    %12 = vector.shape_cast %11 : vector<1x170x256xbf16> to vector<170x256xbf16>
    %c1_14 = arith.constant 1 : index
    %c0_15 = arith.constant 0 : index
    %c0_16 = arith.constant 0 : index
    %13 = vector.load %arg2[%c1_14, %c0_15, %c0_16] : memref<15x256x256xbf16, #tpu.memory_space<vmem>>, vector<1x256x256xbf16>
    %14 = vector.shape_cast %13 : vector<1x256x256xbf16> to vector<256x256xbf16>
    %cst_17 = arith.constant dense<0.000000e+00> : vector<170x256xf32>
    %15 = tpu.matmul %12, %14, %cst_17 {dimension_numbers = #tpu.dot_dimension_numbers<[1], [0], [0], [1], [0, 0, 1, 1], [], []>} : vector<170x256xbf16>, vector<256x256xbf16>, vector<170x256xf32> -> vector<170x256xf32>
    %16 = arith.addf %10, %15 : vector<170x256xf32>
    %c0_18 = arith.constant 0 : index
    %c2 = arith.constant 2 : index
    %c0_19 = arith.constant 0 : index
    %17 = vector.load %arg1[%c0_18, %c2, %c0_19] : memref<1x172x256xbf16, #tpu.memory_space<vmem>>, vector<1x170x256xbf16>
    %18 = vector.shape_cast %17 : vector<1x170x256xbf16> to vector<170x256xbf16>
    %c2_20 = arith.constant 2 : index
    %c0_21 = arith.constant 0 : index
    %c0_22 = arith.constant 0 : index
    %19 = vector.load %arg2[%c2_20, %c0_21, %c0_22] : memref<15x256x256xbf16, #tpu.memory_space<vmem>>, vector<1x256x256xbf16>
    %20 = vector.shape_cast %19 : vector<1x256x256xbf16> to vector<256x256xbf16>
    %cst_23 = arith.constant dense<0.000000e+00> : vector<170x256xf32>
    %21 = tpu.matmul %18, %20, %cst_23 {dimension_numbers = #tpu.dot_dimension_numbers<[1], [0], [0], [1], [0, 0, 1, 1], [], []>} : vector<170x256xbf16>, vector<256x256xbf16>, vector<170x256xf32> -> vector<170x256xf32>
    %22 = arith.addf %16, %21 : vector<170x256xf32>
    %c0_24 = arith.constant 0 : index
    %c0_25 = arith.constant 0 : index
    %23 = vector.load %arg3[%c0_24, %c0_25] : memref<5x256xf32, #tpu.memory_space<vmem>>, vector<1x256xf32>
    %24 = vector.broadcast %23 : vector<1x256xf32> to vector<170x256xf32>
    %25 = arith.addf %22, %24 : vector<170x256xf32>
    %cst_26 = arith.constant 0.000000e+00 : f32
    %26 = vector.broadcast %cst_26 : f32 to vector<170x256xf32>
    %27 = arith.maximumf %25, %26 : vector<170x256xf32>
    %28 = arith.truncf %27 : vector<170x256xf32> to vector<170x256xbf16>
    %c1_27 = arith.constant 1 : index
    %c0_28 = arith.constant 0 : index
    %29 = vector.load %arg5[%c1_27, %c0_28] : memref<174x256xbf16, #tpu.memory_space<vmem>>, vector<170x256xbf16>
    tpu.vector_store %arg5[%c1_27, %c0_28], %28 {strides = array<i32>} : memref<174x256xbf16, #tpu.memory_space<vmem>>, vector<170x256xbf16>,
    %cst_29 = arith.constant 0.000000e+00 : bf16
    %30 = vector.broadcast %cst_29 : bf16 to vector<1x256xbf16>
    %c171 = arith.constant 171 : index
    %c0_30 = arith.constant 0 : index
    %31 = vector.load %arg5[%c171, %c0_30] : memref<174x256xbf16, #tpu.memory_space<vmem>>, vector<1x256xbf16>
    tpu.vector_store %arg5[%c171, %c0_30], %30 {strides = array<i32>} : memref<174x256xbf16, #tpu.memory_space<vmem>>, vector<1x256xbf16>,
    %cst_31 = arith.constant 0.000000e+00 : f32
    %32 = vector.broadcast %cst_31 : f32 to vector<166x256xf32>
    %c0_32 = arith.constant 0 : index
    %c0_33 = arith.constant 0 : index
    %33 = vector.load %arg5[%c0_32, %c0_33] : memref<174x256xbf16, #tpu.memory_space<vmem>>, vector<166x256xbf16>
    %c3 = arith.constant 3 : index
    %c0_34 = arith.constant 0 : index
    %c0_35 = arith.constant 0 : index
    %34 = vector.load %arg2[%c3, %c0_34, %c0_35] : memref<15x256x256xbf16, #tpu.memory_space<vmem>>, vector<1x256x256xbf16>
    %35 = vector.shape_cast %34 : vector<1x256x256xbf16> to vector<256x256xbf16>
    %cst_36 = arith.constant dense<0.000000e+00> : vector<166x256xf32>
    %36 = tpu.matmul %33, %35, %cst_36 {dimension_numbers = #tpu.dot_dimension_numbers<[1], [0], [0], [1], [0, 0, 1, 1], [], []>} : vector<166x256xbf16>, vector<256x256xbf16>, vector<166x256xf32> -> vector<166x256xf32>
    %37 = arith.addf %32, %36 : vector<166x256xf32>
    %c3_37 = arith.constant 3 : index
    %c0_38 = arith.constant 0 : index
    %38 = vector.load %arg5[%c3_37, %c0_38] : memref<174x256xbf16, #tpu.memory_space<vmem>>, vector<166x256xbf16>
    %c4 = arith.constant 4 : index
    %c0_39 = arith.constant 0 : index
    %c0_40 = arith.constant 0 : index
    %39 = vector.load %arg2[%c4, %c0_39, %c0_40] : memref<15x256x256xbf16, #tpu.memory_space<vmem>>, vector<1x256x256xbf16>
    %40 = vector.shape_cast %39 : vector<1x256x256xbf16> to vector<256x256xbf16>
    %cst_41 = arith.constant dense<0.000000e+00> : vector<166x256xf32>
    %41 = tpu.matmul %38, %40, %cst_41 {dimension_numbers = #tpu.dot_dimension_numbers<[1], [0], [0], [1], [0, 0, 1, 1], [], []>} : vector<166x256xbf16>, vector<256x256xbf16>, vector<166x256xf32> -> vector<166x256xf32>
    %42 = arith.addf %37, %41 : vector<166x256xf32>
    %c6 = arith.constant 6 : index
    %c0_42 = arith.constant 0 : index
    %43 = vector.load %arg5[%c6, %c0_42] : memref<174x256xbf16, #tpu.memory_space<vmem>>, vector<166x256xbf16>
    %c5 = arith.constant 5 : index
    %c0_43 = arith.constant 0 : index
    %c0_44 = arith.constant 0 : index
    %44 = vector.load %arg2[%c5, %c0_43, %c0_44] : memref<15x256x256xbf16, #tpu.memory_space<vmem>>, vector<1x256x256xbf16>
    %45 = vector.shape_cast %44 : vector<1x256x256xbf16> to vector<256x256xbf16>
    %cst_45 = arith.constant dense<0.000000e+00> : vector<166x256xf32>
    %46 = tpu.matmul %43, %45, %cst_45 {dimension_numbers = #tpu.dot_dimension_numbers<[1], [0], [0], [1], [0, 0, 1, 1], [], []>} : vector<166x256xbf16>, vector<256x256xbf16>, vector<166x256xf32> -> vector<166x256xf32>
    %47 = arith.addf %42, %46 : vector<166x256xf32>
    %c1_46 = arith.constant 1 : index
    %c0_47 = arith.constant 0 : index
    %48 = vector.load %arg3[%c1_46, %c0_47] : memref<5x256xf32, #tpu.memory_space<vmem>>, vector<1x256xf32>
    %49 = vector.broadcast %48 : vector<1x256xf32> to vector<166x256xf32>
    %50 = arith.addf %47, %49 : vector<166x256xf32>
    %cst_48 = arith.constant 0.000000e+00 : f32
    %51 = vector.broadcast %cst_48 : f32 to vector<166x256xf32>
    %52 = arith.maximumf %50, %51 : vector<166x256xf32>
    %53 = arith.truncf %52 : vector<166x256xf32> to vector<166x256xbf16>
    %c1_49 = arith.constant 1 : index
    %c0_50 = arith.constant 0 : index
    %54 = vector.load %arg6[%c1_49, %c0_50] : memref<174x256xbf16, #tpu.memory_space<vmem>>, vector<166x256xbf16>
    tpu.vector_store %arg6[%c1_49, %c0_50], %53 {strides = array<i32>} : memref<174x256xbf16, #tpu.memory_space<vmem>>, vector<166x256xbf16>,
    %cst_51 = arith.constant 0.000000e+00 : bf16
    %55 = vector.broadcast %cst_51 : bf16 to vector<1x256xbf16>
    %c167 = arith.constant 167 : index
    %c0_52 = arith.constant 0 : index
    %56 = vector.load %arg6[%c167, %c0_52] : memref<174x256xbf16, #tpu.memory_space<vmem>>, vector<1x256xbf16>
    tpu.vector_store %arg6[%c167, %c0_52], %55 {strides = array<i32>} : memref<174x256xbf16, #tpu.memory_space<vmem>>, vector<1x256xbf16>,
    %cst_53 = arith.constant 0.000000e+00 : f32
    %57 = vector.broadcast %cst_53 : f32 to vector<158x256xf32>
    %c0_54 = arith.constant 0 : index
    %c0_55 = arith.constant 0 : index
    %58 = vector.load %arg6[%c0_54, %c0_55] : memref<174x256xbf16, #tpu.memory_space<vmem>>, vector<158x256xbf16>
    %c6_56 = arith.constant 6 : index
    %c0_57 = arith.constant 0 : index
    %c0_58 = arith.constant 0 : index
    %59 = vector.load %arg2[%c6_56, %c0_57, %c0_58] : memref<15x256x256xbf16, #tpu.memory_space<vmem>>, vector<1x256x256xbf16>
    %60 = vector.shape_cast %59 : vector<1x256x256xbf16> to vector<256x256xbf16>
    %cst_59 = arith.constant dense<0.000000e+00> : vector<158x256xf32>
    %61 = tpu.matmul %58, %60, %cst_59 {dimension_numbers = #tpu.dot_dimension_numbers<[1], [0], [0], [1], [0, 0, 1, 1], [], []>} : vector<158x256xbf16>, vector<256x256xbf16>, vector<158x256xf32> -> vector<158x256xf32>
    %62 = arith.addf %57, %61 : vector<158x256xf32>
    %c5_60 = arith.constant 5 : index
    %c0_61 = arith.constant 0 : index
    %63 = vector.load %arg6[%c5_60, %c0_61] : memref<174x256xbf16, #tpu.memory_space<vmem>>, vector<158x256xbf16>
    %c7 = arith.constant 7 : index
    %c0_62 = arith.constant 0 : index
    %c0_63 = arith.constant 0 : index
    %64 = vector.load %arg2[%c7, %c0_62, %c0_63] : memref<15x256x256xbf16, #tpu.memory_space<vmem>>, vector<1x256x256xbf16>
    %65 = vector.shape_cast %64 : vector<1x256x256xbf16> to vector<256x256xbf16>
    %cst_64 = arith.constant dense<0.000000e+00> : vector<158x256xf32>
    %66 = tpu.matmul %63, %65, %cst_64 {dimension_numbers = #tpu.dot_dimension_numbers<[1], [0], [0], [1], [0, 0, 1, 1], [], []>} : vector<158x256xbf16>, vector<256x256xbf16>, vector<158x256xf32> -> vector<158x256xf32>
    %67 = arith.addf %62, %66 : vector<158x256xf32>
    %c10 = arith.constant 10 : index
    %c0_65 = arith.constant 0 : index
    %68 = vector.load %arg6[%c10, %c0_65] : memref<174x256xbf16, #tpu.memory_space<vmem>>, vector<158x256xbf16>
    %c8 = arith.constant 8 : index
    %c0_66 = arith.constant 0 : index
    %c0_67 = arith.constant 0 : index
    %69 = vector.load %arg2[%c8, %c0_66, %c0_67] : memref<15x256x256xbf16, #tpu.memory_space<vmem>>, vector<1x256x256xbf16>
    %70 = vector.shape_cast %69 : vector<1x256x256xbf16> to vector<256x256xbf16>
    %cst_68 = arith.constant dense<0.000000e+00> : vector<158x256xf32>
    %71 = tpu.matmul %68, %70, %cst_68 {dimension_numbers = #tpu.dot_dimension_numbers<[1], [0], [0], [1], [0, 0, 1, 1], [], []>} : vector<158x256xbf16>, vector<256x256xbf16>, vector<158x256xf32> -> vector<158x256xf32>
    %72 = arith.addf %67, %71 : vector<158x256xf32>
    %c2_69 = arith.constant 2 : index
    %c0_70 = arith.constant 0 : index
    %73 = vector.load %arg3[%c2_69, %c0_70] : memref<5x256xf32, #tpu.memory_space<vmem>>, vector<1x256xf32>
    %74 = vector.broadcast %73 : vector<1x256xf32> to vector<158x256xf32>
    %75 = arith.addf %72, %74 : vector<158x256xf32>
    %cst_71 = arith.constant 0.000000e+00 : f32
    %76 = vector.broadcast %cst_71 : f32 to vector<158x256xf32>
    %77 = arith.maximumf %75, %76 : vector<158x256xf32>
    %78 = arith.truncf %77 : vector<158x256xf32> to vector<158x256xbf16>
    %c1_72 = arith.constant 1 : index
    %c0_73 = arith.constant 0 : index
    %79 = vector.load %arg5[%c1_72, %c0_73] : memref<174x256xbf16, #tpu.memory_space<vmem>>, vector<158x256xbf16>
    tpu.vector_store %arg5[%c1_72, %c0_73], %78 {strides = array<i32>} : memref<174x256xbf16, #tpu.memory_space<vmem>>, vector<158x256xbf16>,
    %cst_74 = arith.constant 0.000000e+00 : bf16
    %80 = vector.broadcast %cst_74 : bf16 to vector<1x256xbf16>
    %c159 = arith.constant 159 : index
    %c0_75 = arith.constant 0 : index
    %81 = vector.load %arg5[%c159, %c0_75] : memref<174x256xbf16, #tpu.memory_space<vmem>>, vector<1x256xbf16>
    tpu.vector_store %arg5[%c159, %c0_75], %80 {strides = array<i32>} : memref<174x256xbf16, #tpu.memory_space<vmem>>, vector<1x256xbf16>,
    %cst_76 = arith.constant 0.000000e+00 : f32
    %82 = vector.broadcast %cst_76 : f32 to vector<146x256xf32>
    %c0_77 = arith.constant 0 : index
    %c0_78 = arith.constant 0 : index
    %83 = vector.load %arg5[%c0_77, %c0_78] : memref<174x256xbf16, #tpu.memory_space<vmem>>, vector<146x256xbf16>
    %c9 = arith.constant 9 : index
    %c0_79 = arith.constant 0 : index
    %c0_80 = arith.constant 0 : index
    %84 = vector.load %arg2[%c9, %c0_79, %c0_80] : memref<15x256x256xbf16, #tpu.memory_space<vmem>>, vector<1x256x256xbf16>
    %85 = vector.shape_cast %84 : vector<1x256x256xbf16> to vector<256x256xbf16>
    %cst_81 = arith.constant dense<0.000000e+00> : vector<146x256xf32>
    %86 = tpu.matmul %83, %85, %cst_81 {dimension_numbers = #tpu.dot_dimension_numbers<[1], [0], [0], [1], [0, 0, 1, 1], [], []>} : vector<146x256xbf16>, vector<256x256xbf16>, vector<146x256xf32> -> vector<146x256xf32>
    %87 = arith.addf %82, %86 : vector<146x256xf32>
    %c7_82 = arith.constant 7 : index
    %c0_83 = arith.constant 0 : index
    %88 = vector.load %arg5[%c7_82, %c0_83] : memref<174x256xbf16, #tpu.memory_space<vmem>>, vector<146x256xbf16>
    %c10_84 = arith.constant 10 : index
    %c0_85 = arith.constant 0 : index
    %c0_86 = arith.constant 0 : index
    %89 = vector.load %arg2[%c10_84, %c0_85, %c0_86] : memref<15x256x256xbf16, #tpu.memory_space<vmem>>, vector<1x256x256xbf16>
    %90 = vector.shape_cast %89 : vector<1x256x256xbf16> to vector<256x256xbf16>
    %cst_87 = arith.constant dense<0.000000e+00> : vector<146x256xf32>
    %91 = tpu.matmul %88, %90, %cst_87 {dimension_numbers = #tpu.dot_dimension_numbers<[1], [0], [0], [1], [0, 0, 1, 1], [], []>} : vector<146x256xbf16>, vector<256x256xbf16>, vector<146x256xf32> -> vector<146x256xf32>
    %92 = arith.addf %87, %91 : vector<146x256xf32>
    %c14 = arith.constant 14 : index
    %c0_88 = arith.constant 0 : index
    %93 = vector.load %arg5[%c14, %c0_88] : memref<174x256xbf16, #tpu.memory_space<vmem>>, vector<146x256xbf16>
    %c11 = arith.constant 11 : index
    %c0_89 = arith.constant 0 : index
    %c0_90 = arith.constant 0 : index
    %94 = vector.load %arg2[%c11, %c0_89, %c0_90] : memref<15x256x256xbf16, #tpu.memory_space<vmem>>, vector<1x256x256xbf16>
    %95 = vector.shape_cast %94 : vector<1x256x256xbf16> to vector<256x256xbf16>
    %cst_91 = arith.constant dense<0.000000e+00> : vector<146x256xf32>
    %96 = tpu.matmul %93, %95, %cst_91 {dimension_numbers = #tpu.dot_dimension_numbers<[1], [0], [0], [1], [0, 0, 1, 1], [], []>} : vector<146x256xbf16>, vector<256x256xbf16>, vector<146x256xf32> -> vector<146x256xf32>
    %97 = arith.addf %92, %96 : vector<146x256xf32>
    %c3_92 = arith.constant 3 : index
    %c0_93 = arith.constant 0 : index
    %98 = vector.load %arg3[%c3_92, %c0_93] : memref<5x256xf32, #tpu.memory_space<vmem>>, vector<1x256xf32>
    %99 = vector.broadcast %98 : vector<1x256xf32> to vector<146x256xf32>
    %100 = arith.addf %97, %99 : vector<146x256xf32>
    %cst_94 = arith.constant 0.000000e+00 : f32
    %101 = vector.broadcast %cst_94 : f32 to vector<146x256xf32>
    %102 = arith.maximumf %100, %101 : vector<146x256xf32>
    %103 = arith.truncf %102 : vector<146x256xf32> to vector<146x256xbf16>
    %c1_95 = arith.constant 1 : index
    %c0_96 = arith.constant 0 : index
    %104 = vector.load %arg6[%c1_95, %c0_96] : memref<174x256xbf16, #tpu.memory_space<vmem>>, vector<146x256xbf16>
    tpu.vector_store %arg6[%c1_95, %c0_96], %103 {strides = array<i32>} : memref<174x256xbf16, #tpu.memory_space<vmem>>, vector<146x256xbf16>,
    %cst_97 = arith.constant 0.000000e+00 : bf16
    %105 = vector.broadcast %cst_97 : bf16 to vector<1x256xbf16>
    %c147 = arith.constant 147 : index
    %c0_98 = arith.constant 0 : index
    %106 = vector.load %arg6[%c147, %c0_98] : memref<174x256xbf16, #tpu.memory_space<vmem>>, vector<1x256xbf16>
    tpu.vector_store %arg6[%c147, %c0_98], %105 {strides = array<i32>} : memref<174x256xbf16, #tpu.memory_space<vmem>>, vector<1x256xbf16>,
    %cst_99 = arith.constant 0.000000e+00 : f32
    %107 = vector.broadcast %cst_99 : f32 to vector<130x256xf32>
    %c0_100 = arith.constant 0 : index
    %c0_101 = arith.constant 0 : index
    %108 = vector.load %arg6[%c0_100, %c0_101] : memref<174x256xbf16, #tpu.memory_space<vmem>>, vector<130x256xbf16>
    %c12 = arith.constant 12 : index
    %c0_102 = arith.constant 0 : index
    %c0_103 = arith.constant 0 : index
    %109 = vector.load %arg2[%c12, %c0_102, %c0_103] : memref<15x256x256xbf16, #tpu.memory_space<vmem>>, vector<1x256x256xbf16>
    %110 = vector.shape_cast %109 : vector<1x256x256xbf16> to vector<256x256xbf16>
    %cst_104 = arith.constant dense<0.000000e+00> : vector<130x256xf32>
    %111 = tpu.matmul %108, %110, %cst_104 {dimension_numbers = #tpu.dot_dimension_numbers<[1], [0], [0], [1], [0, 0, 1, 1], [], []>} : vector<130x256xbf16>, vector<256x256xbf16>, vector<130x256xf32> -> vector<130x256xf32>
    %112 = arith.addf %107, %111 : vector<130x256xf32>
    %c9_105 = arith.constant 9 : index
    %c0_106 = arith.constant 0 : index
    %113 = vector.load %arg6[%c9_105, %c0_106] : memref<174x256xbf16, #tpu.memory_space<vmem>>, vector<130x256xbf16>
    %c13 = arith.constant 13 : index
    %c0_107 = arith.constant 0 : index
    %c0_108 = arith.constant 0 : index
    %114 = vector.load %arg2[%c13, %c0_107, %c0_108] : memref<15x256x256xbf16, #tpu.memory_space<vmem>>, vector<1x256x256xbf16>
    %115 = vector.shape_cast %114 : vector<1x256x256xbf16> to vector<256x256xbf16>
    %cst_109 = arith.constant dense<0.000000e+00> : vector<130x256xf32>
    %116 = tpu.matmul %113, %115, %cst_109 {dimension_numbers = #tpu.dot_dimension_numbers<[1], [0], [0], [1], [0, 0, 1, 1], [], []>} : vector<130x256xbf16>, vector<256x256xbf16>, vector<130x256xf32> -> vector<130x256xf32>
    %117 = arith.addf %112, %116 : vector<130x256xf32>
    %c18 = arith.constant 18 : index
    %c0_110 = arith.constant 0 : index
    %118 = vector.load %arg6[%c18, %c0_110] : memref<174x256xbf16, #tpu.memory_space<vmem>>, vector<130x256xbf16>
    %c14_111 = arith.constant 14 : index
    %c0_112 = arith.constant 0 : index
    %c0_113 = arith.constant 0 : index
    %119 = vector.load %arg2[%c14_111, %c0_112, %c0_113] : memref<15x256x256xbf16, #tpu.memory_space<vmem>>, vector<1x256x256xbf16>
    %120 = vector.shape_cast %119 : vector<1x256x256xbf16> to vector<256x256xbf16>
    %cst_114 = arith.constant dense<0.000000e+00> : vector<130x256xf32>
    %121 = tpu.matmul %118, %120, %cst_114 {dimension_numbers = #tpu.dot_dimension_numbers<[1], [0], [0], [1], [0, 0, 1, 1], [], []>} : vector<130x256xbf16>, vector<256x256xbf16>, vector<130x256xf32> -> vector<130x256xf32>
    %122 = arith.addf %117, %121 : vector<130x256xf32>
    %c4_115 = arith.constant 4 : index
    %c0_116 = arith.constant 0 : index
    %123 = vector.load %arg3[%c4_115, %c0_116] : memref<5x256xf32, #tpu.memory_space<vmem>>, vector<1x256xf32>
    %124 = vector.broadcast %123 : vector<1x256xf32> to vector<130x256xf32>
    %125 = arith.addf %122, %124 : vector<130x256xf32>
    %cst_117 = arith.constant 0.000000e+00 : f32
    %126 = vector.broadcast %cst_117 : f32 to vector<130x256xf32>
    %127 = arith.maximumf %125, %126 : vector<130x256xf32>
    %c0_118 = arith.constant 0 : index
    %c0_119 = arith.constant 0 : index
    %c0_120 = arith.constant 0 : index
    %128 = vector.load %arg4[%c0_118, %c0_119, %c0_120] : memref<1x130x256xf32, #tpu.memory_space<vmem>>, vector<1x130x256xf32>
    %129 = vector.shape_cast %128 : vector<1x130x256xf32> to vector<130x256xf32>
    %130 = vector.shape_cast %127 : vector<130x256xf32> to vector<1x130x256xf32>
    tpu.vector_store %arg4[%c0_118, %c0_119, %c0_120], %130 {strides = array<i32>} : memref<1x130x256xf32, #tpu.memory_space<vmem>>, vector<1x130x256xf32>,
    return
  }
  func.func @transform_0(%arg0: i32) -> (i32, i32, i32) {
    %c0_i32 = arith.constant 0 : i32
    %c0_i32_0 = arith.constant 0 : i32
    %c0_i32_1 = arith.constant 0 : i32
    return %arg0, %c0_i32, %c0_i32_0 : i32, i32, i32
  }
  func.func @transform_1(%arg0: i32) -> (i32, i32, i32) {
    %c0_i32 = arith.constant 0 : i32
    %c0_i32_0 = arith.constant 0 : i32
    %c0_i32_1 = arith.constant 0 : i32
    %c0_i32_2 = arith.constant 0 : i32
    return %c0_i32, %c0_i32_0, %c0_i32_1 : i32, i32, i32
  }
  func.func @transform_2(%arg0: i32) -> (i32, i32) {
    %c0_i32 = arith.constant 0 : i32
    %c0_i32_0 = arith.constant 0 : i32
    %c0_i32_1 = arith.constant 0 : i32
    return %c0_i32, %c0_i32_0 : i32, i32
  }
  func.func @transform_3(%arg0: i32) -> (i32, i32, i32) {
    %c0_i32 = arith.constant 0 : i32
    %c0_i32_0 = arith.constant 0 : i32
    %c0_i32_1 = arith.constant 0 : i32
    return %arg0, %c0_i32, %c0_i32_0 : i32, i32, i32
  }
}

</mosaic_0001>

<llo_original>
// kernel: dilated_stack.1
$region0: #{dilated_stack.1}
  #allocation0 [shape = 'u32[]', space=smem, size = 0x4, offset = 0x4, fixed_abs, tag = 'smem constant byte address 0x4 - core index']
  #allocation1 [shape = 'u32[144,128]{1,0:T(1,128)}', space=vmem, size = 0x12000, scoped, tag = 'internal scratch']
  #allocation2 [shape = 'bf16[174,256]{1,0:T(8,128)(2,1)}', space=vmem, size = 0x16000, scoped, tag = 'scratch operand']
  #allocation3 [shape = 'bf16[174,256]{1,0:T(8,128)(2,1)}', space=vmem, size = 0x16000, scoped, tag = 'scratch operand']
  %s0 = inlined_call_operand.vmem [shape: bf16[2,172,256], index: 0, kind: input, shape index: {}]
  %s1 = inlined_call_operand.vmem [shape: bf16[15,256,256], index: 1, kind: input, shape index: {}]
  %s2 = inlined_call_operand.vmem [shape: f32[5,256], index: 2, kind: input, shape index: {}]
  %s3 = inlined_call_operand.vmem [shape: f32[2,130,256], index: 3, kind: output, shape index: {}]
  %s4 = sld [smem:[#allocation0]]
  $region45: #{dilated_stack.1} parent=0
    _
  %s6 = ssub.s32 1, %s4
  %s7 = scalar_select 0, %s6, %s4
  loop: start=0, step=1, limit=4
  $region2: #{dilated_stack.1} parent=0 // loop_pre_header
    _
  $region3: #{dilated_stack.1} parent=0 // loop_header
    %s9 = sphi 0, %s13
    %p10 = scmp.ge.s32.totalorder %s9, 4
    %s19 = sphi 0, %s21
    %s22 = sphi 0, %s19
    %s23 = sphi 0, %s22
    %s39 = sphi 0, %s23
    %s43 = sphi 0, %s43
    %s45 = sphi 0, %s43
    %s46 = sphi 0, %s45
    %s60 = sphi 0, %s46
    %s64 = sphi 0, %s64
    %s66 = sphi 0, %s64
    %s67 = sphi 0, %s66
    %s81 = sphi 0, %s67
    %s87 = sphi 0, %s89
    %s90 = sphi 0, %s87
    %s91 = sphi 0, %s90
    %s107 = sphi 0, %s91
  $region4: #{dilated_stack.1} parent=0 // loop_header_branch
    %12 = sbr.rel (%p10) target = $region8
  $region5: #{dilated_stack.1} parent=0 // loop_body
    %s14 = ssub.s32 %s9, 1
    %s15 = ssub.s32 %s9, 2
    %s16 = sadd.s32 %s9, 1
    %s17 = ssub.s32 %s9, %s16
    %p18 = scmp.eq.s32.totalorder %s17, 0
    %s20 = sadd.s32 %s19, 1
    %s21 = scalar_select %p18, %s19, %s20
    %p24 = pneg %p18
    %p25 = scmp.eq.s32.totalorder %s9, 1
    %p26 = por %p24, %p25
    %p27 = scmp.ne.s32.totalorder %s19, %s22
    %p28 = scmp.eq.s32.totalorder %s9, 0
    %p29 = por %p27, %p28
    %p30 = scmp.ne.s32.totalorder %s19, %s22
    %p31 = scmp.eq.s32.totalorder %s14, 1
    %p32 = por %p30, %p31
    %p33 = scmp.ne.s32.totalorder %s22, %s23
    %p34 = scmp.eq.s32.totalorder %s14, 0
    %p35 = por %p33, %p34
    %p36 = scmp.ne.s32.totalorder %s22, %s23
    %p37 = scmp.eq.s32.totalorder %s15, 1
    %p38 = por %p36, %p37
    %p40 = scmp.ne.s32.totalorder %s23, %s39
    %p41 = scmp.eq.s32.totalorder %s15, 0
    %p42 = por %p40, %p41
    %s44 = sadd.s32 %s43, 1
    %p47 = scmp.eq.s32.totalorder %s9, 1
    %p48 = scmp.ne.s32.totalorder %s43, %s45
    %p49 = scmp.eq.s32.totalorder %s9, 0
    %p50 = por %p48, %p49
    %p51 = scmp.ne.s32.totalorder %s43, %s45
    %p52 = scmp.eq.s32.totalorder %s14, 1
    %p53 = por %p51, %p52
    %p54 = scmp.ne.s32.totalorder %s45, %s46
    %p55 = scmp.eq.s32.totalorder %s14, 0
    %p56 = por %p54, %p55
    %p57 = scmp.ne.s32.totalorder %s45, %s46
    %p58 = scmp.eq.s32.totalorder %s15, 1
    %p59 = por %p57, %p58
    %p61 = scmp.ne.s32.totalorder %s46, %s60
    %p62 = scmp.eq.s32.totalorder %s15, 0
    %p63 = por %p61, %p62
    %s65 = sadd.s32 %s64, 1
    %p68 = scmp.eq.s32.totalorder %s9, 1
    %p69 = scmp.ne.s32.totalorder %s64, %s66
    %p70 = scmp.eq.s32.totalorder %s9, 0
    %p71 = por %p69, %p70
    %p72 = scmp.ne.s32.totalorder %s64, %s66
    %p73 = scmp.eq.s32.totalorder %s14, 1
    %p74 = por %p72, %p73
    %p75 = scmp.ne.s32.totalorder %s66, %s67
    %p76 = scmp.eq.s32.totalorder %s14, 0
    %p77 = por %p75, %p76
    %p78 = scmp.ne.s32.totalorder %s66, %s67
    %p79 = scmp.eq.s32.totalorder %s15, 1
    %p80 = por %p78, %p79
    %p82 = scmp.ne.s32.totalorder %s67, %s81
    %p83 = scmp.eq.s32.totalorder %s15, 0
    %p84 = por %p82, %p83
    %s85 = ssub.s32 %s9, %s16
    %p86 = scmp.eq.s32.totalorder %s85, 0
    %s88 = sadd.s32 %s87, 1
    %s89 = scalar_select %p86, %s87, %s88
    %p92 = pneg %p86
    %p93 = scmp.eq.s32.totalorder %s9, 1
    %p94 = por %p92, %p93
    %p95 = scmp.ne.s32.totalorder %s87, %s90
    %p96 = scmp.eq.s32.totalorder %s9, 0
    %p97 = por %p95, %p96
    %p98 = scmp.ne.s32.totalorder %s87, %s90
    %p99 = scmp.eq.s32.totalorder %s14, 1
    %p100 = por %p98, %p99
    %p101 = scmp.ne.s32.totalorder %s90, %s91
    %p102 = scmp.eq.s32.totalorder %s14, 0
    %p103 = por %p101, %p102
    %p104 = scmp.ne.s32.totalorder %s90, %s91
    %p105 = scmp.eq.s32.totalorder %s15, 1
    %p106 = por %p104, %p105
    %p108 = scmp.ne.s32.totalorder %s91, %s107
    %p109 = scmp.eq.s32.totalorder %s15, 0
    %p110 = por %p108, %p109
    %p111 = scmp.le.s32.totalorder 1, %s9
    %p112 = scmp.lt.s32.totalorder %s9, 3
    %p113 = pnand %p111, %p112
    %p114 = pneg %p113
    // Predicated region
    $region9: #{dilated_stack.1} parent=5 // pred_check
      _
    $region10: #{dilated_stack.1} parent=5 // pred_check_branch
      %116 = sbr.rel (%p113) target = $region12
    $region11: #{dilated_stack.1} parent=5 // pred_region
      %s117 = ssub.s32 %s9, 1
      // Predicated region
      $region13: #{dilated_stack.1} parent=11 // pred_check
        %p118 = pneg %p56
      $region14: #{dilated_stack.1} parent=11 // pred_check_branch
        %120 = sbr.rel (%p118) target = $region16
      $region15: #{dilated_stack.1} parent=11 // pred_region
        _
      $region16: #{dilated_stack.1} parent=11 // pred_fallthru
        _
      // Predicated region
      $region17: #{dilated_stack.1} parent=11 // pred_check
        %p121 = pneg %p77
      $region18: #{dilated_stack.1} parent=11 // pred_check_branch
        %123 = sbr.rel (%p121) target = $region20
      $region19: #{dilated_stack.1} parent=11 // pred_region
        _
      $region20: #{dilated_stack.1} parent=11 // pred_fallthru
        _
    $region12: #{dilated_stack.1} parent=5 // pred_fallthru
      _
    %p124 = scmp.lt.s32.totalorder %s9, 2
    // Predicated region
    $region21: #{dilated_stack.1} parent=5 // pred_check
      %p125 = pneg %p124
    $region22: #{dilated_stack.1} parent=5 // pred_check_branch
      %127 = sbr.rel (%p125) target = $region24
    $region23: #{dilated_stack.1} parent=5 // pred_region
      // Predicated region
      $region25: #{dilated_stack.1} parent=23 // pred_check
        %p128 = pneg %p29
      $region26: #{dilated_stack.1} parent=23 // pred_check_branch
        %130 = sbr.rel (%p128) target = $region28
      $region27: #{dilated_stack.1} parent=23 // pred_region
        %p131 = scmp.lt.s32.totalorder %s9, 1
        %s132 = scalar_select %p131, %s9, 1
        %s133 = smul.addr %s132, 44
        %s134 = smul.addr %s133, 4
        %s135 = scalar_lea.vmem %s0, %s134
      $region28: #{dilated_stack.1} parent=23 // pred_fallthru
        _
    $region24: #{dilated_stack.1} parent=5 // pred_fallthru
      _
    %p136 = scmp.le.s32.totalorder 1, %s9
    %p137 = scmp.lt.s32.totalorder %s9, 3
    %p138 = pnand %p136, %p137
    %p139 = pneg %p138
    // Predicated region
    $region29: #{dilated_stack.1} parent=5 // pred_check
      _
    $region30: #{dilated_stack.1} parent=5 // pred_check_branch
      %141 = sbr.rel (%p138) target = $region32
    $region31: #{dilated_stack.1} parent=5 // pred_region
      %s142 = ssub.s32 %s9, 1
      %p143 = scmp.lt.s32.totalorder %s14, 1
      %s144 = scalar_select %p143, %s14, 1
      %s145 = smul.addr %s144, 44
      %s146 = smul.addr %s145, 4
      %s147 = scalar_lea.vmem %s0, %s146
      %p148 = pneg %p35
      %p149 = pneg %p32
      %p150 = pneg %p56
      %p151 = pneg %p53
      %p152 = pneg %p77
      %p153 = pneg %p74
      %p154 = pneg %p103
      %p155 = pneg %p100
      %p156 = scmp.lt.s32.totalorder %s14, 1
      %s157 = scalar_select %p156, %s14, 1
      %s158 = smul.addr %s157, 34
      %s159 = smul.addr %s158, 8
      %s160 = scalar_lea.vmem %s3, %s159
      %p161 = scmp.lt.s32.totalorder %s14, 1
      %s162 = scalar_select %p161, %s14, 1
      %s163 = smul.addr %s162, 44
      %s164 = smul.addr %s163, 4
      %s165 = scalar_lea.vmem %s0, %s164
      %p166 = scmp.lt.s32.totalorder %s14, 1
      %s167 = scalar_select %p166, %s14, 1
      %s168 = smul.addr %s167, 34
      %s169 = smul.addr %s168, 8
      %s170 = scalar_lea.vmem %s3, %s169
      %172 = vst [vmem:[#allocation2] sm:$0xff] 0
      %173 = vst [vmem:[#allocation2 + $0x8] sm:$0xff] 0
      %174 = vst [vmem:[#allocation2 + $0x10] sm:$0xff] 0
      %175 = vst [vmem:[#allocation2 + $0x18] sm:$0xff] 0
      %176 = vst [vmem:[#allocation2 + $0x20] sm:$0xff] 0
      %177 = vst [vmem:[#allocation2 + $0x28] sm:$0xff] 0
      %178 = vst [vmem:[#allocation2 + $0x30] sm:$0xff] 0
      %179 = vst [vmem:[#allocation2 + $0x38] sm:$0xff] 0
      %180 = vst [vmem:[#allocation2 + $0x40] sm:$0xff] 0
      %181 = vst [vmem:[#allocation2 + $0x48] sm:$0xff] 0
      %182 = vst [vmem:[#allocation2 + $0x50] sm:$0xff] 0
      %183 = vst [vmem:[#allocation2 + $0x58] sm:$0xff] 0
      %184 = vst [vmem:[#allocation2 + $0x60] sm:$0xff] 0
      %185 = vst [vmem:[#allocation2 + $0x68] sm:$0xff] 0
      %186 = vst [vmem:[#allocation2 + $0x70] sm:$0xff] 0
      %187 = vst [vmem:[#allocation2 + $0x78] sm:$0xff] 0
      %188 = vst [vmem:[#allocation2 + $0x80] sm:$0xff] 0
      %189 = vst [vmem:[#allocation2 + $0x88] sm:$0xff] 0
      %190 = vst [vmem:[#allocation2 + $0x90] sm:$0xff] 0
      %191 = vst [vmem:[#allocation2 + $0x98] sm:$0xff] 0
      %192 = vst [vmem:[#allocation2 + $0xa0] sm:$0xff] 0
      %193 = vst [vmem:[#allocation2 + $0xa8] sm:$0x77] 0
      %194 = vst [vmem:[#allocation3] sm:$0xff] 0
      %195 = vst [vmem:[#allocation3 + $0x8] sm:$0xff] 0
      %196 = vst [vmem:[#allocation3 + $0x10] sm:$0xff] 0
      %197 = vst [vmem:[#allocation3 + $0x18] sm:$0xff] 0
      %198 = vst [vmem:[#allocation3 + $0x20] sm:$0xff] 0
      %199 = vst [vmem:[#allocation3 + $0x28] sm:$0xff] 0
      %200 = vst [vmem:[#allocation3 + $0x30] sm:$0xff] 0
      %201 = vst [vmem:[#allocation3 + $0x38] sm:$0xff] 0
      %202 = vst [vmem:[#allocation3 + $0x40] sm:$0xff] 0
      %203 = vst [vmem:[#allocation3 + $0x48] sm:$0xff] 0
      %204 = vst [vmem:[#allocation3 + $0x50] sm:$0xff] 0
      %205 = vst [vmem:[#allocation3 + $0x58] sm:$0xff] 0
      %206 = vst [vmem:[#allocation3 + $0x60] sm:$0xff] 0
      %207 = vst [vmem:[#allocation3 + $0x68] sm:$0xff] 0
      %208 = vst [vmem:[#allocation3 + $0x70] sm:$0xff] 0
      %209 = vst [vmem:[#allocation3 + $0x78] sm:$0xff] 0
      %210 = vst [vmem:[#allocation3 + $0x80] sm:$0xff] 0
      %211 = vst [vmem:[#allocation3 + $0x88] sm:$0xff] 0
      %212 = vst [vmem:[#allocation3 + $0x90] sm:$0xff] 0
      %213 = vst [vmem:[#allocation3 + $0x98] sm:$0xff] 0
      %214 = vst [vmem:[#allocation3 + $0xa0] sm:$0xff] 0
      %215 = vst [vmem:[#allocation3 + $0xa8] sm:$0x77] 0
      %v216 = vld [vmem:[%s165] sm:$0xff]
      %v217 = vld [vmem:[%s165 + $0x8] sm:$0xff]
      %v218 = vld [vmem:[%s165 + $0x10] sm:$0xff]
      %v219 = vld [vmem:[%s165 + $0x18] sm:$0xff]
      %v220 = vld [vmem:[%s165 + $0x20] sm:$0xff]
      %v221 = vld [vmem:[%s165 + $0x28] sm:$0xff]
      %v222 = vld [vmem:[%s165 + $0x30] sm:$0xff]
      %v223 = vld [vmem:[%s165 + $0x38] sm:$0xff]
      %v224 = vld [vmem:[%s165 + $0x40] sm:$0xff]
      %v225 = vld [vmem:[%s165 + $0x48] sm:$0xff]
      %v226 = vld [vmem:[%s165 + $0x50] sm:$0xff]
      %v227 = vld [vmem:[%s165 + $0x58] sm:$0xff]
      %v228 = vld [vmem:[%s165 + $0x60] sm:$0xff]
      %v229 = vld [vmem:[%s165 + $0x68] sm:$0xff]
      %v230 = vld [vmem:[%s165 + $0x70] sm:$0xff]
      %v231 = vld [vmem:[%s165 + $0x78] sm:$0xff]
      %v232 = vld [vmem:[%s165 + $0x80] sm:$0xff]
      %v233 = vld [vmem:[%s165 + $0x88] sm:$0xff]
      %v234 = vld [vmem:[%s165 + $0x90] sm:$0xff]
      %v235 = vld [vmem:[%s165 + $0x98] sm:$0xff]
      %v236 = vld [vmem:[%s165 + $0xa0] sm:$0xff]
      %v237 = vld [vmem:[%s165 + $0xa8] sm:$0x11]
      %v238 = vld [vmem:[%s1] sm:$0xff]
      %v239 = vld [vmem:[%s1 + $0x8] sm:$0xff]
      %v240 = vld [vmem:[%s1 + $0x10] sm:$0xff]
      %v241 = vld [vmem:[%s1 + $0x18] sm:$0xff]
      %v242 = vld [vmem:[%s1 + $0x20] sm:$0xff]
      %v243 = vld [vmem:[%s1 + $0x28] sm:$0xff]
      %v244 = vld [vmem:[%s1 + $0x30] sm:$0xff]
      %v245 = vld [vmem:[%s1 + $0x38] sm:$0xff]
      %v246 = vld [vmem:[%s1 + $0x40] sm:$0xff]
      %v247 = vld [vmem:[%s1 + $0x48] sm:$0xff]
      %v248 = vld [vmem:[%s1 + $0x50] sm:$0xff]
      %v249 = vld [vmem:[%s1 + $0x58] sm:$0xff]
      %v250 = vld [vmem:[%s1 + $0x60] sm:$0xff]
      %v251 = vld [vmem:[%s1 + $0x68] sm:$0xff]
      %v252 = vld [vmem:[%s1 + $0x70] sm:$0xff]
      %v253 = vld [vmem:[%s1 + $0x78] sm:$0xff]
      %v254 = vld [vmem:[%s1 + $0x80] sm:$0xff]
      %v255 = vld [vmem:[%s1 + $0x88] sm:$0xff]
      %v256 = vld [vmem:[%s1 + $0x90] sm:$0xff]
      %v257 = vld [vmem:[%s1 + $0x98] sm:$0xff]
      %v258 = vld [vmem:[%s1 + $0xa0] sm:$0xff]
      %v259 = vld [vmem:[%s1 + $0xa8] sm:$0xff]
      %v260 = vld [vmem:[%s1 + $0xb0] sm:$0xff]
      %v261 = vld [vmem:[%s1 + $0xb8] sm:$0xff]
      %v262 = vld [vmem:[%s1 + $0xc0] sm:$0xff]
      %v263 = vld [vmem:[%s1 + $0xc8] sm:$0xff]
      %v264 = vld [vmem:[%s1 + $0xd0] sm:$0xff]
      %v265 = vld [vmem:[%s1 + $0xd8] sm:$0xff]
      %v266 = vld [vmem:[%s1 + $0xe0] sm:$0xff]
      %v267 = vld [vmem:[%s1 + $0xe8] sm:$0xff]
      %v268 = vld [vmem:[%s1 + $0xf0] sm:$0xff]
      %v269 = vld [vmem:[%s1 + $0xf8] sm:$0xff]
      %v270 = vld [vmem:[%s165 + $0xa8] sm:$0x33]
      %s271 = scalar_lea.vmem %s1, 256
      %v272 = vld [vmem:[%s271] sm:$0xff]
      %v273 = vld [vmem:[%s271 + $0x8] sm:$0xff]
      %v274 = vld [vmem:[%s271 + $0x10] sm:$0xff]
      %v275 = vld [vmem:[%s271 + $0x18] sm:$0xff]
      %v276 = vld [vmem:[%s271 + $0x20] sm:$0xff]
      %v277 = vld [vmem:[%s271 + $0x28] sm:$0xff]
      %v278 = vld [vmem:[%s271 + $0x30] sm:$0xff]
      %v279 = vld [vmem:[%s271 + $0x38] sm:$0xff]
      %v280 = vld [vmem:[%s271 + $0x40] sm:$0xff]
      %v281 = vld [vmem:[%s271 + $0x48] sm:$0xff]
      %v282 = vld [vmem:[%s271 + $0x50] sm:$0xff]
      %v283 = vld [vmem:[%s271 + $0x58] sm:$0xff]
      %v284 = vld [vmem:[%s271 + $0x60] sm:$0xff]
      %v285 = vld [vmem:[%s271 + $0x68] sm:$0xff]
      %v286 = vld [vmem:[%s271 + $0x70] sm:$0xff]
      %v287 = vld [vmem:[%s271 + $0x78] sm:$0xff]
      %v288 = vld [vmem:[%s271 + $0x80] sm:$0xff]
      %v289 = vld [vmem:[%s271 + $0x88] sm:$0xff]
      %v290 = vld [vmem:[%s271 + $0x90] sm:$0xff]
      %v291 = vld [vmem:[%s271 + $0x98] sm:$0xff]
      %v292 = vld [vmem:[%s271 + $0xa0] sm:$0xff]
      %v293 = vld [vmem:[%s271 + $0xa8] sm:$0xff]
      %v294 = vld [vmem:[%s271 + $0xb0] sm:$0xff]
      %v295 = vld [vmem:[%s271 + $0xb8] sm:$0xff]
      %v296 = vld [vmem:[%s271 + $0xc0] sm:$0xff]
      %v297 = vld [vmem:[%s271 + $0xc8] sm:$0xff]
      %v298 = vld [vmem:[%s271 + $0xd0] sm:$0xff]
      %v299 = vld [vmem:[%s271 + $0xd8] sm:$0xff]
      %v300 = vld [vmem:[%s271 + $0xe0] sm:$0xff]
      %v301 = vld [vmem:[%s271 + $0xe8] sm:$0xff]
      %v302 = vld [vmem:[%s271 + $0xf0] sm:$0xff]
      %v303 = vld [vmem:[%s271 + $0xf8] sm:$0xff]
      %v326 = vunpack.c.l.b16 %v216
      %v327 = vunpack.c.h.b16 %v216
      %v328 = vunpack.c.l.b16 %v217
      %v329 = vunpack.c.h.b16 %v217
      %v330 = vunpack.c.l.b16 %v218
      %v331 = vunpack.c.h.b16 %v218
      %v332 = vunpack.c.l.b16 %v219
      %v333 = vunpack.c.h.b16 %v219
      %v334 = vunpack.c.l.b16 %v220
      %v335 = vunpack.c.h.b16 %v220
      %v336 = vunpack.c.l.b16 %v221
      %v337 = vunpack.c.h.b16 %v221
      %v338 = vunpack.c.l.b16 %v222
      %v339 = vunpack.c.h.b16 %v222
      %v340 = vunpack.c.l.b16 %v223
      %v341 = vunpack.c.h.b16 %v223
      %v342 = vunpack.c.l.b16 %v224
      %v343 = vunpack.c.h.b16 %v224
      %v344 = vunpack.c.l.b16 %v225
      %v345 = vunpack.c.h.b16 %v225
      %v346 = vunpack.c.l.b16 %v226
      %v347 = vunpack.c.h.b16 %v226
      %v348 = vunpack.c.l.b16 %v227
      %v349 = vunpack.c.h.b16 %v227
      %v350 = vunpack.c.l.b16 %v228
      %v351 = vunpack.c.h.b16 %v228
      %v352 = vunpack.c.l.b16 %v229
      %v353 = vunpack.c.h.b16 %v229
      %v354 = vunpack.c.l.b16 %v230
      %v355 = vunpack.c.h.b16 %v230
      %v356 = vunpack.c.l.b16 %v231
      %v357 = vunpack.c.h.b16 %v231
      %v358 = vunpack.c.l.b16 %v232
      %v359 = vunpack.c.h.b16 %v232
      %v360 = vunpack.c.l.b16 %v233
      %v361 = vunpack.c.h.b16 %v233
      %v362 = vunpack.c.l.b16 %v234
      %v363 = vunpack.c.h.b16 %v234
      %v364 = vunpack.c.l.b16 %v235
      %v365 = vunpack.c.h.b16 %v235
      %v366 = vunpack.c.l.b16 %v236
      %v367 = vunpack.c.h.b16 %v236
      %v368 = vunpack.c.l.b16 %v270
      %v369 = vunpack.c.h.b16 %v270
      %v370 = vpack.c.b16 %v328, %v326
      %v371 = vpack.c.b16 %v329, %v327
      %v372 = vpack.c.b16 %v332, %v330
      %v373 = vpack.c.b16 %v333, %v331
      %v374 = vpack.c.b16 %v336, %v334
      %v375 = vpack.c.b16 %v337, %v335
      %v376 = vpack.c.b16 %v340, %v338
      %v377 = vpack.c.b16 %v341, %v339
      %v378 = vpack.c.b16 %v344, %v342
      %v379 = vpack.c.b16 %v345, %v343
      %v380 = vpack.c.b16 %v348, %v346
      %v381 = vpack.c.b16 %v349, %v347
      %v382 = vpack.c.b16 %v352, %v350
      %v383 = vpack.c.b16 %v353, %v351
      %v384 = vpack.c.b16 %v356, %v354
      %v385 = vpack.c.b16 %v357, %v355
      %v386 = vpack.c.b16 %v360, %v358
      %v387 = vpack.c.b16 %v361, %v359
      %v388 = vpack.c.b16 %v364, %v362
      %v389 = vpack.c.b16 %v365, %v363
      %v390 = vpack.c.b16 %v368, %v366
      %v391 = vpack.c.b16 %v369, %v367
      %vm392 = vsmask.f32 7424
      %v394 = vshrl.u32 %v370, 16
      %v396 = vshll.u32 %v370, 16
      %v398 = vrot.slane %v396, 1
      %v399 = vor.u32 %v394, %v398
      %v401 = vshll.u32 %v372, 16
      %v403 = vrot.slane %v401, 1
      %v404 = vsel %vm392, %v399, %v403
      %v406 = vshrl.u32 %v371, 16
      %v408 = vshll.u32 %v371, 16
      %v410 = vrot.slane %v408, 1
      %v411 = vor.u32 %v406, %v410
      %v413 = vshll.u32 %v373, 16
      %v415 = vrot.slane %v413, 1
      %v416 = vsel %vm392, %v411, %v415
      %v417 = vshrl.u32 %v372, 16
      %v419 = vor.u32 %v417, %v403
      %v421 = vshll.u32 %v374, 16
      %v423 = vrot.slane %v421, 1
      %v424 = vsel %vm392, %v419, %v423
      %v425 = vshrl.u32 %v373, 16
      %v427 = vor.u32 %v425, %v415
      %v429 = vshll.u32 %v375, 16
      %v431 = vrot.slane %v429, 1
      %v432 = vsel %vm392, %v427, %v431
      %v433 = vshrl.u32 %v374, 16
      %v435 = vor.u32 %v433, %v423
      %v437 = vshll.u32 %v376, 16
      %v439 = vrot.slane %v437, 1
      %v440 = vsel %vm392, %v435, %v439
      %v441 = vshrl.u32 %v375, 16
      %v443 = vor.u32 %v441, %v431
      %v445 = vshll.u32 %v377, 16
      %v447 = vrot.slane %v445, 1
      %v448 = vsel %vm392, %v443, %v447
      %v449 = vshrl.u32 %v376, 16
      %v451 = vor.u32 %v449, %v439
      %v453 = vshll.u32 %v378, 16
      %v455 = vrot.slane %v453, 1
      %v456 = vsel %vm392, %v451, %v455
      %v457 = vshrl.u32 %v377, 16
      %v459 = vor.u32 %v457, %v447
      %v461 = vshll.u32 %v379, 16
      %v463 = vrot.slane %v461, 1
      %v464 = vsel %vm392, %v459, %v463
      %v465 = vshrl.u32 %v378, 16
      %v467 = vor.u32 %v465, %v455
      %v469 = vshll.u32 %v380, 16
      %v471 = vrot.slane %v469, 1
      %v472 = vsel %vm392, %v467, %v471
      %v473 = vshrl.u32 %v379, 16
      %v475 = vor.u32 %v473, %v463
      %v477 = vshll.u32 %v381, 16
      %v479 = vrot.slane %v477, 1
      %v480 = vsel %vm392, %v475, %v479
      %v481 = vshrl.u32 %v380, 16
      %v483 = vor.u32 %v481, %v471
      %v485 = vshll.u32 %v382, 16
      %v487 = vrot.slane %v485, 1
      %v488 = vsel %vm392, %v483, %v487
      %v489 = vshrl.u32 %v381, 16
      %v491 = vor.u32 %v489, %v479
      %v493 = vshll.u32 %v383, 16
      %v495 = vrot.slane %v493, 1
      %v496 = vsel %vm392, %v491, %v495
      %v497 = vshrl.u32 %v382, 16
      %v499 = vor.u32 %v497, %v487
      %v501 = vshll.u32 %v384, 16
      %v503 = vrot.slane %v501, 1
      %v504 = vsel %vm392, %v499, %v503
      %v505 = vshrl.u32 %v383, 16
      %v507 = vor.u32 %v505, %v495
      %v509 = vshll.u32 %v385, 16
      %v511 = vrot.slane %v509, 1
      %v512 = vsel %vm392, %v507, %v511
      %v513 = vshrl.u32 %v384, 16
      %v515 = vor.u32 %v513, %v503
      %v517 = vshll.u32 %v386, 16
      %v519 = vrot.slane %v517, 1
      %v520 = vsel %vm392, %v515, %v519
      %v521 = vshrl.u32 %v385, 16
      %v523 = vor.u32 %v521, %v511
      %v525 = vshll.u32 %v387, 16
      %v527 = vrot.slane %v525, 1
      %v528 = vsel %vm392, %v523, %v527
      %v529 = vshrl.u32 %v386, 16
      %v531 = vor.u32 %v529, %v519
      %v533 = vshll.u32 %v388, 16
      %v535 = vrot.slane %v533, 1
      %v536 = vsel %vm392, %v531, %v535
      %v537 = vshrl.u32 %v387, 16
      %v539 = vor.u32 %v537, %v527
      %v541 = vshll.u32 %v389, 16
      %v543 = vrot.slane %v541, 1
      %v544 = vsel %vm392, %v539, %v543
      %v545 = vshrl.u32 %v388, 16
      %v547 = vor.u32 %v545, %v535
      %v549 = vshll.u32 %v390, 16
      %v551 = vrot.slane %v549, 1
      %v552 = vsel %vm392, %v547, %v551
      %v553 = vshrl.u32 %v389, 16
      %v555 = vor.u32 %v553, %v543
      %v557 = vshll.u32 %v391, 16
      %v559 = vrot.slane %v557, 1
      %v560 = vsel %vm392, %v555, %v559
      %v561 = vshrl.u32 %v390, 16
      %v563 = vor.u32 %v561, %v551
      %v564 = vshrl.u32 %v391, 16
      %v566 = vor.u32 %v564, %v559
      %v621 = vunpack.c.l.b16 %v272
      %v622 = vunpack.c.h.b16 %v272
      %v623 = vunpack.c.l.b16 %v273
      %v624 = vunpack.c.h.b16 %v273
      %v625 = vunpack.c.l.b16 %v274
      %v626 = vunpack.c.h.b16 %v274
      %v627 = vunpack.c.l.b16 %v275
      %v628 = vunpack.c.h.b16 %v275
      %v629 = vunpack.c.l.b16 %v276
      %v630 = vunpack.c.h.b16 %v276
      %v631 = vunpack.c.l.b16 %v277
      %v632 = vunpack.c.h.b16 %v277
      %v633 = vunpack.c.l.b16 %v278
      %v634 = vunpack.c.h.b16 %v278
      %v635 = vunpack.c.l.b16 %v279
      %v636 = vunpack.c.h.b16 %v279
      %v637 = vunpack.c.l.b16 %v280
      %v638 = vunpack.c.h.b16 %v280
      %v639 = vunpack.c.l.b16 %v281
      %v640 = vunpack.c.h.b16 %v281
      %v641 = vunpack.c.l.b16 %v282
      %v642 = vunpack.c.h.b16 %v282
      %v643 = vunpack.c.l.b16 %v283
      %v644 = vunpack.c.h.b16 %v283
      %v645 = vunpack.c.l.b16 %v284
      %v646 = vunpack.c.h.b16 %v284
      %v647 = vunpack.c.l.b16 %v285
      %v648 = vunpack.c.h.b16 %v285
      %v649 = vunpack.c.l.b16 %v286
      %v650 = vunpack.c.h.b16 %v286
      %v651 = vunpack.c.l.b16 %v287
      %v652 = vunpack.c.h.b16 %v287
      %v653 = vunpack.c.l.b16 %v288
      %v654 = vunpack.c.h.b16 %v288
      %v655 = vunpack.c.l.b16 %v289
      %v656 = vunpack.c.h.b16 %v289
      %v657 = vunpack.c.l.b16 %v290
      %v658 = vunpack.c.h.b16 %v290
      %v659 = vunpack.c.l.b16 %v291
      %v660 = vunpack.c.h.b16 %v291
      %v661 = vunpack.c.l.b16 %v292
      %v662 = vunpack.c.h.b16 %v292
      %v663 = vunpack.c.l.b16 %v293
      %v664 = vunpack.c.h.b16 %v293
      %v665 = vunpack.c.l.b16 %v294
      %v666 = vunpack.c.h.b16 %v294
      %v667 = vunpack.c.l.b16 %v295
      %v668 = vunpack.c.h.b16 %v295
      %v669 = vunpack.c.l.b16 %v296
      %v670 = vunpack.c.h.b16 %v296
      %v671 = vunpack.c.l.b16 %v297
      %v672 = vunpack.c.h.b16 %v297
      %v673 = vunpack.c.l.b16 %v298
      %v674 = vunpack.c.h.b16 %v298
      %v675 = vunpack.c.l.b16 %v299
      %v676 = vunpack.c.h.b16 %v299
      %v677 = vunpack.c.l.b16 %v300
      %v678 = vunpack.c.h.b16 %v300
      %v679 = vunpack.c.l.b16 %v301
      %v680 = vunpack.c.h.b16 %v301
      %v681 = vunpack.c.l.b16 %v302
      %v682 = vunpack.c.h.b16 %v302
      %v683 = vunpack.c.l.b16 %v303
      %v684 = vunpack.c.h.b16 %v303
      %v685 = vpack.c.b16 %v623, %v621
      %v686 = vpack.c.b16 %v624, %v622
      %v687 = vpack.c.b16 %v627, %v625
      %v688 = vpack.c.b16 %v628, %v626
      %v689 = vpack.c.b16 %v631, %v629
      %v690 = vpack.c.b16 %v632, %v630
      %v691 = vpack.c.b16 %v635, %v633
      %v692 = vpack.c.b16 %v636, %v634
      %v693 = vpack.c.b16 %v639, %v637
      %v694 = vpack.c.b16 %v640, %v638
      %v695 = vpack.c.b16 %v643, %v641
      %v696 = vpack.c.b16 %v644, %v642
      %v697 = vpack.c.b16 %v647, %v645
      %v698 = vpack.c.b16 %v648, %v646
      %v699 = vpack.c.b16 %v651, %v649
      %v700 = vpack.c.b16 %v652, %v650
      %v701 = vpack.c.b16 %v655, %v653
      %v702 = vpack.c.b16 %v656, %v654
      %v703 = vpack.c.b16 %v659, %v657
      %v704 = vpack.c.b16 %v660, %v658
      %v705 = vpack.c.b16 %v663, %v661
      %v706 = vpack.c.b16 %v664, %v662
      %v707 = vpack.c.b16 %v667, %v665
      %v708 = vpack.c.b16 %v668, %v666
      %v709 = vpack.c.b16 %v671, %v669
      %v710 = vpack.c.b16 %v672, %v670
      %v711 = vpack.c.b16 %v675, %v673
      %v712 = vpack.c.b16 %v676, %v674
      %v713 = vpack.c.b16 %v679, %v677
      %v714 = vpack.c.b16 %v680, %v678
      %v715 = vpack.c.b16 %v683, %v681
      %v716 = vpack.c.b16 %v684, %v682
      %749 = vmatprep.subr.bf16.mxu0 %v686
      %750 = vmatpush1.bf16.msra.mxu0 %v685
      %751 = vmatprep.subr.bf16.mxu0 %v688
      %752 = vmatpush1.bf16.msra.mxu0 %v687
      %753 = vmatprep.subr.bf16.mxu0 %v690
      %754 = vmatpush1.bf16.msra.mxu0 %v689
      %755 = vmatprep.subr.bf16.mxu0 %v692
      %756 = vmatpush1.bf16.msra.mxu0 %v691
      %757 = vmatprep.subr.bf16.mxu0 %v694
      %758 = vmatpush1.bf16.msra.mxu0 %v693
      %759 = vmatprep.subr.bf16.mxu0 %v696
      %760 = vmatpush1.bf16.msra.mxu0 %v695
      %761 = vmatprep.subr.bf16.mxu0 %v698
      %762 = vmatpush1.bf16.msra.mxu0 %v697
      %763 = vmatprep.subr.bf16.mxu0 %v700
      %764 = vmatpush1.bf16.msra.mxu0 %v699
      %765 = vmatprep.subr.bf16.mxu0 %v702
      %766 = vmatpush1.bf16.msra.mxu0 %v701
      %767 = vmatprep.subr.bf16.mxu0 %v704
      %768 = vmatpush1.bf16.msra.mxu0 %v703
      %769 = vmatprep.subr.bf16.mxu0 %v706
      %770 = vmatpush1.bf16.msra.mxu0 %v705
      %771 = vmatprep.subr.bf16.mxu0 %v708
      %772 = vmatpush1.bf16.msra.mxu0 %v707
      %773 = vmatprep.subr.bf16.mxu0 %v710
      %774 = vmatpush1.bf16.msra.mxu0 %v709
      %775 = vmatprep.subr.bf16.mxu0 %v712
      %776 = vmatpush1.bf16.msra.mxu0 %v711
      %777 = vmatprep.subr.bf16.mxu0 %v714
      %778 = vmatpush1.bf16.msra.mxu0 %v713
      %779 = vmatprep.subr.bf16.mxu0 %v716
      %780 = vmatpush1.bf16.msra.mxu0 %v715
      %781 = vmatprep.mubr.bf16.mxu0 %v416
      %782 = vmatmul.mubr.bf16.gmra.mrb[0].mxu0 %v404
      %v783 = vpop.f32.mrb[0].mxu0
      %v784 = vadd.f32 0.0, %v783
      %v785 = vpop.f32.mrb[0].mxu0
      %v786 = vadd.f32 0.0, %v785
      %v787 = vpop.f32.mrb[0].mxu0
      %v788 = vadd.f32 0.0, %v787
      %v789 = vpop.f32.mrb[0].mxu0
      %v790 = vadd.f32 0.0, %v789
      %791 = vmatprep.mubr.bf16.mxu0 %v432
      %792 = vmatmul.mubr.bf16.gmra.mrb[0].mxu0 %v424
      %v793 = vpop.f32.mrb[0].mxu0
      %v794 = vadd.f32 0.0, %v793
      %v795 = vpop.f32.mrb[0].mxu0
      %v796 = vadd.f32 0.0, %v795
      %v797 = vpop.f32.mrb[0].mxu0
      %v798 = vadd.f32 0.0, %v797
      %v799 = vpop.f32.mrb[0].mxu0
      %v800 = vadd.f32 0.0, %v799
      %801 = vmatprep.mubr.bf16.mxu0 %v448
      %802 = vmatmul.mubr.bf16.gmra.mrb[0].mxu0 %v440
      %v803 = vpop.f32.mrb[0].mxu0
      %v804 = vadd.f32 0.0, %v803
      %v805 = vpop.f32.mrb[0].mxu0
      %v806 = vadd.f32 0.0, %v805
      %v807 = vpop.f32.mrb[0].mxu0
      %v808 = vadd.f32 0.0, %v807
      %v809 = vpop.f32.mrb[0].mxu0
      %v810 = vadd.f32 0.0, %v809
      %811 = vmatprep.mubr.bf16.mxu0 %v464
      %812 = vmatmul.mubr.bf16.gmra.mrb[0].mxu0 %v456
      %v813 = vpop.f32.mrb[0].mxu0
      %v814 = vadd.f32 0.0, %v813
      %v815 = vpop.f32.mrb[0].mxu0
      %v816 = vadd.f32 0.0, %v815
      %v817 = vpop.f32.mrb[0].mxu0
      %v818 = vadd.f32 0.0, %v817
      %v819 = vpop.f32.mrb[0].mxu0
      %v820 = vadd.f32 0.0, %v819
      %821 = vmatprep.mubr.bf16.mxu0 %v480
      %822 = vmatmul.mubr.bf16.gmra.mrb[0].mxu0 %v472
      %v823 = vpop.f32.mrb[0].mxu0
      %v824 = vadd.f32 0.0, %v823
      %v825 = vpop.f32.mrb[0].mxu0
      %v826 = vadd.f32 0.0, %v825
      %v827 = vpop.f32.mrb[0].mxu0
      %v828 = vadd.f32 0.0, %v827
      %v829 = vpop.f32.mrb[0].mxu0
      %v830 = vadd.f32 0.0, %v829
      %831 = vmatprep.mubr.bf16.mxu0 %v496
      %832 = vmatmul.mubr.bf16.gmra.mrb[0].mxu0 %v488
      %v833 = vpop.f32.mrb[0].mxu0
      %v834 = vadd.f32 0.0, %v833
      %v835 = vpop.f32.mrb[0].mxu0
      %v836 = vadd.f32 0.0, %v835
      %v837 = vpop.f32.mrb[0].mxu0
      %v838 = vadd.f32 0.0, %v837
      %v839 = vpop.f32.mrb[0].mxu0
      %v840 = vadd.f32 0.0, %v839
      %841 = vmatprep.mubr.bf16.mxu0 %v512
      %842 = vmatmul.mubr.bf16.gmra.mrb[0].mxu0 %v504
      %v843 = vpop.f32.mrb[0].mxu0
      %v844 = vadd.f32 0.0, %v843
      %v845 = vpop.f32.mrb[0].mxu0
      %v846 = vadd.f32 0.0, %v845
      %v847 = vpop.f32.mrb[0].mxu0
      %v848 = vadd.f32 0.0, %v847
      %v849 = vpop.f32.mrb[0].mxu0
      %v850 = vadd.f32 0.0, %v849
      %851 = vmatprep.mubr.bf16.mxu0 %v528
      %852 = vmatmul.mubr.bf16.gmra.mrb[0].mxu0 %v520
      %v853 = vpop.f32.mrb[0].mxu0
      %v854 = vadd.f32 0.0, %v853
      %v855 = vpop.f32.mrb[0].mxu0
      %v856 = vadd.f32 0.0, %v855
      %v857 = vpop.f32.mrb[0].mxu0
      %v858 = vadd.f32 0.0, %v857
      %v859 = vpop.f32.mrb[0].mxu0
      %v860 = vadd.f32 0.0, %v859
      %861 = vmatprep.mubr.bf16.mxu0 %v544
      %862 = vmatmul.mubr.bf16.gmra.mrb[0].mxu0 %v536
      %v863 = vpop.f32.mrb[0].mxu0
      %v864 = vadd.f32 0.0, %v863
      %v865 = vpop.f32.mrb[0].mxu0
      %v866 = vadd.f32 0.0, %v865
      %v867 = vpop.f32.mrb[0].mxu0
      %v868 = vadd.f32 0.0, %v867
      %v869 = vpop.f32.mrb[0].mxu0
      %v870 = vadd.f32 0.0, %v869
      %871 = vmatprep.mubr.bf16.mxu0 %v560
      %872 = vmatmul.mubr.bf16.gmra.mrb[0].mxu0 %v552
      %v873 = vpop.f32.mrb[0].mxu0
      %v874 = vadd.f32 0.0, %v873
      %v875 = vpop.f32.mrb[0].mxu0
      %v876 = vadd.f32 0.0, %v875
      %v877 = vpop.f32.mrb[0].mxu0
      %v878 = vadd.f32 0.0, %v877
      %v879 = vpop.f32.mrb[0].mxu0
      %v880 = vadd.f32 0.0, %v879
      %881 = vmatprep.mubr.bf16.mxu0 %v566
      %882 = vmatmul.mubr.bf16.gmra.mrb[0].mxu0 %v563
      %v883 = vpop.f32.mrb[0].mxu0
      %v884 = vadd.f32 0.0, %v883
      %v885 = vpop.f32.mrb[0].mxu0
      %v886 = vadd.f32 0.0, %v885
      %v887 = vpop.f32.mrb[0].mxu0
      %v888 = vadd.f32 0.0, %v887
      %v889 = vpop.f32.mrb[0].mxu0
      %v890 = vadd.f32 0.0, %v889
      %891 = vdwg.mxu0
      %v893 = vunpack.c.l.b16 %v237
      %v894 = vunpack.c.h.b16 %v237
      %v895 = vpack.c.b16 %v893, %v366
      %v896 = vpack.c.b16 %v894, %v367
      %v951 = vunpack.c.l.b16 %v238
      %v952 = vunpack.c.h.b16 %v238
      %v953 = vunpack.c.l.b16 %v239
      %v954 = vunpack.c.h.b16 %v239
      %v955 = vunpack.c.l.b16 %v240
      %v956 = vunpack.c.h.b16 %v240
      %v957 = vunpack.c.l.b16 %v241
      %v958 = vunpack.c.h.b16 %v241
      %v959 = vunpack.c.l.b16 %v242
      %v960 = vunpack.c.h.b16 %v242
      %v961 = vunpack.c.l.b16 %v243
      %v962 = vunpack.c.h.b16 %v243
      %v963 = vunpack.c.l.b16 %v244
      %v964 = vunpack.c.h.b16 %v244
      %v965 = vunpack.c.l.b16 %v245
      %v966 = vunpack.c.h.b16 %v245
      %v967 = vunpack.c.l.b16 %v246
      %v968 = vunpack.c.h.b16 %v246
      %v969 = vunpack.c.l.b16 %v247
      %v970 = vunpack.c.h.b16 %v247
      %v971 = vunpack.c.l.b16 %v248
      %v972 = vunpack.c.h.b16 %v248
      %v973 = vunpack.c.l.b16 %v249
      %v974 = vunpack.c.h.b16 %v249
      %v975 = vunpack.c.l.b16 %v250
      %v976 = vunpack.c.h.b16 %v250
      %v977 = vunpack.c.l.b16 %v251
      %v978 = vunpack.c.h.b16 %v251
      %v979 = vunpack.c.l.b16 %v252
      %v980 = vunpack.c.h.b16 %v252
      %v981 = vunpack.c.l.b16 %v253
      %v982 = vunpack.c.h.b16 %v253
      %v983 = vunpack.c.l.b16 %v254
      %v984 = vunpack.c.h.b16 %v254
      %v985 = vunpack.c.l.b16 %v255
      %v986 = vunpack.c.h.b16 %v255
      %v987 = vunpack.c.l.b16 %v256
      %v988 = vunpack.c.h.b16 %v256
      %v989 = vunpack.c.l.b16 %v257
      %v990 = vunpack.c.h.b16 %v257
      %v991 = vunpack.c.l.b16 %v258
      %v992 = vunpack.c.h.b16 %v258
      %v993 = vunpack.c.l.b16 %v259
      %v994 = vunpack.c.h.b16 %v259
      %v995 = vunpack.c.l.b16 %v260
      %v996 = vunpack.c.h.b16 %v260
      %v997 = vunpack.c.l.b16 %v261
      %v998 = vunpack.c.h.b16 %v261
      %v999 = vunpack.c.l.b16 %v262
      %v1000 = vunpack.c.h.b16 %v262
      %v1001 = vunpack.c.l.b16 %v263
      %v1002 = vunpack.c.h.b16 %v263
      %v1003 = vunpack.c.l.b16 %v264
      %v1004 = vunpack.c.h.b16 %v264
      %v1005 = vunpack.c.l.b16 %v265
      %v1006 = vunpack.c.h.b16 %v265
      %v1007 = vunpack.c.l.b16 %v266
      %v1008 = vunpack.c.h.b16 %v266
      %v1009 = vunpack.c.l.b16 %v267
      %v1010 = vunpack.c.h.b16 %v267
      %v1011 = vunpack.c.l.b16 %v268
      %v1012 = vunpack.c.h.b16 %v268
      %v1013 = vunpack.c.l.b16 %v269
      %v1014 = vunpack.c.h.b16 %v269
      %v1015 = vpack.c.b16 %v953, %v951
      %v1016 = vpack.c.b16 %v954, %v952
      %v1017 = vpack.c.b16 %v957, %v955
      %v1018 = vpack.c.b16 %v958, %v956
      %v1019 = vpack.c.b16 %v961, %v959
      %v1020 = vpack.c.b16 %v962, %v960
      %v1021 = vpack.c.b16 %v965, %v963
      %v1022 = vpack.c.b16 %v966, %v964
      %v1023 = vpack.c.b16 %v969, %v967
      %v1024 = vpack.c.b16 %v970, %v968
      %v1025 = vpack.c.b16 %v973, %v971
      %v1026 = vpack.c.b16 %v974, %v972
      %v1027 = vpack.c.b16 %v977, %v975
      %v1028 = vpack.c.b16 %v978, %v976
      %v1029 = vpack.c.b16 %v981, %v979
      %v1030 = vpack.c.b16 %v982, %v980
      %v1031 = vpack.c.b16 %v985, %v983
      %v1032 = vpack.c.b16 %v986, %v984
      %v1033 = vpack.c.b16 %v989, %v987
      %v1034 = vpack.c.b16 %v990, %v988
      %v1035 = vpack.c.b16 %v993, %v991
      %v1036 = vpack.c.b16 %v994, %v992
      %v1037 = vpack.c.b16 %v997, %v995
      %v1038 = vpack.c.b16 %v998, %v996
      %v1039 = vpack.c.b16 %v1001, %v999
      %v1040 = vpack.c.b16 %v1002, %v1000
      %v1041 = vpack.c.b16 %v1005, %v1003
      %v1042 = vpack.c.b16 %v1006, %v1004
      %v1043 = vpack.c.b16 %v1009, %v1007
      %v1044 = vpack.c.b16 %v1010, %v1008
      %v1045 = vpack.c.b16 %v1013, %v1011
      %v1046 = vpack.c.b16 %v1014, %v1012
      %1079 = vmatprep.subr.bf16.mxu0 %v1016
      %1080 = vmatpush1.bf16.msra.mxu0 %v1015
      %1081 = vmatprep.subr.bf16.mxu0 %v1018
      %1082 = vmatpush1.bf16.msra.mxu0 %v1017
      %1083 = vmatprep.subr.bf16.mxu0 %v1020
      %1084 = vmatpush1.bf16.msra.mxu0 %v1019
      %1085 = vmatprep.subr.bf16.mxu0 %v1022
      %1086 = vmatpush1.bf16.msra.mxu0 %v1021
      %1087 = vmatprep.subr.bf16.mxu0 %v1024
      %1088 = vmatpush1.bf16.msra.mxu0 %v1023
      %1089 = vmatprep.subr.bf16.mxu0 %v1026
      %1090 = vmatpush1.bf16.msra.mxu0 %v1025
      %1091 = vmatprep.subr.bf16.mxu0 %v1028
      %1092 = vmatpush1.bf16.msra.mxu0 %v1027
      %1093 = vmatprep.subr.bf16.mxu0 %v1030
      %1094 = vmatpush1.bf16.msra.mxu0 %v1029
      %1095 = vmatprep.subr.bf16.mxu0 %v1032
      %1096 = vmatpush1.bf16.msra.mxu0 %v1031
      %1097 = vmatprep.subr.bf16.mxu0 %v1034
      %1098 = vmatpush1.bf16.msra.mxu0 %v1033
      %1099 = vmatprep.subr.bf16.mxu0 %v1036
      %1100 = vmatpush1.bf16.msra.mxu0 %v1035
      %1101 = vmatprep.subr.bf16.mxu0 %v1038
      %1102 = vmatpush1.bf16.msra.mxu0 %v1037
      %1103 = vmatprep.subr.bf16.mxu0 %v1040
      %1104 = vmatpush1.bf16.msra.mxu0 %v1039
      %1105 = vmatprep.subr.bf16.mxu0 %v1042
      %1106 = vmatpush1.bf16.msra.mxu0 %v1041
      %1107 = vmatprep.subr.bf16.mxu0 %v1044
      %1108 = vmatpush1.bf16.msra.mxu0 %v1043
      %1109 = vmatprep.subr.bf16.mxu0 %v1046
      %1110 = vmatpush1.bf16.msra.mxu0 %v1045
      %1111 = vmatprep.mubr.bf16.mxu0 %v371
      %1112 = vmatmul.mubr.bf16.gmra.mrb[0].mxu0 %v370
      %v1113 = vpop.f32.mrb[0].mxu0
      %v1114 = vadd.f32 %v784, %v1113
      %v1115 = vpop.f32.mrb[0].mxu0
      %v1116 = vadd.f32 %v786, %v1115
      %v1117 = vpop.f32.mrb[0].mxu0
      %v1118 = vadd.f32 %v788, %v1117
      %v1119 = vpop.f32.mrb[0].mxu0
      %v1120 = vadd.f32 %v790, %v1119
      %1121 = vmatprep.mubr.bf16.mxu0 %v373
      %1122 = vmatmul.mubr.bf16.gmra.mrb[0].mxu0 %v372
      %v1123 = vpop.f32.mrb[0].mxu0
      %v1124 = vadd.f32 %v794, %v1123
      %v1125 = vpop.f32.mrb[0].mxu0
      %v1126 = vadd.f32 %v796, %v1125
      %v1127 = vpop.f32.mrb[0].mxu0
      %v1128 = vadd.f32 %v798, %v1127
      %v1129 = vpop.f32.mrb[0].mxu0
      %v1130 = vadd.f32 %v800, %v1129
      %1131 = vmatprep.mubr.bf16.mxu0 %v375
      %1132 = vmatmul.mubr.bf16.gmra.mrb[0].mxu0 %v374
      %v1133 = vpop.f32.mrb[0].mxu0
      %v1134 = vadd.f32 %v804, %v1133
      %v1135 = vpop.f32.mrb[0].mxu0
      %v1136 = vadd.f32 %v806, %v1135
      %v1137 = vpop.f32.mrb[0].mxu0
      %v1138 = vadd.f32 %v808, %v1137
      %v1139 = vpop.f32.mrb[0].mxu0
      %v1140 = vadd.f32 %v810, %v1139
      %1141 = vmatprep.mubr.bf16.mxu0 %v377
      %1142 = vmatmul.mubr.bf16.gmra.mrb[0].mxu0 %v376
      %v1143 = vpop.f32.mrb[0].mxu0
      %v1144 = vadd.f32 %v814, %v1143
      %v1145 = vpop.f32.mrb[0].mxu0
      %v1146 = vadd.f32 %v816, %v1145
      %v1147 = vpop.f32.mrb[0].mxu0
      %v1148 = vadd.f32 %v818, %v1147
      %v1149 = vpop.f32.mrb[0].mxu0
      %v1150 = vadd.f32 %v820, %v1149
      %1151 = vmatprep.mubr.bf16.mxu0 %v379
      %1152 = vmatmul.mubr.bf16.gmra.mrb[0].mxu0 %v378
      %v1153 = vpop.f32.mrb[0].mxu0
      %v1154 = vadd.f32 %v824, %v1153
      %v1155 = vpop.f32.mrb[0].mxu0
      %v1156 = vadd.f32 %v826, %v1155
      %v1157 = vpop.f32.mrb[0].mxu0
      %v1158 = vadd.f32 %v828, %v1157
      %v1159 = vpop.f32.mrb[0].mxu0
      %v1160 = vadd.f32 %v830, %v1159
      %1161 = vmatprep.mubr.bf16.mxu0 %v381
      %1162 = vmatmul.mubr.bf16.gmra.mrb[0].mxu0 %v380
      %v1163 = vpop.f32.mrb[0].mxu0
      %v1164 = vadd.f32 %v834, %v1163
      %v1165 = vpop.f32.mrb[0].mxu0
      %v1166 = vadd.f32 %v836, %v1165
      %v1167 = vpop.f32.mrb[0].mxu0
      %v1168 = vadd.f32 %v838, %v1167
      %v1169 = vpop.f32.mrb[0].mxu0
      %v1170 = vadd.f32 %v840, %v1169
      %1171 = vmatprep.mubr.bf16.mxu0 %v383
      %1172 = vmatmul.mubr.bf16.gmra.mrb[0].mxu0 %v382
      %v1173 = vpop.f32.mrb[0].mxu0
      %v1174 = vadd.f32 %v844, %v1173
      %v1175 = vpop.f32.mrb[0].mxu0
      %v1176 = vadd.f32 %v846, %v1175
      %v1177 = vpop.f32.mrb[0].mxu0
      %v1178 = vadd.f32 %v848, %v1177
      %v1179 = vpop.f32.mrb[0].mxu0
      %v1180 = vadd.f32 %v850, %v1179
      %1181 = vmatprep.mubr.bf16.mxu0 %v385
      %1182 = vmatmul.mubr.bf16.gmra.mrb[0].mxu0 %v384
      %v1183 = vpop.f32.mrb[0].mxu0
      %v1184 = vadd.f32 %v854, %v1183
      %v1185 = vpop.f32.mrb[0].mxu0
      %v1186 = vadd.f32 %v856, %v1185
      %v1187 = vpop.f32.mrb[0].mxu0
      %v1188 = vadd.f32 %v858, %v1187
      %v1189 = vpop.f32.mrb[0].mxu0
      %v1190 = vadd.f32 %v860, %v1189
      %1191 = vmatprep.mubr.bf16.mxu0 %v387
      %1192 = vmatmul.mubr.bf16.gmra.mrb[0].mxu0 %v386
      %v1193 = vpop.f32.mrb[0].mxu0
      %v1194 = vadd.f32 %v864, %v1193
      %v1195 = vpop.f32.mrb[0].mxu0
      %v1196 = vadd.f32 %v866, %v1195
      %v1197 = vpop.f32.mrb[0].mxu0
      %v1198 = vadd.f32 %v868, %v1197
      %v1199 = vpop.f32.mrb[0].mxu0
      %v1200 = vadd.f32 %v870, %v1199
      %1201 = vmatprep.mubr.bf16.mxu0 %v389
      %1202 = vmatmul.mubr.bf16.gmra.mrb[0].mxu0 %v388
      %v1203 = vpop.f32.mrb[0].mxu0
      %v1204 = vadd.f32 %v874, %v1203
      %v1205 = vpop.f32.mrb[0].mxu0
      %v1206 = vadd.f32 %v876, %v1205
      %v1207 = vpop.f32.mrb[0].mxu0
      %v1208 = vadd.f32 %v878, %v1207
      %v1209 = vpop.f32.mrb[0].mxu0
      %v1210 = vadd.f32 %v880, %v1209
      %1211 = vmatprep.mubr.bf16.mxu0 %v896
      %1212 = vmatmul.mubr.bf16.gmra.mrb[0].mxu0 %v895
      %v1213 = vpop.f32.mrb[0].mxu0
      %v1214 = vadd.f32 %v884, %v1213
      %v1215 = vpop.f32.mrb[0].mxu0
      %v1216 = vadd.f32 %v886, %v1215
      %v1217 = vpop.f32.mrb[0].mxu0
      %v1218 = vadd.f32 %v888, %v1217
      %v1219 = vpop.f32.mrb[0].mxu0
      %v1220 = vadd.f32 %v890, %v1219
      %1221 = vdwg.mxu0
      %v1222 = vld [vmem:[%s165] sm:$0xee]
      %s1223 = scalar_lea.vmem %s1, 512
      %v1224 = vld [vmem:[%s1223] sm:$0xff]
      %v1225 = vld [vmem:[%s1223 + $0x8] sm:$0xff]
      %v1226 = vld [vmem:[%s1223 + $0x10] sm:$0xff]
      %v1227 = vld [vmem:[%s1223 + $0x18] sm:$0xff]
      %v1228 = vld [vmem:[%s1223 + $0x20] sm:$0xff]
      %v1229 = vld [vmem:[%s1223 + $0x28] sm:$0xff]
      %v1230 = vld [vmem:[%s1223 + $0x30] sm:$0xff]
      %v1231 = vld [vmem:[%s1223 + $0x38] sm:$0xff]
      %v1232 = vld [vmem:[%s1223 + $0x40] sm:$0xff]
      %v1233 = vld [vmem:[%s1223 + $0x48] sm:$0xff]
      %v1234 = vld [vmem:[%s1223 + $0x50] sm:$0xff]
      %v1235 = vld [vmem:[%s1223 + $0x58] sm:$0xff]
      %v1236 = vld [vmem:[%s1223 + $0x60] sm:$0xff]
      %v1237 = vld [vmem:[%s1223 + $0x68] sm:$0xff]
      %v1238 = vld [vmem:[%s1223 + $0x70] sm:$0xff]
      %v1239 = vld [vmem:[%s1223 + $0x78] sm:$0xff]
      %v1240 = vld [vmem:[%s1223 + $0x80] sm:$0xff]
      %v1241 = vld [vmem:[%s1223 + $0x88] sm:$0xff]
      %v1242 = vld [vmem:[%s1223 + $0x90] sm:$0xff]
      %v1243 = vld [vmem:[%s1223 + $0x98] sm:$0xff]
      %v1244 = vld [vmem:[%s1223 + $0xa0] sm:$0xff]
      %v1245 = vld [vmem:[%s1223 + $0xa8] sm:$0xff]
      %v1246 = vld [vmem:[%s1223 + $0xb0] sm:$0xff]
      %v1247 = vld [vmem:[%s1223 + $0xb8] sm:$0xff]
      %v1248 = vld [vmem:[%s1223 + $0xc0] sm:$0xff]
      %v1249 = vld [vmem:[%s1223 + $0xc8] sm:$0xff]
      %v1250 = vld [vmem:[%s1223 + $0xd0] sm:$0xff]
      %v1251 = vld [vmem:[%s1223 + $0xd8] sm:$0xff]
      %v1252 = vld [vmem:[%s1223 + $0xe0] sm:$0xff]
      %v1253 = vld [vmem:[%s1223 + $0xe8] sm:$0xff]
      %v1254 = vld [vmem:[%s1223 + $0xf0] sm:$0xff]
      %v1255 = vld [vmem:[%s1223 + $0xf8] sm:$0xff]
      %v1257 = vunpack.c.l.b16 %v1222
      %v1258 = vunpack.c.h.b16 %v1222
      %v1259 = vpack.c.b16 %v328, %v1257
      %v1260 = vpack.c.b16 %v329, %v1258
      %vm1261 = vcmask 1046528
      %v1262 = vrot.slane %v1259, 1
      %v1263 = vrot.slane %v372, 1
      %v1264 = vsel %vm1261, %v1262, %v1263
      %v1265 = vrot.slane %v1260, 1
      %v1266 = vrot.slane %v373, 1
      %v1267 = vsel %vm1261, %v1265, %v1266
      %v1268 = vrot.slane %v374, 1
      %v1269 = vsel %vm1261, %v1263, %v1268
      %v1270 = vrot.slane %v375, 1
      %v1271 = vsel %vm1261, %v1266, %v1270
      %v1272 = vrot.slane %v376, 1
      %v1273 = vsel %vm1261, %v1268, %v1272
      %v1274 = vrot.slane %v377, 1
      %v1275 = vsel %vm1261, %v1270, %v1274
      %v1276 = vrot.slane %v378, 1
      %v1277 = vsel %vm1261, %v1272, %v1276
      %v1278 = vrot.slane %v379, 1
      %v1279 = vsel %vm1261, %v1274, %v1278
      %v1280 = vrot.slane %v380, 1
      %v1281 = vsel %vm1261, %v1276, %v1280
      %v1282 = vrot.slane %v381, 1
      %v1283 = vsel %vm1261, %v1278, %v1282
      %v1284 = vrot.slane %v382, 1
      %v1285 = vsel %vm1261, %v1280, %v1284
      %v1286 = vrot.slane %v383, 1
      %v1287 = vsel %vm1261, %v1282, %v1286
      %v1288 = vrot.slane %v384, 1
      %v1289 = vsel %vm1261, %v1284, %v1288
      %v1290 = vrot.slane %v385, 1
      %v1291 = vsel %vm1261, %v1286, %v1290
      %v1292 = vrot.slane %v386, 1
      %v1293 = vsel %vm1261, %v1288, %v1292
      %v1294 = vrot.slane %v387, 1
      %v1295 = vsel %vm1261, %v1290, %v1294
      %v1296 = vrot.slane %v388, 1
      %v1297 = vsel %vm1261, %v1292, %v1296
      %v1298 = vrot.slane %v389, 1
      %v1299 = vsel %vm1261, %v1294, %v1298
      %v1300 = vrot.slane %v390, 1
      %v1301 = vsel %vm1261, %v1296, %v1300
      %v1302 = vrot.slane %v391, 1
      %v1303 = vsel %vm1261, %v1298, %v1302
      %v1358 = vunpack.c.l.b16 %v1224
      %v1359 = vunpack.c.h.b16 %v1224
      %v1360 = vunpack.c.l.b16 %v1225
      %v1361 = vunpack.c.h.b16 %v1225
      %v1362 = vunpack.c.l.b16 %v1226
      %v1363 = vunpack.c.h.b16 %v1226
      %v1364 = vunpack.c.l.b16 %v1227
      %v1365 = vunpack.c.h.b16 %v1227
      %v1366 = vunpack.c.l.b16 %v1228
      %v1367 = vunpack.c.h.b16 %v1228
      %v1368 = vunpack.c.l.b16 %v1229
      %v1369 = vunpack.c.h.b16 %v1229
      %v1370 = vunpack.c.l.b16 %v1230
      %v1371 = vunpack.c.h.b16 %v1230
      %v1372 = vunpack.c.l.b16 %v1231
      %v1373 = vunpack.c.h.b16 %v1231
      %v1374 = vunpack.c.l.b16 %v1232
      %v1375 = vunpack.c.h.b16 %v1232
      %v1376 = vunpack.c.l.b16 %v1233
      %v1377 = vunpack.c.h.b16 %v1233
      %v1378 = vunpack.c.l.b16 %v1234
      %v1379 = vunpack.c.h.b16 %v1234
      %v1380 = vunpack.c.l.b16 %v1235
      %v1381 = vunpack.c.h.b16 %v1235
      %v1382 = vunpack.c.l.b16 %v1236
      %v1383 = vunpack.c.h.b16 %v1236
      %v1384 = vunpack.c.l.b16 %v1237
      %v1385 = vunpack.c.h.b16 %v1237
      %v1386 = vunpack.c.l.b16 %v1238
      %v1387 = vunpack.c.h.b16 %v1238
      %v1388 = vunpack.c.l.b16 %v1239
      %v1389 = vunpack.c.h.b16 %v1239
      %v1390 = vunpack.c.l.b16 %v1240
      %v1391 = vunpack.c.h.b16 %v1240
      %v1392 = vunpack.c.l.b16 %v1241
      %v1393 = vunpack.c.h.b16 %v1241
      %v1394 = vunpack.c.l.b16 %v1242
      %v1395 = vunpack.c.h.b16 %v1242
      %v1396 = vunpack.c.l.b16 %v1243
      %v1397 = vunpack.c.h.b16 %v1243
      %v1398 = vunpack.c.l.b16 %v1244
      %v1399 = vunpack.c.h.b16 %v1244
      %v1400 = vunpack.c.l.b16 %v1245
      %v1401 = vunpack.c.h.b16 %v1245
      %v1402 = vunpack.c.l.b16 %v1246
      %v1403 = vunpack.c.h.b16 %v1246
      %v1404 = vunpack.c.l.b16 %v1247
      %v1405 = vunpack.c.h.b16 %v1247
      %v1406 = vunpack.c.l.b16 %v1248
      %v1407 = vunpack.c.h.b16 %v1248
      %v1408 = vunpack.c.l.b16 %v1249
      %v1409 = vunpack.c.h.b16 %v1249
      %v1410 = vunpack.c.l.b16 %v1250
      %v1411 = vunpack.c.h.b16 %v1250
      %v1412 = vunpack.c.l.b16 %v1251
      %v1413 = vunpack.c.h.b16 %v1251
      %v1414 = vunpack.c.l.b16 %v1252
      %v1415 = vunpack.c.h.b16 %v1252
      %v1416 = vunpack.c.l.b16 %v1253
      %v1417 = vunpack.c.h.b16 %v1253
      %v1418 = vunpack.c.l.b16 %v1254
      %v1419 = vunpack.c.h.b16 %v1254
      %v1420 = vunpack.c.l.b16 %v1255
      %v1421 = vunpack.c.h.b16 %v1255
      %v1422 = vpack.c.b16 %v1360, %v1358
      %v1423 = vpack.c.b16 %v1361, %v1359
      %v1424 = vpack.c.b16 %v1364, %v1362
      %v1425 = vpack.c.b16 %v1365, %v1363
      %v1426 = vpack.c.b16 %v1368, %v1366
      %v1427 = vpack.c.b16 %v1369, %v1367
      %v1428 = vpack.c.b16 %v1372, %v1370
      %v1429 = vpack.c.b16 %v1373, %v1371
      %v1430 = vpack.c.b16 %v1376, %v1374
      %v1431 = vpack.c.b16 %v1377, %v1375
      %v1432 = vpack.c.b16 %v1380, %v1378
      %v1433 = vpack.c.b16 %v1381, %v1379
      %v1434 = vpack.c.b16 %v1384, %v1382
      %v1435 = vpack.c.b16 %v1385, %v1383
      %v1436 = vpack.c.b16 %v1388, %v1386
      %v1437 = vpack.c.b16 %v1389, %v1387
      %v1438 = vpack.c.b16 %v1392, %v1390
      %v1439 = vpack.c.b16 %v1393, %v1391
      %v1440 = vpack.c.b16 %v1396, %v1394
      %v1441 = vpack.c.b16 %v1397, %v1395
      %v1442 = vpack.c.b16 %v1400, %v1398
      %v1443 = vpack.c.b16 %v1401, %v1399
      %v1444 = vpack.c.b16 %v1404, %v1402
      %v1445 = vpack.c.b16 %v1405, %v1403
      %v1446 = vpack.c.b16 %v1408, %v1406
      %v1447 = vpack.c.b16 %v1409, %v1407
      %v1448 = vpack.c.b16 %v1412, %v1410
      %v1449 = vpack.c.b16 %v1413, %v1411
      %v1450 = vpack.c.b16 %v1416, %v1414
      %v1451 = vpack.c.b16 %v1417, %v1415
      %v1452 = vpack.c.b16 %v1420, %v1418
      %v1453 = vpack.c.b16 %v1421, %v1419
      %1486 = vmatprep.subr.bf16.mxu0 %v1423
      %1487 = vmatpush1.bf16.msra.mxu0 %v1422
      %1488 = vmatprep.subr.bf16.mxu0 %v1425
      %1489 = vmatpush1.bf16.msra.mxu0 %v1424
      %1490 = vmatprep.subr.bf16.mxu0 %v1427
      %1491 = vmatpush1.bf16.msra.mxu0 %v1426
      %1492 = vmatprep.subr.bf16.mxu0 %v1429
      %1493 = vmatpush1.bf16.msra.mxu0 %v1428
      %1494 = vmatprep.subr.bf16.mxu0 %v1431
      %1495 = vmatpush1.bf16.msra.mxu0 %v1430
      %1496 = vmatprep.subr.bf16.mxu0 %v1433
      %1497 = vmatpush1.bf16.msra.mxu0 %v1432
      %1498 = vmatprep.subr.bf16.mxu0 %v1435
      %1499 = vmatpush1.bf16.msra.mxu0 %v1434
      %1500 = vmatprep.subr.bf16.mxu0 %v1437
      %1501 = vmatpush1.bf16.msra.mxu0 %v1436
      %1502 = vmatprep.subr.bf16.mxu0 %v1439
      %1503 = vmatpush1.bf16.msra.mxu0 %v1438
      %1504 = vmatprep.subr.bf16.mxu0 %v1441
      %1505 = vmatpush1.bf16.msra.mxu0 %v1440
      %1506 = vmatprep.subr.bf16.mxu0 %v1443
      %1507 = vmatpush1.bf16.msra.mxu0 %v1442
      %1508 = vmatprep.subr.bf16.mxu0 %v1445
      %1509 = vmatpush1.bf16.msra.mxu0 %v1444
      %1510 = vmatprep.subr.bf16.mxu0 %v1447
      %1511 = vmatpush1.bf16.msra.mxu0 %v1446
      %1512 = vmatprep.subr.bf16.mxu0 %v1449
      %1513 = vmatpush1.bf16.msra.mxu0 %v1448
      %1514 = vmatprep.subr.bf16.mxu0 %v1451
      %1515 = vmatpush1.bf16.msra.mxu0 %v1450
      %1516 = vmatprep.subr.bf16.mxu0 %v1453
      %1517 = vmatpush1.bf16.msra.mxu0 %v1452
      %1518 = vmatprep.mubr.bf16.mxu0 %v1267
      %1519 = vmatmul.mubr.bf16.gmra.mrb[0].mxu0 %v1264
      %v1520 = vpop.f32.mrb[0].mxu0
      %v1521 = vadd.f32 0.0, %v1520
      %v1522 = vpop.f32.mrb[0].mxu0
      %v1523 = vadd.f32 0.0, %v1522
      %v1524 = vpop.f32.mrb[0].mxu0
      %v1525 = vadd.f32 0.0, %v1524
      %v1526 = vpop.f32.mrb[0].mxu0
      %v1527 = vadd.f32 0.0, %v1526
      %1528 = vmatprep.mubr.bf16.mxu0 %v1271
      %1529 = vmatmul.mubr.bf16.gmra.mrb[0].mxu0 %v1269
      %v1530 = vpop.f32.mrb[0].mxu0
      %v1531 = vadd.f32 0.0, %v1530
      %v1532 = vpop.f32.mrb[0].mxu0
      %v1533 = vadd.f32 0.0, %v1532
      %v1534 = vpop.f32.mrb[0].mxu0
      %v1535 = vadd.f32 0.0, %v1534
      %v1536 = vpop.f32.mrb[0].mxu0
      %v1537 = vadd.f32 0.0, %v1536
      %1538 = vmatprep.mubr.bf16.mxu0 %v1275
      %1539 = vmatmul.mubr.bf16.gmra.mrb[0].mxu0 %v1273
      %v1540 = vpop.f32.mrb[0].mxu0
      %v1541 = vadd.f32 0.0, %v1540
      %v1542 = vpop.f32.mrb[0].mxu0
      %v1543 = vadd.f32 0.0, %v1542
      %v1544 = vpop.f32.mrb[0].mxu0
      %v1545 = vadd.f32 0.0, %v1544
      %v1546 = vpop.f32.mrb[0].mxu0
      %v1547 = vadd.f32 0.0, %v1546
      %1548 = vmatprep.mubr.bf16.mxu0 %v1279
      %1549 = vmatmul.mubr.bf16.gmra.mrb[0].mxu0 %v1277
      %v1550 = vpop.f32.mrb[0].mxu0
      %v1551 = vadd.f32 0.0, %v1550
      %v1552 = vpop.f32.mrb[0].mxu0
      %v1553 = vadd.f32 0.0, %v1552
      %v1554 = vpop.f32.mrb[0].mxu0
      %v1555 = vadd.f32 0.0, %v1554
      %v1556 = vpop.f32.mrb[0].mxu0
      %v1557 = vadd.f32 0.0, %v1556
      %1558 = vmatprep.mubr.bf16.mxu0 %v1283
      %1559 = vmatmul.mubr.bf16.gmra.mrb[0].mxu0 %v1281
      %v1560 = vpop.f32.mrb[0].mxu0
      %v1561 = vadd.f32 0.0, %v1560
      %v1562 = vpop.f32.mrb[0].mxu0
      %v1563 = vadd.f32 0.0, %v1562
      %v1564 = vpop.f32.mrb[0].mxu0
      %v1565 = vadd.f32 0.0, %v1564
      %v1566 = vpop.f32.mrb[0].mxu0
      %v1567 = vadd.f32 0.0, %v1566
      %1568 = vmatprep.mubr.bf16.mxu0 %v1287
      %1569 = vmatmul.mubr.bf16.gmra.mrb[0].mxu0 %v1285
      %v1570 = vpop.f32.mrb[0].mxu0
      %v1571 = vadd.f32 0.0, %v1570
      %v1572 = vpop.f32.mrb[0].mxu0
      %v1573 = vadd.f32 0.0, %v1572
      %v1574 = vpop.f32.mrb[0].mxu0
      %v1575 = vadd.f32 0.0, %v1574
      %v1576 = vpop.f32.mrb[0].mxu0
      %v1577 = vadd.f32 0.0, %v1576
      %1578 = vmatprep.mubr.bf16.mxu0 %v1291
      %1579 = vmatmul.mubr.bf16.gmra.mrb[0].mxu0 %v1289
      %v1580 = vpop.f32.mrb[0].mxu0
      %v1581 = vadd.f32 0.0, %v1580
      %v1582 = vpop.f32.mrb[0].mxu0
      %v1583 = vadd.f32 0.0, %v1582
      %v1584 = vpop.f32.mrb[0].mxu0
      %v1585 = vadd.f32 0.0, %v1584
      %v1586 = vpop.f32.mrb[0].mxu0
      %v1587 = vadd.f32 0.0, %v1586
      %1588 = vmatprep.mubr.bf16.mxu0 %v1295
      %1589 = vmatmul.mubr.bf16.gmra.mrb[0].mxu0 %v1293
      %v1590 = vpop.f32.mrb[0].mxu0
      %v1591 = vadd.f32 0.0, %v1590
      %v1592 = vpop.f32.mrb[0].mxu0
      %v1593 = vadd.f32 0.0, %v1592
      %v1594 = vpop.f32.mrb[0].mxu0
      %v1595 = vadd.f32 0.0, %v1594
      %v1596 = vpop.f32.mrb[0].mxu0
      %v1597 = vadd.f32 0.0, %v1596
      %1598 = vmatprep.mubr.bf16.mxu0 %v1299
      %1599 = vmatmul.mubr.bf16.gmra.mrb[0].mxu0 %v1297
      %v1600 = vpop.f32.mrb[0].mxu0
      %v1601 = vadd.f32 0.0, %v1600
      %v1602 = vpop.f32.mrb[0].mxu0
      %v1603 = vadd.f32 0.0, %v1602
      %v1604 = vpop.f32.mrb[0].mxu0
      %v1605 = vadd.f32 0.0, %v1604
      %v1606 = vpop.f32.mrb[0].mxu0
      %v1607 = vadd.f32 0.0, %v1606
      %1608 = vmatprep.mubr.bf16.mxu0 %v1303
      %1609 = vmatmul.mubr.bf16.gmra.mrb[0].mxu0 %v1301
      %v1610 = vpop.f32.mrb[0].mxu0
      %v1611 = vadd.f32 0.0, %v1610
      %v1612 = vpop.f32.mrb[0].mxu0
      %v1613 = vadd.f32 0.0, %v1612
      %v1614 = vpop.f32.mrb[0].mxu0
      %v1615 = vadd.f32 0.0, %v1614
      %v1616 = vpop.f32.mrb[0].mxu0
      %v1617 = vadd.f32 0.0, %v1616
      %1618 = vmatprep.mubr.bf16.mxu0 %v1302
      %1619 = vmatmul.mubr.bf16.gmra.mrb[0].mxu0 %v1300
      %v1620 = vpop.f32.mrb[0].mxu0
      %v1621 = vadd.f32 0.0, %v1620
      %v1622 = vpop.f32.mrb[0].mxu0
      %v1623 = vadd.f32 0.0, %v1622
      %v1624 = vpop.f32.mrb[0].mxu0
      %v1625 = vadd.f32 0.0, %v1624
      %v1626 = vpop.f32.mrb[0].mxu0
      %v1627 = vadd.f32 0.0, %v1626
      %1628 = vdwg.mxu0
      %v1629 = vadd.f32 %v1114, %v1521
      %v1630 = vadd.f32 %v1116, %v1523
      %v1631 = vadd.f32 %v1118, %v1525
      %v1632 = vadd.f32 %v1120, %v1527
      %v1633 = vadd.f32 %v1124, %v1531
      %v1634 = vadd.f32 %v1126, %v1533
      %v1635 = vadd.f32 %v1128, %v1535
      %v1636 = vadd.f32 %v1130, %v1537
      %v1637 = vadd.f32 %v1134, %v1541
      %v1638 = vadd.f32 %v1136, %v1543
      %v1639 = vadd.f32 %v1138, %v1545
      %v1640 = vadd.f32 %v1140, %v1547
      %v1641 = vadd.f32 %v1144, %v1551
      %v1642 = vadd.f32 %v1146, %v1553
      %v1643 = vadd.f32 %v1148, %v1555
      %v1644 = vadd.f32 %v1150, %v1557
      %v1645 = vadd.f32 %v1154, %v1561
      %v1646 = vadd.f32 %v1156, %v1563
      %v1647 = vadd.f32 %v1158, %v1565
      %v1648 = vadd.f32 %v1160, %v1567
      %v1649 = vadd.f32 %v1164, %v1571
      %v1650 = vadd.f32 %v1166, %v1573
      %v1651 = vadd.f32 %v1168, %v1575
      %v1652 = vadd.f32 %v1170, %v1577
      %v1653 = vadd.f32 %v1174, %v1581
      %v1654 = vadd.f32 %v1176, %v1583
      %v1655 = vadd.f32 %v1178, %v1585
      %v1656 = vadd.f32 %v1180, %v1587
      %v1657 = vadd.f32 %v1184, %v1591
      %v1658 = vadd.f32 %v1186, %v1593
      %v1659 = vadd.f32 %v1188, %v1595
      %v1660 = vadd.f32 %v1190, %v1597
      %v1661 = vadd.f32 %v1194, %v1601
      %v1662 = vadd.f32 %v1196, %v1603
      %v1663 = vadd.f32 %v1198, %v1605
      %v1664 = vadd.f32 %v1200, %v1607
      %v1665 = vadd.f32 %v1204, %v1611
      %v1666 = vadd.f32 %v1206, %v1613
      %v1667 = vadd.f32 %v1208, %v1615
      %v1668 = vadd.f32 %v1210, %v1617
      %v1669 = vadd.f32 %v1214, %v1621
      %v1670 = vadd.f32 %v1216, %v1623
      %v1671 = vadd.f32 %v1218, %v1625
      %v1672 = vadd.f32 %v1220, %v1627
      %v1673 = vld [vmem:[%s2] ss:$8 sm:$0x3]
      %v1675 = vlaneseq
      %v1676 = vshrl.u32 %v1675, 7
      %v1677 = vsub.s32 0, %v1676
      %v1678 = vrot.slane %v1673, %v1677
      %v1679 = vlaneseq
      %v1680 = vshrl.u32 %v1679, 7
      %v1681 = vsub.s32 1, %v1680
      %v1682 = vrot.slane %v1673, %v1681
      %v1685 = vadd.f32 %v1629, %v1678
      %v1686 = vadd.f32 %v1630, %v1682
      %v1687 = vadd.f32 %v1631, %v1678
      %v1688 = vadd.f32 %v1632, %v1682
      %v1689 = vadd.f32 %v1633, %v1678
      %v1690 = vadd.f32 %v1634, %v1682
      %v1691 = vadd.f32 %v1635, %v1678
      %v1692 = vadd.f32 %v1636, %v1682
      %v1693 = vadd.f32 %v1637, %v1678
      %v1694 = vadd.f32 %v1638, %v1682
      %v1695 = vadd.f32 %v1639, %v1678
      %v1696 = vadd.f32 %v1640, %v1682
      %v1697 = vadd.f32 %v1641, %v1678
      %v1698 = vadd.f32 %v1642, %v1682
      %v1699 = vadd.f32 %v1643, %v1678
      %v1700 = vadd.f32 %v1644, %v1682
      %v1701 = vadd.f32 %v1645, %v1678
      %v1702 = vadd.f32 %v1646, %v1682
      %v1703 = vadd.f32 %v1647, %v1678
      %v1704 = vadd.f32 %v1648, %v1682
      %v1705 = vadd.f32 %v1649, %v1678
      %v1706 = vadd.f32 %v1650, %v1682
      %v1707 = vadd.f32 %v1651, %v1678
      %v1708 = vadd.f32 %v1652, %v1682
      %v1709 = vadd.f32 %v1653, %v1678
      %v1710 = vadd.f32 %v1654, %v1682
      %v1711 = vadd.f32 %v1655, %v1678
      %v1712 = vadd.f32 %v1656, %v1682
      %v1713 = vadd.f32 %v1657, %v1678
      %v1714 = vadd.f32 %v1658, %v1682
      %v1715 = vadd.f32 %v1659, %v1678
      %v1716 = vadd.f32 %v1660, %v1682
      %v1717 = vadd.f32 %v1661, %v1678
      %v1718 = vadd.f32 %v1662, %v1682
      %v1719 = vadd.f32 %v1663, %v1678
      %v1720 = vadd.f32 %v1664, %v1682
      %v1721 = vadd.f32 %v1665, %v1678
      %v1722 = vadd.f32 %v1666, %v1682
      %v1723 = vadd.f32 %v1667, %v1678
      %v1724 = vadd.f32 %v1668, %v1682
      %v1725 = vadd.f32 %v1669, %v1678
      %v1726 = vadd.f32 %v1670, %v1682
      %v1727 = vadd.f32 %v1671, %v1678
      %v1728 = vadd.f32 %v1672, %v1682
      %v1729 = vmax.f32 %v1685, 0.0
      %v1730 = vmax.f32 %v1686, 0.0
      %v1731 = vmax.f32 %v1687, 0.0
      %v1732 = vmax.f32 %v1688, 0.0
      %v1733 = vmax.f32 %v1689, 0.0
      %v1734 = vmax.f32 %v1690, 0.0
      %v1735 = vmax.f32 %v1691, 0.0
      %v1736 = vmax.f32 %v1692, 0.0
      %v1737 = vmax.f32 %v1693, 0.0
      %v1738 = vmax.f32 %v1694, 0.0
      %v1739 = vmax.f32 %v1695, 0.0
      %v1740 = vmax.f32 %v1696, 0.0
      %v1741 = vmax.f32 %v1697, 0.0
      %v1742 = vmax.f32 %v1698, 0.0
      %v1743 = vmax.f32 %v1699, 0.0
      %v1744 = vmax.f32 %v1700, 0.0
      %v1745 = vmax.f32 %v1701, 0.0
      %v1746 = vmax.f32 %v1702, 0.0
      %v1747 = vmax.f32 %v1703, 0.0
      %v1748 = vmax.f32 %v1704, 0.0
      %v1749 = vmax.f32 %v1705, 0.0
      %v1750 = vmax.f32 %v1706, 0.0
      %v1751 = vmax.f32 %v1707, 0.0
      %v1752 = vmax.f32 %v1708, 0.0
      %v1753 = vmax.f32 %v1709, 0.0
      %v1754 = vmax.f32 %v1710, 0.0
      %v1755 = vmax.f32 %v1711, 0.0
      %v1756 = vmax.f32 %v1712, 0.0
      %v1757 = vmax.f32 %v1713, 0.0
      %v1758 = vmax.f32 %v1714, 0.0
      %v1759 = vmax.f32 %v1715, 0.0
      %v1760 = vmax.f32 %v1716, 0.0
      %v1761 = vmax.f32 %v1717, 0.0
      %v1762 = vmax.f32 %v1718, 0.0
      %v1763 = vmax.f32 %v1719, 0.0
      %v1764 = vmax.f32 %v1720, 0.0
      %v1765 = vmax.f32 %v1721, 0.0
      %v1766 = vmax.f32 %v1722, 0.0
      %v1767 = vmax.f32 %v1723, 0.0
      %v1768 = vmax.f32 %v1724, 0.0
      %v1769 = vmax.f32 %v1725, 0.0
      %v1770 = vmax.f32 %v1726, 0.0
      %v1771 = vmax.f32 %v1727, 0.0
      %v1772 = vmax.f32 %v1728, 0.0
      %v1773 = vpack.c.bf16 %v1731, %v1729
      %v1774 = vpack.c.bf16 %v1732, %v1730
      %v1775 = vpack.c.bf16 %v1735, %v1733
      %v1776 = vpack.c.bf16 %v1736, %v1734
      %v1777 = vpack.c.bf16 %v1739, %v1737
      %v1778 = vpack.c.bf16 %v1740, %v1738
      %v1779 = vpack.c.bf16 %v1743, %v1741
      %v1780 = vpack.c.bf16 %v1744, %v1742
      %v1781 = vpack.c.bf16 %v1747, %v1745
      %v1782 = vpack.c.bf16 %v1748, %v1746
      %v1783 = vpack.c.bf16 %v1751, %v1749
      %v1784 = vpack.c.bf16 %v1752, %v1750
      %v1785 = vpack.c.bf16 %v1755, %v1753
      %v1786 = vpack.c.bf16 %v1756, %v1754
      %v1787 = vpack.c.bf16 %v1759, %v1757
      %v1788 = vpack.c.bf16 %v1760, %v1758
      %v1789 = vpack.c.bf16 %v1763, %v1761
      %v1790 = vpack.c.bf16 %v1764, %v1762
      %v1791 = vpack.c.bf16 %v1767, %v1765
      %v1792 = vpack.c.bf16 %v1768, %v1766
      %v1793 = vpack.c.bf16 %v1771, %v1769
      %v1794 = vpack.c.bf16 %v1772, %v1770
      %v1817 = vunpack.c.l.b16 %v1773
      %v1818 = vunpack.c.l.b16 %v1774
      %v1819 = vunpack.c.h.b16 %v1773
      %v1820 = vunpack.c.h.b16 %v1774
      %v1821 = vunpack.c.l.b16 %v1775
      %v1822 = vunpack.c.l.b16 %v1776
      %v1823 = vunpack.c.h.b16 %v1775
      %v1824 = vunpack.c.h.b16 %v1776
      %v1825 = vunpack.c.l.b16 %v1777
      %v1826 = vunpack.c.l.b16 %v1778
      %v1827 = vunpack.c.h.b16 %v1777
      %v1828 = vunpack.c.h.b16 %v1778
      %v1829 = vunpack.c.l.b16 %v1779
      %v1830 = vunpack.c.l.b16 %v1780
      %v1831 = vunpack.c.h.b16 %v1779
      %v1832 = vunpack.c.h.b16 %v1780
      %v1833 = vunpack.c.l.b16 %v1781
      %v1834 = vunpack.c.l.b16 %v1782
      %v1835 = vunpack.c.h.b16 %v1781
      %v1836 = vunpack.c.h.b16 %v1782
      %v1837 = vunpack.c.l.b16 %v1783
      %v1838 = vunpack.c.l.b16 %v1784
      %v1839 = vunpack.c.h.b16 %v1783
      %v1840 = vunpack.c.h.b16 %v1784
      %v1841 = vunpack.c.l.b16 %v1785
      %v1842 = vunpack.c.l.b16 %v1786
      %v1843 = vunpack.c.h.b16 %v1785
      %v1844 = vunpack.c.h.b16 %v1786
      %v1845 = vunpack.c.l.b16 %v1787
      %v1846 = vunpack.c.l.b16 %v1788
      %v1847 = vunpack.c.h.b16 %v1787
      %v1848 = vunpack.c.h.b16 %v1788
      %v1849 = vunpack.c.l.b16 %v1789
      %v1850 = vunpack.c.l.b16 %v1790
      %v1851 = vunpack.c.h.b16 %v1789
      %v1852 = vunpack.c.h.b16 %v1790
      %v1853 = vunpack.c.l.b16 %v1791
      %v1854 = vunpack.c.l.b16 %v1792
      %v1855 = vunpack.c.h.b16 %v1791
      %v1856 = vunpack.c.h.b16 %v1792
      %v1857 = vunpack.c.l.b16 %v1793
      %v1858 = vunpack.c.l.b16 %v1794
      %v1859 = vunpack.c.h.b16 %v1793
      %v1860 = vunpack.c.h.b16 %v1794
      %v1861 = vpack.c.b16 %v1818, %v1817
      %v1862 = vpack.c.b16 %v1820, %v1819
      %v1863 = vpack.c.b16 %v1822, %v1821
      %v1864 = vpack.c.b16 %v1824, %v1823
      %v1865 = vpack.c.b16 %v1826, %v1825
      %v1866 = vpack.c.b16 %v1828, %v1827
      %v1867 = vpack.c.b16 %v1830, %v1829
      %v1868 = vpack.c.b16 %v1832, %v1831
      %v1869 = vpack.c.b16 %v1834, %v1833
      %v1870 = vpack.c.b16 %v1836, %v1835
      %v1871 = vpack.c.b16 %v1838, %v1837
      %v1872 = vpack.c.b16 %v1840, %v1839
      %v1873 = vpack.c.b16 %v1842, %v1841
      %v1874 = vpack.c.b16 %v1844, %v1843
      %v1875 = vpack.c.b16 %v1846, %v1845
      %v1876 = vpack.c.b16 %v1848, %v1847
      %v1877 = vpack.c.b16 %v1850, %v1849
      %v1878 = vpack.c.b16 %v1852, %v1851
      %v1879 = vpack.c.b16 %v1854, %v1853
      %v1880 = vpack.c.b16 %v1856, %v1855
      %v1881 = vpack.c.b16 %v1858, %v1857
      %v1882 = vpack.c.b16 %v1860, %v1859
      %vm1883 = vsmask.f32 256
      %vm1884 = vsmask.f32 4368
      %vm1885 = vmor %vm1883, %vm1884
      %v1887 = vshrl.u32 %v1861, 16
      %v1889 = vrot.slane %v1887, 7
      %v1890 = vshll.u32 %v1861, 16
      %v1892 = vor.u32 %v1889, %v1890
      %v1893 = vrot.slane %v1889, 4
      %v1895 = vshrl.u32 %v1862, 16
      %v1897 = vrot.slane %v1895, 7
      %v1898 = vshll.u32 %v1862, 16
      %v1900 = vor.u32 %v1897, %v1898
      %v1901 = vsel %vm1885, %v1893, %v1900
      %v1902 = vrot.slane %v1897, 4
      %v1904 = vshrl.u32 %v1863, 16
      %v1906 = vrot.slane %v1904, 7
      %v1907 = vshll.u32 %v1863, 16
      %v1909 = vor.u32 %v1906, %v1907
      %v1910 = vsel %vm1885, %v1902, %v1909
      %v1911 = vrot.slane %v1906, 4
      %v1913 = vshrl.u32 %v1864, 16
      %v1915 = vrot.slane %v1913, 7
      %v1916 = vshll.u32 %v1864, 16
      %v1918 = vor.u32 %v1915, %v1916
      %v1919 = vsel %vm1885, %v1911, %v1918
      %v1920 = vrot.slane %v1915, 4
      %v1922 = vshrl.u32 %v1865, 16
      %v1924 = vrot.slane %v1922, 7
      %v1925 = vshll.u32 %v1865, 16
      %v1927 = vor.u32 %v1924, %v1925
      %v1928 = vsel %vm1885, %v1920, %v1927
      %v1929 = vrot.slane %v1924, 4
      %v1931 = vshrl.u32 %v1866, 16
      %v1933 = vrot.slane %v1931, 7
      %v1934 = vshll.u32 %v1866, 16
      %v1936 = vor.u32 %v1933, %v1934
      %v1937 = vsel %vm1885, %v1929, %v1936
      %v1938 = vrot.slane %v1933, 4
      %v1940 = vshrl.u32 %v1867, 16
      %v1942 = vrot.slane %v1940, 7
      %v1943 = vshll.u32 %v1867, 16
      %v1945 = vor.u32 %v1942, %v1943
      %v1946 = vsel %vm1885, %v1938, %v1945
      %v1947 = vrot.slane %v1942, 4
      %v1949 = vshrl.u32 %v1868, 16
      %v1951 = vrot.slane %v1949, 7
      %v1952 = vshll.u32 %v1868, 16
      %v1954 = vor.u32 %v1951, %v1952
      %v1955 = vsel %vm1885, %v1947, %v1954
      %v1956 = vrot.slane %v1951, 4
      %v1958 = vshrl.u32 %v1869, 16
      %v1960 = vrot.slane %v1958, 7
      %v1961 = vshll.u32 %v1869, 16
      %v1963 = vor.u32 %v1960, %v1961
      %v1964 = vsel %vm1885, %v1956, %v1963
      %v1965 = vrot.slane %v1960, 4
      %v1967 = vshrl.u32 %v1870, 16
      %v1969 = vrot.slane %v1967, 7
      %v1970 = vshll.u32 %v1870, 16
      %v1972 = vor.u32 %v1969, %v1970
      %v1973 = vsel %vm1885, %v1965, %v1972
      %v1974 = vrot.slane %v1969, 4
      %v1976 = vshrl.u32 %v1871, 16
      %v1978 = vrot.slane %v1976, 7
      %v1979 = vshll.u32 %v1871, 16
      %v1981 = vor.u32 %v1978, %v1979
      %v1982 = vsel %vm1885, %v1974, %v1981
      %v1983 = vrot.slane %v1978, 4
      %v1985 = vshrl.u32 %v1872, 16
      %v1987 = vrot.slane %v1985, 7
      %v1988 = vshll.u32 %v1872, 16
      %v1990 = vor.u32 %v1987, %v1988
      %v1991 = vsel %vm1885, %v1983, %v1990
      %v1992 = vrot.slane %v1987, 4
      %v1994 = vshrl.u32 %v1873, 16
      %v1996 = vrot.slane %v1994, 7
      %v1997 = vshll.u32 %v1873, 16
      %v1999 = vor.u32 %v1996, %v1997
      %v2000 = vsel %vm1885, %v1992, %v1999
      %v2001 = vrot.slane %v1996, 4
      %v2003 = vshrl.u32 %v1874, 16
      %v2005 = vrot.slane %v2003, 7
      %v2006 = vshll.u32 %v1874, 16
      %v2008 = vor.u32 %v2005, %v2006
      %v2009 = vsel %vm1885, %v2001, %v2008
      %v2010 = vrot.slane %v2005, 4
      %v2012 = vshrl.u32 %v1875, 16
      %v2014 = vrot.slane %v2012, 7
      %v2015 = vshll.u32 %v1875, 16
      %v2017 = vor.u32 %v2014, %v2015
      %v2018 = vsel %vm1885, %v2010, %v2017
      %v2019 = vrot.slane %v2014, 4
      %v2021 = vshrl.u32 %v1876, 16
      %v2023 = vrot.slane %v2021, 7
      %v2024 = vshll.u32 %v1876, 16
      %v2026 = vor.u32 %v2023, %v2024
      %v2027 = vsel %vm1885, %v2019, %v2026
      %v2028 = vrot.slane %v2023, 4
      %v2030 = vshrl.u32 %v1877, 16
      %v2032 = vrot.slane %v2030, 7
      %v2033 = vshll.u32 %v1877, 16
      %v2035 = vor.u32 %v2032, %v2033
      %v2036 = vsel %vm1885, %v2028, %v2035
      %v2037 = vrot.slane %v2032, 4
      %v2039 = vshrl.u32 %v1878, 16
      %v2041 = vrot.slane %v2039, 7
      %v2042 = vshll.u32 %v1878, 16
      %v2044 = vor.u32 %v2041, %v2042
      %v2045 = vsel %vm1885, %v2037, %v2044
      %v2046 = vrot.slane %v2041, 4
      %v2048 = vshrl.u32 %v1879, 16
      %v2050 = vrot.slane %v2048, 7
      %v2051 = vshll.u32 %v1879, 16
      %v2053 = vor.u32 %v2050, %v2051
      %v2054 = vsel %vm1885, %v2046, %v2053
      %v2055 = vrot.slane %v2050, 4
      %v2057 = vshrl.u32 %v1880, 16
      %v2059 = vrot.slane %v2057, 7
      %v2060 = vshll.u32 %v1880, 16
      %v2062 = vor.u32 %v2059, %v2060
      %v2063 = vsel %vm1885, %v2055, %v2062
      %v2064 = vrot.slane %v2059, 4
      %v2066 = vshrl.u32 %v1881, 16
      %v2068 = vrot.slane %v2066, 7
      %v2069 = vshll.u32 %v1881, 16
      %v2071 = vor.u32 %v2068, %v2069
      %v2072 = vsel %vm1885, %v2064, %v2071
      %v2073 = vrot.slane %v2068, 4
      %v2075 = vshrl.u32 %v1882, 16
      %v2077 = vrot.slane %v2075, 7
      %v2078 = vshll.u32 %v1882, 16
      %v2080 = vor.u32 %v2077, %v2078
      %v2081 = vsel %vm1885, %v2073, %v2080
      %vm2104 = vcmask 1043456
      %vm2105 = vsmask.f32 7938
      %vm2106 = vmand %vm2104, %vm2105
      %vm2107 = vcmask 1047556
      %vm2108 = vsmask.f32 7954
      %vm2109 = vmand %vm2107, %vm2108
      %vm2110 = vmor %vm2109, %vm2106
      %v2111 = vld [vmem:[#allocation2] sm:$0xff]
      %v2112 = vsel %vm2110, %v1892, %v2111
      %2113 = vst [vmem:[#allocation2] sm:$0xff] %v2112
      %2114 = vst [vmem:[#allocation2 + $0x8] sm:$0xff] %v1901
      %2115 = vst [vmem:[#allocation2 + $0x10] sm:$0xff] %v1910
      %2116 = vst [vmem:[#allocation2 + $0x18] sm:$0xff] %v1919
      %2117 = vst [vmem:[#allocation2 + $0x20] sm:$0xff] %v1928
      %2118 = vst [vmem:[#allocation2 + $0x28] sm:$0xff] %v1937
      %2119 = vst [vmem:[#allocation2 + $0x30] sm:$0xff] %v1946
      %2120 = vst [vmem:[#allocation2 + $0x38] sm:$0xff] %v1955
      %2121 = vst [vmem:[#allocation2 + $0x40] sm:$0xff] %v1964
      %2122 = vst [vmem:[#allocation2 + $0x48] sm:$0xff] %v1973
      %2123 = vst [vmem:[#allocation2 + $0x50] sm:$0xff] %v1982
      %2124 = vst [vmem:[#allocation2 + $0x58] sm:$0xff] %v1991
      %2125 = vst [vmem:[#allocation2 + $0x60] sm:$0xff] %v2000
      %2126 = vst [vmem:[#allocation2 + $0x68] sm:$0xff] %v2009
      %2127 = vst [vmem:[#allocation2 + $0x70] sm:$0xff] %v2018
      %2128 = vst [vmem:[#allocation2 + $0x78] sm:$0xff] %v2027
      %2129 = vst [vmem:[#allocation2 + $0x80] sm:$0xff] %v2036
      %2130 = vst [vmem:[#allocation2 + $0x88] sm:$0xff] %v2045
      %2131 = vst [vmem:[#allocation2 + $0x90] sm:$0xff] %v2054
      %2132 = vst [vmem:[#allocation2 + $0x98] sm:$0xff] %v2063
      %2133 = vst [vmem:[#allocation2 + $0xa0] sm:$0xff] %v2072
      %vm2134 = vcmask 1041408
      %vm2135 = vsmask.f32 1280
      %vm2136 = vmand %vm2134, %vm2135
      %vm2137 = vcmask 1045508
      %vm2138 = vsmask.f32 5376
      %vm2139 = vmand %vm2137, %vm2138
      %vm2140 = vmor %vm2139, %vm2136
      %v2141 = vld [vmem:[#allocation2 + $0xa8] sm:$0x33]
      %v2142 = vsel %vm2140, %v2081, %v2141
      %2143 = vst [vmem:[#allocation2 + $0xa8] sm:$0x33] %v2142
      %vm2144 = vcmask 1041409
      %vm2145 = vsmask.f32 7942
      %vm2146 = vmand %vm2144, %vm2145
      %vm2147 = vcmask 1045509
      %vm2148 = vsmask.f32 7958
      %vm2149 = vmand %vm2147, %vm2148
      %vm2150 = vmor %vm2149, %vm2146
      %v2151 = vld [vmem:[#allocation2 + $0xa8] sm:$0x22]
      %v2152 = vsel %vm2150, 0, %v2151
      %2153 = vst [vmem:[#allocation2 + $0xa8] sm:$0x22] %v2152
      %v2154 = vld [vmem:[#allocation2] sm:$0xff]
      %v2155 = vld [vmem:[#allocation2 + $0x8] sm:$0xff]
      %v2156 = vld [vmem:[#allocation2 + $0x10] sm:$0xff]
      %v2157 = vld [vmem:[#allocation2 + $0x18] sm:$0xff]
      %v2158 = vld [vmem:[#allocation2 + $0x20] sm:$0xff]
      %v2159 = vld [vmem:[#allocation2 + $0x28] sm:$0xff]
      %v2160 = vld [vmem:[#allocation2 + $0x30] sm:$0xff]
      %v2161 = vld [vmem:[#allocation2 + $0x38] sm:$0xff]
      %v2162 = vld [vmem:[#allocation2 + $0x40] sm:$0xff]
      %v2163 = vld [vmem:[#allocation2 + $0x48] sm:$0xff]
      %v2164 = vld [vmem:[#allocation2 + $0x50] sm:$0xff]
      %v2165 = vld [vmem:[#allocation2 + $0x58] sm:$0xff]
      %v2166 = vld [vmem:[#allocation2 + $0x60] sm:$0xff]
      %v2167 = vld [vmem:[#allocation2 + $0x68] sm:$0xff]
      %v2168 = vld [vmem:[#allocation2 + $0x70] sm:$0xff]
      %v2169 = vld [vmem:[#allocation2 + $0x78] sm:$0xff]
      %v2170 = vld [vmem:[#allocation2 + $0x80] sm:$0xff]
      %v2171 = vld [vmem:[#allocation2 + $0x88] sm:$0xff]
      %v2172 = vld [vmem:[#allocation2 + $0x90] sm:$0xff]
      %v2173 = vld [vmem:[#allocation2 + $0x98] sm:$0xff]
      %v2174 = vld [vmem:[#allocation2 + $0xa0] sm:$0x77]
      %s2175 = scalar_lea.vmem %s1, 768
      %v2176 = vld [vmem:[%s2175] sm:$0xff]
      %v2177 = vld [vmem:[%s2175 + $0x8] sm:$0xff]
      %v2178 = vld [vmem:[%s2175 + $0x10] sm:$0xff]
      %v2179 = vld [vmem:[%s2175 + $0x18] sm:$0xff]
      %v2180 = vld [vmem:[%s2175 + $0x20] sm:$0xff]
      %v2181 = vld [vmem:[%s2175 + $0x28] sm:$0xff]
      %v2182 = vld [vmem:[%s2175 + $0x30] sm:$0xff]
      %v2183 = vld [vmem:[%s2175 + $0x38] sm:$0xff]
      %v2184 = vld [vmem:[%s2175 + $0x40] sm:$0xff]
      %v2185 = vld [vmem:[%s2175 + $0x48] sm:$0xff]
      %v2186 = vld [vmem:[%s2175 + $0x50] sm:$0xff]
      %v2187 = vld [vmem:[%s2175 + $0x58] sm:$0xff]
      %v2188 = vld [vmem:[%s2175 + $0x60] sm:$0xff]
      %v2189 = vld [vmem:[%s2175 + $0x68] sm:$0xff]
      %v2190 = vld [vmem:[%s2175 + $0x70] sm:$0xff]
      %v2191 = vld [vmem:[%s2175 + $0x78] sm:$0xff]
      %v2192 = vld [vmem:[%s2175 + $0x80] sm:$0xff]
      %v2193 = vld [vmem:[%s2175 + $0x88] sm:$0xff]
      %v2194 = vld [vmem:[%s2175 + $0x90] sm:$0xff]
      %v2195 = vld [vmem:[%s2175 + $0x98] sm:$0xff]
      %v2196 = vld [vmem:[%s2175 + $0xa0] sm:$0xff]
      %v2197 = vld [vmem:[%s2175 + $0xa8] sm:$0xff]
      %v2198 = vld [vmem:[%s2175 + $0xb0] sm:$0xff]
      %v2199 = vld [vmem:[%s2175 + $0xb8] sm:$0xff]
      %v2200 = vld [vmem:[%s2175 + $0xc0] sm:$0xff]
      %v2201 = vld [vmem:[%s2175 + $0xc8] sm:$0xff]
      %v2202 = vld [vmem:[%s2175 + $0xd0] sm:$0xff]
      %v2203 = vld [vmem:[%s2175 + $0xd8] sm:$0xff]
      %v2204 = vld [vmem:[%s2175 + $0xe0] sm:$0xff]
      %v2205 = vld [vmem:[%s2175 + $0xe8] sm:$0xff]
      %v2206 = vld [vmem:[%s2175 + $0xf0] sm:$0xff]
      %v2207 = vld [vmem:[%s2175 + $0xf8] sm:$0xff]
      %v2208 = vld [vmem:[#allocation2] sm:$0xee]
      %v2209 = vld [vmem:[#allocation2 + $0xa0] sm:$0xff]
      %v2210 = vld [vmem:[#allocation2 + $0xa8] sm:$0x11]
      %s2211 = scalar_lea.vmem %s1, 1024
      %v2212 = vld [vmem:[%s2211] sm:$0xff]
      %v2213 = vld [vmem:[%s2211 + $0x8] sm:$0xff]
      %v2214 = vld [vmem:[%s2211 + $0x10] sm:$0xff]
      %v2215 = vld [vmem:[%s2211 + $0x18] sm:$0xff]
      %v2216 = vld [vmem:[%s2211 + $0x20] sm:$0xff]
      %v2217 = vld [vmem:[%s2211 + $0x28] sm:$0xff]
      %v2218 = vld [vmem:[%s2211 + $0x30] sm:$0xff]
      %v2219 = vld [vmem:[%s2211 + $0x38] sm:$0xff]
      %v2220 = vld [vmem:[%s2211 + $0x40] sm:$0xff]
      %v2221 = vld [vmem:[%s2211 + $0x48] sm:$0xff]
      %v2222 = vld [vmem:[%s2211 + $0x50] sm:$0xff]
      %v2223 = vld [vmem:[%s2211 + $0x58] sm:$0xff]
      %v2224 = vld [vmem:[%s2211 + $0x60] sm:$0xff]
      %v2225 = vld [vmem:[%s2211 + $0x68] sm:$0xff]
      %v2226 = vld [vmem:[%s2211 + $0x70] sm:$0xff]
      %v2227 = vld [vmem:[%s2211 + $0x78] sm:$0xff]
      %v2228 = vld [vmem:[%s2211 + $0x80] sm:$0xff]
      %v2229 = vld [vmem:[%s2211 + $0x88] sm:$0xff]
      %v2230 = vld [vmem:[%s2211 + $0x90] sm:$0xff]
      %v2231 = vld [vmem:[%s2211 + $0x98] sm:$0xff]
      %v2232 = vld [vmem:[%s2211 + $0xa0] sm:$0xff]
      %v2233 = vld [vmem:[%s2211 + $0xa8] sm:$0xff]
      %v2234 = vld [vmem:[%s2211 + $0xb0] sm:$0xff]
      %v2235 = vld [vmem:[%s2211 + $0xb8] sm:$0xff]
      %v2236 = vld [vmem:[%s2211 + $0xc0] sm:$0xff]
      %v2237 = vld [vmem:[%s2211 + $0xc8] sm:$0xff]
      %v2238 = vld [vmem:[%s2211 + $0xd0] sm:$0xff]
      %v2239 = vld [vmem:[%s2211 + $0xd8] sm:$0xff]
      %v2240 = vld [vmem:[%s2211 + $0xe0] sm:$0xff]
      %v2241 = vld [vmem:[%s2211 + $0xe8] sm:$0xff]
      %v2242 = vld [vmem:[%s2211 + $0xf0] sm:$0xff]
      %v2243 = vld [vmem:[%s2211 + $0xf8] sm:$0xff]
      %v2266 = vunpack.c.l.b16 %v2208
      %v2267 = vunpack.c.h.b16 %v2208
      %v2268 = vunpack.c.l.b16 %v2155
      %v2269 = vunpack.c.h.b16 %v2155
      %v2270 = vunpack.c.l.b16 %v2156
      %v2271 = vunpack.c.h.b16 %v2156
      %v2272 = vunpack.c.l.b16 %v2157
      %v2273 = vunpack.c.h.b16 %v2157
      %v2274 = vunpack.c.l.b16 %v2158
      %v2275 = vunpack.c.h.b16 %v2158
      %v2276 = vunpack.c.l.b16 %v2159
      %v2277 = vunpack.c.h.b16 %v2159
      %v2278 = vunpack.c.l.b16 %v2160
      %v2279 = vunpack.c.h.b16 %v2160
      %v2280 = vunpack.c.l.b16 %v2161
      %v2281 = vunpack.c.h.b16 %v2161
      %v2282 = vunpack.c.l.b16 %v2162
      %v2283 = vunpack.c.h.b16 %v2162
      %v2284 = vunpack.c.l.b16 %v2163
      %v2285 = vunpack.c.h.b16 %v2163
      %v2286 = vunpack.c.l.b16 %v2164
      %v2287 = vunpack.c.h.b16 %v2164
      %v2288 = vunpack.c.l.b16 %v2165
      %v2289 = vunpack.c.h.b16 %v2165
      %v2290 = vunpack.c.l.b16 %v2166
      %v2291 = vunpack.c.h.b16 %v2166
      %v2292 = vunpack.c.l.b16 %v2167
      %v2293 = vunpack.c.h.b16 %v2167
      %v2294 = vunpack.c.l.b16 %v2168
      %v2295 = vunpack.c.h.b16 %v2168
      %v2296 = vunpack.c.l.b16 %v2169
      %v2297 = vunpack.c.h.b16 %v2169
      %v2298 = vunpack.c.l.b16 %v2170
      %v2299 = vunpack.c.h.b16 %v2170
      %v2300 = vunpack.c.l.b16 %v2171
      %v2301 = vunpack.c.h.b16 %v2171
      %v2302 = vunpack.c.l.b16 %v2172
      %v2303 = vunpack.c.h.b16 %v2172
      %v2304 = vunpack.c.l.b16 %v2173
      %v2305 = vunpack.c.h.b16 %v2173
      %v2306 = vunpack.c.l.b16 %v2209
      %v2307 = vunpack.c.h.b16 %v2209
      %v2308 = vunpack.c.l.b16 %v2210
      %v2309 = vunpack.c.h.b16 %v2210
      %v2310 = vpack.c.b16 %v2268, %v2266
      %v2311 = vpack.c.b16 %v2269, %v2267
      %v2312 = vpack.c.b16 %v2272, %v2270
      %v2313 = vpack.c.b16 %v2273, %v2271
      %v2314 = vpack.c.b16 %v2276, %v2274
      %v2315 = vpack.c.b16 %v2277, %v2275
      %v2316 = vpack.c.b16 %v2280, %v2278
      %v2317 = vpack.c.b16 %v2281, %v2279
      %v2318 = vpack.c.b16 %v2284, %v2282
      %v2319 = vpack.c.b16 %v2285, %v2283
      %v2320 = vpack.c.b16 %v2288, %v2286
      %v2321 = vpack.c.b16 %v2289, %v2287
      %v2322 = vpack.c.b16 %v2292, %v2290
      %v2323 = vpack.c.b16 %v2293, %v2291
      %v2324 = vpack.c.b16 %v2296, %v2294
      %v2325 = vpack.c.b16 %v2297, %v2295
      %v2326 = vpack.c.b16 %v2300, %v2298
      %v2327 = vpack.c.b16 %v2301, %v2299
      %v2328 = vpack.c.b16 %v2304, %v2302
      %v2329 = vpack.c.b16 %v2305, %v2303
      %v2330 = vpack.c.b16 %v2308, %v2306
      %v2331 = vpack.c.b16 %v2309, %v2307
      %vm2332 = vsmask.f32 6400
      %v2334 = vshrl.u32 %v2310, 16
      %v2336 = vrot.slane %v2334, 1
      %v2337 = vshll.u32 %v2310, 16
      %v2339 = vrot.slane %v2337, 2
      %v2340 = vor.u32 %v2336, %v2339
      %v2342 = vshrl.u32 %v2312, 16
      %v2344 = vrot.slane %v2342, 1
      %v2345 = vshll.u32 %v2312, 16
      %v2347 = vrot.slane %v2345, 2
      %v2348 = vor.u32 %v2344, %v2347
      %v2349 = vsel %vm2332, %v2340, %v2348
      %v2351 = vshrl.u32 %v2311, 16
      %v2353 = vrot.slane %v2351, 1
      %v2354 = vshll.u32 %v2311, 16
      %v2356 = vrot.slane %v2354, 2
      %v2357 = vor.u32 %v2353, %v2356
      %v2359 = vshrl.u32 %v2313, 16
      %v2361 = vrot.slane %v2359, 1
      %v2362 = vshll.u32 %v2313, 16
      %v2364 = vrot.slane %v2362, 2
      %v2365 = vor.u32 %v2361, %v2364
      %v2366 = vsel %vm2332, %v2357, %v2365
      %v2368 = vshrl.u32 %v2314, 16
      %v2370 = vrot.slane %v2368, 1
      %v2371 = vshll.u32 %v2314, 16
      %v2373 = vrot.slane %v2371, 2
      %v2374 = vor.u32 %v2370, %v2373
      %v2375 = vsel %vm2332, %v2348, %v2374
      %v2377 = vshrl.u32 %v2315, 16
      %v2379 = vrot.slane %v2377, 1
      %v2380 = vshll.u32 %v2315, 16
      %v2382 = vrot.slane %v2380, 2
      %v2383 = vor.u32 %v2379, %v2382
      %v2384 = vsel %vm2332, %v2365, %v2383
      %v2386 = vshrl.u32 %v2316, 16
      %v2388 = vrot.slane %v2386, 1
      %v2389 = vshll.u32 %v2316, 16
      %v2391 = vrot.slane %v2389, 2
      %v2392 = vor.u32 %v2388, %v2391
      %v2393 = vsel %vm2332, %v2374, %v2392
      %v2395 = vshrl.u32 %v2317, 16
      %v2397 = vrot.slane %v2395, 1
      %v2398 = vshll.u32 %v2317, 16
      %v2400 = vrot.slane %v2398, 2
      %v2401 = vor.u32 %v2397, %v2400
      %v2402 = vsel %vm2332, %v2383, %v2401
      %v2404 = vshrl.u32 %v2318, 16
      %v2406 = vrot.slane %v2404, 1
      %v2407 = vshll.u32 %v2318, 16
      %v2409 = vrot.slane %v2407, 2
      %v2410 = vor.u32 %v2406, %v2409
      %v2411 = vsel %vm2332, %v2392, %v2410
      %v2413 = vshrl.u32 %v2319, 16
      %v2415 = vrot.slane %v2413, 1
      %v2416 = vshll.u32 %v2319, 16
      %v2418 = vrot.slane %v2416, 2
      %v2419 = vor.u32 %v2415, %v2418
      %v2420 = vsel %vm2332, %v2401, %v2419
      %v2422 = vshrl.u32 %v2320, 16
      %v2424 = vrot.slane %v2422, 1
      %v2425 = vshll.u32 %v2320, 16
      %v2427 = vrot.slane %v2425, 2
      %v2428 = vor.u32 %v2424, %v2427
      %v2429 = vsel %vm2332, %v2410, %v2428
      %v2431 = vshrl.u32 %v2321, 16
      %v2433 = vrot.slane %v2431, 1
      %v2434 = vshll.u32 %v2321, 16
      %v2436 = vrot.slane %v2434, 2
      %v2437 = vor.u32 %v2433, %v2436
      %v2438 = vsel %vm2332, %v2419, %v2437
      %v2440 = vshrl.u32 %v2322, 16
      %v2442 = vrot.slane %v2440, 1
      %v2443 = vshll.u32 %v2322, 16
      %v2445 = vrot.slane %v2443, 2
      %v2446 = vor.u32 %v2442, %v2445
      %v2447 = vsel %vm2332, %v2428, %v2446
      %v2449 = vshrl.u32 %v2323, 16
      %v2451 = vrot.slane %v2449, 1
      %v2452 = vshll.u32 %v2323, 16
      %v2454 = vrot.slane %v2452, 2
      %v2455 = vor.u32 %v2451, %v2454
      %v2456 = vsel %vm2332, %v2437, %v2455
      %v2458 = vshrl.u32 %v2324, 16
      %v2460 = vrot.slane %v2458, 1
      %v2461 = vshll.u32 %v2324, 16
      %v2463 = vrot.slane %v2461, 2
      %v2464 = vor.u32 %v2460, %v2463
      %v2465 = vsel %vm2332, %v2446, %v2464
      %v2467 = vshrl.u32 %v2325, 16
      %v2469 = vrot.slane %v2467, 1
      %v2470 = vshll.u32 %v2325, 16
      %v2472 = vrot.slane %v2470, 2
      %v2473 = vor.u32 %v2469, %v2472
      %v2474 = vsel %vm2332, %v2455, %v2473
      %v2476 = vshrl.u32 %v2326, 16
      %v2478 = vrot.slane %v2476, 1
      %v2479 = vshll.u32 %v2326, 16
      %v2481 = vrot.slane %v2479, 2
      %v2482 = vor.u32 %v2478, %v2481
      %v2483 = vsel %vm2332, %v2464, %v2482
      %v2485 = vshrl.u32 %v2327, 16
      %v2487 = vrot.slane %v2485, 1
      %v2488 = vshll.u32 %v2327, 16
      %v2490 = vrot.slane %v2488, 2
      %v2491 = vor.u32 %v2487, %v2490
      %v2492 = vsel %vm2332, %v2473, %v2491
      %v2494 = vshrl.u32 %v2328, 16
      %v2496 = vrot.slane %v2494, 1
      %v2497 = vshll.u32 %v2328, 16
      %v2499 = vrot.slane %v2497, 2
      %v2500 = vor.u32 %v2496, %v2499
      %v2501 = vsel %vm2332, %v2482, %v2500
      %v2503 = vshrl.u32 %v2329, 16
      %v2505 = vrot.slane %v2503, 1
      %v2506 = vshll.u32 %v2329, 16
      %v2508 = vrot.slane %v2506, 2
      %v2509 = vor.u32 %v2505, %v2508
      %v2510 = vsel %vm2332, %v2491, %v2509
      %v2512 = vshrl.u32 %v2330, 16
      %v2514 = vrot.slane %v2512, 1
      %v2515 = vshll.u32 %v2330, 16
      %v2517 = vrot.slane %v2515, 2
      %v2518 = vor.u32 %v2514, %v2517
      %v2519 = vsel %vm2332, %v2500, %v2518
      %v2521 = vshrl.u32 %v2331, 16
      %v2523 = vrot.slane %v2521, 1
      %v2524 = vshll.u32 %v2331, 16
      %v2526 = vrot.slane %v2524, 2
      %v2527 = vor.u32 %v2523, %v2526
      %v2528 = vsel %vm2332, %v2509, %v2527
      %v2583 = vunpack.c.l.b16 %v2212
      %v2584 = vunpack.c.h.b16 %v2212
      %v2585 = vunpack.c.l.b16 %v2213
      %v2586 = vunpack.c.h.b16 %v2213
      %v2587 = vunpack.c.l.b16 %v2214
      %v2588 = vunpack.c.h.b16 %v2214
      %v2589 = vunpack.c.l.b16 %v2215
      %v2590 = vunpack.c.h.b16 %v2215
      %v2591 = vunpack.c.l.b16 %v2216
      %v2592 = vunpack.c.h.b16 %v2216
      %v2593 = vunpack.c.l.b16 %v2217
      %v2594 = vunpack.c.h.b16 %v2217
      %v2595 = vunpack.c.l.b16 %v2218
      %v2596 = vunpack.c.h.b16 %v2218
      %v2597 = vunpack.c.l.b16 %v2219
      %v2598 = vunpack.c.h.b16 %v2219
      %v2599 = vunpack.c.l.b16 %v2220
      %v2600 = vunpack.c.h.b16 %v2220
      %v2601 = vunpack.c.l.b16 %v2221
      %v2602 = vunpack.c.h.b16 %v2221
      %v2603 = vunpack.c.l.b16 %v2222
      %v2604 = vunpack.c.h.b16 %v2222
      %v2605 = vunpack.c.l.b16 %v2223
      %v2606 = vunpack.c.h.b16 %v2223
      %v2607 = vunpack.c.l.b16 %v2224
      %v2608 = vunpack.c.h.b16 %v2224
      %v2609 = vunpack.c.l.b16 %v2225
      %v2610 = vunpack.c.h.b16 %v2225
      %v2611 = vunpack.c.l.b16 %v2226
      %v2612 = vunpack.c.h.b16 %v2226
      %v2613 = vunpack.c.l.b16 %v2227
      %v2614 = vunpack.c.h.b16 %v2227
      %v2615 = vunpack.c.l.b16 %v2228
      %v2616 = vunpack.c.h.b16 %v2228
      %v2617 = vunpack.c.l.b16 %v2229
      %v2618 = vunpack.c.h.b16 %v2229
      %v2619 = vunpack.c.l.b16 %v2230
      %v2620 = vunpack.c.h.b16 %v2230
      %v2621 = vunpack.c.l.b16 %v2231
      %v2622 = vunpack.c.h.b16 %v2231
      %v2623 = vunpack.c.l.b16 %v2232
      %v2624 = vunpack.c.h.b16 %v2232
      %v2625 = vunpack.c.l.b16 %v2233
      %v2626 = vunpack.c.h.b16 %v2233
      %v2627 = vunpack.c.l.b16 %v2234
      %v2628 = vunpack.c.h.b16 %v2234
      %v2629 = vunpack.c.l.b16 %v2235
      %v2630 = vunpack.c.h.b16 %v2235
      %v2631 = vunpack.c.l.b16 %v2236
      %v2632 = vunpack.c.h.b16 %v2236
      %v2633 = vunpack.c.l.b16 %v2237
      %v2634 = vunpack.c.h.b16 %v2237
      %v2635 = vunpack.c.l.b16 %v2238
      %v2636 = vunpack.c.h.b16 %v2238
      %v2637 = vunpack.c.l.b16 %v2239
      %v2638 = vunpack.c.h.b16 %v2239
      %v2639 = vunpack.c.l.b16 %v2240
      %v2640 = vunpack.c.h.b16 %v2240
      %v2641 = vunpack.c.l.b16 %v2241
      %v2642 = vunpack.c.h.b16 %v2241
      %v2643 = vunpack.c.l.b16 %v2242
      %v2644 = vunpack.c.h.b16 %v2242
      %v2645 = vunpack.c.l.b16 %v2243
      %v2646 = vunpack.c.h.b16 %v2243
      %v2647 = vpack.c.b16 %v2585, %v2583
      %v2648 = vpack.c.b16 %v2586, %v2584
      %v2649 = vpack.c.b16 %v2589, %v2587
      %v2650 = vpack.c.b16 %v2590, %v2588
      %v2651 = vpack.c.b16 %v2593, %v2591
      %v2652 = vpack.c.b16 %v2594, %v2592
      %v2653 = vpack.c.b16 %v2597, %v2595
      %v2654 = vpack.c.b16 %v2598, %v2596
      %v2655 = vpack.c.b16 %v2601, %v2599
      %v2656 = vpack.c.b16 %v2602, %v2600
      %v2657 = vpack.c.b16 %v2605, %v2603
      %v2658 = vpack.c.b16 %v2606, %v2604
      %v2659 = vpack.c.b16 %v2609, %v2607
      %v2660 = vpack.c.b16 %v2610, %v2608
      %v2661 = vpack.c.b16 %v2613, %v2611
      %v2662 = vpack.c.b16 %v2614, %v2612
      %v2663 = vpack.c.b16 %v2617, %v2615
      %v2664 = vpack.c.b16 %v2618, %v2616
      %v2665 = vpack.c.b16 %v2621, %v2619
      %v2666 = vpack.c.b16 %v2622, %v2620
      %v2667 = vpack.c.b16 %v2625, %v2623
      %v2668 = vpack.c.b16 %v2626, %v2624
      %v2669 = vpack.c.b16 %v2629, %v2627
      %v2670 = vpack.c.b16 %v2630, %v2628
      %v2671 = vpack.c.b16 %v2633, %v2631
      %v2672 = vpack.c.b16 %v2634, %v2632
      %v2673 = vpack.c.b16 %v2637, %v2635
      %v2674 = vpack.c.b16 %v2638, %v2636
      %v2675 = vpack.c.b16 %v2641, %v2639
      %v2676 = vpack.c.b16 %v2642, %v2640
      %v2677 = vpack.c.b16 %v2645, %v2643
      %v2678 = vpack.c.b16 %v2646, %v2644
      %2711 = vmatprep.subr.bf16.mxu0 %v2648
      %2712 = vmatpush1.bf16.msra.mxu0 %v2647
      %2713 = vmatprep.subr.bf16.mxu0 %v2650
      %2714 = vmatpush1.bf16.msra.mxu0 %v2649
      %2715 = vmatprep.subr.bf16.mxu0 %v2652
      %2716 = vmatpush1.bf16.msra.mxu0 %v2651
      %2717 = vmatprep.subr.bf16.mxu0 %v2654
      %2718 = vmatpush1.bf16.msra.mxu0 %v2653
      %2719 = vmatprep.subr.bf16.mxu0 %v2656
      %2720 = vmatpush1.bf16.msra.mxu0 %v2655
      %2721 = vmatprep.subr.bf16.mxu0 %v2658
      %2722 = vmatpush1.bf16.msra.mxu0 %v2657
      %2723 = vmatprep.subr.bf16.mxu0 %v2660
      %2724 = vmatpush1.bf16.msra.mxu0 %v2659
      %2725 = vmatprep.subr.bf16.mxu0 %v2662
      %2726 = vmatpush1.bf16.msra.mxu0 %v2661
      %2727 = vmatprep.subr.bf16.mxu0 %v2664
      %2728 = vmatpush1.bf16.msra.mxu0 %v2663
      %2729 = vmatprep.subr.bf16.mxu0 %v2666
      %2730 = vmatpush1.bf16.msra.mxu0 %v2665
      %2731 = vmatprep.subr.bf16.mxu0 %v2668
      %2732 = vmatpush1.bf16.msra.mxu0 %v2667
      %2733 = vmatprep.subr.bf16.mxu0 %v2670
      %2734 = vmatpush1.bf16.msra.mxu0 %v2669
      %2735 = vmatprep.subr.bf16.mxu0 %v2672
      %2736 = vmatpush1.bf16.msra.mxu0 %v2671
      %2737 = vmatprep.subr.bf16.mxu0 %v2674
      %2738 = vmatpush1.bf16.msra.mxu0 %v2673
      %2739 = vmatprep.subr.bf16.mxu0 %v2676
      %2740 = vmatpush1.bf16.msra.mxu0 %v2675
      %2741 = vmatprep.subr.bf16.mxu0 %v2678
      %2742 = vmatpush1.bf16.msra.mxu0 %v2677
      %2743 = vmatprep.mubr.bf16.mxu0 %v2366
      %2744 = vmatmul.mubr.bf16.gmra.mrb[0].mxu0 %v2349
      %v2745 = vpop.f32.mrb[0].mxu0
      %v2746 = vadd.f32 0.0, %v2745
      %v2747 = vpop.f32.mrb[0].mxu0
      %v2748 = vadd.f32 0.0, %v2747
      %v2749 = vpop.f32.mrb[0].mxu0
      %v2750 = vadd.f32 0.0, %v2749
      %v2751 = vpop.f32.mrb[0].mxu0
      %v2752 = vadd.f32 0.0, %v2751
      %2753 = vmatprep.mubr.bf16.mxu0 %v2384
      %2754 = vmatmul.mubr.bf16.gmra.mrb[0].mxu0 %v2375
      %v2755 = vpop.f32.mrb[0].mxu0
      %v2756 = vadd.f32 0.0, %v2755
      %v2757 = vpop.f32.mrb[0].mxu0
      %v2758 = vadd.f32 0.0, %v2757
      %v2759 = vpop.f32.mrb[0].mxu0
      %v2760 = vadd.f32 0.0, %v2759
      %v2761 = vpop.f32.mrb[0].mxu0
      %v2762 = vadd.f32 0.0, %v2761
      %2763 = vmatprep.mubr.bf16.mxu0 %v2402
      %2764 = vmatmul.mubr.bf16.gmra.mrb[0].mxu0 %v2393
      %v2765 = vpop.f32.mrb[0].mxu0
      %v2766 = vadd.f32 0.0, %v2765
      %v2767 = vpop.f32.mrb[0].mxu0
      %v2768 = vadd.f32 0.0, %v2767
      %v2769 = vpop.f32.mrb[0].mxu0
      %v2770 = vadd.f32 0.0, %v2769
      %v2771 = vpop.f32.mrb[0].mxu0
      %v2772 = vadd.f32 0.0, %v2771
      %2773 = vmatprep.mubr.bf16.mxu0 %v2420
      %2774 = vmatmul.mubr.bf16.gmra.mrb[0].mxu0 %v2411
      %v2775 = vpop.f32.mrb[0].mxu0
      %v2776 = vadd.f32 0.0, %v2775
      %v2777 = vpop.f32.mrb[0].mxu0
      %v2778 = vadd.f32 0.0, %v2777
      %v2779 = vpop.f32.mrb[0].mxu0
      %v2780 = vadd.f32 0.0, %v2779
      %v2781 = vpop.f32.mrb[0].mxu0
      %v2782 = vadd.f32 0.0, %v2781
      %2783 = vmatprep.mubr.bf16.mxu0 %v2438
      %2784 = vmatmul.mubr.bf16.gmra.mrb[0].mxu0 %v2429
      %v2785 = vpop.f32.mrb[0].mxu0
      %v2786 = vadd.f32 0.0, %v2785
      %v2787 = vpop.f32.mrb[0].mxu0
      %v2788 = vadd.f32 0.0, %v2787
      %v2789 = vpop.f32.mrb[0].mxu0
      %v2790 = vadd.f32 0.0, %v2789
      %v2791 = vpop.f32.mrb[0].mxu0
      %v2792 = vadd.f32 0.0, %v2791
      %2793 = vmatprep.mubr.bf16.mxu0 %v2456
      %2794 = vmatmul.mubr.bf16.gmra.mrb[0].mxu0 %v2447
      %v2795 = vpop.f32.mrb[0].mxu0
      %v2796 = vadd.f32 0.0, %v2795
      %v2797 = vpop.f32.mrb[0].mxu0
      %v2798 = vadd.f32 0.0, %v2797
      %v2799 = vpop.f32.mrb[0].mxu0
      %v2800 = vadd.f32 0.0, %v2799
      %v2801 = vpop.f32.mrb[0].mxu0
      %v2802 = vadd.f32 0.0, %v2801
      %2803 = vmatprep.mubr.bf16.mxu0 %v2474
      %2804 = vmatmul.mubr.bf16.gmra.mrb[0].mxu0 %v2465
      %v2805 = vpop.f32.mrb[0].mxu0
      %v2806 = vadd.f32 0.0, %v2805
      %v2807 = vpop.f32.mrb[0].mxu0
      %v2808 = vadd.f32 0.0, %v2807
      %v2809 = vpop.f32.mrb[0].mxu0
      %v2810 = vadd.f32 0.0, %v2809
      %v2811 = vpop.f32.mrb[0].mxu0
      %v2812 = vadd.f32 0.0, %v2811
      %2813 = vmatprep.mubr.bf16.mxu0 %v2492
      %2814 = vmatmul.mubr.bf16.gmra.mrb[0].mxu0 %v2483
      %v2815 = vpop.f32.mrb[0].mxu0
      %v2816 = vadd.f32 0.0, %v2815
      %v2817 = vpop.f32.mrb[0].mxu0
      %v2818 = vadd.f32 0.0, %v2817
      %v2819 = vpop.f32.mrb[0].mxu0
      %v2820 = vadd.f32 0.0, %v2819
      %v2821 = vpop.f32.mrb[0].mxu0
      %v2822 = vadd.f32 0.0, %v2821
      %2823 = vmatprep.mubr.bf16.mxu0 %v2510
      %2824 = vmatmul.mubr.bf16.gmra.mrb[0].mxu0 %v2501
      %v2825 = vpop.f32.mrb[0].mxu0
      %v2826 = vadd.f32 0.0, %v2825
      %v2827 = vpop.f32.mrb[0].mxu0
      %v2828 = vadd.f32 0.0, %v2827
      %v2829 = vpop.f32.mrb[0].mxu0
      %v2830 = vadd.f32 0.0, %v2829
      %v2831 = vpop.f32.mrb[0].mxu0
      %v2832 = vadd.f32 0.0, %v2831
      %2833 = vmatprep.mubr.bf16.mxu0 %v2528
      %2834 = vmatmul.mubr.bf16.gmra.mrb[0].mxu0 %v2519
      %v2835 = vpop.f32.mrb[0].mxu0
      %v2836 = vadd.f32 0.0, %v2835
      %v2837 = vpop.f32.mrb[0].mxu0
      %v2838 = vadd.f32 0.0, %v2837
      %v2839 = vpop.f32.mrb[0].mxu0
      %v2840 = vadd.f32 0.0, %v2839
      %v2841 = vpop.f32.mrb[0].mxu0
      %v2842 = vadd.f32 0.0, %v2841
      %2843 = vmatprep.mubr.bf16.mxu0 %v2527
      %2844 = vmatmul.mubr.bf16.gmra.mrb[0].mxu0 %v2518
      %v2845 = vpop.f32.mrb[0].mxu0
      %v2846 = vadd.f32 0.0, %v2845
      %v2847 = vpop.f32.mrb[0].mxu0
      %v2848 = vadd.f32 0.0, %v2847
      %v2849 = vpop.f32.mrb[0].mxu0
      %v2850 = vpop.f32.mrb[0].mxu0
      %2851 = vdwg.mxu0
      %v2854 = vunpack.c.l.b16 %v2154
      %v2855 = vunpack.c.h.b16 %v2154
      %v2856 = vunpack.c.l.b16 %v2174
      %v2857 = vunpack.c.h.b16 %v2174
      %v2858 = vpack.c.b16 %v2268, %v2854
      %v2859 = vpack.c.b16 %v2269, %v2855
      %v2860 = vpack.c.b16 %v2856, %v2856
      %v2861 = vpack.c.b16 %v2857, %v2857
      %v2916 = vunpack.c.l.b16 %v2176
      %v2917 = vunpack.c.h.b16 %v2176
      %v2918 = vunpack.c.l.b16 %v2177
      %v2919 = vunpack.c.h.b16 %v2177
      %v2920 = vunpack.c.l.b16 %v2178
      %v2921 = vunpack.c.h.b16 %v2178
      %v2922 = vunpack.c.l.b16 %v2179
      %v2923 = vunpack.c.h.b16 %v2179
      %v2924 = vunpack.c.l.b16 %v2180
      %v2925 = vunpack.c.h.b16 %v2180
      %v2926 = vunpack.c.l.b16 %v2181
      %v2927 = vunpack.c.h.b16 %v2181
      %v2928 = vunpack.c.l.b16 %v2182
      %v2929 = vunpack.c.h.b16 %v2182
      %v2930 = vunpack.c.l.b16 %v2183
      %v2931 = vunpack.c.h.b16 %v2183
      %v2932 = vunpack.c.l.b16 %v2184
      %v2933 = vunpack.c.h.b16 %v2184
      %v2934 = vunpack.c.l.b16 %v2185
      %v2935 = vunpack.c.h.b16 %v2185
      %v2936 = vunpack.c.l.b16 %v2186
      %v2937 = vunpack.c.h.b16 %v2186
      %v2938 = vunpack.c.l.b16 %v2187
      %v2939 = vunpack.c.h.b16 %v2187
      %v2940 = vunpack.c.l.b16 %v2188
      %v2941 = vunpack.c.h.b16 %v2188
      %v2942 = vunpack.c.l.b16 %v2189
      %v2943 = vunpack.c.h.b16 %v2189
      %v2944 = vunpack.c.l.b16 %v2190
      %v2945 = vunpack.c.h.b16 %v2190
      %v2946 = vunpack.c.l.b16 %v2191
      %v2947 = vunpack.c.h.b16 %v2191
      %v2948 = vunpack.c.l.b16 %v2192
      %v2949 = vunpack.c.h.b16 %v2192
      %v2950 = vunpack.c.l.b16 %v2193
      %v2951 = vunpack.c.h.b16 %v2193
      %v2952 = vunpack.c.l.b16 %v2194
      %v2953 = vunpack.c.h.b16 %v2194
      %v2954 = vunpack.c.l.b16 %v2195
      %v2955 = vunpack.c.h.b16 %v2195
      %v2956 = vunpack.c.l.b16 %v2196
      %v2957 = vunpack.c.h.b16 %v2196
      %v2958 = vunpack.c.l.b16 %v2197
      %v2959 = vunpack.c.h.b16 %v2197
      %v2960 = vunpack.c.l.b16 %v2198
      %v2961 = vunpack.c.h.b16 %v2198
      %v2962 = vunpack.c.l.b16 %v2199
      %v2963 = vunpack.c.h.b16 %v2199
      %v2964 = vunpack.c.l.b16 %v2200
      %v2965 = vunpack.c.h.b16 %v2200
      %v2966 = vunpack.c.l.b16 %v2201
      %v2967 = vunpack.c.h.b16 %v2201
      %v2968 = vunpack.c.l.b16 %v2202
      %v2969 = vunpack.c.h.b16 %v2202
      %v2970 = vunpack.c.l.b16 %v2203
      %v2971 = vunpack.c.h.b16 %v2203
      %v2972 = vunpack.c.l.b16 %v2204
      %v2973 = vunpack.c.h.b16 %v2204
      %v2974 = vunpack.c.l.b16 %v2205
      %v2975 = vunpack.c.h.b16 %v2205
      %v2976 = vunpack.c.l.b16 %v2206
      %v2977 = vunpack.c.h.b16 %v2206
      %v2978 = vunpack.c.l.b16 %v2207
      %v2979 = vunpack.c.h.b16 %v2207
      %v2980 = vpack.c.b16 %v2918, %v2916
      %v2981 = vpack.c.b16 %v2919, %v2917
      %v2982 = vpack.c.b16 %v2922, %v2920
      %v2983 = vpack.c.b16 %v2923, %v2921
      %v2984 = vpack.c.b16 %v2926, %v2924
      %v2985 = vpack.c.b16 %v2927, %v2925
      %v2986 = vpack.c.b16 %v2930, %v2928
      %v2987 = vpack.c.b16 %v2931, %v2929
      %v2988 = vpack.c.b16 %v2934, %v2932
      %v2989 = vpack.c.b16 %v2935, %v2933
      %v2990 = vpack.c.b16 %v2938, %v2936
      %v2991 = vpack.c.b16 %v2939, %v2937
      %v2992 = vpack.c.b16 %v2942, %v2940
      %v2993 = vpack.c.b16 %v2943, %v2941
      %v2994 = vpack.c.b16 %v2946, %v2944
      %v2995 = vpack.c.b16 %v2947, %v2945
      %v2996 = vpack.c.b16 %v2950, %v2948
      %v2997 = vpack.c.b16 %v2951, %v2949
      %v2998 = vpack.c.b16 %v2954, %v2952
      %v2999 = vpack.c.b16 %v2955, %v2953
      %v3000 = vpack.c.b16 %v2958, %v2956
      %v3001 = vpack.c.b16 %v2959, %v2957
      %v3002 = vpack.c.b16 %v2962, %v2960
      %v3003 = vpack.c.b16 %v2963, %v2961
      %v3004 = vpack.c.b16 %v2966, %v2964
      %v3005 = vpack.c.b16 %v2967, %v2965
      %v3006 = vpack.c.b16 %v2970, %v2968
      %v3007 = vpack.c.b16 %v2971, %v2969
      %v3008 = vpack.c.b16 %v2974, %v2972
      %v3009 = vpack.c.b16 %v2975, %v2973
      %v3010 = vpack.c.b16 %v2978, %v2976
      %v3011 = vpack.c.b16 %v2979, %v2977
      %3044 = vmatprep.subr.bf16.mxu0 %v2981
      %3045 = vmatpush1.bf16.msra.mxu0 %v2980
      %3046 = vmatprep.subr.bf16.mxu0 %v2983
      %3047 = vmatpush1.bf16.msra.mxu0 %v2982
      %3048 = vmatprep.subr.bf16.mxu0 %v2985
      %3049 = vmatpush1.bf16.msra.mxu0 %v2984
      %3050 = vmatprep.subr.bf16.mxu0 %v2987
      %3051 = vmatpush1.bf16.msra.mxu0 %v2986
      %3052 = vmatprep.subr.bf16.mxu0 %v2989
      %3053 = vmatpush1.bf16.msra.mxu0 %v2988
      %3054 = vmatprep.subr.bf16.mxu0 %v2991
      %3055 = vmatpush1.bf16.msra.mxu0 %v2990
      %3056 = vmatprep.subr.bf16.mxu0 %v2993
      %3057 = vmatpush1.bf16.msra.mxu0 %v2992
      %3058 = vmatprep.subr.bf16.mxu0 %v2995
      %3059 = vmatpush1.bf16.msra.mxu0 %v2994
      %3060 = vmatprep.subr.bf16.mxu0 %v2997
      %3061 = vmatpush1.bf16.msra.mxu0 %v2996
      %3062 = vmatprep.subr.bf16.mxu0 %v2999
      %3063 = vmatpush1.bf16.msra.mxu0 %v2998
      %3064 = vmatprep.subr.bf16.mxu0 %v3001
      %3065 = vmatpush1.bf16.msra.mxu0 %v3000
      %3066 = vmatprep.subr.bf16.mxu0 %v3003
      %3067 = vmatpush1.bf16.msra.mxu0 %v3002
      %3068 = vmatprep.subr.bf16.mxu0 %v3005
      %3069 = vmatpush1.bf16.msra.mxu0 %v3004
      %3070 = vmatprep.subr.bf16.mxu0 %v3007
      %3071 = vmatpush1.bf16.msra.mxu0 %v3006
      %3072 = vmatprep.subr.bf16.mxu0 %v3009
      %3073 = vmatpush1.bf16.msra.mxu0 %v3008
      %3074 = vmatprep.subr.bf16.mxu0 %v3011
      %3075 = vmatpush1.bf16.msra.mxu0 %v3010
      %3076 = vmatprep.mubr.bf16.mxu0 %v2859
      %3077 = vmatmul.mubr.bf16.gmra.mrb[0].mxu0 %v2858
      %v3078 = vpop.f32.mrb[0].mxu0
      %v3079 = vadd.f32 %v2746, %v3078
      %v3080 = vpop.f32.mrb[0].mxu0
      %v3081 = vadd.f32 %v2748, %v3080
      %v3082 = vpop.f32.mrb[0].mxu0
      %v3083 = vadd.f32 %v2750, %v3082
      %v3084 = vpop.f32.mrb[0].mxu0
      %v3085 = vadd.f32 %v2752, %v3084
      %3086 = vmatprep.mubr.bf16.mxu0 %v2313
      %3087 = vmatmul.mubr.bf16.gmra.mrb[0].mxu0 %v2312
      %v3088 = vpop.f32.mrb[0].mxu0
      %v3089 = vadd.f32 %v2756, %v3088
      %v3090 = vpop.f32.mrb[0].mxu0
      %v3091 = vadd.f32 %v2758, %v3090
      %v3092 = vpop.f32.mrb[0].mxu0
      %v3093 = vadd.f32 %v2760, %v3092
      %v3094 = vpop.f32.mrb[0].mxu0
      %v3095 = vadd.f32 %v2762, %v3094
      %3096 = vmatprep.mubr.bf16.mxu0 %v2315
      %3097 = vmatmul.mubr.bf16.gmra.mrb[0].mxu0 %v2314
      %v3098 = vpop.f32.mrb[0].mxu0
      %v3099 = vadd.f32 %v2766, %v3098
      %v3100 = vpop.f32.mrb[0].mxu0
      %v3101 = vadd.f32 %v2768, %v3100
      %v3102 = vpop.f32.mrb[0].mxu0
      %v3103 = vadd.f32 %v2770, %v3102
      %v3104 = vpop.f32.mrb[0].mxu0
      %v3105 = vadd.f32 %v2772, %v3104
      %3106 = vmatprep.mubr.bf16.mxu0 %v2317
      %3107 = vmatmul.mubr.bf16.gmra.mrb[0].mxu0 %v2316
      %v3108 = vpop.f32.mrb[0].mxu0
      %v3109 = vadd.f32 %v2776, %v3108
      %v3110 = vpop.f32.mrb[0].mxu0
      %v3111 = vadd.f32 %v2778, %v3110
      %v3112 = vpop.f32.mrb[0].mxu0
      %v3113 = vadd.f32 %v2780, %v3112
      %v3114 = vpop.f32.mrb[0].mxu0
      %v3115 = vadd.f32 %v2782, %v3114
      %3116 = vmatprep.mubr.bf16.mxu0 %v2319
      %3117 = vmatmul.mubr.bf16.gmra.mrb[0].mxu0 %v2318
      %v3118 = vpop.f32.mrb[0].mxu0
      %v3119 = vadd.f32 %v2786, %v3118
      %v3120 = vpop.f32.mrb[0].mxu0
      %v3121 = vadd.f32 %v2788, %v3120
      %v3122 = vpop.f32.mrb[0].mxu0
      %v3123 = vadd.f32 %v2790, %v3122
      %v3124 = vpop.f32.mrb[0].mxu0
      %v3125 = vadd.f32 %v2792, %v3124
      %3126 = vmatprep.mubr.bf16.mxu0 %v2321
      %3127 = vmatmul.mubr.bf16.gmra.mrb[0].mxu0 %v2320
      %v3128 = vpop.f32.mrb[0].mxu0
      %v3129 = vadd.f32 %v2796, %v3128
      %v3130 = vpop.f32.mrb[0].mxu0
      %v3131 = vadd.f32 %v2798, %v3130
      %v3132 = vpop.f32.mrb[0].mxu0
      %v3133 = vadd.f32 %v2800, %v3132
      %v3134 = vpop.f32.mrb[0].mxu0
      %v3135 = vadd.f32 %v2802, %v3134
      %3136 = vmatprep.mubr.bf16.mxu0 %v2323
      %3137 = vmatmul.mubr.bf16.gmra.mrb[0].mxu0 %v2322
      %v3138 = vpop.f32.mrb[0].mxu0
      %v3139 = vadd.f32 %v2806, %v3138
      %v3140 = vpop.f32.mrb[0].mxu0
      %v3141 = vadd.f32 %v2808, %v3140
      %v3142 = vpop.f32.mrb[0].mxu0
      %v3143 = vadd.f32 %v2810, %v3142
      %v3144 = vpop.f32.mrb[0].mxu0
      %v3145 = vadd.f32 %v2812, %v3144
      %3146 = vmatprep.mubr.bf16.mxu0 %v2325
      %3147 = vmatmul.mubr.bf16.gmra.mrb[0].mxu0 %v2324
      %v3148 = vpop.f32.mrb[0].mxu0
      %v3149 = vadd.f32 %v2816, %v3148
      %v3150 = vpop.f32.mrb[0].mxu0
      %v3151 = vadd.f32 %v2818, %v3150
      %v3152 = vpop.f32.mrb[0].mxu0
      %v3153 = vadd.f32 %v2820, %v3152
      %v3154 = vpop.f32.mrb[0].mxu0
      %v3155 = vadd.f32 %v2822, %v3154
      %3156 = vmatprep.mubr.bf16.mxu0 %v2327
      %3157 = vmatmul.mubr.bf16.gmra.mrb[0].mxu0 %v2326
      %v3158 = vpop.f32.mrb[0].mxu0
      %v3159 = vadd.f32 %v2826, %v3158
      %v3160 = vpop.f32.mrb[0].mxu0
      %v3161 = vadd.f32 %v2828, %v3160
      %v3162 = vpop.f32.mrb[0].mxu0
      %v3163 = vadd.f32 %v2830, %v3162
      %v3164 = vpop.f32.mrb[0].mxu0
      %v3165 = vadd.f32 %v2832, %v3164
      %3166 = vmatprep.mubr.bf16.mxu0 %v2329
      %3167 = vmatmul.mubr.bf16.gmra.mrb[0].mxu0 %v2328
      %v3168 = vpop.f32.mrb[0].mxu0
      %v3169 = vadd.f32 %v2836, %v3168
      %v3170 = vpop.f32.mrb[0].mxu0
      %v3171 = vadd.f32 %v2838, %v3170
      %v3172 = vpop.f32.mrb[0].mxu0
      %v3173 = vadd.f32 %v2840, %v3172
      %v3174 = vpop.f32.mrb[0].mxu0
      %v3175 = vadd.f32 %v2842, %v3174
      %3176 = vmatprep.mubr.bf16.mxu0 %v2861
      %3177 = vmatmul.mubr.bf16.gmra.mrb[0].mxu0 %v2860
      %v3178 = vpop.f32.mrb[0].mxu0
      %v3179 = vadd.f32 %v2846, %v3178
      %v3180 = vpop.f32.mrb[0].mxu0
      %v3181 = vadd.f32 %v2848, %v3180
      %v3182 = vpop.f32.mrb[0].mxu0
      %v3183 = vpop.f32.mrb[0].mxu0
      %3184 = vdwg.mxu0
      %v3185 = vld [vmem:[#allocation2] sm:$0x88]
      %v3186 = vld [vmem:[#allocation2 + $0xa8] sm:$0x33]
      %s3187 = scalar_lea.vmem %s1, 1280
      %v3188 = vld [vmem:[%s3187] sm:$0xff]
      %v3189 = vld [vmem:[%s3187 + $0x8] sm:$0xff]
      %v3190 = vld [vmem:[%s3187 + $0x10] sm:$0xff]
      %v3191 = vld [vmem:[%s3187 + $0x18] sm:$0xff]
      %v3192 = vld [vmem:[%s3187 + $0x20] sm:$0xff]
      %v3193 = vld [vmem:[%s3187 + $0x28] sm:$0xff]
      %v3194 = vld [vmem:[%s3187 + $0x30] sm:$0xff]
      %v3195 = vld [vmem:[%s3187 + $0x38] sm:$0xff]
      %v3196 = vld [vmem:[%s3187 + $0x40] sm:$0xff]
      %v3197 = vld [vmem:[%s3187 + $0x48] sm:$0xff]
      %v3198 = vld [vmem:[%s3187 + $0x50] sm:$0xff]
      %v3199 = vld [vmem:[%s3187 + $0x58] sm:$0xff]
      %v3200 = vld [vmem:[%s3187 + $0x60] sm:$0xff]
      %v3201 = vld [vmem:[%s3187 + $0x68] sm:$0xff]
      %v3202 = vld [vmem:[%s3187 + $0x70] sm:$0xff]
      %v3203 = vld [vmem:[%s3187 + $0x78] sm:$0xff]
      %v3204 = vld [vmem:[%s3187 + $0x80] sm:$0xff]
      %v3205 = vld [vmem:[%s3187 + $0x88] sm:$0xff]
      %v3206 = vld [vmem:[%s3187 + $0x90] sm:$0xff]
      %v3207 = vld [vmem:[%s3187 + $0x98] sm:$0xff]
      %v3208 = vld [vmem:[%s3187 + $0xa0] sm:$0xff]
      %v3209 = vld [vmem:[%s3187 + $0xa8] sm:$0xff]
      %v3210 = vld [vmem:[%s3187 + $0xb0] sm:$0xff]
      %v3211 = vld [vmem:[%s3187 + $0xb8] sm:$0xff]
      %v3212 = vld [vmem:[%s3187 + $0xc0] sm:$0xff]
      %v3213 = vld [vmem:[%s3187 + $0xc8] sm:$0xff]
      %v3214 = vld [vmem:[%s3187 + $0xd0] sm:$0xff]
      %v3215 = vld [vmem:[%s3187 + $0xd8] sm:$0xff]
      %v3216 = vld [vmem:[%s3187 + $0xe0] sm:$0xff]
      %v3217 = vld [vmem:[%s3187 + $0xe8] sm:$0xff]
      %v3218 = vld [vmem:[%s3187 + $0xf0] sm:$0xff]
      %v3219 = vld [vmem:[%s3187 + $0xf8] sm:$0xff]
      %v3222 = vunpack.c.l.b16 %v3185
      %v3223 = vunpack.c.h.b16 %v3185
      %v3224 = vunpack.c.l.b16 %v3186
      %v3225 = vunpack.c.h.b16 %v3186
      %v3226 = vpack.c.b16 %v2268, %v3222
      %v3227 = vpack.c.b16 %v2269, %v3223
      %v3228 = vpack.c.b16 %v3224, %v2306
      %v3229 = vpack.c.b16 %v3225, %v2307
      %vm3230 = vcmask 1044480
      %v3231 = vrot.slane %v3226, 3
      %v3232 = vrot.slane %v2312, 3
      %v3233 = vsel %vm3230, %v3231, %v3232
      %v3234 = vrot.slane %v3227, 3
      %v3235 = vrot.slane %v2313, 3
      %v3236 = vsel %vm3230, %v3234, %v3235
      %v3237 = vrot.slane %v2314, 3
      %v3238 = vsel %vm3230, %v3232, %v3237
      %v3239 = vrot.slane %v2315, 3
      %v3240 = vsel %vm3230, %v3235, %v3239
      %v3241 = vrot.slane %v2316, 3
      %v3242 = vsel %vm3230, %v3237, %v3241
      %v3243 = vrot.slane %v2317, 3
      %v3244 = vsel %vm3230, %v3239, %v3243
      %v3245 = vrot.slane %v2318, 3
      %v3246 = vsel %vm3230, %v3241, %v3245
      %v3247 = vrot.slane %v2319, 3
      %v3248 = vsel %vm3230, %v3243, %v3247
      %v3249 = vrot.slane %v2320, 3
      %v3250 = vsel %vm3230, %v3245, %v3249
      %v3251 = vrot.slane %v2321, 3
      %v3252 = vsel %vm3230, %v3247, %v3251
      %v3253 = vrot.slane %v2322, 3
      %v3254 = vsel %vm3230, %v3249, %v3253
      %v3255 = vrot.slane %v2323, 3
      %v3256 = vsel %vm3230, %v3251, %v3255
      %v3257 = vrot.slane %v2324, 3
      %v3258 = vsel %vm3230, %v3253, %v3257
      %v3259 = vrot.slane %v2325, 3
      %v3260 = vsel %vm3230, %v3255, %v3259
      %v3261 = vrot.slane %v2326, 3
      %v3262 = vsel %vm3230, %v3257, %v3261
      %v3263 = vrot.slane %v2327, 3
      %v3264 = vsel %vm3230, %v3259, %v3263
      %v3265 = vrot.slane %v2328, 3
      %v3266 = vsel %vm3230, %v3261, %v3265
      %v3267 = vrot.slane %v2329, 3
      %v3268 = vsel %vm3230, %v3263, %v3267
      %v3269 = vrot.slane %v3228, 3
      %v3270 = vsel %vm3230, %v3265, %v3269
      %v3271 = vrot.slane %v3229, 3
      %v3272 = vsel %vm3230, %v3267, %v3271
      %v3327 = vunpack.c.l.b16 %v3188
      %v3328 = vunpack.c.h.b16 %v3188
      %v3329 = vunpack.c.l.b16 %v3189
      %v3330 = vunpack.c.h.b16 %v3189
      %v3331 = vunpack.c.l.b16 %v3190
      %v3332 = vunpack.c.h.b16 %v3190
      %v3333 = vunpack.c.l.b16 %v3191
      %v3334 = vunpack.c.h.b16 %v3191
      %v3335 = vunpack.c.l.b16 %v3192
      %v3336 = vunpack.c.h.b16 %v3192
      %v3337 = vunpack.c.l.b16 %v3193
      %v3338 = vunpack.c.h.b16 %v3193
      %v3339 = vunpack.c.l.b16 %v3194
      %v3340 = vunpack.c.h.b16 %v3194
      %v3341 = vunpack.c.l.b16 %v3195
      %v3342 = vunpack.c.h.b16 %v3195
      %v3343 = vunpack.c.l.b16 %v3196
      %v3344 = vunpack.c.h.b16 %v3196
      %v3345 = vunpack.c.l.b16 %v3197
      %v3346 = vunpack.c.h.b16 %v3197
      %v3347 = vunpack.c.l.b16 %v3198
      %v3348 = vunpack.c.h.b16 %v3198
      %v3349 = vunpack.c.l.b16 %v3199
      %v3350 = vunpack.c.h.b16 %v3199
      %v3351 = vunpack.c.l.b16 %v3200
      %v3352 = vunpack.c.h.b16 %v3200
      %v3353 = vunpack.c.l.b16 %v3201
      %v3354 = vunpack.c.h.b16 %v3201
      %v3355 = vunpack.c.l.b16 %v3202
      %v3356 = vunpack.c.h.b16 %v3202
      %v3357 = vunpack.c.l.b16 %v3203
      %v3358 = vunpack.c.h.b16 %v3203
      %v3359 = vunpack.c.l.b16 %v3204
      %v3360 = vunpack.c.h.b16 %v3204
      %v3361 = vunpack.c.l.b16 %v3205
      %v3362 = vunpack.c.h.b16 %v3205
      %v3363 = vunpack.c.l.b16 %v3206
      %v3364 = vunpack.c.h.b16 %v3206
      %v3365 = vunpack.c.l.b16 %v3207
      %v3366 = vunpack.c.h.b16 %v3207
      %v3367 = vunpack.c.l.b16 %v3208
      %v3368 = vunpack.c.h.b16 %v3208
      %v3369 = vunpack.c.l.b16 %v3209
      %v3370 = vunpack.c.h.b16 %v3209
      %v3371 = vunpack.c.l.b16 %v3210
      %v3372 = vunpack.c.h.b16 %v3210
      %v3373 = vunpack.c.l.b16 %v3211
      %v3374 = vunpack.c.h.b16 %v3211
      %v3375 = vunpack.c.l.b16 %v3212
      %v3376 = vunpack.c.h.b16 %v3212
      %v3377 = vunpack.c.l.b16 %v3213
      %v3378 = vunpack.c.h.b16 %v3213
      %v3379 = vunpack.c.l.b16 %v3214
      %v3380 = vunpack.c.h.b16 %v3214
      %v3381 = vunpack.c.l.b16 %v3215
      %v3382 = vunpack.c.h.b16 %v3215
      %v3383 = vunpack.c.l.b16 %v3216
      %v3384 = vunpack.c.h.b16 %v3216
      %v3385 = vunpack.c.l.b16 %v3217
      %v3386 = vunpack.c.h.b16 %v3217
      %v3387 = vunpack.c.l.b16 %v3218
      %v3388 = vunpack.c.h.b16 %v3218
      %v3389 = vunpack.c.l.b16 %v3219
      %v3390 = vunpack.c.h.b16 %v3219
      %v3391 = vpack.c.b16 %v3329, %v3327
      %v3392 = vpack.c.b16 %v3330, %v3328
      %v3393 = vpack.c.b16 %v3333, %v3331
      %v3394 = vpack.c.b16 %v3334, %v3332
      %v3395 = vpack.c.b16 %v3337, %v3335
      %v3396 = vpack.c.b16 %v3338, %v3336
      %v3397 = vpack.c.b16 %v3341, %v3339
      %v3398 = vpack.c.b16 %v3342, %v3340
      %v3399 = vpack.c.b16 %v3345, %v3343
      %v3400 = vpack.c.b16 %v3346, %v3344
      %v3401 = vpack.c.b16 %v3349, %v3347
      %v3402 = vpack.c.b16 %v3350, %v3348
      %v3403 = vpack.c.b16 %v3353, %v3351
      %v3404 = vpack.c.b16 %v3354, %v3352
      %v3405 = vpack.c.b16 %v3357, %v3355
      %v3406 = vpack.c.b16 %v3358, %v3356
      %v3407 = vpack.c.b16 %v3361, %v3359
      %v3408 = vpack.c.b16 %v3362, %v3360
      %v3409 = vpack.c.b16 %v3365, %v3363
      %v3410 = vpack.c.b16 %v3366, %v3364
      %v3411 = vpack.c.b16 %v3369, %v3367
      %v3412 = vpack.c.b16 %v3370, %v3368
      %v3413 = vpack.c.b16 %v3373, %v3371
      %v3414 = vpack.c.b16 %v3374, %v3372
      %v3415 = vpack.c.b16 %v3377, %v3375
      %v3416 = vpack.c.b16 %v3378, %v3376
      %v3417 = vpack.c.b16 %v3381, %v3379
      %v3418 = vpack.c.b16 %v3382, %v3380
      %v3419 = vpack.c.b16 %v3385, %v3383
      %v3420 = vpack.c.b16 %v3386, %v3384
      %v3421 = vpack.c.b16 %v3389, %v3387
      %v3422 = vpack.c.b16 %v3390, %v3388
      %3455 = vmatprep.subr.bf16.mxu0 %v3392
      %3456 = vmatpush1.bf16.msra.mxu0 %v3391
      %3457 = vmatprep.subr.bf16.mxu0 %v3394
      %3458 = vmatpush1.bf16.msra.mxu0 %v3393
      %3459 = vmatprep.subr.bf16.mxu0 %v3396
      %3460 = vmatpush1.bf16.msra.mxu0 %v3395
      %3461 = vmatprep.subr.bf16.mxu0 %v3398
      %3462 = vmatpush1.bf16.msra.mxu0 %v3397
      %3463 = vmatprep.subr.bf16.mxu0 %v3400
      %3464 = vmatpush1.bf16.msra.mxu0 %v3399
      %3465 = vmatprep.subr.bf16.mxu0 %v3402
      %3466 = vmatpush1.bf16.msra.mxu0 %v3401
      %3467 = vmatprep.subr.bf16.mxu0 %v3404
      %3468 = vmatpush1.bf16.msra.mxu0 %v3403
      %3469 = vmatprep.subr.bf16.mxu0 %v3406
      %3470 = vmatpush1.bf16.msra.mxu0 %v3405
      %3471 = vmatprep.subr.bf16.mxu0 %v3408
      %3472 = vmatpush1.bf16.msra.mxu0 %v3407
      %3473 = vmatprep.subr.bf16.mxu0 %v3410
      %3474 = vmatpush1.bf16.msra.mxu0 %v3409
      %3475 = vmatprep.subr.bf16.mxu0 %v3412
      %3476 = vmatpush1.bf16.msra.mxu0 %v3411
      %3477 = vmatprep.subr.bf16.mxu0 %v3414
      %3478 = vmatpush1.bf16.msra.mxu0 %v3413
      %3479 = vmatprep.subr.bf16.mxu0 %v3416
      %3480 = vmatpush1.bf16.msra.mxu0 %v3415
      %3481 = vmatprep.subr.bf16.mxu0 %v3418
      %3482 = vmatpush1.bf16.msra.mxu0 %v3417
      %3483 = vmatprep.subr.bf16.mxu0 %v3420
      %3484 = vmatpush1.bf16.msra.mxu0 %v3419
      %3485 = vmatprep.subr.bf16.mxu0 %v3422
      %3486 = vmatpush1.bf16.msra.mxu0 %v3421
      %3487 = vmatprep.mubr.bf16.mxu0 %v3236
      %3488 = vmatmul.mubr.bf16.gmra.mrb[0].mxu0 %v3233
      %v3489 = vpop.f32.mrb[0].mxu0
      %v3490 = vadd.f32 0.0, %v3489
      %v3491 = vpop.f32.mrb[0].mxu0
      %v3492 = vadd.f32 0.0, %v3491
      %v3493 = vpop.f32.mrb[0].mxu0
      %v3494 = vadd.f32 0.0, %v3493
      %v3495 = vpop.f32.mrb[0].mxu0
      %v3496 = vadd.f32 0.0, %v3495
      %3497 = vmatprep.mubr.bf16.mxu0 %v3240
      %3498 = vmatmul.mubr.bf16.gmra.mrb[0].mxu0 %v3238
      %v3499 = vpop.f32.mrb[0].mxu0
      %v3500 = vadd.f32 0.0, %v3499
      %v3501 = vpop.f32.mrb[0].mxu0
      %v3502 = vadd.f32 0.0, %v3501
      %v3503 = vpop.f32.mrb[0].mxu0
      %v3504 = vadd.f32 0.0, %v3503
      %v3505 = vpop.f32.mrb[0].mxu0
      %v3506 = vadd.f32 0.0, %v3505
      %3507 = vmatprep.mubr.bf16.mxu0 %v3244
      %3508 = vmatmul.mubr.bf16.gmra.mrb[0].mxu0 %v3242
      %v3509 = vpop.f32.mrb[0].mxu0
      %v3510 = vadd.f32 0.0, %v3509
      %v3511 = vpop.f32.mrb[0].mxu0
      %v3512 = vadd.f32 0.0, %v3511
      %v3513 = vpop.f32.mrb[0].mxu0
      %v3514 = vadd.f32 0.0, %v3513
      %v3515 = vpop.f32.mrb[0].mxu0
      %v3516 = vadd.f32 0.0, %v3515
      %3517 = vmatprep.mubr.bf16.mxu0 %v3248
      %3518 = vmatmul.mubr.bf16.gmra.mrb[0].mxu0 %v3246
      %v3519 = vpop.f32.mrb[0].mxu0
      %v3520 = vadd.f32 0.0, %v3519
      %v3521 = vpop.f32.mrb[0].mxu0
      %v3522 = vadd.f32 0.0, %v3521
      %v3523 = vpop.f32.mrb[0].mxu0
      %v3524 = vadd.f32 0.0, %v3523
      %v3525 = vpop.f32.mrb[0].mxu0
      %v3526 = vadd.f32 0.0, %v3525
      %3527 = vmatprep.mubr.bf16.mxu0 %v3252
      %3528 = vmatmul.mubr.bf16.gmra.mrb[0].mxu0 %v3250
      %v3529 = vpop.f32.mrb[0].mxu0
      %v3530 = vadd.f32 0.0, %v3529
      %v3531 = vpop.f32.mrb[0].mxu0
      %v3532 = vadd.f32 0.0, %v3531
      %v3533 = vpop.f32.mrb[0].mxu0
      %v3534 = vadd.f32 0.0, %v3533
      %v3535 = vpop.f32.mrb[0].mxu0
      %v3536 = vadd.f32 0.0, %v3535
      %3537 = vmatprep.mubr.bf16.mxu0 %v3256
      %3538 = vmatmul.mubr.bf16.gmra.mrb[0].mxu0 %v3254
      %v3539 = vpop.f32.mrb[0].mxu0
      %v3540 = vadd.f32 0.0, %v3539
      %v3541 = vpop.f32.mrb[0].mxu0
      %v3542 = vadd.f32 0.0, %v3541
      %v3543 = vpop.f32.mrb[0].mxu0
      %v3544 = vadd.f32 0.0, %v3543
      %v3545 = vpop.f32.mrb[0].mxu0
      %v3546 = vadd.f32 0.0, %v3545
      %3547 = vmatprep.mubr.bf16.mxu0 %v3260
      %3548 = vmatmul.mubr.bf16.gmra.mrb[0].mxu0 %v3258
      %v3549 = vpop.f32.mrb[0].mxu0
      %v3550 = vadd.f32 0.0, %v3549
      %v3551 = vpop.f32.mrb[0].mxu0
      %v3552 = vadd.f32 0.0, %v3551
      %v3553 = vpop.f32.mrb[0].mxu0
      %v3554 = vadd.f32 0.0, %v3553
      %v3555 = vpop.f32.mrb[0].mxu0
      %v3556 = vadd.f32 0.0, %v3555
      %3557 = vmatprep.mubr.bf16.mxu0 %v3264
      %3558 = vmatmul.mubr.bf16.gmra.mrb[0].mxu0 %v3262
      %v3559 = vpop.f32.mrb[0].mxu0
      %v3560 = vadd.f32 0.0, %v3559
      %v3561 = vpop.f32.mrb[0].mxu0
      %v3562 = vadd.f32 0.0, %v3561
      %v3563 = vpop.f32.mrb[0].mxu0
      %v3564 = vadd.f32 0.0, %v3563
      %v3565 = vpop.f32.mrb[0].mxu0
      %v3566 = vadd.f32 0.0, %v3565
      %3567 = vmatprep.mubr.bf16.mxu0 %v3268
      %3568 = vmatmul.mubr.bf16.gmra.mrb[0].mxu0 %v3266
      %v3569 = vpop.f32.mrb[0].mxu0
      %v3570 = vadd.f32 0.0, %v3569
      %v3571 = vpop.f32.mrb[0].mxu0
      %v3572 = vadd.f32 0.0, %v3571
      %v3573 = vpop.f32.mrb[0].mxu0
      %v3574 = vadd.f32 0.0, %v3573
      %v3575 = vpop.f32.mrb[0].mxu0
      %v3576 = vadd.f32 0.0, %v3575
      %3577 = vmatprep.mubr.bf16.mxu0 %v3272
      %3578 = vmatmul.mubr.bf16.gmra.mrb[0].mxu0 %v3270
      %v3579 = vpop.f32.mrb[0].mxu0
      %v3580 = vadd.f32 0.0, %v3579
      %v3581 = vpop.f32.mrb[0].mxu0
      %v3582 = vadd.f32 0.0, %v3581
      %v3583 = vpop.f32.mrb[0].mxu0
      %v3584 = vadd.f32 0.0, %v3583
      %v3585 = vpop.f32.mrb[0].mxu0
      %v3586 = vadd.f32 0.0, %v3585
      %3587 = vmatprep.mubr.bf16.mxu0 %v3271
      %3588 = vmatmul.mubr.bf16.gmra.mrb[0].mxu0 %v3269
      %v3589 = vpop.f32.mrb[0].mxu0
      %v3590 = vadd.f32 0.0, %v3589
      %v3591 = vpop.f32.mrb[0].mxu0
      %v3592 = vadd.f32 0.0, %v3591
      %v3593 = vpop.f32.mrb[0].mxu0
      %v3594 = vpop.f32.mrb[0].mxu0
      %3595 = vdwg.mxu0
      %v3596 = vadd.f32 %v3079, %v3490
      %v3597 = vadd.f32 %v3081, %v3492
      %v3598 = vadd.f32 %v3083, %v3494
      %v3599 = vadd.f32 %v3085, %v3496
      %v3600 = vadd.f32 %v3089, %v3500
      %v3601 = vadd.f32 %v3091, %v3502
      %v3602 = vadd.f32 %v3093, %v3504
      %v3603 = vadd.f32 %v3095, %v3506
      %v3604 = vadd.f32 %v3099, %v3510
      %v3605 = vadd.f32 %v3101, %v3512
      %v3606 = vadd.f32 %v3103, %v3514
      %v3607 = vadd.f32 %v3105, %v3516
      %v3608 = vadd.f32 %v3109, %v3520
      %v3609 = vadd.f32 %v3111, %v3522
      %v3610 = vadd.f32 %v3113, %v3524
      %v3611 = vadd.f32 %v3115, %v3526
      %v3612 = vadd.f32 %v3119, %v3530
      %v3613 = vadd.f32 %v3121, %v3532
      %v3614 = vadd.f32 %v3123, %v3534
      %v3615 = vadd.f32 %v3125, %v3536
      %v3616 = vadd.f32 %v3129, %v3540
      %v3617 = vadd.f32 %v3131, %v3542
      %v3618 = vadd.f32 %v3133, %v3544
      %v3619 = vadd.f32 %v3135, %v3546
      %v3620 = vadd.f32 %v3139, %v3550
      %v3621 = vadd.f32 %v3141, %v3552
      %v3622 = vadd.f32 %v3143, %v3554
      %v3623 = vadd.f32 %v3145, %v3556
      %v3624 = vadd.f32 %v3149, %v3560
      %v3625 = vadd.f32 %v3151, %v3562
      %v3626 = vadd.f32 %v3153, %v3564
      %v3627 = vadd.f32 %v3155, %v3566
      %v3628 = vadd.f32 %v3159, %v3570
      %v3629 = vadd.f32 %v3161, %v3572
      %v3630 = vadd.f32 %v3163, %v3574
      %v3631 = vadd.f32 %v3165, %v3576
      %v3632 = vadd.f32 %v3169, %v3580
      %v3633 = vadd.f32 %v3171, %v3582
      %v3634 = vadd.f32 %v3173, %v3584
      %v3635 = vadd.f32 %v3175, %v3586
      %v3636 = vadd.f32 %v3179, %v3590
      %v3637 = vadd.f32 %v3181, %v3592
      %s3638 = scalar_lea.vmem %s2, 1
      %v3639 = vld [vmem:[%s3638] ss:$8 sm:$0x3]
      %v3641 = vlaneseq
      %v3642 = vshrl.u32 %v3641, 7
      %v3643 = vsub.s32 0, %v3642
      %v3644 = vrot.slane %v3639, %v3643
      %v3645 = vlaneseq
      %v3646 = vshrl.u32 %v3645, 7
      %v3647 = vsub.s32 1, %v3646
      %v3648 = vrot.slane %v3639, %v3647
      %v3651 = vadd.f32 %v3596, %v3644
      %v3652 = vadd.f32 %v3597, %v3648
      %v3653 = vadd.f32 %v3598, %v3644
      %v3654 = vadd.f32 %v3599, %v3648
      %v3655 = vadd.f32 %v3600, %v3644
      %v3656 = vadd.f32 %v3601, %v3648
      %v3657 = vadd.f32 %v3602, %v3644
      %v3658 = vadd.f32 %v3603, %v3648
      %v3659 = vadd.f32 %v3604, %v3644
      %v3660 = vadd.f32 %v3605, %v3648
      %v3661 = vadd.f32 %v3606, %v3644
      %v3662 = vadd.f32 %v3607, %v3648
      %v3663 = vadd.f32 %v3608, %v3644
      %v3664 = vadd.f32 %v3609, %v3648
      %v3665 = vadd.f32 %v3610, %v3644
      %v3666 = vadd.f32 %v3611, %v3648
      %v3667 = vadd.f32 %v3612, %v3644
      %v3668 = vadd.f32 %v3613, %v3648
      %v3669 = vadd.f32 %v3614, %v3644
      %v3670 = vadd.f32 %v3615, %v3648
      %v3671 = vadd.f32 %v3616, %v3644
      %v3672 = vadd.f32 %v3617, %v3648
      %v3673 = vadd.f32 %v3618, %v3644
      %v3674 = vadd.f32 %v3619, %v3648
      %v3675 = vadd.f32 %v3620, %v3644
      %v3676 = vadd.f32 %v3621, %v3648
      %v3677 = vadd.f32 %v3622, %v3644
      %v3678 = vadd.f32 %v3623, %v3648
      %v3679 = vadd.f32 %v3624, %v3644
      %v3680 = vadd.f32 %v3625, %v3648
      %v3681 = vadd.f32 %v3626, %v3644
      %v3682 = vadd.f32 %v3627, %v3648
      %v3683 = vadd.f32 %v3628, %v3644
      %v3684 = vadd.f32 %v3629, %v3648
      %v3685 = vadd.f32 %v3630, %v3644
      %v3686 = vadd.f32 %v3631, %v3648
      %v3687 = vadd.f32 %v3632, %v3644
      %v3688 = vadd.f32 %v3633, %v3648
      %v3689 = vadd.f32 %v3634, %v3644
      %v3690 = vadd.f32 %v3635, %v3648
      %v3691 = vadd.f32 %v3636, %v3644
      %v3692 = vadd.f32 %v3637, %v3648
      %v3693 = vmax.f32 %v3651, 0.0
      %v3694 = vmax.f32 %v3652, 0.0
      %v3695 = vmax.f32 %v3653, 0.0
      %v3696 = vmax.f32 %v3654, 0.0
      %v3697 = vmax.f32 %v3655, 0.0
      %v3698 = vmax.f32 %v3656, 0.0
      %v3699 = vmax.f32 %v3657, 0.0
      %v3700 = vmax.f32 %v3658, 0.0
      %v3701 = vmax.f32 %v3659, 0.0
      %v3702 = vmax.f32 %v3660, 0.0
      %v3703 = vmax.f32 %v3661, 0.0
      %v3704 = vmax.f32 %v3662, 0.0
      %v3705 = vmax.f32 %v3663, 0.0
      %v3706 = vmax.f32 %v3664, 0.0
      %v3707 = vmax.f32 %v3665, 0.0
      %v3708 = vmax.f32 %v3666, 0.0
      %v3709 = vmax.f32 %v3667, 0.0
      %v3710 = vmax.f32 %v3668, 0.0
      %v3711 = vmax.f32 %v3669, 0.0
      %v3712 = vmax.f32 %v3670, 0.0
      %v3713 = vmax.f32 %v3671, 0.0
      %v3714 = vmax.f32 %v3672, 0.0
      %v3715 = vmax.f32 %v3673, 0.0
      %v3716 = vmax.f32 %v3674, 0.0
      %v3717 = vmax.f32 %v3675, 0.0
      %v3718 = vmax.f32 %v3676, 0.0
      %v3719 = vmax.f32 %v3677, 0.0
      %v3720 = vmax.f32 %v3678, 0.0
      %v3721 = vmax.f32 %v3679, 0.0
      %v3722 = vmax.f32 %v3680, 0.0
      %v3723 = vmax.f32 %v3681, 0.0
      %v3724 = vmax.f32 %v3682, 0.0
      %v3725 = vmax.f32 %v3683, 0.0
      %v3726 = vmax.f32 %v3684, 0.0
      %v3727 = vmax.f32 %v3685, 0.0
      %v3728 = vmax.f32 %v3686, 0.0
      %v3729 = vmax.f32 %v3687, 0.0
      %v3730 = vmax.f32 %v3688, 0.0
      %v3731 = vmax.f32 %v3689, 0.0
      %v3732 = vmax.f32 %v3690, 0.0
      %v3733 = vmax.f32 %v3691, 0.0
      %v3734 = vmax.f32 %v3692, 0.0
      %v3735 = vpack.c.bf16 %v3695, %v3693
      %v3736 = vpack.c.bf16 %v3696, %v3694
      %v3737 = vpack.c.bf16 %v3699, %v3697
      %v3738 = vpack.c.bf16 %v3700, %v3698
      %v3739 = vpack.c.bf16 %v3703, %v3701
      %v3740 = vpack.c.bf16 %v3704, %v3702
      %v3741 = vpack.c.bf16 %v3707, %v3705
      %v3742 = vpack.c.bf16 %v3708, %v3706
      %v3743 = vpack.c.bf16 %v3711, %v3709
      %v3744 = vpack.c.bf16 %v3712, %v3710
      %v3745 = vpack.c.bf16 %v3715, %v3713
      %v3746 = vpack.c.bf16 %v3716, %v3714
      %v3747 = vpack.c.bf16 %v3719, %v3717
      %v3748 = vpack.c.bf16 %v3720, %v3718
      %v3749 = vpack.c.bf16 %v3723, %v3721
      %v3750 = vpack.c.bf16 %v3724, %v3722
      %v3751 = vpack.c.bf16 %v3727, %v3725
      %v3752 = vpack.c.bf16 %v3728, %v3726
      %v3753 = vpack.c.bf16 %v3731, %v3729
      %v3754 = vpack.c.bf16 %v3732, %v3730
      %v3755 = vpack.c.bf16 %v3733, %v3733
      %v3756 = vpack.c.bf16 %v3734, %v3734
      %v3779 = vunpack.c.l.b16 %v3735
      %v3780 = vunpack.c.l.b16 %v3736
      %v3781 = vunpack.c.h.b16 %v3735
      %v3782 = vunpack.c.h.b16 %v3736
      %v3783 = vunpack.c.l.b16 %v3737
      %v3784 = vunpack.c.l.b16 %v3738
      %v3785 = vunpack.c.h.b16 %v3737
      %v3786 = vunpack.c.h.b16 %v3738
      %v3787 = vunpack.c.l.b16 %v3739
      %v3788 = vunpack.c.l.b16 %v3740
      %v3789 = vunpack.c.h.b16 %v3739
      %v3790 = vunpack.c.h.b16 %v3740
      %v3791 = vunpack.c.l.b16 %v3741
      %v3792 = vunpack.c.l.b16 %v3742
      %v3793 = vunpack.c.h.b16 %v3741
      %v3794 = vunpack.c.h.b16 %v3742
      %v3795 = vunpack.c.l.b16 %v3743
      %v3796 = vunpack.c.l.b16 %v3744
      %v3797 = vunpack.c.h.b16 %v3743
      %v3798 = vunpack.c.h.b16 %v3744
      %v3799 = vunpack.c.l.b16 %v3745
      %v3800 = vunpack.c.l.b16 %v3746
      %v3801 = vunpack.c.h.b16 %v3745
      %v3802 = vunpack.c.h.b16 %v3746
      %v3803 = vunpack.c.l.b16 %v3747
      %v3804 = vunpack.c.l.b16 %v3748
      %v3805 = vunpack.c.h.b16 %v3747
      %v3806 = vunpack.c.h.b16 %v3748
      %v3807 = vunpack.c.l.b16 %v3749
      %v3808 = vunpack.c.l.b16 %v3750
      %v3809 = vunpack.c.h.b16 %v3749
      %v3810 = vunpack.c.h.b16 %v3750
      %v3811 = vunpack.c.l.b16 %v3751
      %v3812 = vunpack.c.l.b16 %v3752
      %v3813 = vunpack.c.h.b16 %v3751
      %v3814 = vunpack.c.h.b16 %v3752
      %v3815 = vunpack.c.l.b16 %v3753
      %v3816 = vunpack.c.l.b16 %v3754
      %v3817 = vunpack.c.h.b16 %v3753
      %v3818 = vunpack.c.h.b16 %v3754
      %v3819 = vunpack.c.l.b16 %v3755
      %v3820 = vunpack.c.l.b16 %v3756
      %v3821 = vpack.c.b16 %v3780, %v3779
      %v3822 = vpack.c.b16 %v3782, %v3781
      %v3823 = vpack.c.b16 %v3784, %v3783
      %v3824 = vpack.c.b16 %v3786, %v3785
      %v3825 = vpack.c.b16 %v3788, %v3787
      %v3826 = vpack.c.b16 %v3790, %v3789
      %v3827 = vpack.c.b16 %v3792, %v3791
      %v3828 = vpack.c.b16 %v3794, %v3793
      %v3829 = vpack.c.b16 %v3796, %v3795
      %v3830 = vpack.c.b16 %v3798, %v3797
      %v3831 = vpack.c.b16 %v3800, %v3799
      %v3832 = vpack.c.b16 %v3802, %v3801
      %v3833 = vpack.c.b16 %v3804, %v3803
      %v3834 = vpack.c.b16 %v3806, %v3805
      %v3835 = vpack.c.b16 %v3808, %v3807
      %v3836 = vpack.c.b16 %v3810, %v3809
      %v3837 = vpack.c.b16 %v3812, %v3811
      %v3838 = vpack.c.b16 %v3814, %v3813
      %v3839 = vpack.c.b16 %v3816, %v3815
      %v3840 = vpack.c.b16 %v3818, %v3817
      %v3841 = vpack.c.b16 %v3820, %v3819
      %v3843 = vshrl.u32 %v3821, 16
      %v3845 = vrot.slane %v3843, 7
      %v3846 = vshll.u32 %v3821, 16
      %v3848 = vor.u32 %v3845, %v3846
      %v3849 = vrot.slane %v3845, 4
      %v3851 = vshrl.u32 %v3822, 16
      %v3853 = vrot.slane %v3851, 7
      %v3854 = vshll.u32 %v3822, 16
      %v3856 = vor.u32 %v3853, %v3854
      %v3857 = vsel %vm1885, %v3849, %v3856
      %v3858 = vrot.slane %v3853, 4
      %v3860 = vshrl.u32 %v3823, 16
      %v3862 = vrot.slane %v3860, 7
      %v3863 = vshll.u32 %v3823, 16
      %v3865 = vor.u32 %v3862, %v3863
      %v3866 = vsel %vm1885, %v3858, %v3865
      %v3867 = vrot.slane %v3862, 4
      %v3869 = vshrl.u32 %v3824, 16
      %v3871 = vrot.slane %v3869, 7
      %v3872 = vshll.u32 %v3824, 16
      %v3874 = vor.u32 %v3871, %v3872
      %v3875 = vsel %vm1885, %v3867, %v3874
      %v3876 = vrot.slane %v3871, 4
      %v3878 = vshrl.u32 %v3825, 16
      %v3880 = vrot.slane %v3878, 7
      %v3881 = vshll.u32 %v3825, 16
      %v3883 = vor.u32 %v3880, %v3881
      %v3884 = vsel %vm1885, %v3876, %v3883
      %v3885 = vrot.slane %v3880, 4
      %v3887 = vshrl.u32 %v3826, 16
      %v3889 = vrot.slane %v3887, 7
      %v3890 = vshll.u32 %v3826, 16
      %v3892 = vor.u32 %v3889, %v3890
      %v3893 = vsel %vm1885, %v3885, %v3892
      %v3894 = vrot.slane %v3889, 4
      %v3896 = vshrl.u32 %v3827, 16
      %v3898 = vrot.slane %v3896, 7
      %v3899 = vshll.u32 %v3827, 16
      %v3901 = vor.u32 %v3898, %v3899
      %v3902 = vsel %vm1885, %v3894, %v3901
      %v3903 = vrot.slane %v3898, 4
      %v3905 = vshrl.u32 %v3828, 16
      %v3907 = vrot.slane %v3905, 7
      %v3908 = vshll.u32 %v3828, 16
      %v3910 = vor.u32 %v3907, %v3908
      %v3911 = vsel %vm1885, %v3903, %v3910
      %v3912 = vrot.slane %v3907, 4
      %v3914 = vshrl.u32 %v3829, 16
      %v3916 = vrot.slane %v3914, 7
      %v3917 = vshll.u32 %v3829, 16
      %v3919 = vor.u32 %v3916, %v3917
      %v3920 = vsel %vm1885, %v3912, %v3919
      %v3921 = vrot.slane %v3916, 4
      %v3923 = vshrl.u32 %v3830, 16
      %v3925 = vrot.slane %v3923, 7
      %v3926 = vshll.u32 %v3830, 16
      %v3928 = vor.u32 %v3925, %v3926
      %v3929 = vsel %vm1885, %v3921, %v3928
      %v3930 = vrot.slane %v3925, 4
      %v3932 = vshrl.u32 %v3831, 16
      %v3934 = vrot.slane %v3932, 7
      %v3935 = vshll.u32 %v3831, 16
      %v3937 = vor.u32 %v3934, %v3935
      %v3938 = vsel %vm1885, %v3930, %v3937
      %v3939 = vrot.slane %v3934, 4
      %v3941 = vshrl.u32 %v3832, 16
      %v3943 = vrot.slane %v3941, 7
      %v3944 = vshll.u32 %v3832, 16
      %v3946 = vor.u32 %v3943, %v3944
      %v3947 = vsel %vm1885, %v3939, %v3946
      %v3948 = vrot.slane %v3943, 4
      %v3950 = vshrl.u32 %v3833, 16
      %v3952 = vrot.slane %v3950, 7
      %v3953 = vshll.u32 %v3833, 16
      %v3955 = vor.u32 %v3952, %v3953
      %v3956 = vsel %vm1885, %v3948, %v3955
      %v3957 = vrot.slane %v3952, 4
      %v3959 = vshrl.u32 %v3834, 16
      %v3961 = vrot.slane %v3959, 7
      %v3962 = vshll.u32 %v3834, 16
      %v3964 = vor.u32 %v3961, %v3962
      %v3965 = vsel %vm1885, %v3957, %v3964
      %v3966 = vrot.slane %v3961, 4
      %v3968 = vshrl.u32 %v3835, 16
      %v3970 = vrot.slane %v3968, 7
      %v3971 = vshll.u32 %v3835, 16
      %v3973 = vor.u32 %v3970, %v3971
      %v3974 = vsel %vm1885, %v3966, %v3973
      %v3975 = vrot.slane %v3970, 4
      %v3977 = vshrl.u32 %v3836, 16
      %v3979 = vrot.slane %v3977, 7
      %v3980 = vshll.u32 %v3836, 16
      %v3982 = vor.u32 %v3979, %v3980
      %v3983 = vsel %vm1885, %v3975, %v3982
      %v3984 = vrot.slane %v3979, 4
      %v3986 = vshrl.u32 %v3837, 16
      %v3988 = vrot.slane %v3986, 7
      %v3989 = vshll.u32 %v3837, 16
      %v3991 = vor.u32 %v3988, %v3989
      %v3992 = vsel %vm1885, %v3984, %v3991
      %v3993 = vrot.slane %v3988, 4
      %v3995 = vshrl.u32 %v3838, 16
      %v3997 = vrot.slane %v3995, 7
      %v3998 = vshll.u32 %v3838, 16
      %v4000 = vor.u32 %v3997, %v3998
      %v4001 = vsel %vm1885, %v3993, %v4000
      %v4002 = vrot.slane %v3997, 4
      %v4004 = vshrl.u32 %v3839, 16
      %v4006 = vrot.slane %v4004, 7
      %v4007 = vshll.u32 %v3839, 16
      %v4009 = vor.u32 %v4006, %v4007
      %v4010 = vsel %vm1885, %v4002, %v4009
      %v4011 = vrot.slane %v4006, 4
      %v4013 = vshrl.u32 %v3840, 16
      %v4015 = vrot.slane %v4013, 7
      %v4016 = vshll.u32 %v3840, 16
      %v4018 = vor.u32 %v4015, %v4016
      %v4019 = vsel %vm1885, %v4011, %v4018
      %v4020 = vrot.slane %v4015, 4
      %v4022 = vshrl.u32 %v3841, 16
      %v4024 = vrot.slane %v4022, 7
      %v4025 = vshll.u32 %v3841, 16
      %v4027 = vor.u32 %v4024, %v4025
      %v4028 = vsel %vm1885, %v4020, %v4027
      %v4050 = vld [vmem:[#allocation3] sm:$0xff]
      %v4051 = vsel %vm2110, %v3848, %v4050
      %4052 = vst [vmem:[#allocation3] sm:$0xff] %v4051
      %4053 = vst [vmem:[#allocation3 + $0x8] sm:$0xff] %v3857
      %4054 = vst [vmem:[#allocation3 + $0x10] sm:$0xff] %v3866
      %4055 = vst [vmem:[#allocation3 + $0x18] sm:$0xff] %v3875
      %4056 = vst [vmem:[#allocation3 + $0x20] sm:$0xff] %v3884
      %4057 = vst [vmem:[#allocation3 + $0x28] sm:$0xff] %v3893
      %4058 = vst [vmem:[#allocation3 + $0x30] sm:$0xff] %v3902
      %4059 = vst [vmem:[#allocation3 + $0x38] sm:$0xff] %v3911
      %4060 = vst [vmem:[#allocation3 + $0x40] sm:$0xff] %v3920
      %4061 = vst [vmem:[#allocation3 + $0x48] sm:$0xff] %v3929
      %4062 = vst [vmem:[#allocation3 + $0x50] sm:$0xff] %v3938
      %4063 = vst [vmem:[#allocation3 + $0x58] sm:$0xff] %v3947
      %4064 = vst [vmem:[#allocation3 + $0x60] sm:$0xff] %v3956
      %4065 = vst [vmem:[#allocation3 + $0x68] sm:$0xff] %v3965
      %4066 = vst [vmem:[#allocation3 + $0x70] sm:$0xff] %v3974
      %4067 = vst [vmem:[#allocation3 + $0x78] sm:$0xff] %v3983
      %4068 = vst [vmem:[#allocation3 + $0x80] sm:$0xff] %v3992
      %4069 = vst [vmem:[#allocation3 + $0x88] sm:$0xff] %v4001
      %4070 = vst [vmem:[#allocation3 + $0x90] sm:$0xff] %v4010
      %4071 = vst [vmem:[#allocation3 + $0x98] sm:$0xff] %v4019
      %vm4072 = vsmask.f32 3328
      %vm4073 = vmand %vm2104, %vm4072
      %vm4074 = vmand %vm2107, %vm392
      %vm4075 = vmor %vm4074, %vm4073
      %v4076 = vld [vmem:[#allocation3 + $0xa0] sm:$0xff]
      %v4077 = vsel %vm4075, %v4028, %v4076
      %4078 = vst [vmem:[#allocation3 + $0xa0] sm:$0xff] %v4077
      %vm4079 = vcmask 1043459
      %vm4080 = vsmask.f32 7950
      %vm4081 = vmand %vm4079, %vm4080
      %vm4082 = vcmask 1047559
      %vm4083 = vsmask.f32 7966
      %vm4084 = vmand %vm4082, %vm4083
      %vm4085 = vmor %vm4084, %vm4081
      %v4086 = vld [vmem:[#allocation3 + $0xa0] sm:$0x88]
      %v4087 = vsel %vm4085, 0, %v4086
      %4088 = vst [vmem:[#allocation3 + $0xa0] sm:$0x88] %v4087
      %v4089 = vld [vmem:[#allocation3] sm:$0xff]
      %v4090 = vld [vmem:[#allocation3 + $0x8] sm:$0xff]
      %v4091 = vld [vmem:[#allocation3 + $0x10] sm:$0xff]
      %v4092 = vld [vmem:[#allocation3 + $0x18] sm:$0xff]
      %v4093 = vld [vmem:[#allocation3 + $0x20] sm:$0xff]
      %v4094 = vld [vmem:[#allocation3 + $0x28] sm:$0xff]
      %v4095 = vld [vmem:[#allocation3 + $0x30] sm:$0xff]
      %v4096 = vld [vmem:[#allocation3 + $0x38] sm:$0xff]
      %v4097 = vld [vmem:[#allocation3 + $0x40] sm:$0xff]
      %v4098 = vld [vmem:[#allocation3 + $0x48] sm:$0xff]
      %v4099 = vld [vmem:[#allocation3 + $0x50] sm:$0xff]
      %v4100 = vld [vmem:[#allocation3 + $0x58] sm:$0xff]
      %v4101 = vld [vmem:[#allocation3 + $0x60] sm:$0xff]
      %v4102 = vld [vmem:[#allocation3 + $0x68] sm:$0xff]
      %v4103 = vld [vmem:[#allocation3 + $0x70] sm:$0xff]
      %v4104 = vld [vmem:[#allocation3 + $0x78] sm:$0xff]
      %v4105 = vld [vmem:[#allocation3 + $0x80] sm:$0xff]
      %v4106 = vld [vmem:[#allocation3 + $0x88] sm:$0xff]
      %v4107 = vld [vmem:[#allocation3 + $0x90] sm:$0xff]
      %v4108 = vld [vmem:[#allocation3 + $0x98] sm:$0x77]
      %s4109 = scalar_lea.vmem %s1, 1536
      %v4110 = vld [vmem:[%s4109] sm:$0xff]
      %v4111 = vld [vmem:[%s4109 + $0x8] sm:$0xff]
      %v4112 = vld [vmem:[%s4109 + $0x10] sm:$0xff]
      %v4113 = vld [vmem:[%s4109 + $0x18] sm:$0xff]
      %v4114 = vld [vmem:[%s4109 + $0x20] sm:$0xff]
      %v4115 = vld [vmem:[%s4109 + $0x28] sm:$0xff]
      %v4116 = vld [vmem:[%s4109 + $0x30] sm:$0xff]
      %v4117 = vld [vmem:[%s4109 + $0x38] sm:$0xff]
      %v4118 = vld [vmem:[%s4109 + $0x40] sm:$0xff]
      %v4119 = vld [vmem:[%s4109 + $0x48] sm:$0xff]
      %v4120 = vld [vmem:[%s4109 + $0x50] sm:$0xff]
      %v4121 = vld [vmem:[%s4109 + $0x58] sm:$0xff]
      %v4122 = vld [vmem:[%s4109 + $0x60] sm:$0xff]
      %v4123 = vld [vmem:[%s4109 + $0x68] sm:$0xff]
      %v4124 = vld [vmem:[%s4109 + $0x70] sm:$0xff]
      %v4125 = vld [vmem:[%s4109 + $0x78] sm:$0xff]
      %v4126 = vld [vmem:[%s4109 + $0x80] sm:$0xff]
      %v4127 = vld [vmem:[%s4109 + $0x88] sm:$0xff]
      %v4128 = vld [vmem:[%s4109 + $0x90] sm:$0xff]
      %v4129 = vld [vmem:[%s4109 + $0x98] sm:$0xff]
      %v4130 = vld [vmem:[%s4109 + $0xa0] sm:$0xff]
      %v4131 = vld [vmem:[%s4109 + $0xa8] sm:$0xff]
      %v4132 = vld [vmem:[%s4109 + $0xb0] sm:$0xff]
      %v4133 = vld [vmem:[%s4109 + $0xb8] sm:$0xff]
      %v4134 = vld [vmem:[%s4109 + $0xc0] sm:$0xff]
      %v4135 = vld [vmem:[%s4109 + $0xc8] sm:$0xff]
      %v4136 = vld [vmem:[%s4109 + $0xd0] sm:$0xff]
      %v4137 = vld [vmem:[%s4109 + $0xd8] sm:$0xff]
      %v4138 = vld [vmem:[%s4109 + $0xe0] sm:$0xff]
      %v4139 = vld [vmem:[%s4109 + $0xe8] sm:$0xff]
      %v4140 = vld [vmem:[%s4109 + $0xf0] sm:$0xff]
      %v4141 = vld [vmem:[%s4109 + $0xf8] sm:$0xff]
      %v4142 = vld [vmem:[#allocation3] sm:$0xcc]
      %v4143 = vld [vmem:[#allocation3 + $0x98] sm:$0xff]
      %v4144 = vld [vmem:[#allocation3 + $0xa0] sm:$0x33]
      %s4145 = scalar_lea.vmem %s1, 1792
      %v4146 = vld [vmem:[%s4145] sm:$0xff]
      %v4147 = vld [vmem:[%s4145 + $0x8] sm:$0xff]
      %v4148 = vld [vmem:[%s4145 + $0x10] sm:$0xff]
      %v4149 = vld [vmem:[%s4145 + $0x18] sm:$0xff]
      %v4150 = vld [vmem:[%s4145 + $0x20] sm:$0xff]
      %v4151 = vld [vmem:[%s4145 + $0x28] sm:$0xff]
      %v4152 = vld [vmem:[%s4145 + $0x30] sm:$0xff]
      %v4153 = vld [vmem:[%s4145 + $0x38] sm:$0xff]
      %v4154 = vld [vmem:[%s4145 + $0x40] sm:$0xff]
      %v4155 = vld [vmem:[%s4145 + $0x48] sm:$0xff]
      %v4156 = vld [vmem:[%s4145 + $0x50] sm:$0xff]
      %v4157 = vld [vmem:[%s4145 + $0x58] sm:$0xff]
      %v4158 = vld [vmem:[%s4145 + $0x60] sm:$0xff]
      %v4159 = vld [vmem:[%s4145 + $0x68] sm:$0xff]
      %v4160 = vld [vmem:[%s4145 + $0x70] sm:$0xff]
      %v4161 = vld [vmem:[%s4145 + $0x78] sm:$0xff]
      %v4162 = vld [vmem:[%s4145 + $0x80] sm:$0xff]
      %v4163 = vld [vmem:[%s4145 + $0x88] sm:$0xff]
      %v4164 = vld [vmem:[%s4145 + $0x90] sm:$0xff]
      %v4165 = vld [vmem:[%s4145 + $0x98] sm:$0xff]
      %v4166 = vld [vmem:[%s4145 + $0xa0] sm:$0xff]
      %v4167 = vld [vmem:[%s4145 + $0xa8] sm:$0xff]
      %v4168 = vld [vmem:[%s4145 + $0xb0] sm:$0xff]
      %v4169 = vld [vmem:[%s4145 + $0xb8] sm:$0xff]
      %v4170 = vld [vmem:[%s4145 + $0xc0] sm:$0xff]
      %v4171 = vld [vmem:[%s4145 + $0xc8] sm:$0xff]
      %v4172 = vld [vmem:[%s4145 + $0xd0] sm:$0xff]
      %v4173 = vld [vmem:[%s4145 + $0xd8] sm:$0xff]
      %v4174 = vld [vmem:[%s4145 + $0xe0] sm:$0xff]
      %v4175 = vld [vmem:[%s4145 + $0xe8] sm:$0xff]
      %v4176 = vld [vmem:[%s4145 + $0xf0] sm:$0xff]
      %v4177 = vld [vmem:[%s4145 + $0xf8] sm:$0xff]
      %v4199 = vunpack.c.l.b16 %v4142
      %v4200 = vunpack.c.h.b16 %v4142
      %v4201 = vunpack.c.l.b16 %v4090
      %v4202 = vunpack.c.h.b16 %v4090
      %v4203 = vunpack.c.l.b16 %v4091
      %v4204 = vunpack.c.h.b16 %v4091
      %v4205 = vunpack.c.l.b16 %v4092
      %v4206 = vunpack.c.h.b16 %v4092
      %v4207 = vunpack.c.l.b16 %v4093
      %v4208 = vunpack.c.h.b16 %v4093
      %v4209 = vunpack.c.l.b16 %v4094
      %v4210 = vunpack.c.h.b16 %v4094
      %v4211 = vunpack.c.l.b16 %v4095
      %v4212 = vunpack.c.h.b16 %v4095
      %v4213 = vunpack.c.l.b16 %v4096
      %v4214 = vunpack.c.h.b16 %v4096
      %v4215 = vunpack.c.l.b16 %v4097
      %v4216 = vunpack.c.h.b16 %v4097
      %v4217 = vunpack.c.l.b16 %v4098
      %v4218 = vunpack.c.h.b16 %v4098
      %v4219 = vunpack.c.l.b16 %v4099
      %v4220 = vunpack.c.h.b16 %v4099
      %v4221 = vunpack.c.l.b16 %v4100
      %v4222 = vunpack.c.h.b16 %v4100
      %v4223 = vunpack.c.l.b16 %v4101
      %v4224 = vunpack.c.h.b16 %v4101
      %v4225 = vunpack.c.l.b16 %v4102
      %v4226 = vunpack.c.h.b16 %v4102
      %v4227 = vunpack.c.l.b16 %v4103
      %v4228 = vunpack.c.h.b16 %v4103
      %v4229 = vunpack.c.l.b16 %v4104
      %v4230 = vunpack.c.h.b16 %v4104
      %v4231 = vunpack.c.l.b16 %v4105
      %v4232 = vunpack.c.h.b16 %v4105
      %v4233 = vunpack.c.l.b16 %v4106
      %v4234 = vunpack.c.h.b16 %v4106
      %v4235 = vunpack.c.l.b16 %v4107
      %v4236 = vunpack.c.h.b16 %v4107
      %v4237 = vunpack.c.l.b16 %v4143
      %v4238 = vunpack.c.h.b16 %v4143
      %v4239 = vunpack.c.l.b16 %v4144
      %v4240 = vunpack.c.h.b16 %v4144
      %v4241 = vpack.c.b16 %v4201, %v4199
      %v4242 = vpack.c.b16 %v4202, %v4200
      %v4243 = vpack.c.b16 %v4205, %v4203
      %v4244 = vpack.c.b16 %v4206, %v4204
      %v4245 = vpack.c.b16 %v4209, %v4207
      %v4246 = vpack.c.b16 %v4210, %v4208
      %v4247 = vpack.c.b16 %v4213, %v4211
      %v4248 = vpack.c.b16 %v4214, %v4212
      %v4249 = vpack.c.b16 %v4217, %v4215
      %v4250 = vpack.c.b16 %v4218, %v4216
      %v4251 = vpack.c.b16 %v4221, %v4219
      %v4252 = vpack.c.b16 %v4222, %v4220
      %v4253 = vpack.c.b16 %v4225, %v4223
      %v4254 = vpack.c.b16 %v4226, %v4224
      %v4255 = vpack.c.b16 %v4229, %v4227
      %v4256 = vpack.c.b16 %v4230, %v4228
      %v4257 = vpack.c.b16 %v4233, %v4231
      %v4258 = vpack.c.b16 %v4234, %v4232
      %v4259 = vpack.c.b16 %v4237, %v4235
      %v4260 = vpack.c.b16 %v4238, %v4236
      %v4261 = vpack.c.b16 %v4239, %v4239
      %v4262 = vpack.c.b16 %v4240, %v4240
      %v4264 = vshrl.u32 %v4241, 16
      %v4266 = vrot.slane %v4264, 2
      %v4267 = vshll.u32 %v4241, 16
      %v4269 = vrot.slane %v4267, 3
      %v4270 = vor.u32 %v4266, %v4269
      %v4272 = vshrl.u32 %v4243, 16
      %v4274 = vrot.slane %v4272, 2
      %v4275 = vshll.u32 %v4243, 16
      %v4277 = vrot.slane %v4275, 3
      %v4278 = vor.u32 %v4274, %v4277
      %v4279 = vsel %vm2138, %v4270, %v4278
      %v4281 = vshrl.u32 %v4242, 16
      %v4283 = vrot.slane %v4281, 2
      %v4284 = vshll.u32 %v4242, 16
      %v4286 = vrot.slane %v4284, 3
      %v4287 = vor.u32 %v4283, %v4286
      %v4289 = vshrl.u32 %v4244, 16
      %v4291 = vrot.slane %v4289, 2
      %v4292 = vshll.u32 %v4244, 16
      %v4294 = vrot.slane %v4292, 3
      %v4295 = vor.u32 %v4291, %v4294
      %v4296 = vsel %vm2138, %v4287, %v4295
      %v4298 = vshrl.u32 %v4245, 16
      %v4300 = vrot.slane %v4298, 2
      %v4301 = vshll.u32 %v4245, 16
      %v4303 = vrot.slane %v4301, 3
      %v4304 = vor.u32 %v4300, %v4303
      %v4305 = vsel %vm2138, %v4278, %v4304
      %v4307 = vshrl.u32 %v4246, 16
      %v4309 = vrot.slane %v4307, 2
      %v4310 = vshll.u32 %v4246, 16
      %v4312 = vrot.slane %v4310, 3
      %v4313 = vor.u32 %v4309, %v4312
      %v4314 = vsel %vm2138, %v4295, %v4313
      %v4316 = vshrl.u32 %v4247, 16
      %v4318 = vrot.slane %v4316, 2
      %v4319 = vshll.u32 %v4247, 16
      %v4321 = vrot.slane %v4319, 3
      %v4322 = vor.u32 %v4318, %v4321
      %v4323 = vsel %vm2138, %v4304, %v4322
      %v4325 = vshrl.u32 %v4248, 16
      %v4327 = vrot.slane %v4325, 2
      %v4328 = vshll.u32 %v4248, 16
      %v4330 = vrot.slane %v4328, 3
      %v4331 = vor.u32 %v4327, %v4330
      %v4332 = vsel %vm2138, %v4313, %v4331
      %v4334 = vshrl.u32 %v4249, 16
      %v4336 = vrot.slane %v4334, 2
      %v4337 = vshll.u32 %v4249, 16
      %v4339 = vrot.slane %v4337, 3
      %v4340 = vor.u32 %v4336, %v4339
      %v4341 = vsel %vm2138, %v4322, %v4340
      %v4343 = vshrl.u32 %v4250, 16
      %v4345 = vrot.slane %v4343, 2
      %v4346 = vshll.u32 %v4250, 16
      %v4348 = vrot.slane %v4346, 3
      %v4349 = vor.u32 %v4345, %v4348
      %v4350 = vsel %vm2138, %v4331, %v4349
      %v4352 = vshrl.u32 %v4251, 16
      %v4354 = vrot.slane %v4352, 2
      %v4355 = vshll.u32 %v4251, 16
      %v4357 = vrot.slane %v4355, 3
      %v4358 = vor.u32 %v4354, %v4357
      %v4359 = vsel %vm2138, %v4340, %v4358
      %v4361 = vshrl.u32 %v4252, 16
      %v4363 = vrot.slane %v4361, 2
      %v4364 = vshll.u32 %v4252, 16
      %v4366 = vrot.slane %v4364, 3
      %v4367 = vor.u32 %v4363, %v4366
      %v4368 = vsel %vm2138, %v4349, %v4367
      %v4370 = vshrl.u32 %v4253, 16
      %v4372 = vrot.slane %v4370, 2
      %v4373 = vshll.u32 %v4253, 16
      %v4375 = vrot.slane %v4373, 3
      %v4376 = vor.u32 %v4372, %v4375
      %v4377 = vsel %vm2138, %v4358, %v4376
      %v4379 = vshrl.u32 %v4254, 16
      %v4381 = vrot.slane %v4379, 2
      %v4382 = vshll.u32 %v4254, 16
      %v4384 = vrot.slane %v4382, 3
      %v4385 = vor.u32 %v4381, %v4384
      %v4386 = vsel %vm2138, %v4367, %v4385
      %v4388 = vshrl.u32 %v4255, 16
      %v4390 = vrot.slane %v4388, 2
      %v4391 = vshll.u32 %v4255, 16
      %v4393 = vrot.slane %v4391, 3
      %v4394 = vor.u32 %v4390, %v4393
      %v4395 = vsel %vm2138, %v4376, %v4394
      %v4397 = vshrl.u32 %v4256, 16
      %v4399 = vrot.slane %v4397, 2
      %v4400 = vshll.u32 %v4256, 16
      %v4402 = vrot.slane %v4400, 3
      %v4403 = vor.u32 %v4399, %v4402
      %v4404 = vsel %vm2138, %v4385, %v4403
      %v4406 = vshrl.u32 %v4257, 16
      %v4408 = vrot.slane %v4406, 2
      %v4409 = vshll.u32 %v4257, 16
      %v4411 = vrot.slane %v4409, 3
      %v4412 = vor.u32 %v4408, %v4411
      %v4413 = vsel %vm2138, %v4394, %v4412
      %v4415 = vshrl.u32 %v4258, 16
      %v4417 = vrot.slane %v4415, 2
      %v4418 = vshll.u32 %v4258, 16
      %v4420 = vrot.slane %v4418, 3
      %v4421 = vor.u32 %v4417, %v4420
      %v4422 = vsel %vm2138, %v4403, %v4421
      %v4424 = vshrl.u32 %v4259, 16
      %v4426 = vrot.slane %v4424, 2
      %v4427 = vshll.u32 %v4259, 16
      %v4429 = vrot.slane %v4427, 3
      %v4430 = vor.u32 %v4426, %v4429
      %v4431 = vsel %vm2138, %v4412, %v4430
      %v4433 = vshrl.u32 %v4260, 16
      %v4435 = vrot.slane %v4433, 2
      %v4436 = vshll.u32 %v4260, 16
      %v4438 = vrot.slane %v4436, 3
      %v4439 = vor.u32 %v4435, %v4438
      %v4440 = vsel %vm2138, %v4421, %v4439
      %v4442 = vshrl.u32 %v4261, 16
      %v4444 = vrot.slane %v4442, 2
      %v4445 = vshll.u32 %v4261, 16
      %v4447 = vrot.slane %v4445, 3
      %v4448 = vor.u32 %v4444, %v4447
      %v4449 = vsel %vm2138, %v4430, %v4448
      %v4451 = vshrl.u32 %v4262, 16
      %v4453 = vrot.slane %v4451, 2
      %v4454 = vshll.u32 %v4262, 16
      %v4456 = vrot.slane %v4454, 3
      %v4457 = vor.u32 %v4453, %v4456
      %v4458 = vsel %vm2138, %v4439, %v4457
      %v4511 = vunpack.c.l.b16 %v4146
      %v4512 = vunpack.c.h.b16 %v4146
      %v4513 = vunpack.c.l.b16 %v4147
      %v4514 = vunpack.c.h.b16 %v4147
      %v4515 = vunpack.c.l.b16 %v4148
      %v4516 = vunpack.c.h.b16 %v4148
      %v4517 = vunpack.c.l.b16 %v4149
      %v4518 = vunpack.c.h.b16 %v4149
      %v4519 = vunpack.c.l.b16 %v4150
      %v4520 = vunpack.c.h.b16 %v4150
      %v4521 = vunpack.c.l.b16 %v4151
      %v4522 = vunpack.c.h.b16 %v4151
      %v4523 = vunpack.c.l.b16 %v4152
      %v4524 = vunpack.c.h.b16 %v4152
      %v4525 = vunpack.c.l.b16 %v4153
      %v4526 = vunpack.c.h.b16 %v4153
      %v4527 = vunpack.c.l.b16 %v4154
      %v4528 = vunpack.c.h.b16 %v4154
      %v4529 = vunpack.c.l.b16 %v4155
      %v4530 = vunpack.c.h.b16 %v4155
      %v4531 = vunpack.c.l.b16 %v4156
      %v4532 = vunpack.c.h.b16 %v4156
      %v4533 = vunpack.c.l.b16 %v4157
      %v4534 = vunpack.c.h.b16 %v4157
      %v4535 = vunpack.c.l.b16 %v4158
      %v4536 = vunpack.c.h.b16 %v4158
      %v4537 = vunpack.c.l.b16 %v4159
      %v4538 = vunpack.c.h.b16 %v4159
      %v4539 = vunpack.c.l.b16 %v4160
      %v4540 = vunpack.c.h.b16 %v4160
      %v4541 = vunpack.c.l.b16 %v4161
      %v4542 = vunpack.c.h.b16 %v4161
      %v4543 = vunpack.c.l.b16 %v4162
      %v4544 = vunpack.c.h.b16 %v4162
      %v4545 = vunpack.c.l.b16 %v4163
      %v4546 = vunpack.c.h.b16 %v4163
      %v4547 = vunpack.c.l.b16 %v4164
      %v4548 = vunpack.c.h.b16 %v4164
      %v4549 = vunpack.c.l.b16 %v4165
      %v4550 = vunpack.c.h.b16 %v4165
      %v4551 = vunpack.c.l.b16 %v4166
      %v4552 = vunpack.c.h.b16 %v4166
      %v4553 = vunpack.c.l.b16 %v4167
      %v4554 = vunpack.c.h.b16 %v4167
      %v4555 = vunpack.c.l.b16 %v4168
      %v4556 = vunpack.c.h.b16 %v4168
      %v4557 = vunpack.c.l.b16 %v4169
      %v4558 = vunpack.c.h.b16 %v4169
      %v4559 = vunpack.c.l.b16 %v4170
      %v4560 = vunpack.c.h.b16 %v4170
      %v4561 = vunpack.c.l.b16 %v4171
      %v4562 = vunpack.c.h.b16 %v4171
      %v4563 = vunpack.c.l.b16 %v4172
      %v4564 = vunpack.c.h.b16 %v4172
      %v4565 = vunpack.c.l.b16 %v4173
      %v4566 = vunpack.c.h.b16 %v4173
      %v4567 = vunpack.c.l.b16 %v4174
      %v4568 = vunpack.c.h.b16 %v4174
      %v4569 = vunpack.c.l.b16 %v4175
      %v4570 = vunpack.c.h.b16 %v4175
      %v4571 = vunpack.c.l.b16 %v4176
      %v4572 = vunpack.c.h.b16 %v4176
      %v4573 = vunpack.c.l.b16 %v4177
      %v4574 = vunpack.c.h.b16 %v4177
      %v4575 = vpack.c.b16 %v4513, %v4511
      %v4576 = vpack.c.b16 %v4514, %v4512
      %v4577 = vpack.c.b16 %v4517, %v4515
      %v4578 = vpack.c.b16 %v4518, %v4516
      %v4579 = vpack.c.b16 %v4521, %v4519
      %v4580 = vpack.c.b16 %v4522, %v4520
      %v4581 = vpack.c.b16 %v4525, %v4523
      %v4582 = vpack.c.b16 %v4526, %v4524
      %v4583 = vpack.c.b16 %v4529, %v4527
      %v4584 = vpack.c.b16 %v4530, %v4528
      %v4585 = vpack.c.b16 %v4533, %v4531
      %v4586 = vpack.c.b16 %v4534, %v4532
      %v4587 = vpack.c.b16 %v4537, %v4535
      %v4588 = vpack.c.b16 %v4538, %v4536
      %v4589 = vpack.c.b16 %v4541, %v4539
      %v4590 = vpack.c.b16 %v4542, %v4540
      %v4591 = vpack.c.b16 %v4545, %v4543
      %v4592 = vpack.c.b16 %v4546, %v4544
      %v4593 = vpack.c.b16 %v4549, %v4547
      %v4594 = vpack.c.b16 %v4550, %v4548
      %v4595 = vpack.c.b16 %v4553, %v4551
      %v4596 = vpack.c.b16 %v4554, %v4552
      %v4597 = vpack.c.b16 %v4557, %v4555
      %v4598 = vpack.c.b16 %v4558, %v4556
      %v4599 = vpack.c.b16 %v4561, %v4559
      %v4600 = vpack.c.b16 %v4562, %v4560
      %v4601 = vpack.c.b16 %v4565, %v4563
      %v4602 = vpack.c.b16 %v4566, %v4564
      %v4603 = vpack.c.b16 %v4569, %v4567
      %v4604 = vpack.c.b16 %v4570, %v4568
      %v4605 = vpack.c.b16 %v4573, %v4571
      %v4606 = vpack.c.b16 %v4574, %v4572
      %4639 = vmatprep.subr.bf16.mxu0 %v4576
      %4640 = vmatpush1.bf16.msra.mxu0 %v4575
      %4641 = vmatprep.subr.bf16.mxu0 %v4578
      %4642 = vmatpush1.bf16.msra.mxu0 %v4577
      %4643 = vmatprep.subr.bf16.mxu0 %v4580
      %4644 = vmatpush1.bf16.msra.mxu0 %v4579
      %4645 = vmatprep.subr.bf16.mxu0 %v4582
      %4646 = vmatpush1.bf16.msra.mxu0 %v4581
      %4647 = vmatprep.subr.bf16.mxu0 %v4584
      %4648 = vmatpush1.bf16.msra.mxu0 %v4583
      %4649 = vmatprep.subr.bf16.mxu0 %v4586
      %4650 = vmatpush1.bf16.msra.mxu0 %v4585
      %4651 = vmatprep.subr.bf16.mxu0 %v4588
      %4652 = vmatpush1.bf16.msra.mxu0 %v4587
      %4653 = vmatprep.subr.bf16.mxu0 %v4590
      %4654 = vmatpush1.bf16.msra.mxu0 %v4589
      %4655 = vmatprep.subr.bf16.mxu0 %v4592
      %4656 = vmatpush1.bf16.msra.mxu0 %v4591
      %4657 = vmatprep.subr.bf16.mxu0 %v4594
      %4658 = vmatpush1.bf16.msra.mxu0 %v4593
      %4659 = vmatprep.subr.bf16.mxu0 %v4596
      %4660 = vmatpush1.bf16.msra.mxu0 %v4595
      %4661 = vmatprep.subr.bf16.mxu0 %v4598
      %4662 = vmatpush1.bf16.msra.mxu0 %v4597
      %4663 = vmatprep.subr.bf16.mxu0 %v4600
      %4664 = vmatpush1.bf16.msra.mxu0 %v4599
      %4665 = vmatprep.subr.bf16.mxu0 %v4602
      %4666 = vmatpush1.bf16.msra.mxu0 %v4601
      %4667 = vmatprep.subr.bf16.mxu0 %v4604
      %4668 = vmatpush1.bf16.msra.mxu0 %v4603
      %4669 = vmatprep.subr.bf16.mxu0 %v4606
      %4670 = vmatpush1.bf16.msra.mxu0 %v4605
      %4671 = vmatprep.mubr.bf16.mxu0 %v4296
      %4672 = vmatmul.mubr.bf16.gmra.mrb[0].mxu0 %v4279
      %v4673 = vpop.f32.mrb[0].mxu0
      %v4674 = vadd.f32 0.0, %v4673
      %v4675 = vpop.f32.mrb[0].mxu0
      %v4676 = vadd.f32 0.0, %v4675
      %v4677 = vpop.f32.mrb[0].mxu0
      %v4678 = vadd.f32 0.0, %v4677
      %v4679 = vpop.f32.mrb[0].mxu0
      %v4680 = vadd.f32 0.0, %v4679
      %4681 = vmatprep.mubr.bf16.mxu0 %v4314
      %4682 = vmatmul.mubr.bf16.gmra.mrb[0].mxu0 %v4305
      %v4683 = vpop.f32.mrb[0].mxu0
      %v4684 = vadd.f32 0.0, %v4683
      %v4685 = vpop.f32.mrb[0].mxu0
      %v4686 = vadd.f32 0.0, %v4685
      %v4687 = vpop.f32.mrb[0].mxu0
      %v4688 = vadd.f32 0.0, %v4687
      %v4689 = vpop.f32.mrb[0].mxu0
      %v4690 = vadd.f32 0.0, %v4689
      %4691 = vmatprep.mubr.bf16.mxu0 %v4332
      %4692 = vmatmul.mubr.bf16.gmra.mrb[0].mxu0 %v4323
      %v4693 = vpop.f32.mrb[0].mxu0
      %v4694 = vadd.f32 0.0, %v4693
      %v4695 = vpop.f32.mrb[0].mxu0
      %v4696 = vadd.f32 0.0, %v4695
      %v4697 = vpop.f32.mrb[0].mxu0
      %v4698 = vadd.f32 0.0, %v4697
      %v4699 = vpop.f32.mrb[0].mxu0
      %v4700 = vadd.f32 0.0, %v4699
      %4701 = vmatprep.mubr.bf16.mxu0 %v4350
      %4702 = vmatmul.mubr.bf16.gmra.mrb[0].mxu0 %v4341
      %v4703 = vpop.f32.mrb[0].mxu0
      %v4704 = vadd.f32 0.0, %v4703
      %v4705 = vpop.f32.mrb[0].mxu0
      %v4706 = vadd.f32 0.0, %v4705
      %v4707 = vpop.f32.mrb[0].mxu0
      %v4708 = vadd.f32 0.0, %v4707
      %v4709 = vpop.f32.mrb[0].mxu0
      %v4710 = vadd.f32 0.0, %v4709
      %4711 = vmatprep.mubr.bf16.mxu0 %v4368
      %4712 = vmatmul.mubr.bf16.gmra.mrb[0].mxu0 %v4359
      %v4713 = vpop.f32.mrb[0].mxu0
      %v4714 = vadd.f32 0.0, %v4713
      %v4715 = vpop.f32.mrb[0].mxu0
      %v4716 = vadd.f32 0.0, %v4715
      %v4717 = vpop.f32.mrb[0].mxu0
      %v4718 = vadd.f32 0.0, %v4717
      %v4719 = vpop.f32.mrb[0].mxu0
      %v4720 = vadd.f32 0.0, %v4719
      %4721 = vmatprep.mubr.bf16.mxu0 %v4386
      %4722 = vmatmul.mubr.bf16.gmra.mrb[0].mxu0 %v4377
      %v4723 = vpop.f32.mrb[0].mxu0
      %v4724 = vadd.f32 0.0, %v4723
      %v4725 = vpop.f32.mrb[0].mxu0
      %v4726 = vadd.f32 0.0, %v4725
      %v4727 = vpop.f32.mrb[0].mxu0
      %v4728 = vadd.f32 0.0, %v4727
      %v4729 = vpop.f32.mrb[0].mxu0
      %v4730 = vadd.f32 0.0, %v4729
      %4731 = vmatprep.mubr.bf16.mxu0 %v4404
      %4732 = vmatmul.mubr.bf16.gmra.mrb[0].mxu0 %v4395
      %v4733 = vpop.f32.mrb[0].mxu0
      %v4734 = vadd.f32 0.0, %v4733
      %v4735 = vpop.f32.mrb[0].mxu0
      %v4736 = vadd.f32 0.0, %v4735
      %v4737 = vpop.f32.mrb[0].mxu0
      %v4738 = vadd.f32 0.0, %v4737
      %v4739 = vpop.f32.mrb[0].mxu0
      %v4740 = vadd.f32 0.0, %v4739
      %4741 = vmatprep.mubr.bf16.mxu0 %v4422
      %4742 = vmatmul.mubr.bf16.gmra.mrb[0].mxu0 %v4413
      %v4743 = vpop.f32.mrb[0].mxu0
      %v4744 = vadd.f32 0.0, %v4743
      %v4745 = vpop.f32.mrb[0].mxu0
      %v4746 = vadd.f32 0.0, %v4745
      %v4747 = vpop.f32.mrb[0].mxu0
      %v4748 = vadd.f32 0.0, %v4747
      %v4749 = vpop.f32.mrb[0].mxu0
      %v4750 = vadd.f32 0.0, %v4749
      %4751 = vmatprep.mubr.bf16.mxu0 %v4440
      %4752 = vmatmul.mubr.bf16.gmra.mrb[0].mxu0 %v4431
      %v4753 = vpop.f32.mrb[0].mxu0
      %v4754 = vadd.f32 0.0, %v4753
      %v4755 = vpop.f32.mrb[0].mxu0
      %v4756 = vadd.f32 0.0, %v4755
      %v4757 = vpop.f32.mrb[0].mxu0
      %v4758 = vadd.f32 0.0, %v4757
      %v4759 = vpop.f32.mrb[0].mxu0
      %v4760 = vadd.f32 0.0, %v4759
      %4761 = vmatprep.mubr.bf16.mxu0 %v4458
      %4762 = vmatmul.mubr.bf16.gmra.mrb[0].mxu0 %v4449
      %v4763 = vpop.f32.mrb[0].mxu0
      %v4764 = vadd.f32 0.0, %v4763
      %v4765 = vpop.f32.mrb[0].mxu0
      %v4766 = vadd.f32 0.0, %v4765
      %v4767 = vpop.f32.mrb[0].mxu0
      %v4768 = vadd.f32 0.0, %v4767
      %v4769 = vpop.f32.mrb[0].mxu0
      %v4770 = vadd.f32 0.0, %v4769
      %4771 = vdwg.mxu0
      %v4774 = vunpack.c.l.b16 %v4089
      %v4775 = vunpack.c.h.b16 %v4089
      %v4776 = vunpack.c.l.b16 %v4108
      %v4777 = vunpack.c.h.b16 %v4108
      %v4778 = vpack.c.b16 %v4201, %v4774
      %v4779 = vpack.c.b16 %v4202, %v4775
      %v4780 = vpack.c.b16 %v4776, %v4235
      %v4781 = vpack.c.b16 %v4777, %v4236
      %v4834 = vunpack.c.l.b16 %v4110
      %v4835 = vunpack.c.h.b16 %v4110
      %v4836 = vunpack.c.l.b16 %v4111
      %v4837 = vunpack.c.h.b16 %v4111
      %v4838 = vunpack.c.l.b16 %v4112
      %v4839 = vunpack.c.h.b16 %v4112
      %v4840 = vunpack.c.l.b16 %v4113
      %v4841 = vunpack.c.h.b16 %v4113
      %v4842 = vunpack.c.l.b16 %v4114
      %v4843 = vunpack.c.h.b16 %v4114
      %v4844 = vunpack.c.l.b16 %v4115
      %v4845 = vunpack.c.h.b16 %v4115
      %v4846 = vunpack.c.l.b16 %v4116
      %v4847 = vunpack.c.h.b16 %v4116
      %v4848 = vunpack.c.l.b16 %v4117
      %v4849 = vunpack.c.h.b16 %v4117
      %v4850 = vunpack.c.l.b16 %v4118
      %v4851 = vunpack.c.h.b16 %v4118
      %v4852 = vunpack.c.l.b16 %v4119
      %v4853 = vunpack.c.h.b16 %v4119
      %v4854 = vunpack.c.l.b16 %v4120
      %v4855 = vunpack.c.h.b16 %v4120
      %v4856 = vunpack.c.l.b16 %v4121
      %v4857 = vunpack.c.h.b16 %v4121
      %v4858 = vunpack.c.l.b16 %v4122
      %v4859 = vunpack.c.h.b16 %v4122
      %v4860 = vunpack.c.l.b16 %v4123
      %v4861 = vunpack.c.h.b16 %v4123
      %v4862 = vunpack.c.l.b16 %v4124
      %v4863 = vunpack.c.h.b16 %v4124
      %v4864 = vunpack.c.l.b16 %v4125
      %v4865 = vunpack.c.h.b16 %v4125
      %v4866 = vunpack.c.l.b16 %v4126
      %v4867 = vunpack.c.h.b16 %v4126
      %v4868 = vunpack.c.l.b16 %v4127
      %v4869 = vunpack.c.h.b16 %v4127
      %v4870 = vunpack.c.l.b16 %v4128
      %v4871 = vunpack.c.h.b16 %v4128
      %v4872 = vunpack.c.l.b16 %v4129
      %v4873 = vunpack.c.h.b16 %v4129
      %v4874 = vunpack.c.l.b16 %v4130
      %v4875 = vunpack.c.h.b16 %v4130
      %v4876 = vunpack.c.l.b16 %v4131
      %v4877 = vunpack.c.h.b16 %v4131
      %v4878 = vunpack.c.l.b16 %v4132
      %v4879 = vunpack.c.h.b16 %v4132
      %v4880 = vunpack.c.l.b16 %v4133
      %v4881 = vunpack.c.h.b16 %v4133
      %v4882 = vunpack.c.l.b16 %v4134
      %v4883 = vunpack.c.h.b16 %v4134
      %v4884 = vunpack.c.l.b16 %v4135
      %v4885 = vunpack.c.h.b16 %v4135
      %v4886 = vunpack.c.l.b16 %v4136
      %v4887 = vunpack.c.h.b16 %v4136
      %v4888 = vunpack.c.l.b16 %v4137
      %v4889 = vunpack.c.h.b16 %v4137
      %v4890 = vunpack.c.l.b16 %v4138
      %v4891 = vunpack.c.h.b16 %v4138
      %v4892 = vunpack.c.l.b16 %v4139
      %v4893 = vunpack.c.h.b16 %v4139
      %v4894 = vunpack.c.l.b16 %v4140
      %v4895 = vunpack.c.h.b16 %v4140
      %v4896 = vunpack.c.l.b16 %v4141
      %v4897 = vunpack.c.h.b16 %v4141
      %v4898 = vpack.c.b16 %v4836, %v4834
      %v4899 = vpack.c.b16 %v4837, %v4835
      %v4900 = vpack.c.b16 %v4840, %v4838
      %v4901 = vpack.c.b16 %v4841, %v4839
      %v4902 = vpack.c.b16 %v4844, %v4842
      %v4903 = vpack.c.b16 %v4845, %v4843
      %v4904 = vpack.c.b16 %v4848, %v4846
      %v4905 = vpack.c.b16 %v4849, %v4847
      %v4906 = vpack.c.b16 %v4852, %v4850
      %v4907 = vpack.c.b16 %v4853, %v4851
      %v4908 = vpack.c.b16 %v4856, %v4854
      %v4909 = vpack.c.b16 %v4857, %v4855
      %v4910 = vpack.c.b16 %v4860, %v4858
      %v4911 = vpack.c.b16 %v4861, %v4859
      %v4912 = vpack.c.b16 %v4864, %v4862
      %v4913 = vpack.c.b16 %v4865, %v4863
      %v4914 = vpack.c.b16 %v4868, %v4866
      %v4915 = vpack.c.b16 %v4869, %v4867
      %v4916 = vpack.c.b16 %v4872, %v4870
      %v4917 = vpack.c.b16 %v4873, %v4871
      %v4918 = vpack.c.b16 %v4876, %v4874
      %v4919 = vpack.c.b16 %v4877, %v4875
      %v4920 = vpack.c.b16 %v4880, %v4878
      %v4921 = vpack.c.b16 %v4881, %v4879
      %v4922 = vpack.c.b16 %v4884, %v4882
      %v4923 = vpack.c.b16 %v4885, %v4883
      %v4924 = vpack.c.b16 %v4888, %v4886
      %v4925 = vpack.c.b16 %v4889, %v4887
      %v4926 = vpack.c.b16 %v4892, %v4890
      %v4927 = vpack.c.b16 %v4893, %v4891
      %v4928 = vpack.c.b16 %v4896, %v4894
      %v4929 = vpack.c.b16 %v4897, %v4895
      %4962 = vmatprep.subr.bf16.mxu0 %v4899
      %4963 = vmatpush1.bf16.msra.mxu0 %v4898
      %4964 = vmatprep.subr.bf16.mxu0 %v4901
      %4965 = vmatpush1.bf16.msra.mxu0 %v4900
      %4966 = vmatprep.subr.bf16.mxu0 %v4903
      %4967 = vmatpush1.bf16.msra.mxu0 %v4902
      %4968 = vmatprep.subr.bf16.mxu0 %v4905
      %4969 = vmatpush1.bf16.msra.mxu0 %v4904
      %4970 = vmatprep.subr.bf16.mxu0 %v4907
      %4971 = vmatpush1.bf16.msra.mxu0 %v4906
      %4972 = vmatprep.subr.bf16.mxu0 %v4909
      %4973 = vmatpush1.bf16.msra.mxu0 %v4908
      %4974 = vmatprep.subr.bf16.mxu0 %v4911
      %4975 = vmatpush1.bf16.msra.mxu0 %v4910
      %4976 = vmatprep.subr.bf16.mxu0 %v4913
      %4977 = vmatpush1.bf16.msra.mxu0 %v4912
      %4978 = vmatprep.subr.bf16.mxu0 %v4915
      %4979 = vmatpush1.bf16.msra.mxu0 %v4914
      %4980 = vmatprep.subr.bf16.mxu0 %v4917
      %4981 = vmatpush1.bf16.msra.mxu0 %v4916
      %4982 = vmatprep.subr.bf16.mxu0 %v4919
      %4983 = vmatpush1.bf16.msra.mxu0 %v4918
      %4984 = vmatprep.subr.bf16.mxu0 %v4921
      %4985 = vmatpush1.bf16.msra.mxu0 %v4920
      %4986 = vmatprep.subr.bf16.mxu0 %v4923
      %4987 = vmatpush1.bf16.msra.mxu0 %v4922
      %4988 = vmatprep.subr.bf16.mxu0 %v4925
      %4989 = vmatpush1.bf16.msra.mxu0 %v4924
      %4990 = vmatprep.subr.bf16.mxu0 %v4927
      %4991 = vmatpush1.bf16.msra.mxu0 %v4926
      %4992 = vmatprep.subr.bf16.mxu0 %v4929
      %4993 = vmatpush1.bf16.msra.mxu0 %v4928
      %4994 = vmatprep.mubr.bf16.mxu0 %v4779
      %4995 = vmatmul.mubr.bf16.gmra.mrb[0].mxu0 %v4778
      %v4996 = vpop.f32.mrb[0].mxu0
      %v4997 = vadd.f32 %v4674, %v4996
      %v4998 = vpop.f32.mrb[0].mxu0
      %v4999 = vadd.f32 %v4676, %v4998
      %v5000 = vpop.f32.mrb[0].mxu0
      %v5001 = vadd.f32 %v4678, %v5000
      %v5002 = vpop.f32.mrb[0].mxu0
      %v5003 = vadd.f32 %v4680, %v5002
      %5004 = vmatprep.mubr.bf16.mxu0 %v4244
      %5005 = vmatmul.mubr.bf16.gmra.mrb[0].mxu0 %v4243
      %v5006 = vpop.f32.mrb[0].mxu0
      %v5007 = vadd.f32 %v4684, %v5006
      %v5008 = vpop.f32.mrb[0].mxu0
      %v5009 = vadd.f32 %v4686, %v5008
      %v5010 = vpop.f32.mrb[0].mxu0
      %v5011 = vadd.f32 %v4688, %v5010
      %v5012 = vpop.f32.mrb[0].mxu0
      %v5013 = vadd.f32 %v4690, %v5012
      %5014 = vmatprep.mubr.bf16.mxu0 %v4246
      %5015 = vmatmul.mubr.bf16.gmra.mrb[0].mxu0 %v4245
      %v5016 = vpop.f32.mrb[0].mxu0
      %v5017 = vadd.f32 %v4694, %v5016
      %v5018 = vpop.f32.mrb[0].mxu0
      %v5019 = vadd.f32 %v4696, %v5018
      %v5020 = vpop.f32.mrb[0].mxu0
      %v5021 = vadd.f32 %v4698, %v5020
      %v5022 = vpop.f32.mrb[0].mxu0
      %v5023 = vadd.f32 %v4700, %v5022
      %5024 = vmatprep.mubr.bf16.mxu0 %v4248
      %5025 = vmatmul.mubr.bf16.gmra.mrb[0].mxu0 %v4247
      %v5026 = vpop.f32.mrb[0].mxu0
      %v5027 = vadd.f32 %v4704, %v5026
      %v5028 = vpop.f32.mrb[0].mxu0
      %v5029 = vadd.f32 %v4706, %v5028
      %v5030 = vpop.f32.mrb[0].mxu0
      %v5031 = vadd.f32 %v4708, %v5030
      %v5032 = vpop.f32.mrb[0].mxu0
      %v5033 = vadd.f32 %v4710, %v5032
      %5034 = vmatprep.mubr.bf16.mxu0 %v4250
      %5035 = vmatmul.mubr.bf16.gmra.mrb[0].mxu0 %v4249
      %v5036 = vpop.f32.mrb[0].mxu0
      %v5037 = vadd.f32 %v4714, %v5036
      %v5038 = vpop.f32.mrb[0].mxu0
      %v5039 = vadd.f32 %v4716, %v5038
      %v5040 = vpop.f32.mrb[0].mxu0
      %v5041 = vadd.f32 %v4718, %v5040
      %v5042 = vpop.f32.mrb[0].mxu0
      %v5043 = vadd.f32 %v4720, %v5042
      %5044 = vmatprep.mubr.bf16.mxu0 %v4252
      %5045 = vmatmul.mubr.bf16.gmra.mrb[0].mxu0 %v4251
      %v5046 = vpop.f32.mrb[0].mxu0
      %v5047 = vadd.f32 %v4724, %v5046
      %v5048 = vpop.f32.mrb[0].mxu0
      %v5049 = vadd.f32 %v4726, %v5048
      %v5050 = vpop.f32.mrb[0].mxu0
      %v5051 = vadd.f32 %v4728, %v5050
      %v5052 = vpop.f32.mrb[0].mxu0
      %v5053 = vadd.f32 %v4730, %v5052
      %5054 = vmatprep.mubr.bf16.mxu0 %v4254
      %5055 = vmatmul.mubr.bf16.gmra.mrb[0].mxu0 %v4253
      %v5056 = vpop.f32.mrb[0].mxu0
      %v5057 = vadd.f32 %v4734, %v5056
      %v5058 = vpop.f32.mrb[0].mxu0
      %v5059 = vadd.f32 %v4736, %v5058
      %v5060 = vpop.f32.mrb[0].mxu0
      %v5061 = vadd.f32 %v4738, %v5060
      %v5062 = vpop.f32.mrb[0].mxu0
      %v5063 = vadd.f32 %v4740, %v5062
      %5064 = vmatprep.mubr.bf16.mxu0 %v4256
      %5065 = vmatmul.mubr.bf16.gmra.mrb[0].mxu0 %v4255
      %v5066 = vpop.f32.mrb[0].mxu0
      %v5067 = vadd.f32 %v4744, %v5066
      %v5068 = vpop.f32.mrb[0].mxu0
      %v5069 = vadd.f32 %v4746, %v5068
      %v5070 = vpop.f32.mrb[0].mxu0
      %v5071 = vadd.f32 %v4748, %v5070
      %v5072 = vpop.f32.mrb[0].mxu0
      %v5073 = vadd.f32 %v4750, %v5072
      %5074 = vmatprep.mubr.bf16.mxu0 %v4258
      %5075 = vmatmul.mubr.bf16.gmra.mrb[0].mxu0 %v4257
      %v5076 = vpop.f32.mrb[0].mxu0
      %v5077 = vadd.f32 %v4754, %v5076
      %v5078 = vpop.f32.mrb[0].mxu0
      %v5079 = vadd.f32 %v4756, %v5078
      %v5080 = vpop.f32.mrb[0].mxu0
      %v5081 = vadd.f32 %v4758, %v5080
      %v5082 = vpop.f32.mrb[0].mxu0
      %v5083 = vadd.f32 %v4760, %v5082
      %5084 = vmatprep.mubr.bf16.mxu0 %v4781
      %5085 = vmatmul.mubr.bf16.gmra.mrb[0].mxu0 %v4780
      %v5086 = vpop.f32.mrb[0].mxu0
      %v5087 = vadd.f32 %v4764, %v5086
      %v5088 = vpop.f32.mrb[0].mxu0
      %v5089 = vadd.f32 %v4766, %v5088
      %v5090 = vpop.f32.mrb[0].mxu0
      %v5091 = vadd.f32 %v4768, %v5090
      %v5092 = vpop.f32.mrb[0].mxu0
      %v5093 = vadd.f32 %v4770, %v5092
      %5094 = vdwg.mxu0
      %v5095 = vld [vmem:[#allocation3 + $0x8] sm:$0xee]
      %v5096 = vld [vmem:[#allocation3 + $0xa0] sm:$0xff]
      %s5097 = scalar_lea.vmem %s1, 2048
      %v5098 = vld [vmem:[%s5097] sm:$0xff]
      %v5099 = vld [vmem:[%s5097 + $0x8] sm:$0xff]
      %v5100 = vld [vmem:[%s5097 + $0x10] sm:$0xff]
      %v5101 = vld [vmem:[%s5097 + $0x18] sm:$0xff]
      %v5102 = vld [vmem:[%s5097 + $0x20] sm:$0xff]
      %v5103 = vld [vmem:[%s5097 + $0x28] sm:$0xff]
      %v5104 = vld [vmem:[%s5097 + $0x30] sm:$0xff]
      %v5105 = vld [vmem:[%s5097 + $0x38] sm:$0xff]
      %v5106 = vld [vmem:[%s5097 + $0x40] sm:$0xff]
      %v5107 = vld [vmem:[%s5097 + $0x48] sm:$0xff]
      %v5108 = vld [vmem:[%s5097 + $0x50] sm:$0xff]
      %v5109 = vld [vmem:[%s5097 + $0x58] sm:$0xff]
      %v5110 = vld [vmem:[%s5097 + $0x60] sm:$0xff]
      %v5111 = vld [vmem:[%s5097 + $0x68] sm:$0xff]
      %v5112 = vld [vmem:[%s5097 + $0x70] sm:$0xff]
      %v5113 = vld [vmem:[%s5097 + $0x78] sm:$0xff]
      %v5114 = vld [vmem:[%s5097 + $0x80] sm:$0xff]
      %v5115 = vld [vmem:[%s5097 + $0x88] sm:$0xff]
      %v5116 = vld [vmem:[%s5097 + $0x90] sm:$0xff]
      %v5117 = vld [vmem:[%s5097 + $0x98] sm:$0xff]
      %v5118 = vld [vmem:[%s5097 + $0xa0] sm:$0xff]
      %v5119 = vld [vmem:[%s5097 + $0xa8] sm:$0xff]
      %v5120 = vld [vmem:[%s5097 + $0xb0] sm:$0xff]
      %v5121 = vld [vmem:[%s5097 + $0xb8] sm:$0xff]
      %v5122 = vld [vmem:[%s5097 + $0xc0] sm:$0xff]
      %v5123 = vld [vmem:[%s5097 + $0xc8] sm:$0xff]
      %v5124 = vld [vmem:[%s5097 + $0xd0] sm:$0xff]
      %v5125 = vld [vmem:[%s5097 + $0xd8] sm:$0xff]
      %v5126 = vld [vmem:[%s5097 + $0xe0] sm:$0xff]
      %v5127 = vld [vmem:[%s5097 + $0xe8] sm:$0xff]
      %v5128 = vld [vmem:[%s5097 + $0xf0] sm:$0xff]
      %v5129 = vld [vmem:[%s5097 + $0xf8] sm:$0xff]
      %v5132 = vunpack.c.l.b16 %v5095
      %v5133 = vunpack.c.h.b16 %v5095
      %v5134 = vunpack.c.l.b16 %v5096
      %v5135 = vunpack.c.h.b16 %v5096
      %v5136 = vpack.c.b16 %v4203, %v5132
      %v5137 = vpack.c.b16 %v4204, %v5133
      %v5138 = vpack.c.b16 %v4207, %v4205
      %v5139 = vpack.c.b16 %v4208, %v4206
      %v5140 = vpack.c.b16 %v4211, %v4209
      %v5141 = vpack.c.b16 %v4212, %v4210
      %v5142 = vpack.c.b16 %v4215, %v4213
      %v5143 = vpack.c.b16 %v4216, %v4214
      %v5144 = vpack.c.b16 %v4219, %v4217
      %v5145 = vpack.c.b16 %v4220, %v4218
      %v5146 = vpack.c.b16 %v4223, %v4221
      %v5147 = vpack.c.b16 %v4224, %v4222
      %v5148 = vpack.c.b16 %v4227, %v4225
      %v5149 = vpack.c.b16 %v4228, %v4226
      %v5150 = vpack.c.b16 %v4231, %v4229
      %v5151 = vpack.c.b16 %v4232, %v4230
      %v5152 = vpack.c.b16 %v4235, %v4233
      %v5153 = vpack.c.b16 %v4236, %v4234
      %v5154 = vpack.c.b16 %v5134, %v4237
      %v5155 = vpack.c.b16 %v5135, %v4238
      %v5156 = vrot.slane %v5136, 1
      %v5157 = vrot.slane %v5138, 1
      %v5158 = vsel %vm1261, %v5156, %v5157
      %v5159 = vrot.slane %v5137, 1
      %v5160 = vrot.slane %v5139, 1
      %v5161 = vsel %vm1261, %v5159, %v5160
      %v5162 = vrot.slane %v5140, 1
      %v5163 = vsel %vm1261, %v5157, %v5162
      %v5164 = vrot.slane %v5141, 1
      %v5165 = vsel %vm1261, %v5160, %v5164
      %v5166 = vrot.slane %v5142, 1
      %v5167 = vsel %vm1261, %v5162, %v5166
      %v5168 = vrot.slane %v5143, 1
      %v5169 = vsel %vm1261, %v5164, %v5168
      %v5170 = vrot.slane %v5144, 1
      %v5171 = vsel %vm1261, %v5166, %v5170
      %v5172 = vrot.slane %v5145, 1
      %v5173 = vsel %vm1261, %v5168, %v5172
      %v5174 = vrot.slane %v5146, 1
      %v5175 = vsel %vm1261, %v5170, %v5174
      %v5176 = vrot.slane %v5147, 1
      %v5177 = vsel %vm1261, %v5172, %v5176
      %v5178 = vrot.slane %v5148, 1
      %v5179 = vsel %vm1261, %v5174, %v5178
      %v5180 = vrot.slane %v5149, 1
      %v5181 = vsel %vm1261, %v5176, %v5180
      %v5182 = vrot.slane %v5150, 1
      %v5183 = vsel %vm1261, %v5178, %v5182
      %v5184 = vrot.slane %v5151, 1
      %v5185 = vsel %vm1261, %v5180, %v5184
      %v5186 = vrot.slane %v5152, 1
      %v5187 = vsel %vm1261, %v5182, %v5186
      %v5188 = vrot.slane %v5153, 1
      %v5189 = vsel %vm1261, %v5184, %v5188
      %v5190 = vrot.slane %v5154, 1
      %v5191 = vsel %vm1261, %v5186, %v5190
      %v5192 = vrot.slane %v5155, 1
      %v5193 = vsel %vm1261, %v5188, %v5192
      %v5246 = vunpack.c.l.b16 %v5098
      %v5247 = vunpack.c.h.b16 %v5098
      %v5248 = vunpack.c.l.b16 %v5099
      %v5249 = vunpack.c.h.b16 %v5099
      %v5250 = vunpack.c.l.b16 %v5100
      %v5251 = vunpack.c.h.b16 %v5100
      %v5252 = vunpack.c.l.b16 %v5101
      %v5253 = vunpack.c.h.b16 %v5101
      %v5254 = vunpack.c.l.b16 %v5102
      %v5255 = vunpack.c.h.b16 %v5102
      %v5256 = vunpack.c.l.b16 %v5103
      %v5257 = vunpack.c.h.b16 %v5103
      %v5258 = vunpack.c.l.b16 %v5104
      %v5259 = vunpack.c.h.b16 %v5104
      %v5260 = vunpack.c.l.b16 %v5105
      %v5261 = vunpack.c.h.b16 %v5105
      %v5262 = vunpack.c.l.b16 %v5106
      %v5263 = vunpack.c.h.b16 %v5106
      %v5264 = vunpack.c.l.b16 %v5107
      %v5265 = vunpack.c.h.b16 %v5107
      %v5266 = vunpack.c.l.b16 %v5108
      %v5267 = vunpack.c.h.b16 %v5108
      %v5268 = vunpack.c.l.b16 %v5109
      %v5269 = vunpack.c.h.b16 %v5109
      %v5270 = vunpack.c.l.b16 %v5110
      %v5271 = vunpack.c.h.b16 %v5110
      %v5272 = vunpack.c.l.b16 %v5111
      %v5273 = vunpack.c.h.b16 %v5111
      %v5274 = vunpack.c.l.b16 %v5112
      %v5275 = vunpack.c.h.b16 %v5112
      %v5276 = vunpack.c.l.b16 %v5113
      %v5277 = vunpack.c.h.b16 %v5113
      %v5278 = vunpack.c.l.b16 %v5114
      %v5279 = vunpack.c.h.b16 %v5114
      %v5280 = vunpack.c.l.b16 %v5115
      %v5281 = vunpack.c.h.b16 %v5115
      %v5282 = vunpack.c.l.b16 %v5116
      %v5283 = vunpack.c.h.b16 %v5116
      %v5284 = vunpack.c.l.b16 %v5117
      %v5285 = vunpack.c.h.b16 %v5117
      %v5286 = vunpack.c.l.b16 %v5118
      %v5287 = vunpack.c.h.b16 %v5118
      %v5288 = vunpack.c.l.b16 %v5119
      %v5289 = vunpack.c.h.b16 %v5119
      %v5290 = vunpack.c.l.b16 %v5120
      %v5291 = vunpack.c.h.b16 %v5120
      %v5292 = vunpack.c.l.b16 %v5121
      %v5293 = vunpack.c.h.b16 %v5121
      %v5294 = vunpack.c.l.b16 %v5122
      %v5295 = vunpack.c.h.b16 %v5122
      %v5296 = vunpack.c.l.b16 %v5123
      %v5297 = vunpack.c.h.b16 %v5123
      %v5298 = vunpack.c.l.b16 %v5124
      %v5299 = vunpack.c.h.b16 %v5124
      %v5300 = vunpack.c.l.b16 %v5125
      %v5301 = vunpack.c.h.b16 %v5125
      %v5302 = vunpack.c.l.b16 %v5126
      %v5303 = vunpack.c.h.b16 %v5126
      %v5304 = vunpack.c.l.b16 %v5127
      %v5305 = vunpack.c.h.b16 %v5127
      %v5306 = vunpack.c.l.b16 %v5128
      %v5307 = vunpack.c.h.b16 %v5128
      %v5308 = vunpack.c.l.b16 %v5129
      %v5309 = vunpack.c.h.b16 %v5129
      %v5310 = vpack.c.b16 %v5248, %v5246
      %v5311 = vpack.c.b16 %v5249, %v5247
      %v5312 = vpack.c.b16 %v5252, %v5250
      %v5313 = vpack.c.b16 %v5253, %v5251
      %v5314 = vpack.c.b16 %v5256, %v5254
      %v5315 = vpack.c.b16 %v5257, %v5255
      %v5316 = vpack.c.b16 %v5260, %v5258
      %v5317 = vpack.c.b16 %v5261, %v5259
      %v5318 = vpack.c.b16 %v5264, %v5262
      %v5319 = vpack.c.b16 %v5265, %v5263
      %v5320 = vpack.c.b16 %v5268, %v5266
      %v5321 = vpack.c.b16 %v5269, %v5267
      %v5322 = vpack.c.b16 %v5272, %v5270
      %v5323 = vpack.c.b16 %v5273, %v5271
      %v5324 = vpack.c.b16 %v5276, %v5274
      %v5325 = vpack.c.b16 %v5277, %v5275
      %v5326 = vpack.c.b16 %v5280, %v5278
      %v5327 = vpack.c.b16 %v5281, %v5279
      %v5328 = vpack.c.b16 %v5284, %v5282
      %v5329 = vpack.c.b16 %v5285, %v5283
      %v5330 = vpack.c.b16 %v5288, %v5286
      %v5331 = vpack.c.b16 %v5289, %v5287
      %v5332 = vpack.c.b16 %v5292, %v5290
      %v5333 = vpack.c.b16 %v5293, %v5291
      %v5334 = vpack.c.b16 %v5296, %v5294
      %v5335 = vpack.c.b16 %v5297, %v5295
      %v5336 = vpack.c.b16 %v5300, %v5298
      %v5337 = vpack.c.b16 %v5301, %v5299
      %v5338 = vpack.c.b16 %v5304, %v5302
      %v5339 = vpack.c.b16 %v5305, %v5303
      %v5340 = vpack.c.b16 %v5308, %v5306
      %v5341 = vpack.c.b16 %v5309, %v5307
      %5374 = vmatprep.subr.bf16.mxu0 %v5311
      %5375 = vmatpush1.bf16.msra.mxu0 %v5310
      %5376 = vmatprep.subr.bf16.mxu0 %v5313
      %5377 = vmatpush1.bf16.msra.mxu0 %v5312
      %5378 = vmatprep.subr.bf16.mxu0 %v5315
      %5379 = vmatpush1.bf16.msra.mxu0 %v5314
      %5380 = vmatprep.subr.bf16.mxu0 %v5317
      %5381 = vmatpush1.bf16.msra.mxu0 %v5316
      %5382 = vmatprep.subr.bf16.mxu0 %v5319
      %5383 = vmatpush1.bf16.msra.mxu0 %v5318
      %5384 = vmatprep.subr.bf16.mxu0 %v5321
      %5385 = vmatpush1.bf16.msra.mxu0 %v5320
      %5386 = vmatprep.subr.bf16.mxu0 %v5323
      %5387 = vmatpush1.bf16.msra.mxu0 %v5322
      %5388 = vmatprep.subr.bf16.mxu0 %v5325
      %5389 = vmatpush1.bf16.msra.mxu0 %v5324
      %5390 = vmatprep.subr.bf16.mxu0 %v5327
      %5391 = vmatpush1.bf16.msra.mxu0 %v5326
      %5392 = vmatprep.subr.bf16.mxu0 %v5329
      %5393 = vmatpush1.bf16.msra.mxu0 %v5328
      %5394 = vmatprep.subr.bf16.mxu0 %v5331
      %5395 = vmatpush1.bf16.msra.mxu0 %v5330
      %5396 = vmatprep.subr.bf16.mxu0 %v5333
      %5397 = vmatpush1.bf16.msra.mxu0 %v5332
      %5398 = vmatprep.subr.bf16.mxu0 %v5335
      %5399 = vmatpush1.bf16.msra.mxu0 %v5334
      %5400 = vmatprep.subr.bf16.mxu0 %v5337
      %5401 = vmatpush1.bf16.msra.mxu0 %v5336
      %5402 = vmatprep.subr.bf16.mxu0 %v5339
      %5403 = vmatpush1.bf16.msra.mxu0 %v5338
      %5404 = vmatprep.subr.bf16.mxu0 %v5341
      %5405 = vmatpush1.bf16.msra.mxu0 %v5340
      %5406 = vmatprep.mubr.bf16.mxu0 %v5161
      %5407 = vmatmul.mubr.bf16.gmra.mrb[0].mxu0 %v5158
      %v5408 = vpop.f32.mrb[0].mxu0
      %v5409 = vadd.f32 0.0, %v5408
      %v5410 = vpop.f32.mrb[0].mxu0
      %v5411 = vadd.f32 0.0, %v5410
      %v5412 = vpop.f32.mrb[0].mxu0
      %v5413 = vadd.f32 0.0, %v5412
      %v5414 = vpop.f32.mrb[0].mxu0
      %v5415 = vadd.f32 0.0, %v5414
      %5416 = vmatprep.mubr.bf16.mxu0 %v5165
      %5417 = vmatmul.mubr.bf16.gmra.mrb[0].mxu0 %v5163
      %v5418 = vpop.f32.mrb[0].mxu0
      %v5419 = vadd.f32 0.0, %v5418
      %v5420 = vpop.f32.mrb[0].mxu0
      %v5421 = vadd.f32 0.0, %v5420
      %v5422 = vpop.f32.mrb[0].mxu0
      %v5423 = vadd.f32 0.0, %v5422
      %v5424 = vpop.f32.mrb[0].mxu0
      %v5425 = vadd.f32 0.0, %v5424
      %5426 = vmatprep.mubr.bf16.mxu0 %v5169
      %5427 = vmatmul.mubr.bf16.gmra.mrb[0].mxu0 %v5167
      %v5428 = vpop.f32.mrb[0].mxu0
      %v5429 = vadd.f32 0.0, %v5428
      %v5430 = vpop.f32.mrb[0].mxu0
      %v5431 = vadd.f32 0.0, %v5430
      %v5432 = vpop.f32.mrb[0].mxu0
      %v5433 = vadd.f32 0.0, %v5432
      %v5434 = vpop.f32.mrb[0].mxu0
      %v5435 = vadd.f32 0.0, %v5434
      %5436 = vmatprep.mubr.bf16.mxu0 %v5173
      %5437 = vmatmul.mubr.bf16.gmra.mrb[0].mxu0 %v5171
      %v5438 = vpop.f32.mrb[0].mxu0
      %v5439 = vadd.f32 0.0, %v5438
      %v5440 = vpop.f32.mrb[0].mxu0
      %v5441 = vadd.f32 0.0, %v5440
      %v5442 = vpop.f32.mrb[0].mxu0
      %v5443 = vadd.f32 0.0, %v5442
      %v5444 = vpop.f32.mrb[0].mxu0
      %v5445 = vadd.f32 0.0, %v5444
      %5446 = vmatprep.mubr.bf16.mxu0 %v5177
      %5447 = vmatmul.mubr.bf16.gmra.mrb[0].mxu0 %v5175
      %v5448 = vpop.f32.mrb[0].mxu0
      %v5449 = vadd.f32 0.0, %v5448
      %v5450 = vpop.f32.mrb[0].mxu0
      %v5451 = vadd.f32 0.0, %v5450
      %v5452 = vpop.f32.mrb[0].mxu0
      %v5453 = vadd.f32 0.0, %v5452
      %v5454 = vpop.f32.mrb[0].mxu0
      %v5455 = vadd.f32 0.0, %v5454
      %5456 = vmatprep.mubr.bf16.mxu0 %v5181
      %5457 = vmatmul.mubr.bf16.gmra.mrb[0].mxu0 %v5179
      %v5458 = vpop.f32.mrb[0].mxu0
      %v5459 = vadd.f32 0.0, %v5458
      %v5460 = vpop.f32.mrb[0].mxu0
      %v5461 = vadd.f32 0.0, %v5460
      %v5462 = vpop.f32.mrb[0].mxu0
      %v5463 = vadd.f32 0.0, %v5462
      %v5464 = vpop.f32.mrb[0].mxu0
      %v5465 = vadd.f32 0.0, %v5464
      %5466 = vmatprep.mubr.bf16.mxu0 %v5185
      %5467 = vmatmul.mubr.bf16.gmra.mrb[0].mxu0 %v5183
      %v5468 = vpop.f32.mrb[0].mxu0
      %v5469 = vadd.f32 0.0, %v5468
      %v5470 = vpop.f32.mrb[0].mxu0
      %v5471 = vadd.f32 0.0, %v5470
      %v5472 = vpop.f32.mrb[0].mxu0
      %v5473 = vadd.f32 0.0, %v5472
      %v5474 = vpop.f32.mrb[0].mxu0
      %v5475 = vadd.f32 0.0, %v5474
      %5476 = vmatprep.mubr.bf16.mxu0 %v5189
      %5477 = vmatmul.mubr.bf16.gmra.mrb[0].mxu0 %v5187
      %v5478 = vpop.f32.mrb[0].mxu0
      %v5479 = vadd.f32 0.0, %v5478
      %v5480 = vpop.f32.mrb[0].mxu0
      %v5481 = vadd.f32 0.0, %v5480
      %v5482 = vpop.f32.mrb[0].mxu0
      %v5483 = vadd.f32 0.0, %v5482
      %v5484 = vpop.f32.mrb[0].mxu0
      %v5485 = vadd.f32 0.0, %v5484
      %5486 = vmatprep.mubr.bf16.mxu0 %v5193
      %5487 = vmatmul.mubr.bf16.gmra.mrb[0].mxu0 %v5191
      %v5488 = vpop.f32.mrb[0].mxu0
      %v5489 = vadd.f32 0.0, %v5488
      %v5490 = vpop.f32.mrb[0].mxu0
      %v5491 = vadd.f32 0.0, %v5490
      %v5492 = vpop.f32.mrb[0].mxu0
      %v5493 = vadd.f32 0.0, %v5492
      %v5494 = vpop.f32.mrb[0].mxu0
      %v5495 = vadd.f32 0.0, %v5494
      %5496 = vmatprep.mubr.bf16.mxu0 %v5192
      %5497 = vmatmul.mubr.bf16.gmra.mrb[0].mxu0 %v5190
      %v5498 = vpop.f32.mrb[0].mxu0
      %v5499 = vadd.f32 0.0, %v5498
      %v5500 = vpop.f32.mrb[0].mxu0
      %v5501 = vadd.f32 0.0, %v5500
      %v5502 = vpop.f32.mrb[0].mxu0
      %v5503 = vadd.f32 0.0, %v5502
      %v5504 = vpop.f32.mrb[0].mxu0
      %v5505 = vadd.f32 0.0, %v5504
      %5506 = vdwg.mxu0
      %v5507 = vadd.f32 %v4997, %v5409
      %v5508 = vadd.f32 %v4999, %v5411
      %v5509 = vadd.f32 %v5001, %v5413
      %v5510 = vadd.f32 %v5003, %v5415
      %v5511 = vadd.f32 %v5007, %v5419
      %v5512 = vadd.f32 %v5009, %v5421
      %v5513 = vadd.f32 %v5011, %v5423
      %v5514 = vadd.f32 %v5013, %v5425
      %v5515 = vadd.f32 %v5017, %v5429
      %v5516 = vadd.f32 %v5019, %v5431
      %v5517 = vadd.f32 %v5021, %v5433
      %v5518 = vadd.f32 %v5023, %v5435
      %v5519 = vadd.f32 %v5027, %v5439
      %v5520 = vadd.f32 %v5029, %v5441
      %v5521 = vadd.f32 %v5031, %v5443
      %v5522 = vadd.f32 %v5033, %v5445
      %v5523 = vadd.f32 %v5037, %v5449
      %v5524 = vadd.f32 %v5039, %v5451
      %v5525 = vadd.f32 %v5041, %v5453
      %v5526 = vadd.f32 %v5043, %v5455
      %v5527 = vadd.f32 %v5047, %v5459
      %v5528 = vadd.f32 %v5049, %v5461
      %v5529 = vadd.f32 %v5051, %v5463
      %v5530 = vadd.f32 %v5053, %v5465
      %v5531 = vadd.f32 %v5057, %v5469
      %v5532 = vadd.f32 %v5059, %v5471
      %v5533 = vadd.f32 %v5061, %v5473
      %v5534 = vadd.f32 %v5063, %v5475
      %v5535 = vadd.f32 %v5067, %v5479
      %v5536 = vadd.f32 %v5069, %v5481
      %v5537 = vadd.f32 %v5071, %v5483
      %v5538 = vadd.f32 %v5073, %v5485
      %v5539 = vadd.f32 %v5077, %v5489
      %v5540 = vadd.f32 %v5079, %v5491
      %v5541 = vadd.f32 %v5081, %v5493
      %v5542 = vadd.f32 %v5083, %v5495
      %v5543 = vadd.f32 %v5087, %v5499
      %v5544 = vadd.f32 %v5089, %v5501
      %v5545 = vadd.f32 %v5091, %v5503
      %v5546 = vadd.f32 %v5093, %v5505
      %s5547 = scalar_lea.vmem %s2, 2
      %v5548 = vld [vmem:[%s5547] ss:$8 sm:$0x3]
      %v5550 = vlaneseq
      %v5551 = vshrl.u32 %v5550, 7
      %v5552 = vsub.s32 0, %v5551
      %v5553 = vrot.slane %v5548, %v5552
      %v5554 = vlaneseq
      %v5555 = vshrl.u32 %v5554, 7
      %v5556 = vsub.s32 1, %v5555
      %v5557 = vrot.slane %v5548, %v5556
      %v5560 = vadd.f32 %v5507, %v5553
      %v5561 = vadd.f32 %v5508, %v5557
      %v5562 = vadd.f32 %v5509, %v5553
      %v5563 = vadd.f32 %v5510, %v5557
      %v5564 = vadd.f32 %v5511, %v5553
      %v5565 = vadd.f32 %v5512, %v5557
      %v5566 = vadd.f32 %v5513, %v5553
      %v5567 = vadd.f32 %v5514, %v5557
      %v5568 = vadd.f32 %v5515, %v5553
      %v5569 = vadd.f32 %v5516, %v5557
      %v5570 = vadd.f32 %v5517, %v5553
      %v5571 = vadd.f32 %v5518, %v5557
      %v5572 = vadd.f32 %v5519, %v5553
      %v5573 = vadd.f32 %v5520, %v5557
      %v5574 = vadd.f32 %v5521, %v5553
      %v5575 = vadd.f32 %v5522, %v5557
      %v5576 = vadd.f32 %v5523, %v5553
      %v5577 = vadd.f32 %v5524, %v5557
      %v5578 = vadd.f32 %v5525, %v5553
      %v5579 = vadd.f32 %v5526, %v5557
      %v5580 = vadd.f32 %v5527, %v5553
      %v5581 = vadd.f32 %v5528, %v5557
      %v5582 = vadd.f32 %v5529, %v5553
      %v5583 = vadd.f32 %v5530, %v5557
      %v5584 = vadd.f32 %v5531, %v5553
      %v5585 = vadd.f32 %v5532, %v5557
      %v5586 = vadd.f32 %v5533, %v5553
      %v5587 = vadd.f32 %v5534, %v5557
      %v5588 = vadd.f32 %v5535, %v5553
      %v5589 = vadd.f32 %v5536, %v5557
      %v5590 = vadd.f32 %v5537, %v5553
      %v5591 = vadd.f32 %v5538, %v5557
      %v5592 = vadd.f32 %v5539, %v5553
      %v5593 = vadd.f32 %v5540, %v5557
      %v5594 = vadd.f32 %v5541, %v5553
      %v5595 = vadd.f32 %v5542, %v5557
      %v5596 = vadd.f32 %v5543, %v5553
      %v5597 = vadd.f32 %v5544, %v5557
      %v5598 = vadd.f32 %v5545, %v5553
      %v5599 = vadd.f32 %v5546, %v5557
      %v5600 = vmax.f32 %v5560, 0.0
      %v5601 = vmax.f32 %v5561, 0.0
      %v5602 = vmax.f32 %v5562, 0.0
      %v5603 = vmax.f32 %v5563, 0.0
      %v5604 = vmax.f32 %v5564, 0.0
      %v5605 = vmax.f32 %v5565, 0.0
      %v5606 = vmax.f32 %v5566, 0.0
      %v5607 = vmax.f32 %v5567, 0.0
      %v5608 = vmax.f32 %v5568, 0.0
      %v5609 = vmax.f32 %v5569, 0.0
      %v5610 = vmax.f32 %v5570, 0.0
      %v5611 = vmax.f32 %v5571, 0.0
      %v5612 = vmax.f32 %v5572, 0.0
      %v5613 = vmax.f32 %v5573, 0.0
      %v5614 = vmax.f32 %v5574, 0.0
      %v5615 = vmax.f32 %v5575, 0.0
      %v5616 = vmax.f32 %v5576, 0.0
      %v5617 = vmax.f32 %v5577, 0.0
      %v5618 = vmax.f32 %v5578, 0.0
      %v5619 = vmax.f32 %v5579, 0.0
      %v5620 = vmax.f32 %v5580, 0.0
      %v5621 = vmax.f32 %v5581, 0.0
      %v5622 = vmax.f32 %v5582, 0.0
      %v5623 = vmax.f32 %v5583, 0.0
      %v5624 = vmax.f32 %v5584, 0.0
      %v5625 = vmax.f32 %v5585, 0.0
      %v5626 = vmax.f32 %v5586, 0.0
      %v5627 = vmax.f32 %v5587, 0.0
      %v5628 = vmax.f32 %v5588, 0.0
      %v5629 = vmax.f32 %v5589, 0.0
      %v5630 = vmax.f32 %v5590, 0.0
      %v5631 = vmax.f32 %v5591, 0.0
      %v5632 = vmax.f32 %v5592, 0.0
      %v5633 = vmax.f32 %v5593, 0.0
      %v5634 = vmax.f32 %v5594, 0.0
      %v5635 = vmax.f32 %v5595, 0.0
      %v5636 = vmax.f32 %v5596, 0.0
      %v5637 = vmax.f32 %v5597, 0.0
      %v5638 = vmax.f32 %v5598, 0.0
      %v5639 = vmax.f32 %v5599, 0.0
      %v5640 = vpack.c.bf16 %v5602, %v5600
      %v5641 = vpack.c.bf16 %v5603, %v5601
      %v5642 = vpack.c.bf16 %v5606, %v5604
      %v5643 = vpack.c.bf16 %v5607, %v5605
      %v5644 = vpack.c.bf16 %v5610, %v5608
      %v5645 = vpack.c.bf16 %v5611, %v5609
      %v5646 = vpack.c.bf16 %v5614, %v5612
      %v5647 = vpack.c.bf16 %v5615, %v5613
      %v5648 = vpack.c.bf16 %v5618, %v5616
      %v5649 = vpack.c.bf16 %v5619, %v5617
      %v5650 = vpack.c.bf16 %v5622, %v5620
      %v5651 = vpack.c.bf16 %v5623, %v5621
      %v5652 = vpack.c.bf16 %v5626, %v5624
      %v5653 = vpack.c.bf16 %v5627, %v5625
      %v5654 = vpack.c.bf16 %v5630, %v5628
      %v5655 = vpack.c.bf16 %v5631, %v5629
      %v5656 = vpack.c.bf16 %v5634, %v5632
      %v5657 = vpack.c.bf16 %v5635, %v5633
      %v5658 = vpack.c.bf16 %v5638, %v5636
      %v5659 = vpack.c.bf16 %v5639, %v5637
      %v5680 = vunpack.c.l.b16 %v5640
      %v5681 = vunpack.c.l.b16 %v5641
      %v5682 = vunpack.c.h.b16 %v5640
      %v5683 = vunpack.c.h.b16 %v5641
      %v5684 = vunpack.c.l.b16 %v5642
      %v5685 = vunpack.c.l.b16 %v5643
      %v5686 = vunpack.c.h.b16 %v5642
      %v5687 = vunpack.c.h.b16 %v5643
      %v5688 = vunpack.c.l.b16 %v5644
      %v5689 = vunpack.c.l.b16 %v5645
      %v5690 = vunpack.c.h.b16 %v5644
      %v5691 = vunpack.c.h.b16 %v5645
      %v5692 = vunpack.c.l.b16 %v5646
      %v5693 = vunpack.c.l.b16 %v5647
      %v5694 = vunpack.c.h.b16 %v5646
      %v5695 = vunpack.c.h.b16 %v5647
      %v5696 = vunpack.c.l.b16 %v5648
      %v5697 = vunpack.c.l.b16 %v5649
      %v5698 = vunpack.c.h.b16 %v5648
      %v5699 = vunpack.c.h.b16 %v5649
      %v5700 = vunpack.c.l.b16 %v5650
      %v5701 = vunpack.c.l.b16 %v5651
      %v5702 = vunpack.c.h.b16 %v5650
      %v5703 = vunpack.c.h.b16 %v5651
      %v5704 = vunpack.c.l.b16 %v5652
      %v5705 = vunpack.c.l.b16 %v5653
      %v5706 = vunpack.c.h.b16 %v5652
      %v5707 = vunpack.c.h.b16 %v5653
      %v5708 = vunpack.c.l.b16 %v5654
      %v5709 = vunpack.c.l.b16 %v5655
      %v5710 = vunpack.c.h.b16 %v5654
      %v5711 = vunpack.c.h.b16 %v5655
      %v5712 = vunpack.c.l.b16 %v5656
      %v5713 = vunpack.c.l.b16 %v5657
      %v5714 = vunpack.c.h.b16 %v5656
      %v5715 = vunpack.c.h.b16 %v5657
      %v5716 = vunpack.c.l.b16 %v5658
      %v5717 = vunpack.c.l.b16 %v5659
      %v5718 = vunpack.c.h.b16 %v5658
      %v5719 = vunpack.c.h.b16 %v5659
      %v5720 = vpack.c.b16 %v5681, %v5680
      %v5721 = vpack.c.b16 %v5683, %v5682
      %v5722 = vpack.c.b16 %v5685, %v5684
      %v5723 = vpack.c.b16 %v5687, %v5686
      %v5724 = vpack.c.b16 %v5689, %v5688
      %v5725 = vpack.c.b16 %v5691, %v5690
      %v5726 = vpack.c.b16 %v5693, %v5692
      %v5727 = vpack.c.b16 %v5695, %v5694
      %v5728 = vpack.c.b16 %v5697, %v5696
      %v5729 = vpack.c.b16 %v5699, %v5698
      %v5730 = vpack.c.b16 %v5701, %v5700
      %v5731 = vpack.c.b16 %v5703, %v5702
      %v5732 = vpack.c.b16 %v5705, %v5704
      %v5733 = vpack.c.b16 %v5707, %v5706
      %v5734 = vpack.c.b16 %v5709, %v5708
      %v5735 = vpack.c.b16 %v5711, %v5710
      %v5736 = vpack.c.b16 %v5713, %v5712
      %v5737 = vpack.c.b16 %v5715, %v5714
      %v5738 = vpack.c.b16 %v5717, %v5716
      %v5739 = vpack.c.b16 %v5719, %v5718
      %v5741 = vshrl.u32 %v5720, 16
      %v5743 = vrot.slane %v5741, 7
      %v5744 = vshll.u32 %v5720, 16
      %v5746 = vor.u32 %v5743, %v5744
      %v5747 = vrot.slane %v5743, 4
      %v5749 = vshrl.u32 %v5721, 16
      %v5751 = vrot.slane %v5749, 7
      %v5752 = vshll.u32 %v5721, 16
      %v5754 = vor.u32 %v5751, %v5752
      %v5755 = vsel %vm1885, %v5747, %v5754
      %v5756 = vrot.slane %v5751, 4
      %v5758 = vshrl.u32 %v5722, 16
      %v5760 = vrot.slane %v5758, 7
      %v5761 = vshll.u32 %v5722, 16
      %v5763 = vor.u32 %v5760, %v5761
      %v5764 = vsel %vm1885, %v5756, %v5763
      %v5765 = vrot.slane %v5760, 4
      %v5767 = vshrl.u32 %v5723, 16
      %v5769 = vrot.slane %v5767, 7
      %v5770 = vshll.u32 %v5723, 16
      %v5772 = vor.u32 %v5769, %v5770
      %v5773 = vsel %vm1885, %v5765, %v5772
      %v5774 = vrot.slane %v5769, 4
      %v5776 = vshrl.u32 %v5724, 16
      %v5778 = vrot.slane %v5776, 7
      %v5779 = vshll.u32 %v5724, 16
      %v5781 = vor.u32 %v5778, %v5779
      %v5782 = vsel %vm1885, %v5774, %v5781
      %v5783 = vrot.slane %v5778, 4
      %v5785 = vshrl.u32 %v5725, 16
      %v5787 = vrot.slane %v5785, 7
      %v5788 = vshll.u32 %v5725, 16
      %v5790 = vor.u32 %v5787, %v5788
      %v5791 = vsel %vm1885, %v5783, %v5790
      %v5792 = vrot.slane %v5787, 4
      %v5794 = vshrl.u32 %v5726, 16
      %v5796 = vrot.slane %v5794, 7
      %v5797 = vshll.u32 %v5726, 16
      %v5799 = vor.u32 %v5796, %v5797
      %v5800 = vsel %vm1885, %v5792, %v5799
      %v5801 = vrot.slane %v5796, 4
      %v5803 = vshrl.u32 %v5727, 16
      %v5805 = vrot.slane %v5803, 7
      %v5806 = vshll.u32 %v5727, 16
      %v5808 = vor.u32 %v5805, %v5806
      %v5809 = vsel %vm1885, %v5801, %v5808
      %v5810 = vrot.slane %v5805, 4
      %v5812 = vshrl.u32 %v5728, 16
      %v5814 = vrot.slane %v5812, 7
      %v5815 = vshll.u32 %v5728, 16
      %v5817 = vor.u32 %v5814, %v5815
      %v5818 = vsel %vm1885, %v5810, %v5817
      %v5819 = vrot.slane %v5814, 4
      %v5821 = vshrl.u32 %v5729, 16
      %v5823 = vrot.slane %v5821, 7
      %v5824 = vshll.u32 %v5729, 16
      %v5826 = vor.u32 %v5823, %v5824
      %v5827 = vsel %vm1885, %v5819, %v5826
      %v5828 = vrot.slane %v5823, 4
      %v5830 = vshrl.u32 %v5730, 16
      %v5832 = vrot.slane %v5830, 7
      %v5833 = vshll.u32 %v5730, 16
      %v5835 = vor.u32 %v5832, %v5833
      %v5836 = vsel %vm1885, %v5828, %v5835
      %v5837 = vrot.slane %v5832, 4
      %v5839 = vshrl.u32 %v5731, 16
      %v5841 = vrot.slane %v5839, 7
      %v5842 = vshll.u32 %v5731, 16
      %v5844 = vor.u32 %v5841, %v5842
      %v5845 = vsel %vm1885, %v5837, %v5844
      %v5846 = vrot.slane %v5841, 4
      %v5848 = vshrl.u32 %v5732, 16
      %v5850 = vrot.slane %v5848, 7
      %v5851 = vshll.u32 %v5732, 16
      %v5853 = vor.u32 %v5850, %v5851
      %v5854 = vsel %vm1885, %v5846, %v5853
      %v5855 = vrot.slane %v5850, 4
      %v5857 = vshrl.u32 %v5733, 16
      %v5859 = vrot.slane %v5857, 7
      %v5860 = vshll.u32 %v5733, 16
      %v5862 = vor.u32 %v5859, %v5860
      %v5863 = vsel %vm1885, %v5855, %v5862
      %v5864 = vrot.slane %v5859, 4
      %v5866 = vshrl.u32 %v5734, 16
      %v5868 = vrot.slane %v5866, 7
      %v5869 = vshll.u32 %v5734, 16
      %v5871 = vor.u32 %v5868, %v5869
      %v5872 = vsel %vm1885, %v5864, %v5871
      %v5873 = vrot.slane %v5868, 4
      %v5875 = vshrl.u32 %v5735, 16
      %v5877 = vrot.slane %v5875, 7
      %v5878 = vshll.u32 %v5735, 16
      %v5880 = vor.u32 %v5877, %v5878
      %v5881 = vsel %vm1885, %v5873, %v5880
      %v5882 = vrot.slane %v5877, 4
      %v5884 = vshrl.u32 %v5736, 16
      %v5886 = vrot.slane %v5884, 7
      %v5887 = vshll.u32 %v5736, 16
      %v5889 = vor.u32 %v5886, %v5887
      %v5890 = vsel %vm1885, %v5882, %v5889
      %v5891 = vrot.slane %v5886, 4
      %v5893 = vshrl.u32 %v5737, 16
      %v5895 = vrot.slane %v5893, 7
      %v5896 = vshll.u32 %v5737, 16
      %v5898 = vor.u32 %v5895, %v5896
      %v5899 = vsel %vm1885, %v5891, %v5898
      %v5900 = vrot.slane %v5895, 4
      %v5902 = vshrl.u32 %v5738, 16
      %v5904 = vrot.slane %v5902, 7
      %v5905 = vshll.u32 %v5738, 16
      %v5907 = vor.u32 %v5904, %v5905
      %v5908 = vsel %vm1885, %v5900, %v5907
      %v5909 = vrot.slane %v5904, 4
      %v5911 = vshrl.u32 %v5739, 16
      %v5913 = vrot.slane %v5911, 7
      %v5914 = vshll.u32 %v5739, 16
      %v5916 = vor.u32 %v5913, %v5914
      %v5917 = vsel %vm1885, %v5909, %v5916
      %v5938 = vld [vmem:[#allocation2] sm:$0xff]
      %v5939 = vsel %vm2110, %v5746, %v5938
      %5940 = vst [vmem:[#allocation2] sm:$0xff] %v5939
      %5941 = vst [vmem:[#allocation2 + $0x8] sm:$0xff] %v5755
      %5942 = vst [vmem:[#allocation2 + $0x10] sm:$0xff] %v5764
      %5943 = vst [vmem:[#allocation2 + $0x18] sm:$0xff] %v5773
      %5944 = vst [vmem:[#allocation2 + $0x20] sm:$0xff] %v5782
      %5945 = vst [vmem:[#allocation2 + $0x28] sm:$0xff] %v5791
      %5946 = vst [vmem:[#allocation2 + $0x30] sm:$0xff] %v5800
      %5947 = vst [vmem:[#allocation2 + $0x38] sm:$0xff] %v5809
      %5948 = vst [vmem:[#allocation2 + $0x40] sm:$0xff] %v5818
      %5949 = vst [vmem:[#allocation2 + $0x48] sm:$0xff] %v5827
      %5950 = vst [vmem:[#allocation2 + $0x50] sm:$0xff] %v5836
      %5951 = vst [vmem:[#allocation2 + $0x58] sm:$0xff] %v5845
      %5952 = vst [vmem:[#allocation2 + $0x60] sm:$0xff] %v5854
      %5953 = vst [vmem:[#allocation2 + $0x68] sm:$0xff] %v5863
      %5954 = vst [vmem:[#allocation2 + $0x70] sm:$0xff] %v5872
      %5955 = vst [vmem:[#allocation2 + $0x78] sm:$0xff] %v5881
      %5956 = vst [vmem:[#allocation2 + $0x80] sm:$0xff] %v5890
      %5957 = vst [vmem:[#allocation2 + $0x88] sm:$0xff] %v5899
      %5958 = vst [vmem:[#allocation2 + $0x90] sm:$0xff] %v5908
      %v5959 = vld [vmem:[#allocation2 + $0x98] sm:$0xff]
      %v5960 = vsel %vm4075, %v5917, %v5959
      %5961 = vst [vmem:[#allocation2 + $0x98] sm:$0xff] %v5960
      %v5962 = vld [vmem:[#allocation2 + $0x98] sm:$0x88]
      %v5963 = vsel %vm4085, 0, %v5962
      %5964 = vst [vmem:[#allocation2 + $0x98] sm:$0x88] %v5963
      %v5965 = vld [vmem:[#allocation2] sm:$0xff]
      %v5966 = vld [vmem:[#allocation2 + $0x8] sm:$0xff]
      %v5967 = vld [vmem:[#allocation2 + $0x10] sm:$0xff]
      %v5968 = vld [vmem:[#allocation2 + $0x18] sm:$0xff]
      %v5969 = vld [vmem:[#allocation2 + $0x20] sm:$0xff]
      %v5970 = vld [vmem:[#allocation2 + $0x28] sm:$0xff]
      %v5971 = vld [vmem:[#allocation2 + $0x30] sm:$0xff]
      %v5972 = vld [vmem:[#allocation2 + $0x38] sm:$0xff]
      %v5973 = vld [vmem:[#allocation2 + $0x40] sm:$0xff]
      %v5974 = vld [vmem:[#allocation2 + $0x48] sm:$0xff]
      %v5975 = vld [vmem:[#allocation2 + $0x50] sm:$0xff]
      %v5976 = vld [vmem:[#allocation2 + $0x58] sm:$0xff]
      %v5977 = vld [vmem:[#allocation2 + $0x60] sm:$0xff]
      %v5978 = vld [vmem:[#allocation2 + $0x68] sm:$0xff]
      %v5979 = vld [vmem:[#allocation2 + $0x70] sm:$0xff]
      %v5980 = vld [vmem:[#allocation2 + $0x78] sm:$0xff]
      %v5981 = vld [vmem:[#allocation2 + $0x80] sm:$0xff]
      %v5982 = vld [vmem:[#allocation2 + $0x88] sm:$0xff]
      %v5983 = vld [vmem:[#allocation2 + $0x90] sm:$0x11]
      %s5984 = scalar_lea.vmem %s1, 2304
      %v5985 = vld [vmem:[%s5984] sm:$0xff]
      %v5986 = vld [vmem:[%s5984 + $0x8] sm:$0xff]
      %v5987 = vld [vmem:[%s5984 + $0x10] sm:$0xff]
      %v5988 = vld [vmem:[%s5984 + $0x18] sm:$0xff]
      %v5989 = vld [vmem:[%s5984 + $0x20] sm:$0xff]
      %v5990 = vld [vmem:[%s5984 + $0x28] sm:$0xff]
      %v5991 = vld [vmem:[%s5984 + $0x30] sm:$0xff]
      %v5992 = vld [vmem:[%s5984 + $0x38] sm:$0xff]
      %v5993 = vld [vmem:[%s5984 + $0x40] sm:$0xff]
      %v5994 = vld [vmem:[%s5984 + $0x48] sm:$0xff]
      %v5995 = vld [vmem:[%s5984 + $0x50] sm:$0xff]
      %v5996 = vld [vmem:[%s5984 + $0x58] sm:$0xff]
      %v5997 = vld [vmem:[%s5984 + $0x60] sm:$0xff]
      %v5998 = vld [vmem:[%s5984 + $0x68] sm:$0xff]
      %v5999 = vld [vmem:[%s5984 + $0x70] sm:$0xff]
      %v6000 = vld [vmem:[%s5984 + $0x78] sm:$0xff]
      %v6001 = vld [vmem:[%s5984 + $0x80] sm:$0xff]
      %v6002 = vld [vmem:[%s5984 + $0x88] sm:$0xff]
      %v6003 = vld [vmem:[%s5984 + $0x90] sm:$0xff]
      %v6004 = vld [vmem:[%s5984 + $0x98] sm:$0xff]
      %v6005 = vld [vmem:[%s5984 + $0xa0] sm:$0xff]
      %v6006 = vld [vmem:[%s5984 + $0xa8] sm:$0xff]
      %v6007 = vld [vmem:[%s5984 + $0xb0] sm:$0xff]
      %v6008 = vld [vmem:[%s5984 + $0xb8] sm:$0xff]
      %v6009 = vld [vmem:[%s5984 + $0xc0] sm:$0xff]
      %v6010 = vld [vmem:[%s5984 + $0xc8] sm:$0xff]
      %v6011 = vld [vmem:[%s5984 + $0xd0] sm:$0xff]
      %v6012 = vld [vmem:[%s5984 + $0xd8] sm:$0xff]
      %v6013 = vld [vmem:[%s5984 + $0xe0] sm:$0xff]
      %v6014 = vld [vmem:[%s5984 + $0xe8] sm:$0xff]
      %v6015 = vld [vmem:[%s5984 + $0xf0] sm:$0xff]
      %v6016 = vld [vmem:[%s5984 + $0xf8] sm:$0xff]
      %v6017 = vld [vmem:[#allocation2] sm:$0x88]
      %v6018 = vld [vmem:[#allocation2 + $0x90] sm:$0xff]
      %v6019 = vld [vmem:[#allocation2 + $0x98] sm:$0x11]
      %s6020 = scalar_lea.vmem %s1, 2560
      %v6021 = vld [vmem:[%s6020] sm:$0xff]
      %v6022 = vld [vmem:[%s6020 + $0x8] sm:$0xff]
      %v6023 = vld [vmem:[%s6020 + $0x10] sm:$0xff]
      %v6024 = vld [vmem:[%s6020 + $0x18] sm:$0xff]
      %v6025 = vld [vmem:[%s6020 + $0x20] sm:$0xff]
      %v6026 = vld [vmem:[%s6020 + $0x28] sm:$0xff]
      %v6027 = vld [vmem:[%s6020 + $0x30] sm:$0xff]
      %v6028 = vld [vmem:[%s6020 + $0x38] sm:$0xff]
      %v6029 = vld [vmem:[%s6020 + $0x40] sm:$0xff]
      %v6030 = vld [vmem:[%s6020 + $0x48] sm:$0xff]
      %v6031 = vld [vmem:[%s6020 + $0x50] sm:$0xff]
      %v6032 = vld [vmem:[%s6020 + $0x58] sm:$0xff]
      %v6033 = vld [vmem:[%s6020 + $0x60] sm:$0xff]
      %v6034 = vld [vmem:[%s6020 + $0x68] sm:$0xff]
      %v6035 = vld [vmem:[%s6020 + $0x70] sm:$0xff]
      %v6036 = vld [vmem:[%s6020 + $0x78] sm:$0xff]
      %v6037 = vld [vmem:[%s6020 + $0x80] sm:$0xff]
      %v6038 = vld [vmem:[%s6020 + $0x88] sm:$0xff]
      %v6039 = vld [vmem:[%s6020 + $0x90] sm:$0xff]
      %v6040 = vld [vmem:[%s6020 + $0x98] sm:$0xff]
      %v6041 = vld [vmem:[%s6020 + $0xa0] sm:$0xff]
      %v6042 = vld [vmem:[%s6020 + $0xa8] sm:$0xff]
      %v6043 = vld [vmem:[%s6020 + $0xb0] sm:$0xff]
      %v6044 = vld [vmem:[%s6020 + $0xb8] sm:$0xff]
      %v6045 = vld [vmem:[%s6020 + $0xc0] sm:$0xff]
      %v6046 = vld [vmem:[%s6020 + $0xc8] sm:$0xff]
      %v6047 = vld [vmem:[%s6020 + $0xd0] sm:$0xff]
      %v6048 = vld [vmem:[%s6020 + $0xd8] sm:$0xff]
      %v6049 = vld [vmem:[%s6020 + $0xe0] sm:$0xff]
      %v6050 = vld [vmem:[%s6020 + $0xe8] sm:$0xff]
      %v6051 = vld [vmem:[%s6020 + $0xf0] sm:$0xff]
      %v6052 = vld [vmem:[%s6020 + $0xf8] sm:$0xff]
      %v6073 = vunpack.c.l.b16 %v6017
      %v6074 = vunpack.c.h.b16 %v6017
      %v6075 = vunpack.c.l.b16 %v5966
      %v6076 = vunpack.c.h.b16 %v5966
      %v6077 = vunpack.c.l.b16 %v5967
      %v6078 = vunpack.c.h.b16 %v5967
      %v6079 = vunpack.c.l.b16 %v5968
      %v6080 = vunpack.c.h.b16 %v5968
      %v6081 = vunpack.c.l.b16 %v5969
      %v6082 = vunpack.c.h.b16 %v5969
      %v6083 = vunpack.c.l.b16 %v5970
      %v6084 = vunpack.c.h.b16 %v5970
      %v6085 = vunpack.c.l.b16 %v5971
      %v6086 = vunpack.c.h.b16 %v5971
      %v6087 = vunpack.c.l.b16 %v5972
      %v6088 = vunpack.c.h.b16 %v5972
      %v6089 = vunpack.c.l.b16 %v5973
      %v6090 = vunpack.c.h.b16 %v5973
      %v6091 = vunpack.c.l.b16 %v5974
      %v6092 = vunpack.c.h.b16 %v5974
      %v6093 = vunpack.c.l.b16 %v5975
      %v6094 = vunpack.c.h.b16 %v5975
      %v6095 = vunpack.c.l.b16 %v5976
      %v6096 = vunpack.c.h.b16 %v5976
      %v6097 = vunpack.c.l.b16 %v5977
      %v6098 = vunpack.c.h.b16 %v5977
      %v6099 = vunpack.c.l.b16 %v5978
      %v6100 = vunpack.c.h.b16 %v5978
      %v6101 = vunpack.c.l.b16 %v5979
      %v6102 = vunpack.c.h.b16 %v5979
      %v6103 = vunpack.c.l.b16 %v5980
      %v6104 = vunpack.c.h.b16 %v5980
      %v6105 = vunpack.c.l.b16 %v5981
      %v6106 = vunpack.c.h.b16 %v5981
      %v6107 = vunpack.c.l.b16 %v5982
      %v6108 = vunpack.c.h.b16 %v5982
      %v6109 = vunpack.c.l.b16 %v6018
      %v6110 = vunpack.c.h.b16 %v6018
      %v6111 = vunpack.c.l.b16 %v6019
      %v6112 = vunpack.c.h.b16 %v6019
      %v6113 = vpack.c.b16 %v6075, %v6073
      %v6114 = vpack.c.b16 %v6076, %v6074
      %v6115 = vpack.c.b16 %v6079, %v6077
      %v6116 = vpack.c.b16 %v6080, %v6078
      %v6117 = vpack.c.b16 %v6083, %v6081
      %v6118 = vpack.c.b16 %v6084, %v6082
      %v6119 = vpack.c.b16 %v6087, %v6085
      %v6120 = vpack.c.b16 %v6088, %v6086
      %v6121 = vpack.c.b16 %v6091, %v6089
      %v6122 = vpack.c.b16 %v6092, %v6090
      %v6123 = vpack.c.b16 %v6095, %v6093
      %v6124 = vpack.c.b16 %v6096, %v6094
      %v6125 = vpack.c.b16 %v6099, %v6097
      %v6126 = vpack.c.b16 %v6100, %v6098
      %v6127 = vpack.c.b16 %v6103, %v6101
      %v6128 = vpack.c.b16 %v6104, %v6102
      %v6129 = vpack.c.b16 %v6107, %v6105
      %v6130 = vpack.c.b16 %v6108, %v6106
      %v6131 = vpack.c.b16 %v6111, %v6109
      %v6132 = vpack.c.b16 %v6112, %v6110
      %vm6133 = vsmask.f32 4352
      %v6135 = vshrl.u32 %v6113, 16
      %v6137 = vrot.slane %v6135, 3
      %v6138 = vshll.u32 %v6113, 16
      %v6140 = vrot.slane %v6138, 4
      %v6141 = vor.u32 %v6137, %v6140
      %v6143 = vshrl.u32 %v6115, 16
      %v6145 = vrot.slane %v6143, 3
      %v6146 = vshll.u32 %v6115, 16
      %v6148 = vrot.slane %v6146, 4
      %v6149 = vor.u32 %v6145, %v6148
      %v6150 = vsel %vm6133, %v6141, %v6149
      %v6152 = vshrl.u32 %v6114, 16
      %v6154 = vrot.slane %v6152, 3
      %v6155 = vshll.u32 %v6114, 16
      %v6157 = vrot.slane %v6155, 4
      %v6158 = vor.u32 %v6154, %v6157
      %v6160 = vshrl.u32 %v6116, 16
      %v6162 = vrot.slane %v6160, 3
      %v6163 = vshll.u32 %v6116, 16
      %v6165 = vrot.slane %v6163, 4
      %v6166 = vor.u32 %v6162, %v6165
      %v6167 = vsel %vm6133, %v6158, %v6166
      %v6169 = vshrl.u32 %v6117, 16
      %v6171 = vrot.slane %v6169, 3
      %v6172 = vshll.u32 %v6117, 16
      %v6174 = vrot.slane %v6172, 4
      %v6175 = vor.u32 %v6171, %v6174
      %v6176 = vsel %vm6133, %v6149, %v6175
      %v6178 = vshrl.u32 %v6118, 16
      %v6180 = vrot.slane %v6178, 3
      %v6181 = vshll.u32 %v6118, 16
      %v6183 = vrot.slane %v6181, 4
      %v6184 = vor.u32 %v6180, %v6183
      %v6185 = vsel %vm6133, %v6166, %v6184
      %v6187 = vshrl.u32 %v6119, 16
      %v6189 = vrot.slane %v6187, 3
      %v6190 = vshll.u32 %v6119, 16
      %v6192 = vrot.slane %v6190, 4
      %v6193 = vor.u32 %v6189, %v6192
      %v6194 = vsel %vm6133, %v6175, %v6193
      %v6196 = vshrl.u32 %v6120, 16
      %v6198 = vrot.slane %v6196, 3
      %v6199 = vshll.u32 %v6120, 16
      %v6201 = vrot.slane %v6199, 4
      %v6202 = vor.u32 %v6198, %v6201
      %v6203 = vsel %vm6133, %v6184, %v6202
      %v6205 = vshrl.u32 %v6121, 16
      %v6207 = vrot.slane %v6205, 3
      %v6208 = vshll.u32 %v6121, 16
      %v6210 = vrot.slane %v6208, 4
      %v6211 = vor.u32 %v6207, %v6210
      %v6212 = vsel %vm6133, %v6193, %v6211
      %v6214 = vshrl.u32 %v6122, 16
      %v6216 = vrot.slane %v6214, 3
      %v6217 = vshll.u32 %v6122, 16
      %v6219 = vrot.slane %v6217, 4
      %v6220 = vor.u32 %v6216, %v6219
      %v6221 = vsel %vm6133, %v6202, %v6220
      %v6223 = vshrl.u32 %v6123, 16
      %v6225 = vrot.slane %v6223, 3
      %v6226 = vshll.u32 %v6123, 16
      %v6228 = vrot.slane %v6226, 4
      %v6229 = vor.u32 %v6225, %v6228
      %v6230 = vsel %vm6133, %v6211, %v6229
      %v6232 = vshrl.u32 %v6124, 16
      %v6234 = vrot.slane %v6232, 3
      %v6235 = vshll.u32 %v6124, 16
      %v6237 = vrot.slane %v6235, 4
      %v6238 = vor.u32 %v6234, %v6237
      %v6239 = vsel %vm6133, %v6220, %v6238
      %v6241 = vshrl.u32 %v6125, 16
      %v6243 = vrot.slane %v6241, 3
      %v6244 = vshll.u32 %v6125, 16
      %v6246 = vrot.slane %v6244, 4
      %v6247 = vor.u32 %v6243, %v6246
      %v6248 = vsel %vm6133, %v6229, %v6247
      %v6250 = vshrl.u32 %v6126, 16
      %v6252 = vrot.slane %v6250, 3
      %v6253 = vshll.u32 %v6126, 16
      %v6255 = vrot.slane %v6253, 4
      %v6256 = vor.u32 %v6252, %v6255
      %v6257 = vsel %vm6133, %v6238, %v6256
      %v6259 = vshrl.u32 %v6127, 16
      %v6261 = vrot.slane %v6259, 3
      %v6262 = vshll.u32 %v6127, 16
      %v6264 = vrot.slane %v6262, 4
      %v6265 = vor.u32 %v6261, %v6264
      %v6266 = vsel %vm6133, %v6247, %v6265
      %v6268 = vshrl.u32 %v6128, 16
      %v6270 = vrot.slane %v6268, 3
      %v6271 = vshll.u32 %v6128, 16
      %v6273 = vrot.slane %v6271, 4
      %v6274 = vor.u32 %v6270, %v6273
      %v6275 = vsel %vm6133, %v6256, %v6274
      %v6277 = vshrl.u32 %v6129, 16
      %v6279 = vrot.slane %v6277, 3
      %v6280 = vshll.u32 %v6129, 16
      %v6282 = vrot.slane %v6280, 4
      %v6283 = vor.u32 %v6279, %v6282
      %v6284 = vsel %vm6133, %v6265, %v6283
      %v6286 = vshrl.u32 %v6130, 16
      %v6288 = vrot.slane %v6286, 3
      %v6289 = vshll.u32 %v6130, 16
      %v6291 = vrot.slane %v6289, 4
      %v6292 = vor.u32 %v6288, %v6291
      %v6293 = vsel %vm6133, %v6274, %v6292
      %v6295 = vshrl.u32 %v6131, 16
      %v6297 = vrot.slane %v6295, 3
      %v6298 = vshll.u32 %v6131, 16
      %v6300 = vrot.slane %v6298, 4
      %v6301 = vor.u32 %v6297, %v6300
      %v6302 = vsel %vm6133, %v6283, %v6301
      %v6304 = vshrl.u32 %v6132, 16
      %v6306 = vrot.slane %v6304, 3
      %v6307 = vshll.u32 %v6132, 16
      %v6309 = vrot.slane %v6307, 4
      %v6310 = vor.u32 %v6306, %v6309
      %v6311 = vsel %vm6133, %v6292, %v6310
      %v6364 = vunpack.c.l.b16 %v6021
      %v6365 = vunpack.c.h.b16 %v6021
      %v6366 = vunpack.c.l.b16 %v6022
      %v6367 = vunpack.c.h.b16 %v6022
      %v6368 = vunpack.c.l.b16 %v6023
      %v6369 = vunpack.c.h.b16 %v6023
      %v6370 = vunpack.c.l.b16 %v6024
      %v6371 = vunpack.c.h.b16 %v6024
      %v6372 = vunpack.c.l.b16 %v6025
      %v6373 = vunpack.c.h.b16 %v6025
      %v6374 = vunpack.c.l.b16 %v6026
      %v6375 = vunpack.c.h.b16 %v6026
      %v6376 = vunpack.c.l.b16 %v6027
      %v6377 = vunpack.c.h.b16 %v6027
      %v6378 = vunpack.c.l.b16 %v6028
      %v6379 = vunpack.c.h.b16 %v6028
      %v6380 = vunpack.c.l.b16 %v6029
      %v6381 = vunpack.c.h.b16 %v6029
      %v6382 = vunpack.c.l.b16 %v6030
      %v6383 = vunpack.c.h.b16 %v6030
      %v6384 = vunpack.c.l.b16 %v6031
      %v6385 = vunpack.c.h.b16 %v6031
      %v6386 = vunpack.c.l.b16 %v6032
      %v6387 = vunpack.c.h.b16 %v6032
      %v6388 = vunpack.c.l.b16 %v6033
      %v6389 = vunpack.c.h.b16 %v6033
      %v6390 = vunpack.c.l.b16 %v6034
      %v6391 = vunpack.c.h.b16 %v6034
      %v6392 = vunpack.c.l.b16 %v6035
      %v6393 = vunpack.c.h.b16 %v6035
      %v6394 = vunpack.c.l.b16 %v6036
      %v6395 = vunpack.c.h.b16 %v6036
      %v6396 = vunpack.c.l.b16 %v6037
      %v6397 = vunpack.c.h.b16 %v6037
      %v6398 = vunpack.c.l.b16 %v6038
      %v6399 = vunpack.c.h.b16 %v6038
      %v6400 = vunpack.c.l.b16 %v6039
      %v6401 = vunpack.c.h.b16 %v6039
      %v6402 = vunpack.c.l.b16 %v6040
      %v6403 = vunpack.c.h.b16 %v6040
      %v6404 = vunpack.c.l.b16 %v6041
      %v6405 = vunpack.c.h.b16 %v6041
      %v6406 = vunpack.c.l.b16 %v6042
      %v6407 = vunpack.c.h.b16 %v6042
      %v6408 = vunpack.c.l.b16 %v6043
      %v6409 = vunpack.c.h.b16 %v6043
      %v6410 = vunpack.c.l.b16 %v6044
      %v6411 = vunpack.c.h.b16 %v6044
      %v6412 = vunpack.c.l.b16 %v6045
      %v6413 = vunpack.c.h.b16 %v6045
      %v6414 = vunpack.c.l.b16 %v6046
      %v6415 = vunpack.c.h.b16 %v6046
      %v6416 = vunpack.c.l.b16 %v6047
      %v6417 = vunpack.c.h.b16 %v6047
      %v6418 = vunpack.c.l.b16 %v6048
      %v6419 = vunpack.c.h.b16 %v6048
      %v6420 = vunpack.c.l.b16 %v6049
      %v6421 = vunpack.c.h.b16 %v6049
      %v6422 = vunpack.c.l.b16 %v6050
      %v6423 = vunpack.c.h.b16 %v6050
      %v6424 = vunpack.c.l.b16 %v6051
      %v6425 = vunpack.c.h.b16 %v6051
      %v6426 = vunpack.c.l.b16 %v6052
      %v6427 = vunpack.c.h.b16 %v6052
      %v6428 = vpack.c.b16 %v6366, %v6364
      %v6429 = vpack.c.b16 %v6367, %v6365
      %v6430 = vpack.c.b16 %v6370, %v6368
      %v6431 = vpack.c.b16 %v6371, %v6369
      %v6432 = vpack.c.b16 %v6374, %v6372
      %v6433 = vpack.c.b16 %v6375, %v6373
      %v6434 = vpack.c.b16 %v6378, %v6376
      %v6435 = vpack.c.b16 %v6379, %v6377
      %v6436 = vpack.c.b16 %v6382, %v6380
      %v6437 = vpack.c.b16 %v6383, %v6381
      %v6438 = vpack.c.b16 %v6386, %v6384
      %v6439 = vpack.c.b16 %v6387, %v6385
      %v6440 = vpack.c.b16 %v6390, %v6388
      %v6441 = vpack.c.b16 %v6391, %v6389
      %v6442 = vpack.c.b16 %v6394, %v6392
      %v6443 = vpack.c.b16 %v6395, %v6393
      %v6444 = vpack.c.b16 %v6398, %v6396
      %v6445 = vpack.c.b16 %v6399, %v6397
      %v6446 = vpack.c.b16 %v6402, %v6400
      %v6447 = vpack.c.b16 %v6403, %v6401
      %v6448 = vpack.c.b16 %v6406, %v6404
      %v6449 = vpack.c.b16 %v6407, %v6405
      %v6450 = vpack.c.b16 %v6410, %v6408
      %v6451 = vpack.c.b16 %v6411, %v6409
      %v6452 = vpack.c.b16 %v6414, %v6412
      %v6453 = vpack.c.b16 %v6415, %v6413
      %v6454 = vpack.c.b16 %v6418, %v6416
      %v6455 = vpack.c.b16 %v6419, %v6417
      %v6456 = vpack.c.b16 %v6422, %v6420
      %v6457 = vpack.c.b16 %v6423, %v6421
      %v6458 = vpack.c.b16 %v6426, %v6424
      %v6459 = vpack.c.b16 %v6427, %v6425
      %6492 = vmatprep.subr.bf16.mxu0 %v6429
      %6493 = vmatpush1.bf16.msra.mxu0 %v6428
      %6494 = vmatprep.subr.bf16.mxu0 %v6431
      %6495 = vmatpush1.bf16.msra.mxu0 %v6430
      %6496 = vmatprep.subr.bf16.mxu0 %v6433
      %6497 = vmatpush1.bf16.msra.mxu0 %v6432
      %6498 = vmatprep.subr.bf16.mxu0 %v6435
      %6499 = vmatpush1.bf16.msra.mxu0 %v6434
      %6500 = vmatprep.subr.bf16.mxu0 %v6437
      %6501 = vmatpush1.bf16.msra.mxu0 %v6436
      %6502 = vmatprep.subr.bf16.mxu0 %v6439
      %6503 = vmatpush1.bf16.msra.mxu0 %v6438
      %6504 = vmatprep.subr.bf16.mxu0 %v6441
      %6505 = vmatpush1.bf16.msra.mxu0 %v6440
      %6506 = vmatprep.subr.bf16.mxu0 %v6443
      %6507 = vmatpush1.bf16.msra.mxu0 %v6442
      %6508 = vmatprep.subr.bf16.mxu0 %v6445
      %6509 = vmatpush1.bf16.msra.mxu0 %v6444
      %6510 = vmatprep.subr.bf16.mxu0 %v6447
      %6511 = vmatpush1.bf16.msra.mxu0 %v6446
      %6512 = vmatprep.subr.bf16.mxu0 %v6449
      %6513 = vmatpush1.bf16.msra.mxu0 %v6448
      %6514 = vmatprep.subr.bf16.mxu0 %v6451
      %6515 = vmatpush1.bf16.msra.mxu0 %v6450
      %6516 = vmatprep.subr.bf16.mxu0 %v6453
      %6517 = vmatpush1.bf16.msra.mxu0 %v6452
      %6518 = vmatprep.subr.bf16.mxu0 %v6455
      %6519 = vmatpush1.bf16.msra.mxu0 %v6454
      %6520 = vmatprep.subr.bf16.mxu0 %v6457
      %6521 = vmatpush1.bf16.msra.mxu0 %v6456
      %6522 = vmatprep.subr.bf16.mxu0 %v6459
      %6523 = vmatpush1.bf16.msra.mxu0 %v6458
      %6524 = vmatprep.mubr.bf16.mxu0 %v6167
      %6525 = vmatmul.mubr.bf16.gmra.mrb[0].mxu0 %v6150
      %v6526 = vpop.f32.mrb[0].mxu0
      %v6527 = vadd.f32 0.0, %v6526
      %v6528 = vpop.f32.mrb[0].mxu0
      %v6529 = vadd.f32 0.0, %v6528
      %v6530 = vpop.f32.mrb[0].mxu0
      %v6531 = vadd.f32 0.0, %v6530
      %v6532 = vpop.f32.mrb[0].mxu0
      %v6533 = vadd.f32 0.0, %v6532
      %6534 = vmatprep.mubr.bf16.mxu0 %v6185
      %6535 = vmatmul.mubr.bf16.gmra.mrb[0].mxu0 %v6176
      %v6536 = vpop.f32.mrb[0].mxu0
      %v6537 = vadd.f32 0.0, %v6536
      %v6538 = vpop.f32.mrb[0].mxu0
      %v6539 = vadd.f32 0.0, %v6538
      %v6540 = vpop.f32.mrb[0].mxu0
      %v6541 = vadd.f32 0.0, %v6540
      %v6542 = vpop.f32.mrb[0].mxu0
      %v6543 = vadd.f32 0.0, %v6542
      %6544 = vmatprep.mubr.bf16.mxu0 %v6203
      %6545 = vmatmul.mubr.bf16.gmra.mrb[0].mxu0 %v6194
      %v6546 = vpop.f32.mrb[0].mxu0
      %v6547 = vadd.f32 0.0, %v6546
      %v6548 = vpop.f32.mrb[0].mxu0
      %v6549 = vadd.f32 0.0, %v6548
      %v6550 = vpop.f32.mrb[0].mxu0
      %v6551 = vadd.f32 0.0, %v6550
      %v6552 = vpop.f32.mrb[0].mxu0
      %v6553 = vadd.f32 0.0, %v6552
      %6554 = vmatprep.mubr.bf16.mxu0 %v6221
      %6555 = vmatmul.mubr.bf16.gmra.mrb[0].mxu0 %v6212
      %v6556 = vpop.f32.mrb[0].mxu0
      %v6557 = vadd.f32 0.0, %v6556
      %v6558 = vpop.f32.mrb[0].mxu0
      %v6559 = vadd.f32 0.0, %v6558
      %v6560 = vpop.f32.mrb[0].mxu0
      %v6561 = vadd.f32 0.0, %v6560
      %v6562 = vpop.f32.mrb[0].mxu0
      %v6563 = vadd.f32 0.0, %v6562
      %6564 = vmatprep.mubr.bf16.mxu0 %v6239
      %6565 = vmatmul.mubr.bf16.gmra.mrb[0].mxu0 %v6230
      %v6566 = vpop.f32.mrb[0].mxu0
      %v6567 = vadd.f32 0.0, %v6566
      %v6568 = vpop.f32.mrb[0].mxu0
      %v6569 = vadd.f32 0.0, %v6568
      %v6570 = vpop.f32.mrb[0].mxu0
      %v6571 = vadd.f32 0.0, %v6570
      %v6572 = vpop.f32.mrb[0].mxu0
      %v6573 = vadd.f32 0.0, %v6572
      %6574 = vmatprep.mubr.bf16.mxu0 %v6257
      %6575 = vmatmul.mubr.bf16.gmra.mrb[0].mxu0 %v6248
      %v6576 = vpop.f32.mrb[0].mxu0
      %v6577 = vadd.f32 0.0, %v6576
      %v6578 = vpop.f32.mrb[0].mxu0
      %v6579 = vadd.f32 0.0, %v6578
      %v6580 = vpop.f32.mrb[0].mxu0
      %v6581 = vadd.f32 0.0, %v6580
      %v6582 = vpop.f32.mrb[0].mxu0
      %v6583 = vadd.f32 0.0, %v6582
      %6584 = vmatprep.mubr.bf16.mxu0 %v6275
      %6585 = vmatmul.mubr.bf16.gmra.mrb[0].mxu0 %v6266
      %v6586 = vpop.f32.mrb[0].mxu0
      %v6587 = vadd.f32 0.0, %v6586
      %v6588 = vpop.f32.mrb[0].mxu0
      %v6589 = vadd.f32 0.0, %v6588
      %v6590 = vpop.f32.mrb[0].mxu0
      %v6591 = vadd.f32 0.0, %v6590
      %v6592 = vpop.f32.mrb[0].mxu0
      %v6593 = vadd.f32 0.0, %v6592
      %6594 = vmatprep.mubr.bf16.mxu0 %v6293
      %6595 = vmatmul.mubr.bf16.gmra.mrb[0].mxu0 %v6284
      %v6596 = vpop.f32.mrb[0].mxu0
      %v6597 = vadd.f32 0.0, %v6596
      %v6598 = vpop.f32.mrb[0].mxu0
      %v6599 = vadd.f32 0.0, %v6598
      %v6600 = vpop.f32.mrb[0].mxu0
      %v6601 = vadd.f32 0.0, %v6600
      %v6602 = vpop.f32.mrb[0].mxu0
      %v6603 = vadd.f32 0.0, %v6602
      %6604 = vmatprep.mubr.bf16.mxu0 %v6311
      %6605 = vmatmul.mubr.bf16.gmra.mrb[0].mxu0 %v6302
      %v6606 = vpop.f32.mrb[0].mxu0
      %v6607 = vadd.f32 0.0, %v6606
      %v6608 = vpop.f32.mrb[0].mxu0
      %v6609 = vadd.f32 0.0, %v6608
      %v6610 = vpop.f32.mrb[0].mxu0
      %v6611 = vadd.f32 0.0, %v6610
      %v6612 = vpop.f32.mrb[0].mxu0
      %v6613 = vadd.f32 0.0, %v6612
      %6614 = vmatprep.mubr.bf16.mxu0 %v6310
      %6615 = vmatmul.mubr.bf16.gmra.mrb[0].mxu0 %v6301
      %v6616 = vpop.f32.mrb[0].mxu0
      %v6617 = vadd.f32 0.0, %v6616
      %v6618 = vpop.f32.mrb[0].mxu0
      %v6619 = vadd.f32 0.0, %v6618
      %v6620 = vpop.f32.mrb[0].mxu0
      %v6621 = vpop.f32.mrb[0].mxu0
      %6622 = vdwg.mxu0
      %v6625 = vunpack.c.l.b16 %v5965
      %v6626 = vunpack.c.h.b16 %v5965
      %v6627 = vunpack.c.l.b16 %v5983
      %v6628 = vunpack.c.h.b16 %v5983
      %v6629 = vpack.c.b16 %v6075, %v6625
      %v6630 = vpack.c.b16 %v6076, %v6626
      %v6631 = vpack.c.b16 %v6627, %v6627
      %v6632 = vpack.c.b16 %v6628, %v6628
      %v6685 = vunpack.c.l.b16 %v5985
      %v6686 = vunpack.c.h.b16 %v5985
      %v6687 = vunpack.c.l.b16 %v5986
      %v6688 = vunpack.c.h.b16 %v5986
      %v6689 = vunpack.c.l.b16 %v5987
      %v6690 = vunpack.c.h.b16 %v5987
      %v6691 = vunpack.c.l.b16 %v5988
      %v6692 = vunpack.c.h.b16 %v5988
      %v6693 = vunpack.c.l.b16 %v5989
      %v6694 = vunpack.c.h.b16 %v5989
      %v6695 = vunpack.c.l.b16 %v5990
      %v6696 = vunpack.c.h.b16 %v5990
      %v6697 = vunpack.c.l.b16 %v5991
      %v6698 = vunpack.c.h.b16 %v5991
      %v6699 = vunpack.c.l.b16 %v5992
      %v6700 = vunpack.c.h.b16 %v5992
      %v6701 = vunpack.c.l.b16 %v5993
      %v6702 = vunpack.c.h.b16 %v5993
      %v6703 = vunpack.c.l.b16 %v5994
      %v6704 = vunpack.c.h.b16 %v5994
      %v6705 = vunpack.c.l.b16 %v5995
      %v6706 = vunpack.c.h.b16 %v5995
      %v6707 = vunpack.c.l.b16 %v5996
      %v6708 = vunpack.c.h.b16 %v5996
      %v6709 = vunpack.c.l.b16 %v5997
      %v6710 = vunpack.c.h.b16 %v5997
      %v6711 = vunpack.c.l.b16 %v5998
      %v6712 = vunpack.c.h.b16 %v5998
      %v6713 = vunpack.c.l.b16 %v5999
      %v6714 = vunpack.c.h.b16 %v5999
      %v6715 = vunpack.c.l.b16 %v6000
      %v6716 = vunpack.c.h.b16 %v6000
      %v6717 = vunpack.c.l.b16 %v6001
      %v6718 = vunpack.c.h.b16 %v6001
      %v6719 = vunpack.c.l.b16 %v6002
      %v6720 = vunpack.c.h.b16 %v6002
      %v6721 = vunpack.c.l.b16 %v6003
      %v6722 = vunpack.c.h.b16 %v6003
      %v6723 = vunpack.c.l.b16 %v6004
      %v6724 = vunpack.c.h.b16 %v6004
      %v6725 = vunpack.c.l.b16 %v6005
      %v6726 = vunpack.c.h.b16 %v6005
      %v6727 = vunpack.c.l.b16 %v6006
      %v6728 = vunpack.c.h.b16 %v6006
      %v6729 = vunpack.c.l.b16 %v6007
      %v6730 = vunpack.c.h.b16 %v6007
      %v6731 = vunpack.c.l.b16 %v6008
      %v6732 = vunpack.c.h.b16 %v6008
      %v6733 = vunpack.c.l.b16 %v6009
      %v6734 = vunpack.c.h.b16 %v6009
      %v6735 = vunpack.c.l.b16 %v6010
      %v6736 = vunpack.c.h.b16 %v6010
      %v6737 = vunpack.c.l.b16 %v6011
      %v6738 = vunpack.c.h.b16 %v6011
      %v6739 = vunpack.c.l.b16 %v6012
      %v6740 = vunpack.c.h.b16 %v6012
      %v6741 = vunpack.c.l.b16 %v6013
      %v6742 = vunpack.c.h.b16 %v6013
      %v6743 = vunpack.c.l.b16 %v6014
      %v6744 = vunpack.c.h.b16 %v6014
      %v6745 = vunpack.c.l.b16 %v6015
      %v6746 = vunpack.c.h.b16 %v6015
      %v6747 = vunpack.c.l.b16 %v6016
      %v6748 = vunpack.c.h.b16 %v6016
      %v6749 = vpack.c.b16 %v6687, %v6685
      %v6750 = vpack.c.b16 %v6688, %v6686
      %v6751 = vpack.c.b16 %v6691, %v6689
      %v6752 = vpack.c.b16 %v6692, %v6690
      %v6753 = vpack.c.b16 %v6695, %v6693
      %v6754 = vpack.c.b16 %v6696, %v6694
      %v6755 = vpack.c.b16 %v6699, %v6697
      %v6756 = vpack.c.b16 %v6700, %v6698
      %v6757 = vpack.c.b16 %v6703, %v6701
      %v6758 = vpack.c.b16 %v6704, %v6702
      %v6759 = vpack.c.b16 %v6707, %v6705
      %v6760 = vpack.c.b16 %v6708, %v6706
      %v6761 = vpack.c.b16 %v6711, %v6709
      %v6762 = vpack.c.b16 %v6712, %v6710
      %v6763 = vpack.c.b16 %v6715, %v6713
      %v6764 = vpack.c.b16 %v6716, %v6714
      %v6765 = vpack.c.b16 %v6719, %v6717
      %v6766 = vpack.c.b16 %v6720, %v6718
      %v6767 = vpack.c.b16 %v6723, %v6721
      %v6768 = vpack.c.b16 %v6724, %v6722
      %v6769 = vpack.c.b16 %v6727, %v6725
      %v6770 = vpack.c.b16 %v6728, %v6726
      %v6771 = vpack.c.b16 %v6731, %v6729
      %v6772 = vpack.c.b16 %v6732, %v6730
      %v6773 = vpack.c.b16 %v6735, %v6733
      %v6774 = vpack.c.b16 %v6736, %v6734
      %v6775 = vpack.c.b16 %v6739, %v6737
      %v6776 = vpack.c.b16 %v6740, %v6738
      %v6777 = vpack.c.b16 %v6743, %v6741
      %v6778 = vpack.c.b16 %v6744, %v6742
      %v6779 = vpack.c.b16 %v6747, %v6745
      %v6780 = vpack.c.b16 %v6748, %v6746
      %6813 = vmatprep.subr.bf16.mxu0 %v6750
      %6814 = vmatpush1.bf16.msra.mxu0 %v6749
      %6815 = vmatprep.subr.bf16.mxu0 %v6752
      %6816 = vmatpush1.bf16.msra.mxu0 %v6751
      %6817 = vmatprep.subr.bf16.mxu0 %v6754
      %6818 = vmatpush1.bf16.msra.mxu0 %v6753
      %6819 = vmatprep.subr.bf16.mxu0 %v6756
      %6820 = vmatpush1.bf16.msra.mxu0 %v6755
      %6821 = vmatprep.subr.bf16.mxu0 %v6758
      %6822 = vmatpush1.bf16.msra.mxu0 %v6757
      %6823 = vmatprep.subr.bf16.mxu0 %v6760
      %6824 = vmatpush1.bf16.msra.mxu0 %v6759
      %6825 = vmatprep.subr.bf16.mxu0 %v6762
      %6826 = vmatpush1.bf16.msra.mxu0 %v6761
      %6827 = vmatprep.subr.bf16.mxu0 %v6764
      %6828 = vmatpush1.bf16.msra.mxu0 %v6763
      %6829 = vmatprep.subr.bf16.mxu0 %v6766
      %6830 = vmatpush1.bf16.msra.mxu0 %v6765
      %6831 = vmatprep.subr.bf16.mxu0 %v6768
      %6832 = vmatpush1.bf16.msra.mxu0 %v6767
      %6833 = vmatprep.subr.bf16.mxu0 %v6770
      %6834 = vmatpush1.bf16.msra.mxu0 %v6769
      %6835 = vmatprep.subr.bf16.mxu0 %v6772
      %6836 = vmatpush1.bf16.msra.mxu0 %v6771
      %6837 = vmatprep.subr.bf16.mxu0 %v6774
      %6838 = vmatpush1.bf16.msra.mxu0 %v6773
      %6839 = vmatprep.subr.bf16.mxu0 %v6776
      %6840 = vmatpush1.bf16.msra.mxu0 %v6775
      %6841 = vmatprep.subr.bf16.mxu0 %v6778
      %6842 = vmatpush1.bf16.msra.mxu0 %v6777
      %6843 = vmatprep.subr.bf16.mxu0 %v6780
      %6844 = vmatpush1.bf16.msra.mxu0 %v6779
      %6845 = vmatprep.mubr.bf16.mxu0 %v6630
      %6846 = vmatmul.mubr.bf16.gmra.mrb[0].mxu0 %v6629
      %v6847 = vpop.f32.mrb[0].mxu0
      %v6848 = vadd.f32 %v6527, %v6847
      %v6849 = vpop.f32.mrb[0].mxu0
      %v6850 = vadd.f32 %v6529, %v6849
      %v6851 = vpop.f32.mrb[0].mxu0
      %v6852 = vadd.f32 %v6531, %v6851
      %v6853 = vpop.f32.mrb[0].mxu0
      %v6854 = vadd.f32 %v6533, %v6853
      %6855 = vmatprep.mubr.bf16.mxu0 %v6116
      %6856 = vmatmul.mubr.bf16.gmra.mrb[0].mxu0 %v6115
      %v6857 = vpop.f32.mrb[0].mxu0
      %v6858 = vadd.f32 %v6537, %v6857
      %v6859 = vpop.f32.mrb[0].mxu0
      %v6860 = vadd.f32 %v6539, %v6859
      %v6861 = vpop.f32.mrb[0].mxu0
      %v6862 = vadd.f32 %v6541, %v6861
      %v6863 = vpop.f32.mrb[0].mxu0
      %v6864 = vadd.f32 %v6543, %v6863
      %6865 = vmatprep.mubr.bf16.mxu0 %v6118
      %6866 = vmatmul.mubr.bf16.gmra.mrb[0].mxu0 %v6117
      %v6867 = vpop.f32.mrb[0].mxu0
      %v6868 = vadd.f32 %v6547, %v6867
      %v6869 = vpop.f32.mrb[0].mxu0
      %v6870 = vadd.f32 %v6549, %v6869
      %v6871 = vpop.f32.mrb[0].mxu0
      %v6872 = vadd.f32 %v6551, %v6871
      %v6873 = vpop.f32.mrb[0].mxu0
      %v6874 = vadd.f32 %v6553, %v6873
      %6875 = vmatprep.mubr.bf16.mxu0 %v6120
      %6876 = vmatmul.mubr.bf16.gmra.mrb[0].mxu0 %v6119
      %v6877 = vpop.f32.mrb[0].mxu0
      %v6878 = vadd.f32 %v6557, %v6877
      %v6879 = vpop.f32.mrb[0].mxu0
      %v6880 = vadd.f32 %v6559, %v6879
      %v6881 = vpop.f32.mrb[0].mxu0
      %v6882 = vadd.f32 %v6561, %v6881
      %v6883 = vpop.f32.mrb[0].mxu0
      %v6884 = vadd.f32 %v6563, %v6883
      %6885 = vmatprep.mubr.bf16.mxu0 %v6122
      %6886 = vmatmul.mubr.bf16.gmra.mrb[0].mxu0 %v6121
      %v6887 = vpop.f32.mrb[0].mxu0
      %v6888 = vadd.f32 %v6567, %v6887
      %v6889 = vpop.f32.mrb[0].mxu0
      %v6890 = vadd.f32 %v6569, %v6889
      %v6891 = vpop.f32.mrb[0].mxu0
      %v6892 = vadd.f32 %v6571, %v6891
      %v6893 = vpop.f32.mrb[0].mxu0
      %v6894 = vadd.f32 %v6573, %v6893
      %6895 = vmatprep.mubr.bf16.mxu0 %v6124
      %6896 = vmatmul.mubr.bf16.gmra.mrb[0].mxu0 %v6123
      %v6897 = vpop.f32.mrb[0].mxu0
      %v6898 = vadd.f32 %v6577, %v6897
      %v6899 = vpop.f32.mrb[0].mxu0
      %v6900 = vadd.f32 %v6579, %v6899
      %v6901 = vpop.f32.mrb[0].mxu0
      %v6902 = vadd.f32 %v6581, %v6901
      %v6903 = vpop.f32.mrb[0].mxu0
      %v6904 = vadd.f32 %v6583, %v6903
      %6905 = vmatprep.mubr.bf16.mxu0 %v6126
      %6906 = vmatmul.mubr.bf16.gmra.mrb[0].mxu0 %v6125
      %v6907 = vpop.f32.mrb[0].mxu0
      %v6908 = vadd.f32 %v6587, %v6907
      %v6909 = vpop.f32.mrb[0].mxu0
      %v6910 = vadd.f32 %v6589, %v6909
      %v6911 = vpop.f32.mrb[0].mxu0
      %v6912 = vadd.f32 %v6591, %v6911
      %v6913 = vpop.f32.mrb[0].mxu0
      %v6914 = vadd.f32 %v6593, %v6913
      %6915 = vmatprep.mubr.bf16.mxu0 %v6128
      %6916 = vmatmul.mubr.bf16.gmra.mrb[0].mxu0 %v6127
      %v6917 = vpop.f32.mrb[0].mxu0
      %v6918 = vadd.f32 %v6597, %v6917
      %v6919 = vpop.f32.mrb[0].mxu0
      %v6920 = vadd.f32 %v6599, %v6919
      %v6921 = vpop.f32.mrb[0].mxu0
      %v6922 = vadd.f32 %v6601, %v6921
      %v6923 = vpop.f32.mrb[0].mxu0
      %v6924 = vadd.f32 %v6603, %v6923
      %6925 = vmatprep.mubr.bf16.mxu0 %v6130
      %6926 = vmatmul.mubr.bf16.gmra.mrb[0].mxu0 %v6129
      %v6927 = vpop.f32.mrb[0].mxu0
      %v6928 = vadd.f32 %v6607, %v6927
      %v6929 = vpop.f32.mrb[0].mxu0
      %v6930 = vadd.f32 %v6609, %v6929
      %v6931 = vpop.f32.mrb[0].mxu0
      %v6932 = vadd.f32 %v6611, %v6931
      %v6933 = vpop.f32.mrb[0].mxu0
      %v6934 = vadd.f32 %v6613, %v6933
      %6935 = vmatprep.mubr.bf16.mxu0 %v6632
      %6936 = vmatmul.mubr.bf16.gmra.mrb[0].mxu0 %v6631
      %v6937 = vpop.f32.mrb[0].mxu0
      %v6938 = vadd.f32 %v6617, %v6937
      %v6939 = vpop.f32.mrb[0].mxu0
      %v6940 = vadd.f32 %v6619, %v6939
      %v6941 = vpop.f32.mrb[0].mxu0
      %v6942 = vpop.f32.mrb[0].mxu0
      %6943 = vdwg.mxu0
      %v6944 = vld [vmem:[#allocation2 + $0x8] sm:$0x88]
      %v6945 = vld [vmem:[#allocation2 + $0x98] sm:$0xff]
      %s6946 = scalar_lea.vmem %s1, 2816
      %v6947 = vld [vmem:[%s6946] sm:$0xff]
      %v6948 = vld [vmem:[%s6946 + $0x8] sm:$0xff]
      %v6949 = vld [vmem:[%s6946 + $0x10] sm:$0xff]
      %v6950 = vld [vmem:[%s6946 + $0x18] sm:$0xff]
      %v6951 = vld [vmem:[%s6946 + $0x20] sm:$0xff]
      %v6952 = vld [vmem:[%s6946 + $0x28] sm:$0xff]
      %v6953 = vld [vmem:[%s6946 + $0x30] sm:$0xff]
      %v6954 = vld [vmem:[%s6946 + $0x38] sm:$0xff]
      %v6955 = vld [vmem:[%s6946 + $0x40] sm:$0xff]
      %v6956 = vld [vmem:[%s6946 + $0x48] sm:$0xff]
      %v6957 = vld [vmem:[%s6946 + $0x50] sm:$0xff]
      %v6958 = vld [vmem:[%s6946 + $0x58] sm:$0xff]
      %v6959 = vld [vmem:[%s6946 + $0x60] sm:$0xff]
      %v6960 = vld [vmem:[%s6946 + $0x68] sm:$0xff]
      %v6961 = vld [vmem:[%s6946 + $0x70] sm:$0xff]
      %v6962 = vld [vmem:[%s6946 + $0x78] sm:$0xff]
      %v6963 = vld [vmem:[%s6946 + $0x80] sm:$0xff]
      %v6964 = vld [vmem:[%s6946 + $0x88] sm:$0xff]
      %v6965 = vld [vmem:[%s6946 + $0x90] sm:$0xff]
      %v6966 = vld [vmem:[%s6946 + $0x98] sm:$0xff]
      %v6967 = vld [vmem:[%s6946 + $0xa0] sm:$0xff]
      %v6968 = vld [vmem:[%s6946 + $0xa8] sm:$0xff]
      %v6969 = vld [vmem:[%s6946 + $0xb0] sm:$0xff]
      %v6970 = vld [vmem:[%s6946 + $0xb8] sm:$0xff]
      %v6971 = vld [vmem:[%s6946 + $0xc0] sm:$0xff]
      %v6972 = vld [vmem:[%s6946 + $0xc8] sm:$0xff]
      %v6973 = vld [vmem:[%s6946 + $0xd0] sm:$0xff]
      %v6974 = vld [vmem:[%s6946 + $0xd8] sm:$0xff]
      %v6975 = vld [vmem:[%s6946 + $0xe0] sm:$0xff]
      %v6976 = vld [vmem:[%s6946 + $0xe8] sm:$0xff]
      %v6977 = vld [vmem:[%s6946 + $0xf0] sm:$0xff]
      %v6978 = vld [vmem:[%s6946 + $0xf8] sm:$0xff]
      %v6981 = vunpack.c.l.b16 %v6944
      %v6982 = vunpack.c.h.b16 %v6944
      %v6983 = vunpack.c.l.b16 %v6945
      %v6984 = vunpack.c.h.b16 %v6945
      %v6985 = vpack.c.b16 %v6077, %v6981
      %v6986 = vpack.c.b16 %v6078, %v6982
      %v6987 = vpack.c.b16 %v6081, %v6079
      %v6988 = vpack.c.b16 %v6082, %v6080
      %v6989 = vpack.c.b16 %v6085, %v6083
      %v6990 = vpack.c.b16 %v6086, %v6084
      %v6991 = vpack.c.b16 %v6089, %v6087
      %v6992 = vpack.c.b16 %v6090, %v6088
      %v6993 = vpack.c.b16 %v6093, %v6091
      %v6994 = vpack.c.b16 %v6094, %v6092
      %v6995 = vpack.c.b16 %v6097, %v6095
      %v6996 = vpack.c.b16 %v6098, %v6096
      %v6997 = vpack.c.b16 %v6101, %v6099
      %v6998 = vpack.c.b16 %v6102, %v6100
      %v6999 = vpack.c.b16 %v6105, %v6103
      %v7000 = vpack.c.b16 %v6106, %v6104
      %v7001 = vpack.c.b16 %v6109, %v6107
      %v7002 = vpack.c.b16 %v6110, %v6108
      %v7003 = vpack.c.b16 %v6983, %v6983
      %v7004 = vpack.c.b16 %v6984, %v6984
      %v7005 = vrot.slane %v6985, 3
      %v7006 = vrot.slane %v6987, 3
      %v7007 = vsel %vm3230, %v7005, %v7006
      %v7008 = vrot.slane %v6986, 3
      %v7009 = vrot.slane %v6988, 3
      %v7010 = vsel %vm3230, %v7008, %v7009
      %v7011 = vrot.slane %v6989, 3
      %v7012 = vsel %vm3230, %v7006, %v7011
      %v7013 = vrot.slane %v6990, 3
      %v7014 = vsel %vm3230, %v7009, %v7013
      %v7015 = vrot.slane %v6991, 3
      %v7016 = vsel %vm3230, %v7011, %v7015
      %v7017 = vrot.slane %v6992, 3
      %v7018 = vsel %vm3230, %v7013, %v7017
      %v7019 = vrot.slane %v6993, 3
      %v7020 = vsel %vm3230, %v7015, %v7019
      %v7021 = vrot.slane %v6994, 3
      %v7022 = vsel %vm3230, %v7017, %v7021
      %v7023 = vrot.slane %v6995, 3
      %v7024 = vsel %vm3230, %v7019, %v7023
      %v7025 = vrot.slane %v6996, 3
      %v7026 = vsel %vm3230, %v7021, %v7025
      %v7027 = vrot.slane %v6997, 3
      %v7028 = vsel %vm3230, %v7023, %v7027
      %v7029 = vrot.slane %v6998, 3
      %v7030 = vsel %vm3230, %v7025, %v7029
      %v7031 = vrot.slane %v6999, 3
      %v7032 = vsel %vm3230, %v7027, %v7031
      %v7033 = vrot.slane %v7000, 3
      %v7034 = vsel %vm3230, %v7029, %v7033
      %v7035 = vrot.slane %v7001, 3
      %v7036 = vsel %vm3230, %v7031, %v7035
      %v7037 = vrot.slane %v7002, 3
      %v7038 = vsel %vm3230, %v7033, %v7037
      %v7039 = vrot.slane %v7003, 3
      %v7040 = vsel %vm3230, %v7035, %v7039
      %v7041 = vrot.slane %v7004, 3
      %v7042 = vsel %vm3230, %v7037, %v7041
      %v7095 = vunpack.c.l.b16 %v6947
      %v7096 = vunpack.c.h.b16 %v6947
      %v7097 = vunpack.c.l.b16 %v6948
      %v7098 = vunpack.c.h.b16 %v6948
      %v7099 = vunpack.c.l.b16 %v6949
      %v7100 = vunpack.c.h.b16 %v6949
      %v7101 = vunpack.c.l.b16 %v6950
      %v7102 = vunpack.c.h.b16 %v6950
      %v7103 = vunpack.c.l.b16 %v6951
      %v7104 = vunpack.c.h.b16 %v6951
      %v7105 = vunpack.c.l.b16 %v6952
      %v7106 = vunpack.c.h.b16 %v6952
      %v7107 = vunpack.c.l.b16 %v6953
      %v7108 = vunpack.c.h.b16 %v6953
      %v7109 = vunpack.c.l.b16 %v6954
      %v7110 = vunpack.c.h.b16 %v6954
      %v7111 = vunpack.c.l.b16 %v6955
      %v7112 = vunpack.c.h.b16 %v6955
      %v7113 = vunpack.c.l.b16 %v6956
      %v7114 = vunpack.c.h.b16 %v6956
      %v7115 = vunpack.c.l.b16 %v6957
      %v7116 = vunpack.c.h.b16 %v6957
      %v7117 = vunpack.c.l.b16 %v6958
      %v7118 = vunpack.c.h.b16 %v6958
      %v7119 = vunpack.c.l.b16 %v6959
      %v7120 = vunpack.c.h.b16 %v6959
      %v7121 = vunpack.c.l.b16 %v6960
      %v7122 = vunpack.c.h.b16 %v6960
      %v7123 = vunpack.c.l.b16 %v6961
      %v7124 = vunpack.c.h.b16 %v6961
      %v7125 = vunpack.c.l.b16 %v6962
      %v7126 = vunpack.c.h.b16 %v6962
      %v7127 = vunpack.c.l.b16 %v6963
      %v7128 = vunpack.c.h.b16 %v6963
      %v7129 = vunpack.c.l.b16 %v6964
      %v7130 = vunpack.c.h.b16 %v6964
      %v7131 = vunpack.c.l.b16 %v6965
      %v7132 = vunpack.c.h.b16 %v6965
      %v7133 = vunpack.c.l.b16 %v6966
      %v7134 = vunpack.c.h.b16 %v6966
      %v7135 = vunpack.c.l.b16 %v6967
      %v7136 = vunpack.c.h.b16 %v6967
      %v7137 = vunpack.c.l.b16 %v6968
      %v7138 = vunpack.c.h.b16 %v6968
      %v7139 = vunpack.c.l.b16 %v6969
      %v7140 = vunpack.c.h.b16 %v6969
      %v7141 = vunpack.c.l.b16 %v6970
      %v7142 = vunpack.c.h.b16 %v6970
      %v7143 = vunpack.c.l.b16 %v6971
      %v7144 = vunpack.c.h.b16 %v6971
      %v7145 = vunpack.c.l.b16 %v6972
      %v7146 = vunpack.c.h.b16 %v6972
      %v7147 = vunpack.c.l.b16 %v6973
      %v7148 = vunpack.c.h.b16 %v6973
      %v7149 = vunpack.c.l.b16 %v6974
      %v7150 = vunpack.c.h.b16 %v6974
      %v7151 = vunpack.c.l.b16 %v6975
      %v7152 = vunpack.c.h.b16 %v6975
      %v7153 = vunpack.c.l.b16 %v6976
      %v7154 = vunpack.c.h.b16 %v6976
      %v7155 = vunpack.c.l.b16 %v6977
      %v7156 = vunpack.c.h.b16 %v6977
      %v7157 = vunpack.c.l.b16 %v6978
      %v7158 = vunpack.c.h.b16 %v6978
      %v7159 = vpack.c.b16 %v7097, %v7095
      %v7160 = vpack.c.b16 %v7098, %v7096
      %v7161 = vpack.c.b16 %v7101, %v7099
      %v7162 = vpack.c.b16 %v7102, %v7100
      %v7163 = vpack.c.b16 %v7105, %v7103
      %v7164 = vpack.c.b16 %v7106, %v7104
      %v7165 = vpack.c.b16 %v7109, %v7107
      %v7166 = vpack.c.b16 %v7110, %v7108
      %v7167 = vpack.c.b16 %v7113, %v7111
      %v7168 = vpack.c.b16 %v7114, %v7112
      %v7169 = vpack.c.b16 %v7117, %v7115
      %v7170 = vpack.c.b16 %v7118, %v7116
      %v7171 = vpack.c.b16 %v7121, %v7119
      %v7172 = vpack.c.b16 %v7122, %v7120
      %v7173 = vpack.c.b16 %v7125, %v7123
      %v7174 = vpack.c.b16 %v7126, %v7124
      %v7175 = vpack.c.b16 %v7129, %v7127
      %v7176 = vpack.c.b16 %v7130, %v7128
      %v7177 = vpack.c.b16 %v7133, %v7131
      %v7178 = vpack.c.b16 %v7134, %v7132
      %v7179 = vpack.c.b16 %v7137, %v7135
      %v7180 = vpack.c.b16 %v7138, %v7136
      %v7181 = vpack.c.b16 %v7141, %v7139
      %v7182 = vpack.c.b16 %v7142, %v7140
      %v7183 = vpack.c.b16 %v7145, %v7143
      %v7184 = vpack.c.b16 %v7146, %v7144
      %v7185 = vpack.c.b16 %v7149, %v7147
      %v7186 = vpack.c.b16 %v7150, %v7148
      %v7187 = vpack.c.b16 %v7153, %v7151
      %v7188 = vpack.c.b16 %v7154, %v7152
      %v7189 = vpack.c.b16 %v7157, %v7155
      %v7190 = vpack.c.b16 %v7158, %v7156
      %7223 = vmatprep.subr.bf16.mxu0 %v7160
      %7224 = vmatpush1.bf16.msra.mxu0 %v7159
      %7225 = vmatprep.subr.bf16.mxu0 %v7162
      %7226 = vmatpush1.bf16.msra.mxu0 %v7161
      %7227 = vmatprep.subr.bf16.mxu0 %v7164
      %7228 = vmatpush1.bf16.msra.mxu0 %v7163
      %7229 = vmatprep.subr.bf16.mxu0 %v7166
      %7230 = vmatpush1.bf16.msra.mxu0 %v7165
      %7231 = vmatprep.subr.bf16.mxu0 %v7168
      %7232 = vmatpush1.bf16.msra.mxu0 %v7167
      %7233 = vmatprep.subr.bf16.mxu0 %v7170
      %7234 = vmatpush1.bf16.msra.mxu0 %v7169
      %7235 = vmatprep.subr.bf16.mxu0 %v7172
      %7236 = vmatpush1.bf16.msra.mxu0 %v7171
      %7237 = vmatprep.subr.bf16.mxu0 %v7174
      %7238 = vmatpush1.bf16.msra.mxu0 %v7173
      %7239 = vmatprep.subr.bf16.mxu0 %v7176
      %7240 = vmatpush1.bf16.msra.mxu0 %v7175
      %7241 = vmatprep.subr.bf16.mxu0 %v7178
      %7242 = vmatpush1.bf16.msra.mxu0 %v7177
      %7243 = vmatprep.subr.bf16.mxu0 %v7180
      %7244 = vmatpush1.bf16.msra.mxu0 %v7179
      %7245 = vmatprep.subr.bf16.mxu0 %v7182
      %7246 = vmatpush1.bf16.msra.mxu0 %v7181
      %7247 = vmatprep.subr.bf16.mxu0 %v7184
      %7248 = vmatpush1.bf16.msra.mxu0 %v7183
      %7249 = vmatprep.subr.bf16.mxu0 %v7186
      %7250 = vmatpush1.bf16.msra.mxu0 %v7185
      %7251 = vmatprep.subr.bf16.mxu0 %v7188
      %7252 = vmatpush1.bf16.msra.mxu0 %v7187
      %7253 = vmatprep.subr.bf16.mxu0 %v7190
      %7254 = vmatpush1.bf16.msra.mxu0 %v7189
      %7255 = vmatprep.mubr.bf16.mxu0 %v7010
      %7256 = vmatmul.mubr.bf16.gmra.mrb[0].mxu0 %v7007
      %v7257 = vpop.f32.mrb[0].mxu0
      %v7258 = vadd.f32 0.0, %v7257
      %v7259 = vpop.f32.mrb[0].mxu0
      %v7260 = vadd.f32 0.0, %v7259
      %v7261 = vpop.f32.mrb[0].mxu0
      %v7262 = vadd.f32 0.0, %v7261
      %v7263 = vpop.f32.mrb[0].mxu0
      %v7264 = vadd.f32 0.0, %v7263
      %7265 = vmatprep.mubr.bf16.mxu0 %v7014
      %7266 = vmatmul.mubr.bf16.gmra.mrb[0].mxu0 %v7012
      %v7267 = vpop.f32.mrb[0].mxu0
      %v7268 = vadd.f32 0.0, %v7267
      %v7269 = vpop.f32.mrb[0].mxu0
      %v7270 = vadd.f32 0.0, %v7269
      %v7271 = vpop.f32.mrb[0].mxu0
      %v7272 = vadd.f32 0.0, %v7271
      %v7273 = vpop.f32.mrb[0].mxu0
      %v7274 = vadd.f32 0.0, %v7273
      %7275 = vmatprep.mubr.bf16.mxu0 %v7018
      %7276 = vmatmul.mubr.bf16.gmra.mrb[0].mxu0 %v7016
      %v7277 = vpop.f32.mrb[0].mxu0
      %v7278 = vadd.f32 0.0, %v7277
      %v7279 = vpop.f32.mrb[0].mxu0
      %v7280 = vadd.f32 0.0, %v7279
      %v7281 = vpop.f32.mrb[0].mxu0
      %v7282 = vadd.f32 0.0, %v7281
      %v7283 = vpop.f32.mrb[0].mxu0
      %v7284 = vadd.f32 0.0, %v7283
      %7285 = vmatprep.mubr.bf16.mxu0 %v7022
      %7286 = vmatmul.mubr.bf16.gmra.mrb[0].mxu0 %v7020
      %v7287 = vpop.f32.mrb[0].mxu0
      %v7288 = vadd.f32 0.0, %v7287
      %v7289 = vpop.f32.mrb[0].mxu0
      %v7290 = vadd.f32 0.0, %v7289
      %v7291 = vpop.f32.mrb[0].mxu0
      %v7292 = vadd.f32 0.0, %v7291
      %v7293 = vpop.f32.mrb[0].mxu0
      %v7294 = vadd.f32 0.0, %v7293
      %7295 = vmatprep.mubr.bf16.mxu0 %v7026
      %7296 = vmatmul.mubr.bf16.gmra.mrb[0].mxu0 %v7024
      %v7297 = vpop.f32.mrb[0].mxu0
      %v7298 = vadd.f32 0.0, %v7297
      %v7299 = vpop.f32.mrb[0].mxu0
      %v7300 = vadd.f32 0.0, %v7299
      %v7301 = vpop.f32.mrb[0].mxu0
      %v7302 = vadd.f32 0.0, %v7301
      %v7303 = vpop.f32.mrb[0].mxu0
      %v7304 = vadd.f32 0.0, %v7303
      %7305 = vmatprep.mubr.bf16.mxu0 %v7030
      %7306 = vmatmul.mubr.bf16.gmra.mrb[0].mxu0 %v7028
      %v7307 = vpop.f32.mrb[0].mxu0
      %v7308 = vadd.f32 0.0, %v7307
      %v7309 = vpop.f32.mrb[0].mxu0
      %v7310 = vadd.f32 0.0, %v7309
      %v7311 = vpop.f32.mrb[0].mxu0
      %v7312 = vadd.f32 0.0, %v7311
      %v7313 = vpop.f32.mrb[0].mxu0
      %v7314 = vadd.f32 0.0, %v7313
      %7315 = vmatprep.mubr.bf16.mxu0 %v7034
      %7316 = vmatmul.mubr.bf16.gmra.mrb[0].mxu0 %v7032
      %v7317 = vpop.f32.mrb[0].mxu0
      %v7318 = vadd.f32 0.0, %v7317
      %v7319 = vpop.f32.mrb[0].mxu0
      %v7320 = vadd.f32 0.0, %v7319
      %v7321 = vpop.f32.mrb[0].mxu0
      %v7322 = vadd.f32 0.0, %v7321
      %v7323 = vpop.f32.mrb[0].mxu0
      %v7324 = vadd.f32 0.0, %v7323
      %7325 = vmatprep.mubr.bf16.mxu0 %v7038
      %7326 = vmatmul.mubr.bf16.gmra.mrb[0].mxu0 %v7036
      %v7327 = vpop.f32.mrb[0].mxu0
      %v7328 = vadd.f32 0.0, %v7327
      %v7329 = vpop.f32.mrb[0].mxu0
      %v7330 = vadd.f32 0.0, %v7329
      %v7331 = vpop.f32.mrb[0].mxu0
      %v7332 = vadd.f32 0.0, %v7331
      %v7333 = vpop.f32.mrb[0].mxu0
      %v7334 = vadd.f32 0.0, %v7333
      %7335 = vmatprep.mubr.bf16.mxu0 %v7042
      %7336 = vmatmul.mubr.bf16.gmra.mrb[0].mxu0 %v7040
      %v7337 = vpop.f32.mrb[0].mxu0
      %v7338 = vadd.f32 0.0, %v7337
      %v7339 = vpop.f32.mrb[0].mxu0
      %v7340 = vadd.f32 0.0, %v7339
      %v7341 = vpop.f32.mrb[0].mxu0
      %v7342 = vadd.f32 0.0, %v7341
      %v7343 = vpop.f32.mrb[0].mxu0
      %v7344 = vadd.f32 0.0, %v7343
      %7345 = vmatprep.mubr.bf16.mxu0 %v7041
      %7346 = vmatmul.mubr.bf16.gmra.mrb[0].mxu0 %v7039
      %v7347 = vpop.f32.mrb[0].mxu0
      %v7348 = vadd.f32 0.0, %v7347
      %v7349 = vpop.f32.mrb[0].mxu0
      %v7350 = vadd.f32 0.0, %v7349
      %v7351 = vpop.f32.mrb[0].mxu0
      %v7352 = vpop.f32.mrb[0].mxu0
      %7353 = vdwg.mxu0
      %v7354 = vadd.f32 %v6848, %v7258
      %v7355 = vadd.f32 %v6850, %v7260
      %v7356 = vadd.f32 %v6852, %v7262
      %v7357 = vadd.f32 %v6854, %v7264
      %v7358 = vadd.f32 %v6858, %v7268
      %v7359 = vadd.f32 %v6860, %v7270
      %v7360 = vadd.f32 %v6862, %v7272
      %v7361 = vadd.f32 %v6864, %v7274
      %v7362 = vadd.f32 %v6868, %v7278
      %v7363 = vadd.f32 %v6870, %v7280
      %v7364 = vadd.f32 %v6872, %v7282
      %v7365 = vadd.f32 %v6874, %v7284
      %v7366 = vadd.f32 %v6878, %v7288
      %v7367 = vadd.f32 %v6880, %v7290
      %v7368 = vadd.f32 %v6882, %v7292
      %v7369 = vadd.f32 %v6884, %v7294
      %v7370 = vadd.f32 %v6888, %v7298
      %v7371 = vadd.f32 %v6890, %v7300
      %v7372 = vadd.f32 %v6892, %v7302
      %v7373 = vadd.f32 %v6894, %v7304
      %v7374 = vadd.f32 %v6898, %v7308
      %v7375 = vadd.f32 %v6900, %v7310
      %v7376 = vadd.f32 %v6902, %v7312
      %v7377 = vadd.f32 %v6904, %v7314
      %v7378 = vadd.f32 %v6908, %v7318
      %v7379 = vadd.f32 %v6910, %v7320
      %v7380 = vadd.f32 %v6912, %v7322
      %v7381 = vadd.f32 %v6914, %v7324
      %v7382 = vadd.f32 %v6918, %v7328
      %v7383 = vadd.f32 %v6920, %v7330
      %v7384 = vadd.f32 %v6922, %v7332
      %v7385 = vadd.f32 %v6924, %v7334
      %v7386 = vadd.f32 %v6928, %v7338
      %v7387 = vadd.f32 %v6930, %v7340
      %v7388 = vadd.f32 %v6932, %v7342
      %v7389 = vadd.f32 %v6934, %v7344
      %v7390 = vadd.f32 %v6938, %v7348
      %v7391 = vadd.f32 %v6940, %v7350
      %s7392 = scalar_lea.vmem %s2, 3
      %v7393 = vld [vmem:[%s7392] ss:$8 sm:$0x3]
      %v7395 = vlaneseq
      %v7396 = vshrl.u32 %v7395, 7
      %v7397 = vsub.s32 0, %v7396
      %v7398 = vrot.slane %v7393, %v7397
      %v7399 = vlaneseq
      %v7400 = vshrl.u32 %v7399, 7
      %v7401 = vsub.s32 1, %v7400
      %v7402 = vrot.slane %v7393, %v7401
      %v7405 = vadd.f32 %v7354, %v7398
      %v7406 = vadd.f32 %v7355, %v7402
      %v7407 = vadd.f32 %v7356, %v7398
      %v7408 = vadd.f32 %v7357, %v7402
      %v7409 = vadd.f32 %v7358, %v7398
      %v7410 = vadd.f32 %v7359, %v7402
      %v7411 = vadd.f32 %v7360, %v7398
      %v7412 = vadd.f32 %v7361, %v7402
      %v7413 = vadd.f32 %v7362, %v7398
      %v7414 = vadd.f32 %v7363, %v7402
      %v7415 = vadd.f32 %v7364, %v7398
      %v7416 = vadd.f32 %v7365, %v7402
      %v7417 = vadd.f32 %v7366, %v7398
      %v7418 = vadd.f32 %v7367, %v7402
      %v7419 = vadd.f32 %v7368, %v7398
      %v7420 = vadd.f32 %v7369, %v7402
      %v7421 = vadd.f32 %v7370, %v7398
      %v7422 = vadd.f32 %v7371, %v7402
      %v7423 = vadd.f32 %v7372, %v7398
      %v7424 = vadd.f32 %v7373, %v7402
      %v7425 = vadd.f32 %v7374, %v7398
      %v7426 = vadd.f32 %v7375, %v7402
      %v7427 = vadd.f32 %v7376, %v7398
      %v7428 = vadd.f32 %v7377, %v7402
      %v7429 = vadd.f32 %v7378, %v7398
      %v7430 = vadd.f32 %v7379, %v7402
      %v7431 = vadd.f32 %v7380, %v7398
      %v7432 = vadd.f32 %v7381, %v7402
      %v7433 = vadd.f32 %v7382, %v7398
      %v7434 = vadd.f32 %v7383, %v7402
      %v7435 = vadd.f32 %v7384, %v7398
      %v7436 = vadd.f32 %v7385, %v7402
      %v7437 = vadd.f32 %v7386, %v7398
      %v7438 = vadd.f32 %v7387, %v7402
      %v7439 = vadd.f32 %v7388, %v7398
      %v7440 = vadd.f32 %v7389, %v7402
      %v7441 = vadd.f32 %v7390, %v7398
      %v7442 = vadd.f32 %v7391, %v7402
      %v7443 = vmax.f32 %v7405, 0.0
      %v7444 = vmax.f32 %v7406, 0.0
      %v7445 = vmax.f32 %v7407, 0.0
      %v7446 = vmax.f32 %v7408, 0.0
      %v7447 = vmax.f32 %v7409, 0.0
      %v7448 = vmax.f32 %v7410, 0.0
      %v7449 = vmax.f32 %v7411, 0.0
      %v7450 = vmax.f32 %v7412, 0.0
      %v7451 = vmax.f32 %v7413, 0.0
      %v7452 = vmax.f32 %v7414, 0.0
      %v7453 = vmax.f32 %v7415, 0.0
      %v7454 = vmax.f32 %v7416, 0.0
      %v7455 = vmax.f32 %v7417, 0.0
      %v7456 = vmax.f32 %v7418, 0.0
      %v7457 = vmax.f32 %v7419, 0.0
      %v7458 = vmax.f32 %v7420, 0.0
      %v7459 = vmax.f32 %v7421, 0.0
      %v7460 = vmax.f32 %v7422, 0.0
      %v7461 = vmax.f32 %v7423, 0.0
      %v7462 = vmax.f32 %v7424, 0.0
      %v7463 = vmax.f32 %v7425, 0.0
      %v7464 = vmax.f32 %v7426, 0.0
      %v7465 = vmax.f32 %v7427, 0.0
      %v7466 = vmax.f32 %v7428, 0.0
      %v7467 = vmax.f32 %v7429, 0.0
      %v7468 = vmax.f32 %v7430, 0.0
      %v7469 = vmax.f32 %v7431, 0.0
      %v7470 = vmax.f32 %v7432, 0.0
      %v7471 = vmax.f32 %v7433, 0.0
      %v7472 = vmax.f32 %v7434, 0.0
      %v7473 = vmax.f32 %v7435, 0.0
      %v7474 = vmax.f32 %v7436, 0.0
      %v7475 = vmax.f32 %v7437, 0.0
      %v7476 = vmax.f32 %v7438, 0.0
      %v7477 = vmax.f32 %v7439, 0.0
      %v7478 = vmax.f32 %v7440, 0.0
      %v7479 = vmax.f32 %v7441, 0.0
      %v7480 = vmax.f32 %v7442, 0.0
      %v7481 = vpack.c.bf16 %v7445, %v7443
      %v7482 = vpack.c.bf16 %v7446, %v7444
      %v7483 = vpack.c.bf16 %v7449, %v7447
      %v7484 = vpack.c.bf16 %v7450, %v7448
      %v7485 = vpack.c.bf16 %v7453, %v7451
      %v7486 = vpack.c.bf16 %v7454, %v7452
      %v7487 = vpack.c.bf16 %v7457, %v7455
      %v7488 = vpack.c.bf16 %v7458, %v7456
      %v7489 = vpack.c.bf16 %v7461, %v7459
      %v7490 = vpack.c.bf16 %v7462, %v7460
      %v7491 = vpack.c.bf16 %v7465, %v7463
      %v7492 = vpack.c.bf16 %v7466, %v7464
      %v7493 = vpack.c.bf16 %v7469, %v7467
      %v7494 = vpack.c.bf16 %v7470, %v7468
      %v7495 = vpack.c.bf16 %v7473, %v7471
      %v7496 = vpack.c.bf16 %v7474, %v7472
      %v7497 = vpack.c.bf16 %v7477, %v7475
      %v7498 = vpack.c.bf16 %v7478, %v7476
      %v7499 = vpack.c.bf16 %v7479, %v7479
      %v7500 = vpack.c.bf16 %v7480, %v7480
      %v7521 = vunpack.c.l.b16 %v7481
      %v7522 = vunpack.c.l.b16 %v7482
      %v7523 = vunpack.c.h.b16 %v7481
      %v7524 = vunpack.c.h.b16 %v7482
      %v7525 = vunpack.c.l.b16 %v7483
      %v7526 = vunpack.c.l.b16 %v7484
      %v7527 = vunpack.c.h.b16 %v7483
      %v7528 = vunpack.c.h.b16 %v7484
      %v7529 = vunpack.c.l.b16 %v7485
      %v7530 = vunpack.c.l.b16 %v7486
      %v7531 = vunpack.c.h.b16 %v7485
      %v7532 = vunpack.c.h.b16 %v7486
      %v7533 = vunpack.c.l.b16 %v7487
      %v7534 = vunpack.c.l.b16 %v7488
      %v7535 = vunpack.c.h.b16 %v7487
      %v7536 = vunpack.c.h.b16 %v7488
      %v7537 = vunpack.c.l.b16 %v7489
      %v7538 = vunpack.c.l.b16 %v7490
      %v7539 = vunpack.c.h.b16 %v7489
      %v7540 = vunpack.c.h.b16 %v7490
      %v7541 = vunpack.c.l.b16 %v7491
      %v7542 = vunpack.c.l.b16 %v7492
      %v7543 = vunpack.c.h.b16 %v7491
      %v7544 = vunpack.c.h.b16 %v7492
      %v7545 = vunpack.c.l.b16 %v7493
      %v7546 = vunpack.c.l.b16 %v7494
      %v7547 = vunpack.c.h.b16 %v7493
      %v7548 = vunpack.c.h.b16 %v7494
      %v7549 = vunpack.c.l.b16 %v7495
      %v7550 = vunpack.c.l.b16 %v7496
      %v7551 = vunpack.c.h.b16 %v7495
      %v7552 = vunpack.c.h.b16 %v7496
      %v7553 = vunpack.c.l.b16 %v7497
      %v7554 = vunpack.c.l.b16 %v7498
      %v7555 = vunpack.c.h.b16 %v7497
      %v7556 = vunpack.c.h.b16 %v7498
      %v7557 = vunpack.c.l.b16 %v7499
      %v7558 = vunpack.c.l.b16 %v7500
      %v7559 = vpack.c.b16 %v7522, %v7521
      %v7560 = vpack.c.b16 %v7524, %v7523
      %v7561 = vpack.c.b16 %v7526, %v7525
      %v7562 = vpack.c.b16 %v7528, %v7527
      %v7563 = vpack.c.b16 %v7530, %v7529
      %v7564 = vpack.c.b16 %v7532, %v7531
      %v7565 = vpack.c.b16 %v7534, %v7533
      %v7566 = vpack.c.b16 %v7536, %v7535
      %v7567 = vpack.c.b16 %v7538, %v7537
      %v7568 = vpack.c.b16 %v7540, %v7539
      %v7569 = vpack.c.b16 %v7542, %v7541
      %v7570 = vpack.c.b16 %v7544, %v7543
      %v7571 = vpack.c.b16 %v7546, %v7545
      %v7572 = vpack.c.b16 %v7548, %v7547
      %v7573 = vpack.c.b16 %v7550, %v7549
      %v7574 = vpack.c.b16 %v7552, %v7551
      %v7575 = vpack.c.b16 %v7554, %v7553
      %v7576 = vpack.c.b16 %v7556, %v7555
      %v7577 = vpack.c.b16 %v7558, %v7557
      %v7579 = vshrl.u32 %v7559, 16
      %v7581 = vrot.slane %v7579, 7
      %v7582 = vshll.u32 %v7559, 16
      %v7584 = vor.u32 %v7581, %v7582
      %v7585 = vrot.slane %v7581, 4
      %v7587 = vshrl.u32 %v7560, 16
      %v7589 = vrot.slane %v7587, 7
      %v7590 = vshll.u32 %v7560, 16
      %v7592 = vor.u32 %v7589, %v7590
      %v7593 = vsel %vm1885, %v7585, %v7592
      %v7594 = vrot.slane %v7589, 4
      %v7596 = vshrl.u32 %v7561, 16
      %v7598 = vrot.slane %v7596, 7
      %v7599 = vshll.u32 %v7561, 16
      %v7601 = vor.u32 %v7598, %v7599
      %v7602 = vsel %vm1885, %v7594, %v7601
      %v7603 = vrot.slane %v7598, 4
      %v7605 = vshrl.u32 %v7562, 16
      %v7607 = vrot.slane %v7605, 7
      %v7608 = vshll.u32 %v7562, 16
      %v7610 = vor.u32 %v7607, %v7608
      %v7611 = vsel %vm1885, %v7603, %v7610
      %v7612 = vrot.slane %v7607, 4
      %v7614 = vshrl.u32 %v7563, 16
      %v7616 = vrot.slane %v7614, 7
      %v7617 = vshll.u32 %v7563, 16
      %v7619 = vor.u32 %v7616, %v7617
      %v7620 = vsel %vm1885, %v7612, %v7619
      %v7621 = vrot.slane %v7616, 4
      %v7623 = vshrl.u32 %v7564, 16
      %v7625 = vrot.slane %v7623, 7
      %v7626 = vshll.u32 %v7564, 16
      %v7628 = vor.u32 %v7625, %v7626
      %v7629 = vsel %vm1885, %v7621, %v7628
      %v7630 = vrot.slane %v7625, 4
      %v7632 = vshrl.u32 %v7565, 16
      %v7634 = vrot.slane %v7632, 7
      %v7635 = vshll.u32 %v7565, 16
      %v7637 = vor.u32 %v7634, %v7635
      %v7638 = vsel %vm1885, %v7630, %v7637
      %v7639 = vrot.slane %v7634, 4
      %v7641 = vshrl.u32 %v7566, 16
      %v7643 = vrot.slane %v7641, 7
      %v7644 = vshll.u32 %v7566, 16
      %v7646 = vor.u32 %v7643, %v7644
      %v7647 = vsel %vm1885, %v7639, %v7646
      %v7648 = vrot.slane %v7643, 4
      %v7650 = vshrl.u32 %v7567, 16
      %v7652 = vrot.slane %v7650, 7
      %v7653 = vshll.u32 %v7567, 16
      %v7655 = vor.u32 %v7652, %v7653
      %v7656 = vsel %vm1885, %v7648, %v7655
      %v7657 = vrot.slane %v7652, 4
      %v7659 = vshrl.u32 %v7568, 16
      %v7661 = vrot.slane %v7659, 7
      %v7662 = vshll.u32 %v7568, 16
      %v7664 = vor.u32 %v7661, %v7662
      %v7665 = vsel %vm1885, %v7657, %v7664
      %v7666 = vrot.slane %v7661, 4
      %v7668 = vshrl.u32 %v7569, 16
      %v7670 = vrot.slane %v7668, 7
      %v7671 = vshll.u32 %v7569, 16
      %v7673 = vor.u32 %v7670, %v7671
      %v7674 = vsel %vm1885, %v7666, %v7673
      %v7675 = vrot.slane %v7670, 4
      %v7677 = vshrl.u32 %v7570, 16
      %v7679 = vrot.slane %v7677, 7
      %v7680 = vshll.u32 %v7570, 16
      %v7682 = vor.u32 %v7679, %v7680
      %v7683 = vsel %vm1885, %v7675, %v7682
      %v7684 = vrot.slane %v7679, 4
      %v7686 = vshrl.u32 %v7571, 16
      %v7688 = vrot.slane %v7686, 7
      %v7689 = vshll.u32 %v7571, 16
      %v7691 = vor.u32 %v7688, %v7689
      %v7692 = vsel %vm1885, %v7684, %v7691
      %v7693 = vrot.slane %v7688, 4
      %v7695 = vshrl.u32 %v7572, 16
      %v7697 = vrot.slane %v7695, 7
      %v7698 = vshll.u32 %v7572, 16
      %v7700 = vor.u32 %v7697, %v7698
      %v7701 = vsel %vm1885, %v7693, %v7700
      %v7702 = vrot.slane %v7697, 4
      %v7704 = vshrl.u32 %v7573, 16
      %v7706 = vrot.slane %v7704, 7
      %v7707 = vshll.u32 %v7573, 16
      %v7709 = vor.u32 %v7706, %v7707
      %v7710 = vsel %vm1885, %v7702, %v7709
      %v7711 = vrot.slane %v7706, 4
      %v7713 = vshrl.u32 %v7574, 16
      %v7715 = vrot.slane %v7713, 7
      %v7716 = vshll.u32 %v7574, 16
      %v7718 = vor.u32 %v7715, %v7716
      %v7719 = vsel %vm1885, %v7711, %v7718
      %v7720 = vrot.slane %v7715, 4
      %v7722 = vshrl.u32 %v7575, 16
      %v7724 = vrot.slane %v7722, 7
      %v7725 = vshll.u32 %v7575, 16
      %v7727 = vor.u32 %v7724, %v7725
      %v7728 = vsel %vm1885, %v7720, %v7727
      %v7729 = vrot.slane %v7724, 4
      %v7731 = vshrl.u32 %v7576, 16
      %v7733 = vrot.slane %v7731, 7
      %v7734 = vshll.u32 %v7576, 16
      %v7736 = vor.u32 %v7733, %v7734
      %v7737 = vsel %vm1885, %v7729, %v7736
      %v7738 = vrot.slane %v7733, 4
      %v7740 = vshrl.u32 %v7577, 16
      %v7742 = vrot.slane %v7740, 7
      %v7743 = vshll.u32 %v7577, 16
      %v7745 = vor.u32 %v7742, %v7743
      %v7746 = vsel %vm1885, %v7738, %v7745
      %v7766 = vld [vmem:[#allocation3] sm:$0xff]
      %v7767 = vsel %vm2110, %v7584, %v7766
      %7768 = vst [vmem:[#allocation3] sm:$0xff] %v7767
      %7769 = vst [vmem:[#allocation3 + $0x8] sm:$0xff] %v7593
      %7770 = vst [vmem:[#allocation3 + $0x10] sm:$0xff] %v7602
      %7771 = vst [vmem:[#allocation3 + $0x18] sm:$0xff] %v7611
      %7772 = vst [vmem:[#allocation3 + $0x20] sm:$0xff] %v7620
      %7773 = vst [vmem:[#allocation3 + $0x28] sm:$0xff] %v7629
      %7774 = vst [vmem:[#allocation3 + $0x30] sm:$0xff] %v7638
      %7775 = vst [vmem:[#allocation3 + $0x38] sm:$0xff] %v7647
      %7776 = vst [vmem:[#allocation3 + $0x40] sm:$0xff] %v7656
      %7777 = vst [vmem:[#allocation3 + $0x48] sm:$0xff] %v7665
      %7778 = vst [vmem:[#allocation3 + $0x50] sm:$0xff] %v7674
      %7779 = vst [vmem:[#allocation3 + $0x58] sm:$0xff] %v7683
      %7780 = vst [vmem:[#allocation3 + $0x60] sm:$0xff] %v7692
      %7781 = vst [vmem:[#allocation3 + $0x68] sm:$0xff] %v7701
      %7782 = vst [vmem:[#allocation3 + $0x70] sm:$0xff] %v7710
      %7783 = vst [vmem:[#allocation3 + $0x78] sm:$0xff] %v7719
      %7784 = vst [vmem:[#allocation3 + $0x80] sm:$0xff] %v7728
      %7785 = vst [vmem:[#allocation3 + $0x88] sm:$0xff] %v7737
      %v7786 = vld [vmem:[#allocation3 + $0x90] sm:$0x33]
      %v7787 = vsel %vm2140, %v7746, %v7786
      %7788 = vst [vmem:[#allocation3 + $0x90] sm:$0x33] %v7787
      %v7789 = vld [vmem:[#allocation3 + $0x90] sm:$0x22]
      %v7790 = vsel %vm2150, 0, %v7789
      %7791 = vst [vmem:[#allocation3 + $0x90] sm:$0x22] %v7790
      %v7792 = vld [vmem:[#allocation3] sm:$0xff]
      %v7793 = vld [vmem:[#allocation3 + $0x8] sm:$0xff]
      %v7794 = vld [vmem:[#allocation3 + $0x10] sm:$0xff]
      %v7795 = vld [vmem:[#allocation3 + $0x18] sm:$0xff]
      %v7796 = vld [vmem:[#allocation3 + $0x20] sm:$0xff]
      %v7797 = vld [vmem:[#allocation3 + $0x28] sm:$0xff]
      %v7798 = vld [vmem:[#allocation3 + $0x30] sm:$0xff]
      %v7799 = vld [vmem:[#allocation3 + $0x38] sm:$0xff]
      %v7800 = vld [vmem:[#allocation3 + $0x40] sm:$0xff]
      %v7801 = vld [vmem:[#allocation3 + $0x48] sm:$0xff]
      %v7802 = vld [vmem:[#allocation3 + $0x50] sm:$0xff]
      %v7803 = vld [vmem:[#allocation3 + $0x58] sm:$0xff]
      %v7804 = vld [vmem:[#allocation3 + $0x60] sm:$0xff]
      %v7805 = vld [vmem:[#allocation3 + $0x68] sm:$0xff]
      %v7806 = vld [vmem:[#allocation3 + $0x70] sm:$0xff]
      %v7807 = vld [vmem:[#allocation3 + $0x78] sm:$0xff]
      %v7808 = vld [vmem:[#allocation3 + $0x80] sm:$0x11]
      %s7809 = scalar_lea.vmem %s1, 3072
      %v7810 = vld [vmem:[%s7809] sm:$0xff]
      %v7811 = vld [vmem:[%s7809 + $0x8] sm:$0xff]
      %v7812 = vld [vmem:[%s7809 + $0x10] sm:$0xff]
      %v7813 = vld [vmem:[%s7809 + $0x18] sm:$0xff]
      %v7814 = vld [vmem:[%s7809 + $0x20] sm:$0xff]
      %v7815 = vld [vmem:[%s7809 + $0x28] sm:$0xff]
      %v7816 = vld [vmem:[%s7809 + $0x30] sm:$0xff]
      %v7817 = vld [vmem:[%s7809 + $0x38] sm:$0xff]
      %v7818 = vld [vmem:[%s7809 + $0x40] sm:$0xff]
      %v7819 = vld [vmem:[%s7809 + $0x48] sm:$0xff]
      %v7820 = vld [vmem:[%s7809 + $0x50] sm:$0xff]
      %v7821 = vld [vmem:[%s7809 + $0x58] sm:$0xff]
      %v7822 = vld [vmem:[%s7809 + $0x60] sm:$0xff]
      %v7823 = vld [vmem:[%s7809 + $0x68] sm:$0xff]
      %v7824 = vld [vmem:[%s7809 + $0x70] sm:$0xff]
      %v7825 = vld [vmem:[%s7809 + $0x78] sm:$0xff]
      %v7826 = vld [vmem:[%s7809 + $0x80] sm:$0xff]
      %v7827 = vld [vmem:[%s7809 + $0x88] sm:$0xff]
      %v7828 = vld [vmem:[%s7809 + $0x90] sm:$0xff]
      %v7829 = vld [vmem:[%s7809 + $0x98] sm:$0xff]
      %v7830 = vld [vmem:[%s7809 + $0xa0] sm:$0xff]
      %v7831 = vld [vmem:[%s7809 + $0xa8] sm:$0xff]
      %v7832 = vld [vmem:[%s7809 + $0xb0] sm:$0xff]
      %v7833 = vld [vmem:[%s7809 + $0xb8] sm:$0xff]
      %v7834 = vld [vmem:[%s7809 + $0xc0] sm:$0xff]
      %v7835 = vld [vmem:[%s7809 + $0xc8] sm:$0xff]
      %v7836 = vld [vmem:[%s7809 + $0xd0] sm:$0xff]
      %v7837 = vld [vmem:[%s7809 + $0xd8] sm:$0xff]
      %v7838 = vld [vmem:[%s7809 + $0xe0] sm:$0xff]
      %v7839 = vld [vmem:[%s7809 + $0xe8] sm:$0xff]
      %v7840 = vld [vmem:[%s7809 + $0xf0] sm:$0xff]
      %v7841 = vld [vmem:[%s7809 + $0xf8] sm:$0xff]
      %v7842 = vld [vmem:[#allocation3 + $0x80] sm:$0xff]
      %v7843 = vld [vmem:[#allocation3 + $0x88] sm:$0x33]
      %s7844 = scalar_lea.vmem %s1, 3328
      %v7845 = vld [vmem:[%s7844] sm:$0xff]
      %v7846 = vld [vmem:[%s7844 + $0x8] sm:$0xff]
      %v7847 = vld [vmem:[%s7844 + $0x10] sm:$0xff]
      %v7848 = vld [vmem:[%s7844 + $0x18] sm:$0xff]
      %v7849 = vld [vmem:[%s7844 + $0x20] sm:$0xff]
      %v7850 = vld [vmem:[%s7844 + $0x28] sm:$0xff]
      %v7851 = vld [vmem:[%s7844 + $0x30] sm:$0xff]
      %v7852 = vld [vmem:[%s7844 + $0x38] sm:$0xff]
      %v7853 = vld [vmem:[%s7844 + $0x40] sm:$0xff]
      %v7854 = vld [vmem:[%s7844 + $0x48] sm:$0xff]
      %v7855 = vld [vmem:[%s7844 + $0x50] sm:$0xff]
      %v7856 = vld [vmem:[%s7844 + $0x58] sm:$0xff]
      %v7857 = vld [vmem:[%s7844 + $0x60] sm:$0xff]
      %v7858 = vld [vmem:[%s7844 + $0x68] sm:$0xff]
      %v7859 = vld [vmem:[%s7844 + $0x70] sm:$0xff]
      %v7860 = vld [vmem:[%s7844 + $0x78] sm:$0xff]
      %v7861 = vld [vmem:[%s7844 + $0x80] sm:$0xff]
      %v7862 = vld [vmem:[%s7844 + $0x88] sm:$0xff]
      %v7863 = vld [vmem:[%s7844 + $0x90] sm:$0xff]
      %v7864 = vld [vmem:[%s7844 + $0x98] sm:$0xff]
      %v7865 = vld [vmem:[%s7844 + $0xa0] sm:$0xff]
      %v7866 = vld [vmem:[%s7844 + $0xa8] sm:$0xff]
      %v7867 = vld [vmem:[%s7844 + $0xb0] sm:$0xff]
      %v7868 = vld [vmem:[%s7844 + $0xb8] sm:$0xff]
      %v7869 = vld [vmem:[%s7844 + $0xc0] sm:$0xff]
      %v7870 = vld [vmem:[%s7844 + $0xc8] sm:$0xff]
      %v7871 = vld [vmem:[%s7844 + $0xd0] sm:$0xff]
      %v7872 = vld [vmem:[%s7844 + $0xd8] sm:$0xff]
      %v7873 = vld [vmem:[%s7844 + $0xe0] sm:$0xff]
      %v7874 = vld [vmem:[%s7844 + $0xe8] sm:$0xff]
      %v7875 = vld [vmem:[%s7844 + $0xf0] sm:$0xff]
      %v7876 = vld [vmem:[%s7844 + $0xf8] sm:$0xff]
      %v7894 = vunpack.c.l.b16 %v7793
      %v7895 = vunpack.c.h.b16 %v7793
      %v7896 = vunpack.c.l.b16 %v7794
      %v7897 = vunpack.c.h.b16 %v7794
      %v7898 = vunpack.c.l.b16 %v7795
      %v7899 = vunpack.c.h.b16 %v7795
      %v7900 = vunpack.c.l.b16 %v7796
      %v7901 = vunpack.c.h.b16 %v7796
      %v7902 = vunpack.c.l.b16 %v7797
      %v7903 = vunpack.c.h.b16 %v7797
      %v7904 = vunpack.c.l.b16 %v7798
      %v7905 = vunpack.c.h.b16 %v7798
      %v7906 = vunpack.c.l.b16 %v7799
      %v7907 = vunpack.c.h.b16 %v7799
      %v7908 = vunpack.c.l.b16 %v7800
      %v7909 = vunpack.c.h.b16 %v7800
      %v7910 = vunpack.c.l.b16 %v7801
      %v7911 = vunpack.c.h.b16 %v7801
      %v7912 = vunpack.c.l.b16 %v7802
      %v7913 = vunpack.c.h.b16 %v7802
      %v7914 = vunpack.c.l.b16 %v7803
      %v7915 = vunpack.c.h.b16 %v7803
      %v7916 = vunpack.c.l.b16 %v7804
      %v7917 = vunpack.c.h.b16 %v7804
      %v7918 = vunpack.c.l.b16 %v7805
      %v7919 = vunpack.c.h.b16 %v7805
      %v7920 = vunpack.c.l.b16 %v7806
      %v7921 = vunpack.c.h.b16 %v7806
      %v7922 = vunpack.c.l.b16 %v7807
      %v7923 = vunpack.c.h.b16 %v7807
      %v7924 = vunpack.c.l.b16 %v7842
      %v7925 = vunpack.c.h.b16 %v7842
      %v7926 = vunpack.c.l.b16 %v7843
      %v7927 = vunpack.c.h.b16 %v7843
      %v7928 = vpack.c.b16 %v7896, %v7894
      %v7929 = vpack.c.b16 %v7897, %v7895
      %v7930 = vpack.c.b16 %v7900, %v7898
      %v7931 = vpack.c.b16 %v7901, %v7899
      %v7932 = vpack.c.b16 %v7904, %v7902
      %v7933 = vpack.c.b16 %v7905, %v7903
      %v7934 = vpack.c.b16 %v7908, %v7906
      %v7935 = vpack.c.b16 %v7909, %v7907
      %v7936 = vpack.c.b16 %v7912, %v7910
      %v7937 = vpack.c.b16 %v7913, %v7911
      %v7938 = vpack.c.b16 %v7916, %v7914
      %v7939 = vpack.c.b16 %v7917, %v7915
      %v7940 = vpack.c.b16 %v7920, %v7918
      %v7941 = vpack.c.b16 %v7921, %v7919
      %v7942 = vpack.c.b16 %v7924, %v7922
      %v7943 = vpack.c.b16 %v7925, %v7923
      %v7944 = vpack.c.b16 %v7926, %v7926
      %v7945 = vpack.c.b16 %v7927, %v7927
      %v7947 = vshrl.u32 %v7928, 16
      %v7949 = vshll.u32 %v7928, 16
      %v7951 = vrot.slane %v7949, 1
      %v7952 = vor.u32 %v7947, %v7951
      %v7954 = vshll.u32 %v7930, 16
      %v7956 = vrot.slane %v7954, 1
      %v7957 = vsel %vm392, %v7952, %v7956
      %v7959 = vshrl.u32 %v7929, 16
      %v7961 = vshll.u32 %v7929, 16
      %v7963 = vrot.slane %v7961, 1
      %v7964 = vor.u32 %v7959, %v7963
      %v7966 = vshll.u32 %v7931, 16
      %v7968 = vrot.slane %v7966, 1
      %v7969 = vsel %vm392, %v7964, %v7968
      %v7970 = vshrl.u32 %v7930, 16
      %v7972 = vor.u32 %v7970, %v7956
      %v7974 = vshll.u32 %v7932, 16
      %v7976 = vrot.slane %v7974, 1
      %v7977 = vsel %vm392, %v7972, %v7976
      %v7978 = vshrl.u32 %v7931, 16
      %v7980 = vor.u32 %v7978, %v7968
      %v7982 = vshll.u32 %v7933, 16
      %v7984 = vrot.slane %v7982, 1
      %v7985 = vsel %vm392, %v7980, %v7984
      %v7986 = vshrl.u32 %v7932, 16
      %v7988 = vor.u32 %v7986, %v7976
      %v7990 = vshll.u32 %v7934, 16
      %v7992 = vrot.slane %v7990, 1
      %v7993 = vsel %vm392, %v7988, %v7992
      %v7994 = vshrl.u32 %v7933, 16
      %v7996 = vor.u32 %v7994, %v7984
      %v7998 = vshll.u32 %v7935, 16
      %v8000 = vrot.slane %v7998, 1
      %v8001 = vsel %vm392, %v7996, %v8000
      %v8002 = vshrl.u32 %v7934, 16
      %v8004 = vor.u32 %v8002, %v7992
      %v8006 = vshll.u32 %v7936, 16
      %v8008 = vrot.slane %v8006, 1
      %v8009 = vsel %vm392, %v8004, %v8008
      %v8010 = vshrl.u32 %v7935, 16
      %v8012 = vor.u32 %v8010, %v8000
      %v8014 = vshll.u32 %v7937, 16
      %v8016 = vrot.slane %v8014, 1
      %v8017 = vsel %vm392, %v8012, %v8016
      %v8018 = vshrl.u32 %v7936, 16
      %v8020 = vor.u32 %v8018, %v8008
      %v8022 = vshll.u32 %v7938, 16
      %v8024 = vrot.slane %v8022, 1
      %v8025 = vsel %vm392, %v8020, %v8024
      %v8026 = vshrl.u32 %v7937, 16
      %v8028 = vor.u32 %v8026, %v8016
      %v8030 = vshll.u32 %v7939, 16
      %v8032 = vrot.slane %v8030, 1
      %v8033 = vsel %vm392, %v8028, %v8032
      %v8034 = vshrl.u32 %v7938, 16
      %v8036 = vor.u32 %v8034, %v8024
      %v8038 = vshll.u32 %v7940, 16
      %v8040 = vrot.slane %v8038, 1
      %v8041 = vsel %vm392, %v8036, %v8040
      %v8042 = vshrl.u32 %v7939, 16
      %v8044 = vor.u32 %v8042, %v8032
      %v8046 = vshll.u32 %v7941, 16
      %v8048 = vrot.slane %v8046, 1
      %v8049 = vsel %vm392, %v8044, %v8048
      %v8050 = vshrl.u32 %v7940, 16
      %v8052 = vor.u32 %v8050, %v8040
      %v8054 = vshll.u32 %v7942, 16
      %v8056 = vrot.slane %v8054, 1
      %v8057 = vsel %vm392, %v8052, %v8056
      %v8058 = vshrl.u32 %v7941, 16
      %v8060 = vor.u32 %v8058, %v8048
      %v8062 = vshll.u32 %v7943, 16
      %v8064 = vrot.slane %v8062, 1
      %v8065 = vsel %vm392, %v8060, %v8064
      %v8066 = vshrl.u32 %v7942, 16
      %v8068 = vor.u32 %v8066, %v8056
      %v8070 = vshll.u32 %v7944, 16
      %v8072 = vrot.slane %v8070, 1
      %v8073 = vsel %vm392, %v8068, %v8072
      %v8074 = vshrl.u32 %v7943, 16
      %v8076 = vor.u32 %v8074, %v8064
      %v8078 = vshll.u32 %v7945, 16
      %v8080 = vrot.slane %v8078, 1
      %v8081 = vsel %vm392, %v8076, %v8080
      %v8082 = vshrl.u32 %v7944, 16
      %v8084 = vor.u32 %v8082, %v8072
      %v8085 = vshrl.u32 %v7945, 16
      %v8087 = vor.u32 %v8085, %v8080
      %v8138 = vunpack.c.l.b16 %v7845
      %v8139 = vunpack.c.h.b16 %v7845
      %v8140 = vunpack.c.l.b16 %v7846
      %v8141 = vunpack.c.h.b16 %v7846
      %v8142 = vunpack.c.l.b16 %v7847
      %v8143 = vunpack.c.h.b16 %v7847
      %v8144 = vunpack.c.l.b16 %v7848
      %v8145 = vunpack.c.h.b16 %v7848
      %v8146 = vunpack.c.l.b16 %v7849
      %v8147 = vunpack.c.h.b16 %v7849
      %v8148 = vunpack.c.l.b16 %v7850
      %v8149 = vunpack.c.h.b16 %v7850
      %v8150 = vunpack.c.l.b16 %v7851
      %v8151 = vunpack.c.h.b16 %v7851
      %v8152 = vunpack.c.l.b16 %v7852
      %v8153 = vunpack.c.h.b16 %v7852
      %v8154 = vunpack.c.l.b16 %v7853
      %v8155 = vunpack.c.h.b16 %v7853
      %v8156 = vunpack.c.l.b16 %v7854
      %v8157 = vunpack.c.h.b16 %v7854
      %v8158 = vunpack.c.l.b16 %v7855
      %v8159 = vunpack.c.h.b16 %v7855
      %v8160 = vunpack.c.l.b16 %v7856
      %v8161 = vunpack.c.h.b16 %v7856
      %v8162 = vunpack.c.l.b16 %v7857
      %v8163 = vunpack.c.h.b16 %v7857
      %v8164 = vunpack.c.l.b16 %v7858
      %v8165 = vunpack.c.h.b16 %v7858
      %v8166 = vunpack.c.l.b16 %v7859
      %v8167 = vunpack.c.h.b16 %v7859
      %v8168 = vunpack.c.l.b16 %v7860
      %v8169 = vunpack.c.h.b16 %v7860
      %v8170 = vunpack.c.l.b16 %v7861
      %v8171 = vunpack.c.h.b16 %v7861
      %v8172 = vunpack.c.l.b16 %v7862
      %v8173 = vunpack.c.h.b16 %v7862
      %v8174 = vunpack.c.l.b16 %v7863
      %v8175 = vunpack.c.h.b16 %v7863
      %v8176 = vunpack.c.l.b16 %v7864
      %v8177 = vunpack.c.h.b16 %v7864
      %v8178 = vunpack.c.l.b16 %v7865
      %v8179 = vunpack.c.h.b16 %v7865
      %v8180 = vunpack.c.l.b16 %v7866
      %v8181 = vunpack.c.h.b16 %v7866
      %v8182 = vunpack.c.l.b16 %v7867
      %v8183 = vunpack.c.h.b16 %v7867
      %v8184 = vunpack.c.l.b16 %v7868
      %v8185 = vunpack.c.h.b16 %v7868
      %v8186 = vunpack.c.l.b16 %v7869
      %v8187 = vunpack.c.h.b16 %v7869
      %v8188 = vunpack.c.l.b16 %v7870
      %v8189 = vunpack.c.h.b16 %v7870
      %v8190 = vunpack.c.l.b16 %v7871
      %v8191 = vunpack.c.h.b16 %v7871
      %v8192 = vunpack.c.l.b16 %v7872
      %v8193 = vunpack.c.h.b16 %v7872
      %v8194 = vunpack.c.l.b16 %v7873
      %v8195 = vunpack.c.h.b16 %v7873
      %v8196 = vunpack.c.l.b16 %v7874
      %v8197 = vunpack.c.h.b16 %v7874
      %v8198 = vunpack.c.l.b16 %v7875
      %v8199 = vunpack.c.h.b16 %v7875
      %v8200 = vunpack.c.l.b16 %v7876
      %v8201 = vunpack.c.h.b16 %v7876
      %v8202 = vpack.c.b16 %v8140, %v8138
      %v8203 = vpack.c.b16 %v8141, %v8139
      %v8204 = vpack.c.b16 %v8144, %v8142
      %v8205 = vpack.c.b16 %v8145, %v8143
      %v8206 = vpack.c.b16 %v8148, %v8146
      %v8207 = vpack.c.b16 %v8149, %v8147
      %v8208 = vpack.c.b16 %v8152, %v8150
      %v8209 = vpack.c.b16 %v8153, %v8151
      %v8210 = vpack.c.b16 %v8156, %v8154
      %v8211 = vpack.c.b16 %v8157, %v8155
      %v8212 = vpack.c.b16 %v8160, %v8158
      %v8213 = vpack.c.b16 %v8161, %v8159
      %v8214 = vpack.c.b16 %v8164, %v8162
      %v8215 = vpack.c.b16 %v8165, %v8163
      %v8216 = vpack.c.b16 %v8168, %v8166
      %v8217 = vpack.c.b16 %v8169, %v8167
      %v8218 = vpack.c.b16 %v8172, %v8170
      %v8219 = vpack.c.b16 %v8173, %v8171
      %v8220 = vpack.c.b16 %v8176, %v8174
      %v8221 = vpack.c.b16 %v8177, %v8175
      %v8222 = vpack.c.b16 %v8180, %v8178
      %v8223 = vpack.c.b16 %v8181, %v8179
      %v8224 = vpack.c.b16 %v8184, %v8182
      %v8225 = vpack.c.b16 %v8185, %v8183
      %v8226 = vpack.c.b16 %v8188, %v8186
      %v8227 = vpack.c.b16 %v8189, %v8187
      %v8228 = vpack.c.b16 %v8192, %v8190
      %v8229 = vpack.c.b16 %v8193, %v8191
      %v8230 = vpack.c.b16 %v8196, %v8194
      %v8231 = vpack.c.b16 %v8197, %v8195
      %v8232 = vpack.c.b16 %v8200, %v8198
      %v8233 = vpack.c.b16 %v8201, %v8199
      %8266 = vmatprep.subr.bf16.mxu0 %v8203
      %8267 = vmatpush1.bf16.msra.mxu0 %v8202
      %8268 = vmatprep.subr.bf16.mxu0 %v8205
      %8269 = vmatpush1.bf16.msra.mxu0 %v8204
      %8270 = vmatprep.subr.bf16.mxu0 %v8207
      %8271 = vmatpush1.bf16.msra.mxu0 %v8206
      %8272 = vmatprep.subr.bf16.mxu0 %v8209
      %8273 = vmatpush1.bf16.msra.mxu0 %v8208
      %8274 = vmatprep.subr.bf16.mxu0 %v8211
      %8275 = vmatpush1.bf16.msra.mxu0 %v8210
      %8276 = vmatprep.subr.bf16.mxu0 %v8213
      %8277 = vmatpush1.bf16.msra.mxu0 %v8212
      %8278 = vmatprep.subr.bf16.mxu0 %v8215
      %8279 = vmatpush1.bf16.msra.mxu0 %v8214
      %8280 = vmatprep.subr.bf16.mxu0 %v8217
      %8281 = vmatpush1.bf16.msra.mxu0 %v8216
      %8282 = vmatprep.subr.bf16.mxu0 %v8219
      %8283 = vmatpush1.bf16.msra.mxu0 %v8218
      %8284 = vmatprep.subr.bf16.mxu0 %v8221
      %8285 = vmatpush1.bf16.msra.mxu0 %v8220
      %8286 = vmatprep.subr.bf16.mxu0 %v8223
      %8287 = vmatpush1.bf16.msra.mxu0 %v8222
      %8288 = vmatprep.subr.bf16.mxu0 %v8225
      %8289 = vmatpush1.bf16.msra.mxu0 %v8224
      %8290 = vmatprep.subr.bf16.mxu0 %v8227
      %8291 = vmatpush1.bf16.msra.mxu0 %v8226
      %8292 = vmatprep.subr.bf16.mxu0 %v8229
      %8293 = vmatpush1.bf16.msra.mxu0 %v8228
      %8294 = vmatprep.subr.bf16.mxu0 %v8231
      %8295 = vmatpush1.bf16.msra.mxu0 %v8230
      %8296 = vmatprep.subr.bf16.mxu0 %v8233
      %8297 = vmatpush1.bf16.msra.mxu0 %v8232
      %8298 = vmatprep.mubr.bf16.mxu0 %v7969
      %8299 = vmatmul.mubr.bf16.gmra.mrb[0].mxu0 %v7957
      %v8300 = vpop.f32.mrb[0].mxu0
      %v8301 = vadd.f32 0.0, %v8300
      %v8302 = vpop.f32.mrb[0].mxu0
      %v8303 = vadd.f32 0.0, %v8302
      %v8304 = vpop.f32.mrb[0].mxu0
      %v8305 = vadd.f32 0.0, %v8304
      %v8306 = vpop.f32.mrb[0].mxu0
      %v8307 = vadd.f32 0.0, %v8306
      %8308 = vmatprep.mubr.bf16.mxu0 %v7985
      %8309 = vmatmul.mubr.bf16.gmra.mrb[0].mxu0 %v7977
      %v8310 = vpop.f32.mrb[0].mxu0
      %v8311 = vadd.f32 0.0, %v8310
      %v8312 = vpop.f32.mrb[0].mxu0
      %v8313 = vadd.f32 0.0, %v8312
      %v8314 = vpop.f32.mrb[0].mxu0
      %v8315 = vadd.f32 0.0, %v8314
      %v8316 = vpop.f32.mrb[0].mxu0
      %v8317 = vadd.f32 0.0, %v8316
      %8318 = vmatprep.mubr.bf16.mxu0 %v8001
      %8319 = vmatmul.mubr.bf16.gmra.mrb[0].mxu0 %v7993
      %v8320 = vpop.f32.mrb[0].mxu0
      %v8321 = vadd.f32 0.0, %v8320
      %v8322 = vpop.f32.mrb[0].mxu0
      %v8323 = vadd.f32 0.0, %v8322
      %v8324 = vpop.f32.mrb[0].mxu0
      %v8325 = vadd.f32 0.0, %v8324
      %v8326 = vpop.f32.mrb[0].mxu0
      %v8327 = vadd.f32 0.0, %v8326
      %8328 = vmatprep.mubr.bf16.mxu0 %v8017
      %8329 = vmatmul.mubr.bf16.gmra.mrb[0].mxu0 %v8009
      %v8330 = vpop.f32.mrb[0].mxu0
      %v8331 = vadd.f32 0.0, %v8330
      %v8332 = vpop.f32.mrb[0].mxu0
      %v8333 = vadd.f32 0.0, %v8332
      %v8334 = vpop.f32.mrb[0].mxu0
      %v8335 = vadd.f32 0.0, %v8334
      %v8336 = vpop.f32.mrb[0].mxu0
      %v8337 = vadd.f32 0.0, %v8336
      %8338 = vmatprep.mubr.bf16.mxu0 %v8033
      %8339 = vmatmul.mubr.bf16.gmra.mrb[0].mxu0 %v8025
      %v8340 = vpop.f32.mrb[0].mxu0
      %v8341 = vadd.f32 0.0, %v8340
      %v8342 = vpop.f32.mrb[0].mxu0
      %v8343 = vadd.f32 0.0, %v8342
      %v8344 = vpop.f32.mrb[0].mxu0
      %v8345 = vadd.f32 0.0, %v8344
      %v8346 = vpop.f32.mrb[0].mxu0
      %v8347 = vadd.f32 0.0, %v8346
      %8348 = vmatprep.mubr.bf16.mxu0 %v8049
      %8349 = vmatmul.mubr.bf16.gmra.mrb[0].mxu0 %v8041
      %v8350 = vpop.f32.mrb[0].mxu0
      %v8351 = vadd.f32 0.0, %v8350
      %v8352 = vpop.f32.mrb[0].mxu0
      %v8353 = vadd.f32 0.0, %v8352
      %v8354 = vpop.f32.mrb[0].mxu0
      %v8355 = vadd.f32 0.0, %v8354
      %v8356 = vpop.f32.mrb[0].mxu0
      %v8357 = vadd.f32 0.0, %v8356
      %8358 = vmatprep.mubr.bf16.mxu0 %v8065
      %8359 = vmatmul.mubr.bf16.gmra.mrb[0].mxu0 %v8057
      %v8360 = vpop.f32.mrb[0].mxu0
      %v8361 = vadd.f32 0.0, %v8360
      %v8362 = vpop.f32.mrb[0].mxu0
      %v8363 = vadd.f32 0.0, %v8362
      %v8364 = vpop.f32.mrb[0].mxu0
      %v8365 = vadd.f32 0.0, %v8364
      %v8366 = vpop.f32.mrb[0].mxu0
      %v8367 = vadd.f32 0.0, %v8366
      %8368 = vmatprep.mubr.bf16.mxu0 %v8081
      %8369 = vmatmul.mubr.bf16.gmra.mrb[0].mxu0 %v8073
      %v8370 = vpop.f32.mrb[0].mxu0
      %v8371 = vadd.f32 0.0, %v8370
      %v8372 = vpop.f32.mrb[0].mxu0
      %v8373 = vadd.f32 0.0, %v8372
      %v8374 = vpop.f32.mrb[0].mxu0
      %v8375 = vadd.f32 0.0, %v8374
      %v8376 = vpop.f32.mrb[0].mxu0
      %v8377 = vadd.f32 0.0, %v8376
      %8378 = vmatprep.mubr.bf16.mxu0 %v8087
      %8379 = vmatmul.mubr.bf16.gmra.mrb[0].mxu0 %v8084
      %v8380 = vpop.f32.mrb[0].mxu0
      %v8381 = vadd.f32 0.0, %v8380
      %v8382 = vpop.f32.mrb[0].mxu0
      %v8383 = vadd.f32 0.0, %v8382
      %v8384 = vpop.f32.mrb[0].mxu0
      %v8385 = vpop.f32.mrb[0].mxu0
      %8386 = vdwg.mxu0
      %v8389 = vunpack.c.l.b16 %v7792
      %v8390 = vunpack.c.h.b16 %v7792
      %v8391 = vunpack.c.l.b16 %v7808
      %v8392 = vunpack.c.h.b16 %v7808
      %v8393 = vpack.c.b16 %v7894, %v8389
      %v8394 = vpack.c.b16 %v7895, %v8390
      %v8395 = vpack.c.b16 %v7898, %v7896
      %v8396 = vpack.c.b16 %v7899, %v7897
      %v8397 = vpack.c.b16 %v7902, %v7900
      %v8398 = vpack.c.b16 %v7903, %v7901
      %v8399 = vpack.c.b16 %v7906, %v7904
      %v8400 = vpack.c.b16 %v7907, %v7905
      %v8401 = vpack.c.b16 %v7910, %v7908
      %v8402 = vpack.c.b16 %v7911, %v7909
      %v8403 = vpack.c.b16 %v7914, %v7912
      %v8404 = vpack.c.b16 %v7915, %v7913
      %v8405 = vpack.c.b16 %v7918, %v7916
      %v8406 = vpack.c.b16 %v7919, %v7917
      %v8407 = vpack.c.b16 %v7922, %v7920
      %v8408 = vpack.c.b16 %v7923, %v7921
      %v8409 = vpack.c.b16 %v8391, %v8391
      %v8410 = vpack.c.b16 %v8392, %v8392
      %v8461 = vunpack.c.l.b16 %v7810
      %v8462 = vunpack.c.h.b16 %v7810
      %v8463 = vunpack.c.l.b16 %v7811
      %v8464 = vunpack.c.h.b16 %v7811
      %v8465 = vunpack.c.l.b16 %v7812
      %v8466 = vunpack.c.h.b16 %v7812
      %v8467 = vunpack.c.l.b16 %v7813
      %v8468 = vunpack.c.h.b16 %v7813
      %v8469 = vunpack.c.l.b16 %v7814
      %v8470 = vunpack.c.h.b16 %v7814
      %v8471 = vunpack.c.l.b16 %v7815
      %v8472 = vunpack.c.h.b16 %v7815
      %v8473 = vunpack.c.l.b16 %v7816
      %v8474 = vunpack.c.h.b16 %v7816
      %v8475 = vunpack.c.l.b16 %v7817
      %v8476 = vunpack.c.h.b16 %v7817
      %v8477 = vunpack.c.l.b16 %v7818
      %v8478 = vunpack.c.h.b16 %v7818
      %v8479 = vunpack.c.l.b16 %v7819
      %v8480 = vunpack.c.h.b16 %v7819
      %v8481 = vunpack.c.l.b16 %v7820
      %v8482 = vunpack.c.h.b16 %v7820
      %v8483 = vunpack.c.l.b16 %v7821
      %v8484 = vunpack.c.h.b16 %v7821
      %v8485 = vunpack.c.l.b16 %v7822
      %v8486 = vunpack.c.h.b16 %v7822
      %v8487 = vunpack.c.l.b16 %v7823
      %v8488 = vunpack.c.h.b16 %v7823
      %v8489 = vunpack.c.l.b16 %v7824
      %v8490 = vunpack.c.h.b16 %v7824
      %v8491 = vunpack.c.l.b16 %v7825
      %v8492 = vunpack.c.h.b16 %v7825
      %v8493 = vunpack.c.l.b16 %v7826
      %v8494 = vunpack.c.h.b16 %v7826
      %v8495 = vunpack.c.l.b16 %v7827
      %v8496 = vunpack.c.h.b16 %v7827
      %v8497 = vunpack.c.l.b16 %v7828
      %v8498 = vunpack.c.h.b16 %v7828
      %v8499 = vunpack.c.l.b16 %v7829
      %v8500 = vunpack.c.h.b16 %v7829
      %v8501 = vunpack.c.l.b16 %v7830
      %v8502 = vunpack.c.h.b16 %v7830
      %v8503 = vunpack.c.l.b16 %v7831
      %v8504 = vunpack.c.h.b16 %v7831
      %v8505 = vunpack.c.l.b16 %v7832
      %v8506 = vunpack.c.h.b16 %v7832
      %v8507 = vunpack.c.l.b16 %v7833
      %v8508 = vunpack.c.h.b16 %v7833
      %v8509 = vunpack.c.l.b16 %v7834
      %v8510 = vunpack.c.h.b16 %v7834
      %v8511 = vunpack.c.l.b16 %v7835
      %v8512 = vunpack.c.h.b16 %v7835
      %v8513 = vunpack.c.l.b16 %v7836
      %v8514 = vunpack.c.h.b16 %v7836
      %v8515 = vunpack.c.l.b16 %v7837
      %v8516 = vunpack.c.h.b16 %v7837
      %v8517 = vunpack.c.l.b16 %v7838
      %v8518 = vunpack.c.h.b16 %v7838
      %v8519 = vunpack.c.l.b16 %v7839
      %v8520 = vunpack.c.h.b16 %v7839
      %v8521 = vunpack.c.l.b16 %v7840
      %v8522 = vunpack.c.h.b16 %v7840
      %v8523 = vunpack.c.l.b16 %v7841
      %v8524 = vunpack.c.h.b16 %v7841
      %v8525 = vpack.c.b16 %v8463, %v8461
      %v8526 = vpack.c.b16 %v8464, %v8462
      %v8527 = vpack.c.b16 %v8467, %v8465
      %v8528 = vpack.c.b16 %v8468, %v8466
      %v8529 = vpack.c.b16 %v8471, %v8469
      %v8530 = vpack.c.b16 %v8472, %v8470
      %v8531 = vpack.c.b16 %v8475, %v8473
      %v8532 = vpack.c.b16 %v8476, %v8474
      %v8533 = vpack.c.b16 %v8479, %v8477
      %v8534 = vpack.c.b16 %v8480, %v8478
      %v8535 = vpack.c.b16 %v8483, %v8481
      %v8536 = vpack.c.b16 %v8484, %v8482
      %v8537 = vpack.c.b16 %v8487, %v8485
      %v8538 = vpack.c.b16 %v8488, %v8486
      %v8539 = vpack.c.b16 %v8491, %v8489
      %v8540 = vpack.c.b16 %v8492, %v8490
      %v8541 = vpack.c.b16 %v8495, %v8493
      %v8542 = vpack.c.b16 %v8496, %v8494
      %v8543 = vpack.c.b16 %v8499, %v8497
      %v8544 = vpack.c.b16 %v8500, %v8498
      %v8545 = vpack.c.b16 %v8503, %v8501
      %v8546 = vpack.c.b16 %v8504, %v8502
      %v8547 = vpack.c.b16 %v8507, %v8505
      %v8548 = vpack.c.b16 %v8508, %v8506
      %v8549 = vpack.c.b16 %v8511, %v8509
      %v8550 = vpack.c.b16 %v8512, %v8510
      %v8551 = vpack.c.b16 %v8515, %v8513
      %v8552 = vpack.c.b16 %v8516, %v8514
      %v8553 = vpack.c.b16 %v8519, %v8517
      %v8554 = vpack.c.b16 %v8520, %v8518
      %v8555 = vpack.c.b16 %v8523, %v8521
      %v8556 = vpack.c.b16 %v8524, %v8522
      %8589 = vmatprep.subr.bf16.mxu0 %v8526
      %8590 = vmatpush1.bf16.msra.mxu0 %v8525
      %8591 = vmatprep.subr.bf16.mxu0 %v8528
      %8592 = vmatpush1.bf16.msra.mxu0 %v8527
      %8593 = vmatprep.subr.bf16.mxu0 %v8530
      %8594 = vmatpush1.bf16.msra.mxu0 %v8529
      %8595 = vmatprep.subr.bf16.mxu0 %v8532
      %8596 = vmatpush1.bf16.msra.mxu0 %v8531
      %8597 = vmatprep.subr.bf16.mxu0 %v8534
      %8598 = vmatpush1.bf16.msra.mxu0 %v8533
      %8599 = vmatprep.subr.bf16.mxu0 %v8536
      %8600 = vmatpush1.bf16.msra.mxu0 %v8535
      %8601 = vmatprep.subr.bf16.mxu0 %v8538
      %8602 = vmatpush1.bf16.msra.mxu0 %v8537
      %8603 = vmatprep.subr.bf16.mxu0 %v8540
      %8604 = vmatpush1.bf16.msra.mxu0 %v8539
      %8605 = vmatprep.subr.bf16.mxu0 %v8542
      %8606 = vmatpush1.bf16.msra.mxu0 %v8541
      %8607 = vmatprep.subr.bf16.mxu0 %v8544
      %8608 = vmatpush1.bf16.msra.mxu0 %v8543
      %8609 = vmatprep.subr.bf16.mxu0 %v8546
      %8610 = vmatpush1.bf16.msra.mxu0 %v8545
      %8611 = vmatprep.subr.bf16.mxu0 %v8548
      %8612 = vmatpush1.bf16.msra.mxu0 %v8547
      %8613 = vmatprep.subr.bf16.mxu0 %v8550
      %8614 = vmatpush1.bf16.msra.mxu0 %v8549
      %8615 = vmatprep.subr.bf16.mxu0 %v8552
      %8616 = vmatpush1.bf16.msra.mxu0 %v8551
      %8617 = vmatprep.subr.bf16.mxu0 %v8554
      %8618 = vmatpush1.bf16.msra.mxu0 %v8553
      %8619 = vmatprep.subr.bf16.mxu0 %v8556
      %8620 = vmatpush1.bf16.msra.mxu0 %v8555
      %8621 = vmatprep.mubr.bf16.mxu0 %v8394
      %8622 = vmatmul.mubr.bf16.gmra.mrb[0].mxu0 %v8393
      %v8623 = vpop.f32.mrb[0].mxu0
      %v8624 = vadd.f32 %v8301, %v8623
      %v8625 = vpop.f32.mrb[0].mxu0
      %v8626 = vadd.f32 %v8303, %v8625
      %v8627 = vpop.f32.mrb[0].mxu0
      %v8628 = vadd.f32 %v8305, %v8627
      %v8629 = vpop.f32.mrb[0].mxu0
      %v8630 = vadd.f32 %v8307, %v8629
      %8631 = vmatprep.mubr.bf16.mxu0 %v8396
      %8632 = vmatmul.mubr.bf16.gmra.mrb[0].mxu0 %v8395
      %v8633 = vpop.f32.mrb[0].mxu0
      %v8634 = vadd.f32 %v8311, %v8633
      %v8635 = vpop.f32.mrb[0].mxu0
      %v8636 = vadd.f32 %v8313, %v8635
      %v8637 = vpop.f32.mrb[0].mxu0
      %v8638 = vadd.f32 %v8315, %v8637
      %v8639 = vpop.f32.mrb[0].mxu0
      %v8640 = vadd.f32 %v8317, %v8639
      %8641 = vmatprep.mubr.bf16.mxu0 %v8398
      %8642 = vmatmul.mubr.bf16.gmra.mrb[0].mxu0 %v8397
      %v8643 = vpop.f32.mrb[0].mxu0
      %v8644 = vadd.f32 %v8321, %v8643
      %v8645 = vpop.f32.mrb[0].mxu0
      %v8646 = vadd.f32 %v8323, %v8645
      %v8647 = vpop.f32.mrb[0].mxu0
      %v8648 = vadd.f32 %v8325, %v8647
      %v8649 = vpop.f32.mrb[0].mxu0
      %v8650 = vadd.f32 %v8327, %v8649
      %8651 = vmatprep.mubr.bf16.mxu0 %v8400
      %8652 = vmatmul.mubr.bf16.gmra.mrb[0].mxu0 %v8399
      %v8653 = vpop.f32.mrb[0].mxu0
      %v8654 = vadd.f32 %v8331, %v8653
      %v8655 = vpop.f32.mrb[0].mxu0
      %v8656 = vadd.f32 %v8333, %v8655
      %v8657 = vpop.f32.mrb[0].mxu0
      %v8658 = vadd.f32 %v8335, %v8657
      %v8659 = vpop.f32.mrb[0].mxu0
      %v8660 = vadd.f32 %v8337, %v8659
      %8661 = vmatprep.mubr.bf16.mxu0 %v8402
      %8662 = vmatmul.mubr.bf16.gmra.mrb[0].mxu0 %v8401
      %v8663 = vpop.f32.mrb[0].mxu0
      %v8664 = vadd.f32 %v8341, %v8663
      %v8665 = vpop.f32.mrb[0].mxu0
      %v8666 = vadd.f32 %v8343, %v8665
      %v8667 = vpop.f32.mrb[0].mxu0
      %v8668 = vadd.f32 %v8345, %v8667
      %v8669 = vpop.f32.mrb[0].mxu0
      %v8670 = vadd.f32 %v8347, %v8669
      %8671 = vmatprep.mubr.bf16.mxu0 %v8404
      %8672 = vmatmul.mubr.bf16.gmra.mrb[0].mxu0 %v8403
      %v8673 = vpop.f32.mrb[0].mxu0
      %v8674 = vadd.f32 %v8351, %v8673
      %v8675 = vpop.f32.mrb[0].mxu0
      %v8676 = vadd.f32 %v8353, %v8675
      %v8677 = vpop.f32.mrb[0].mxu0
      %v8678 = vadd.f32 %v8355, %v8677
      %v8679 = vpop.f32.mrb[0].mxu0
      %v8680 = vadd.f32 %v8357, %v8679
      %8681 = vmatprep.mubr.bf16.mxu0 %v8406
      %8682 = vmatmul.mubr.bf16.gmra.mrb[0].mxu0 %v8405
      %v8683 = vpop.f32.mrb[0].mxu0
      %v8684 = vadd.f32 %v8361, %v8683
      %v8685 = vpop.f32.mrb[0].mxu0
      %v8686 = vadd.f32 %v8363, %v8685
      %v8687 = vpop.f32.mrb[0].mxu0
      %v8688 = vadd.f32 %v8365, %v8687
      %v8689 = vpop.f32.mrb[0].mxu0
      %v8690 = vadd.f32 %v8367, %v8689
      %8691 = vmatprep.mubr.bf16.mxu0 %v8408
      %8692 = vmatmul.mubr.bf16.gmra.mrb[0].mxu0 %v8407
      %v8693 = vpop.f32.mrb[0].mxu0
      %v8694 = vadd.f32 %v8371, %v8693
      %v8695 = vpop.f32.mrb[0].mxu0
      %v8696 = vadd.f32 %v8373, %v8695
      %v8697 = vpop.f32.mrb[0].mxu0
      %v8698 = vadd.f32 %v8375, %v8697
      %v8699 = vpop.f32.mrb[0].mxu0
      %v8700 = vadd.f32 %v8377, %v8699
      %8701 = vmatprep.mubr.bf16.mxu0 %v8410
      %8702 = vmatmul.mubr.bf16.gmra.mrb[0].mxu0 %v8409
      %v8703 = vpop.f32.mrb[0].mxu0
      %v8704 = vadd.f32 %v8381, %v8703
      %v8705 = vpop.f32.mrb[0].mxu0
      %v8706 = vadd.f32 %v8383, %v8705
      %v8707 = vpop.f32.mrb[0].mxu0
      %v8708 = vpop.f32.mrb[0].mxu0
      %8709 = vdwg.mxu0
      %v8710 = vld [vmem:[#allocation3 + $0x10] sm:$0xee]
      %v8711 = vld [vmem:[#allocation3 + $0x18] sm:$0xff]
      %v8712 = vld [vmem:[#allocation3 + $0x20] sm:$0xff]
      %v8713 = vld [vmem:[#allocation3 + $0x28] sm:$0xff]
      %v8714 = vld [vmem:[#allocation3 + $0x30] sm:$0xff]
      %v8715 = vld [vmem:[#allocation3 + $0x38] sm:$0xff]
      %v8716 = vld [vmem:[#allocation3 + $0x40] sm:$0xff]
      %v8717 = vld [vmem:[#allocation3 + $0x48] sm:$0xff]
      %v8718 = vld [vmem:[#allocation3 + $0x50] sm:$0xff]
      %v8719 = vld [vmem:[#allocation3 + $0x58] sm:$0xff]
      %v8720 = vld [vmem:[#allocation3 + $0x60] sm:$0xff]
      %v8721 = vld [vmem:[#allocation3 + $0x68] sm:$0xff]
      %v8722 = vld [vmem:[#allocation3 + $0x70] sm:$0xff]
      %v8723 = vld [vmem:[#allocation3 + $0x78] sm:$0xff]
      %v8724 = vld [vmem:[#allocation3 + $0x80] sm:$0xff]
      %v8725 = vld [vmem:[#allocation3 + $0x88] sm:$0xff]
      %v8726 = vld [vmem:[#allocation3 + $0x90] sm:$0x33]
      %s8727 = scalar_lea.vmem %s1, 3584
      %v8728 = vld [vmem:[%s8727] sm:$0xff]
      %v8729 = vld [vmem:[%s8727 + $0x8] sm:$0xff]
      %v8730 = vld [vmem:[%s8727 + $0x10] sm:$0xff]
      %v8731 = vld [vmem:[%s8727 + $0x18] sm:$0xff]
      %v8732 = vld [vmem:[%s8727 + $0x20] sm:$0xff]
      %v8733 = vld [vmem:[%s8727 + $0x28] sm:$0xff]
      %v8734 = vld [vmem:[%s8727 + $0x30] sm:$0xff]
      %v8735 = vld [vmem:[%s8727 + $0x38] sm:$0xff]
      %v8736 = vld [vmem:[%s8727 + $0x40] sm:$0xff]
      %v8737 = vld [vmem:[%s8727 + $0x48] sm:$0xff]
      %v8738 = vld [vmem:[%s8727 + $0x50] sm:$0xff]
      %v8739 = vld [vmem:[%s8727 + $0x58] sm:$0xff]
      %v8740 = vld [vmem:[%s8727 + $0x60] sm:$0xff]
      %v8741 = vld [vmem:[%s8727 + $0x68] sm:$0xff]
      %v8742 = vld [vmem:[%s8727 + $0x70] sm:$0xff]
      %v8743 = vld [vmem:[%s8727 + $0x78] sm:$0xff]
      %v8744 = vld [vmem:[%s8727 + $0x80] sm:$0xff]
      %v8745 = vld [vmem:[%s8727 + $0x88] sm:$0xff]
      %v8746 = vld [vmem:[%s8727 + $0x90] sm:$0xff]
      %v8747 = vld [vmem:[%s8727 + $0x98] sm:$0xff]
      %v8748 = vld [vmem:[%s8727 + $0xa0] sm:$0xff]
      %v8749 = vld [vmem:[%s8727 + $0xa8] sm:$0xff]
      %v8750 = vld [vmem:[%s8727 + $0xb0] sm:$0xff]
      %v8751 = vld [vmem:[%s8727 + $0xb8] sm:$0xff]
      %v8752 = vld [vmem:[%s8727 + $0xc0] sm:$0xff]
      %v8753 = vld [vmem:[%s8727 + $0xc8] sm:$0xff]
      %v8754 = vld [vmem:[%s8727 + $0xd0] sm:$0xff]
      %v8755 = vld [vmem:[%s8727 + $0xd8] sm:$0xff]
      %v8756 = vld [vmem:[%s8727 + $0xe0] sm:$0xff]
      %v8757 = vld [vmem:[%s8727 + $0xe8] sm:$0xff]
      %v8758 = vld [vmem:[%s8727 + $0xf0] sm:$0xff]
      %v8759 = vld [vmem:[%s8727 + $0xf8] sm:$0xff]
      %v8777 = vunpack.c.l.b16 %v8710
      %v8778 = vunpack.c.h.b16 %v8710
      %v8779 = vunpack.c.l.b16 %v8711
      %v8780 = vunpack.c.h.b16 %v8711
      %v8781 = vunpack.c.l.b16 %v8712
      %v8782 = vunpack.c.h.b16 %v8712
      %v8783 = vunpack.c.l.b16 %v8713
      %v8784 = vunpack.c.h.b16 %v8713
      %v8785 = vunpack.c.l.b16 %v8714
      %v8786 = vunpack.c.h.b16 %v8714
      %v8787 = vunpack.c.l.b16 %v8715
      %v8788 = vunpack.c.h.b16 %v8715
      %v8789 = vunpack.c.l.b16 %v8716
      %v8790 = vunpack.c.h.b16 %v8716
      %v8791 = vunpack.c.l.b16 %v8717
      %v8792 = vunpack.c.h.b16 %v8717
      %v8793 = vunpack.c.l.b16 %v8718
      %v8794 = vunpack.c.h.b16 %v8718
      %v8795 = vunpack.c.l.b16 %v8719
      %v8796 = vunpack.c.h.b16 %v8719
      %v8797 = vunpack.c.l.b16 %v8720
      %v8798 = vunpack.c.h.b16 %v8720
      %v8799 = vunpack.c.l.b16 %v8721
      %v8800 = vunpack.c.h.b16 %v8721
      %v8801 = vunpack.c.l.b16 %v8722
      %v8802 = vunpack.c.h.b16 %v8722
      %v8803 = vunpack.c.l.b16 %v8723
      %v8804 = vunpack.c.h.b16 %v8723
      %v8805 = vunpack.c.l.b16 %v8724
      %v8806 = vunpack.c.h.b16 %v8724
      %v8807 = vunpack.c.l.b16 %v8725
      %v8808 = vunpack.c.h.b16 %v8725
      %v8809 = vunpack.c.l.b16 %v8726
      %v8810 = vunpack.c.h.b16 %v8726
      %v8811 = vpack.c.b16 %v8779, %v8777
      %v8812 = vpack.c.b16 %v8780, %v8778
      %v8813 = vpack.c.b16 %v8783, %v8781
      %v8814 = vpack.c.b16 %v8784, %v8782
      %v8815 = vpack.c.b16 %v8787, %v8785
      %v8816 = vpack.c.b16 %v8788, %v8786
      %v8817 = vpack.c.b16 %v8791, %v8789
      %v8818 = vpack.c.b16 %v8792, %v8790
      %v8819 = vpack.c.b16 %v8795, %v8793
      %v8820 = vpack.c.b16 %v8796, %v8794
      %v8821 = vpack.c.b16 %v8799, %v8797
      %v8822 = vpack.c.b16 %v8800, %v8798
      %v8823 = vpack.c.b16 %v8803, %v8801
      %v8824 = vpack.c.b16 %v8804, %v8802
      %v8825 = vpack.c.b16 %v8807, %v8805
      %v8826 = vpack.c.b16 %v8808, %v8806
      %v8827 = vpack.c.b16 %v8809, %v8809
      %v8828 = vpack.c.b16 %v8810, %v8810
      %v8829 = vrot.slane %v8811, 1
      %v8830 = vrot.slane %v8813, 1
      %v8831 = vsel %vm1261, %v8829, %v8830
      %v8832 = vrot.slane %v8812, 1
      %v8833 = vrot.slane %v8814, 1
      %v8834 = vsel %vm1261, %v8832, %v8833
      %v8835 = vrot.slane %v8815, 1
      %v8836 = vsel %vm1261, %v8830, %v8835
      %v8837 = vrot.slane %v8816, 1
      %v8838 = vsel %vm1261, %v8833, %v8837
      %v8839 = vrot.slane %v8817, 1
      %v8840 = vsel %vm1261, %v8835, %v8839
      %v8841 = vrot.slane %v8818, 1
      %v8842 = vsel %vm1261, %v8837, %v8841
      %v8843 = vrot.slane %v8819, 1
      %v8844 = vsel %vm1261, %v8839, %v8843
      %v8845 = vrot.slane %v8820, 1
      %v8846 = vsel %vm1261, %v8841, %v8845
      %v8847 = vrot.slane %v8821, 1
      %v8848 = vsel %vm1261, %v8843, %v8847
      %v8849 = vrot.slane %v8822, 1
      %v8850 = vsel %vm1261, %v8845, %v8849
      %v8851 = vrot.slane %v8823, 1
      %v8852 = vsel %vm1261, %v8847, %v8851
      %v8853 = vrot.slane %v8824, 1
      %v8854 = vsel %vm1261, %v8849, %v8853
      %v8855 = vrot.slane %v8825, 1
      %v8856 = vsel %vm1261, %v8851, %v8855
      %v8857 = vrot.slane %v8826, 1
      %v8858 = vsel %vm1261, %v8853, %v8857
      %v8859 = vrot.slane %v8827, 1
      %v8860 = vsel %vm1261, %v8855, %v8859
      %v8861 = vrot.slane %v8828, 1
      %v8862 = vsel %vm1261, %v8857, %v8861
      %v8913 = vunpack.c.l.b16 %v8728
      %v8914 = vunpack.c.h.b16 %v8728
      %v8915 = vunpack.c.l.b16 %v8729
      %v8916 = vunpack.c.h.b16 %v8729
      %v8917 = vunpack.c.l.b16 %v8730
      %v8918 = vunpack.c.h.b16 %v8730
      %v8919 = vunpack.c.l.b16 %v8731
      %v8920 = vunpack.c.h.b16 %v8731
      %v8921 = vunpack.c.l.b16 %v8732
      %v8922 = vunpack.c.h.b16 %v8732
      %v8923 = vunpack.c.l.b16 %v8733
      %v8924 = vunpack.c.h.b16 %v8733
      %v8925 = vunpack.c.l.b16 %v8734
      %v8926 = vunpack.c.h.b16 %v8734
      %v8927 = vunpack.c.l.b16 %v8735
      %v8928 = vunpack.c.h.b16 %v8735
      %v8929 = vunpack.c.l.b16 %v8736
      %v8930 = vunpack.c.h.b16 %v8736
      %v8931 = vunpack.c.l.b16 %v8737
      %v8932 = vunpack.c.h.b16 %v8737
      %v8933 = vunpack.c.l.b16 %v8738
      %v8934 = vunpack.c.h.b16 %v8738
      %v8935 = vunpack.c.l.b16 %v8739
      %v8936 = vunpack.c.h.b16 %v8739
      %v8937 = vunpack.c.l.b16 %v8740
      %v8938 = vunpack.c.h.b16 %v8740
      %v8939 = vunpack.c.l.b16 %v8741
      %v8940 = vunpack.c.h.b16 %v8741
      %v8941 = vunpack.c.l.b16 %v8742
      %v8942 = vunpack.c.h.b16 %v8742
      %v8943 = vunpack.c.l.b16 %v8743
      %v8944 = vunpack.c.h.b16 %v8743
      %v8945 = vunpack.c.l.b16 %v8744
      %v8946 = vunpack.c.h.b16 %v8744
      %v8947 = vunpack.c.l.b16 %v8745
      %v8948 = vunpack.c.h.b16 %v8745
      %v8949 = vunpack.c.l.b16 %v8746
      %v8950 = vunpack.c.h.b16 %v8746
      %v8951 = vunpack.c.l.b16 %v8747
      %v8952 = vunpack.c.h.b16 %v8747
      %v8953 = vunpack.c.l.b16 %v8748
      %v8954 = vunpack.c.h.b16 %v8748
      %v8955 = vunpack.c.l.b16 %v8749
      %v8956 = vunpack.c.h.b16 %v8749
      %v8957 = vunpack.c.l.b16 %v8750
      %v8958 = vunpack.c.h.b16 %v8750
      %v8959 = vunpack.c.l.b16 %v8751
      %v8960 = vunpack.c.h.b16 %v8751
      %v8961 = vunpack.c.l.b16 %v8752
      %v8962 = vunpack.c.h.b16 %v8752
      %v8963 = vunpack.c.l.b16 %v8753
      %v8964 = vunpack.c.h.b16 %v8753
      %v8965 = vunpack.c.l.b16 %v8754
      %v8966 = vunpack.c.h.b16 %v8754
      %v8967 = vunpack.c.l.b16 %v8755
      %v8968 = vunpack.c.h.b16 %v8755
      %v8969 = vunpack.c.l.b16 %v8756
      %v8970 = vunpack.c.h.b16 %v8756
      %v8971 = vunpack.c.l.b16 %v8757
      %v8972 = vunpack.c.h.b16 %v8757
      %v8973 = vunpack.c.l.b16 %v8758
      %v8974 = vunpack.c.h.b16 %v8758
      %v8975 = vunpack.c.l.b16 %v8759
      %v8976 = vunpack.c.h.b16 %v8759
      %v8977 = vpack.c.b16 %v8915, %v8913
      %v8978 = vpack.c.b16 %v8916, %v8914
      %v8979 = vpack.c.b16 %v8919, %v8917
      %v8980 = vpack.c.b16 %v8920, %v8918
      %v8981 = vpack.c.b16 %v8923, %v8921
      %v8982 = vpack.c.b16 %v8924, %v8922
      %v8983 = vpack.c.b16 %v8927, %v8925
      %v8984 = vpack.c.b16 %v8928, %v8926
      %v8985 = vpack.c.b16 %v8931, %v8929
      %v8986 = vpack.c.b16 %v8932, %v8930
      %v8987 = vpack.c.b16 %v8935, %v8933
      %v8988 = vpack.c.b16 %v8936, %v8934
      %v8989 = vpack.c.b16 %v8939, %v8937
      %v8990 = vpack.c.b16 %v8940, %v8938
      %v8991 = vpack.c.b16 %v8943, %v8941
      %v8992 = vpack.c.b16 %v8944, %v8942
      %v8993 = vpack.c.b16 %v8947, %v8945
      %v8994 = vpack.c.b16 %v8948, %v8946
      %v8995 = vpack.c.b16 %v8951, %v8949
      %v8996 = vpack.c.b16 %v8952, %v8950
      %v8997 = vpack.c.b16 %v8955, %v8953
      %v8998 = vpack.c.b16 %v8956, %v8954
      %v8999 = vpack.c.b16 %v8959, %v8957
      %v9000 = vpack.c.b16 %v8960, %v8958
      %v9001 = vpack.c.b16 %v8963, %v8961
      %v9002 = vpack.c.b16 %v8964, %v8962
      %v9003 = vpack.c.b16 %v8967, %v8965
      %v9004 = vpack.c.b16 %v8968, %v8966
      %v9005 = vpack.c.b16 %v8971, %v8969
      %v9006 = vpack.c.b16 %v8972, %v8970
      %v9007 = vpack.c.b16 %v8975, %v8973
      %v9008 = vpack.c.b16 %v8976, %v8974
      %9041 = vmatprep.subr.bf16.mxu0 %v8978
      %9042 = vmatpush1.bf16.msra.mxu0 %v8977
      %9043 = vmatprep.subr.bf16.mxu0 %v8980
      %9044 = vmatpush1.bf16.msra.mxu0 %v8979
      %9045 = vmatprep.subr.bf16.mxu0 %v8982
      %9046 = vmatpush1.bf16.msra.mxu0 %v8981
      %9047 = vmatprep.subr.bf16.mxu0 %v8984
      %9048 = vmatpush1.bf16.msra.mxu0 %v8983
      %9049 = vmatprep.subr.bf16.mxu0 %v8986
      %9050 = vmatpush1.bf16.msra.mxu0 %v8985
      %9051 = vmatprep.subr.bf16.mxu0 %v8988
      %9052 = vmatpush1.bf16.msra.mxu0 %v8987
      %9053 = vmatprep.subr.bf16.mxu0 %v8990
      %9054 = vmatpush1.bf16.msra.mxu0 %v8989
      %9055 = vmatprep.subr.bf16.mxu0 %v8992
      %9056 = vmatpush1.bf16.msra.mxu0 %v8991
      %9057 = vmatprep.subr.bf16.mxu0 %v8994
      %9058 = vmatpush1.bf16.msra.mxu0 %v8993
      %9059 = vmatprep.subr.bf16.mxu0 %v8996
      %9060 = vmatpush1.bf16.msra.mxu0 %v8995
      %9061 = vmatprep.subr.bf16.mxu0 %v8998
      %9062 = vmatpush1.bf16.msra.mxu0 %v8997
      %9063 = vmatprep.subr.bf16.mxu0 %v9000
      %9064 = vmatpush1.bf16.msra.mxu0 %v8999
      %9065 = vmatprep.subr.bf16.mxu0 %v9002
      %9066 = vmatpush1.bf16.msra.mxu0 %v9001
      %9067 = vmatprep.subr.bf16.mxu0 %v9004
      %9068 = vmatpush1.bf16.msra.mxu0 %v9003
      %9069 = vmatprep.subr.bf16.mxu0 %v9006
      %9070 = vmatpush1.bf16.msra.mxu0 %v9005
      %9071 = vmatprep.subr.bf16.mxu0 %v9008
      %9072 = vmatpush1.bf16.msra.mxu0 %v9007
      %9073 = vmatprep.mubr.bf16.mxu0 %v8834
      %9074 = vmatmul.mubr.bf16.gmra.mrb[0].mxu0 %v8831
      %v9075 = vpop.f32.mrb[0].mxu0
      %v9076 = vadd.f32 0.0, %v9075
      %v9077 = vpop.f32.mrb[0].mxu0
      %v9078 = vadd.f32 0.0, %v9077
      %v9079 = vpop.f32.mrb[0].mxu0
      %v9080 = vadd.f32 0.0, %v9079
      %v9081 = vpop.f32.mrb[0].mxu0
      %v9082 = vadd.f32 0.0, %v9081
      %9083 = vmatprep.mubr.bf16.mxu0 %v8838
      %9084 = vmatmul.mubr.bf16.gmra.mrb[0].mxu0 %v8836
      %v9085 = vpop.f32.mrb[0].mxu0
      %v9086 = vadd.f32 0.0, %v9085
      %v9087 = vpop.f32.mrb[0].mxu0
      %v9088 = vadd.f32 0.0, %v9087
      %v9089 = vpop.f32.mrb[0].mxu0
      %v9090 = vadd.f32 0.0, %v9089
      %v9091 = vpop.f32.mrb[0].mxu0
      %v9092 = vadd.f32 0.0, %v9091
      %9093 = vmatprep.mubr.bf16.mxu0 %v8842
      %9094 = vmatmul.mubr.bf16.gmra.mrb[0].mxu0 %v8840
      %v9095 = vpop.f32.mrb[0].mxu0
      %v9096 = vadd.f32 0.0, %v9095
      %v9097 = vpop.f32.mrb[0].mxu0
      %v9098 = vadd.f32 0.0, %v9097
      %v9099 = vpop.f32.mrb[0].mxu0
      %v9100 = vadd.f32 0.0, %v9099
      %v9101 = vpop.f32.mrb[0].mxu0
      %v9102 = vadd.f32 0.0, %v9101
      %9103 = vmatprep.mubr.bf16.mxu0 %v8846
      %9104 = vmatmul.mubr.bf16.gmra.mrb[0].mxu0 %v8844
      %v9105 = vpop.f32.mrb[0].mxu0
      %v9106 = vadd.f32 0.0, %v9105
      %v9107 = vpop.f32.mrb[0].mxu0
      %v9108 = vadd.f32 0.0, %v9107
      %v9109 = vpop.f32.mrb[0].mxu0
      %v9110 = vadd.f32 0.0, %v9109
      %v9111 = vpop.f32.mrb[0].mxu0
      %v9112 = vadd.f32 0.0, %v9111
      %9113 = vmatprep.mubr.bf16.mxu0 %v8850
      %9114 = vmatmul.mubr.bf16.gmra.mrb[0].mxu0 %v8848
      %v9115 = vpop.f32.mrb[0].mxu0
      %v9116 = vadd.f32 0.0, %v9115
      %v9117 = vpop.f32.mrb[0].mxu0
      %v9118 = vadd.f32 0.0, %v9117
      %v9119 = vpop.f32.mrb[0].mxu0
      %v9120 = vadd.f32 0.0, %v9119
      %v9121 = vpop.f32.mrb[0].mxu0
      %v9122 = vadd.f32 0.0, %v9121
      %9123 = vmatprep.mubr.bf16.mxu0 %v8854
      %9124 = vmatmul.mubr.bf16.gmra.mrb[0].mxu0 %v8852
      %v9125 = vpop.f32.mrb[0].mxu0
      %v9126 = vadd.f32 0.0, %v9125
      %v9127 = vpop.f32.mrb[0].mxu0
      %v9128 = vadd.f32 0.0, %v9127
      %v9129 = vpop.f32.mrb[0].mxu0
      %v9130 = vadd.f32 0.0, %v9129
      %v9131 = vpop.f32.mrb[0].mxu0
      %v9132 = vadd.f32 0.0, %v9131
      %9133 = vmatprep.mubr.bf16.mxu0 %v8858
      %9134 = vmatmul.mubr.bf16.gmra.mrb[0].mxu0 %v8856
      %v9135 = vpop.f32.mrb[0].mxu0
      %v9136 = vadd.f32 0.0, %v9135
      %v9137 = vpop.f32.mrb[0].mxu0
      %v9138 = vadd.f32 0.0, %v9137
      %v9139 = vpop.f32.mrb[0].mxu0
      %v9140 = vadd.f32 0.0, %v9139
      %v9141 = vpop.f32.mrb[0].mxu0
      %v9142 = vadd.f32 0.0, %v9141
      %9143 = vmatprep.mubr.bf16.mxu0 %v8862
      %9144 = vmatmul.mubr.bf16.gmra.mrb[0].mxu0 %v8860
      %v9145 = vpop.f32.mrb[0].mxu0
      %v9146 = vadd.f32 0.0, %v9145
      %v9147 = vpop.f32.mrb[0].mxu0
      %v9148 = vadd.f32 0.0, %v9147
      %v9149 = vpop.f32.mrb[0].mxu0
      %v9150 = vadd.f32 0.0, %v9149
      %v9151 = vpop.f32.mrb[0].mxu0
      %v9152 = vadd.f32 0.0, %v9151
      %9153 = vmatprep.mubr.bf16.mxu0 %v8861
      %9154 = vmatmul.mubr.bf16.gmra.mrb[0].mxu0 %v8859
      %v9155 = vpop.f32.mrb[0].mxu0
      %v9156 = vadd.f32 0.0, %v9155
      %v9157 = vpop.f32.mrb[0].mxu0
      %v9158 = vadd.f32 0.0, %v9157
      %v9159 = vpop.f32.mrb[0].mxu0
      %v9160 = vpop.f32.mrb[0].mxu0
      %9161 = vdwg.mxu0
      %v9162 = vadd.f32 %v8624, %v9076
      %v9163 = vadd.f32 %v8626, %v9078
      %v9164 = vadd.f32 %v8628, %v9080
      %v9165 = vadd.f32 %v8630, %v9082
      %v9166 = vadd.f32 %v8634, %v9086
      %v9167 = vadd.f32 %v8636, %v9088
      %v9168 = vadd.f32 %v8638, %v9090
      %v9169 = vadd.f32 %v8640, %v9092
      %v9170 = vadd.f32 %v8644, %v9096
      %v9171 = vadd.f32 %v8646, %v9098
      %v9172 = vadd.f32 %v8648, %v9100
      %v9173 = vadd.f32 %v8650, %v9102
      %v9174 = vadd.f32 %v8654, %v9106
      %v9175 = vadd.f32 %v8656, %v9108
      %v9176 = vadd.f32 %v8658, %v9110
      %v9177 = vadd.f32 %v8660, %v9112
      %v9178 = vadd.f32 %v8664, %v9116
      %v9179 = vadd.f32 %v8666, %v9118
      %v9180 = vadd.f32 %v8668, %v9120
      %v9181 = vadd.f32 %v8670, %v9122
      %v9182 = vadd.f32 %v8674, %v9126
      %v9183 = vadd.f32 %v8676, %v9128
      %v9184 = vadd.f32 %v8678, %v9130
      %v9185 = vadd.f32 %v8680, %v9132
      %v9186 = vadd.f32 %v8684, %v9136
      %v9187 = vadd.f32 %v8686, %v9138
      %v9188 = vadd.f32 %v8688, %v9140
      %v9189 = vadd.f32 %v8690, %v9142
      %v9190 = vadd.f32 %v8694, %v9146
      %v9191 = vadd.f32 %v8696, %v9148
      %v9192 = vadd.f32 %v8698, %v9150
      %v9193 = vadd.f32 %v8700, %v9152
      %v9194 = vadd.f32 %v8704, %v9156
      %v9195 = vadd.f32 %v8706, %v9158
      %s9196 = scalar_lea.vmem %s2, 4
      %v9197 = vld [vmem:[%s9196] ss:$8 sm:$0x3]
      %v9199 = vlaneseq
      %v9200 = vshrl.u32 %v9199, 7
      %v9201 = vsub.s32 0, %v9200
      %v9202 = vrot.slane %v9197, %v9201
      %v9203 = vlaneseq
      %v9204 = vshrl.u32 %v9203, 7
      %v9205 = vsub.s32 1, %v9204
      %v9206 = vrot.slane %v9197, %v9205
      %v9209 = vadd.f32 %v9162, %v9202
      %v9210 = vadd.f32 %v9163, %v9206
      %v9211 = vadd.f32 %v9164, %v9202
      %v9212 = vadd.f32 %v9165, %v9206
      %v9213 = vadd.f32 %v9166, %v9202
      %v9214 = vadd.f32 %v9167, %v9206
      %v9215 = vadd.f32 %v9168, %v9202
      %v9216 = vadd.f32 %v9169, %v9206
      %v9217 = vadd.f32 %v9170, %v9202
      %v9218 = vadd.f32 %v9171, %v9206
      %v9219 = vadd.f32 %v9172, %v9202
      %v9220 = vadd.f32 %v9173, %v9206
      %v9221 = vadd.f32 %v9174, %v9202
      %v9222 = vadd.f32 %v9175, %v9206
      %v9223 = vadd.f32 %v9176, %v9202
      %v9224 = vadd.f32 %v9177, %v9206
      %v9225 = vadd.f32 %v9178, %v9202
      %v9226 = vadd.f32 %v9179, %v9206
      %v9227 = vadd.f32 %v9180, %v9202
      %v9228 = vadd.f32 %v9181, %v9206
      %v9229 = vadd.f32 %v9182, %v9202
      %v9230 = vadd.f32 %v9183, %v9206
      %v9231 = vadd.f32 %v9184, %v9202
      %v9232 = vadd.f32 %v9185, %v9206
      %v9233 = vadd.f32 %v9186, %v9202
      %v9234 = vadd.f32 %v9187, %v9206
      %v9235 = vadd.f32 %v9188, %v9202
      %v9236 = vadd.f32 %v9189, %v9206
      %v9237 = vadd.f32 %v9190, %v9202
      %v9238 = vadd.f32 %v9191, %v9206
      %v9239 = vadd.f32 %v9192, %v9202
      %v9240 = vadd.f32 %v9193, %v9206
      %v9241 = vadd.f32 %v9194, %v9202
      %v9242 = vadd.f32 %v9195, %v9206
      %v9243 = vmax.f32 %v9209, 0.0
      %v9244 = vmax.f32 %v9210, 0.0
      %v9245 = vmax.f32 %v9211, 0.0
      %v9246 = vmax.f32 %v9212, 0.0
      %v9247 = vmax.f32 %v9213, 0.0
      %v9248 = vmax.f32 %v9214, 0.0
      %v9249 = vmax.f32 %v9215, 0.0
      %v9250 = vmax.f32 %v9216, 0.0
      %v9251 = vmax.f32 %v9217, 0.0
      %v9252 = vmax.f32 %v9218, 0.0
      %v9253 = vmax.f32 %v9219, 0.0
      %v9254 = vmax.f32 %v9220, 0.0
      %v9255 = vmax.f32 %v9221, 0.0
      %v9256 = vmax.f32 %v9222, 0.0
      %v9257 = vmax.f32 %v9223, 0.0
      %v9258 = vmax.f32 %v9224, 0.0
      %v9259 = vmax.f32 %v9225, 0.0
      %v9260 = vmax.f32 %v9226, 0.0
      %v9261 = vmax.f32 %v9227, 0.0
      %v9262 = vmax.f32 %v9228, 0.0
      %v9263 = vmax.f32 %v9229, 0.0
      %v9264 = vmax.f32 %v9230, 0.0
      %v9265 = vmax.f32 %v9231, 0.0
      %v9266 = vmax.f32 %v9232, 0.0
      %v9267 = vmax.f32 %v9233, 0.0
      %v9268 = vmax.f32 %v9234, 0.0
      %v9269 = vmax.f32 %v9235, 0.0
      %v9270 = vmax.f32 %v9236, 0.0
      %v9271 = vmax.f32 %v9237, 0.0
      %v9272 = vmax.f32 %v9238, 0.0
      %v9273 = vmax.f32 %v9239, 0.0
      %v9274 = vmax.f32 %v9240, 0.0
      %v9275 = vmax.f32 %v9241, 0.0
      %v9276 = vmax.f32 %v9242, 0.0
      %9277 = vst [vmem:[%s170] sm:$0xff] %v9243
      %9278 = vst [vmem:[%s170 + $0x8] sm:$0xff] %v9244
      %9279 = vst [vmem:[%s170 + $0x10] sm:$0xff] %v9245
      %9280 = vst [vmem:[%s170 + $0x18] sm:$0xff] %v9246
      %9281 = vst [vmem:[%s170 + $0x20] sm:$0xff] %v9247
      %9282 = vst [vmem:[%s170 + $0x28] sm:$0xff] %v9248
      %9283 = vst [vmem:[%s170 + $0x30] sm:$0xff] %v9249
      %9284 = vst [vmem:[%s170 + $0x38] sm:$0xff] %v9250
      %9285 = vst [vmem:[%s170 + $0x40] sm:$0xff] %v9251
      %9286 = vst [vmem:[%s170 + $0x48] sm:$0xff] %v9252
      %9287 = vst [vmem:[%s170 + $0x50] sm:$0xff] %v9253
      %9288 = vst [vmem:[%s170 + $0x58] sm:$0xff] %v9254
      %9289 = vst [vmem:[%s170 + $0x60] sm:$0xff] %v9255
      %9290 = vst [vmem:[%s170 + $0x68] sm:$0xff] %v9256
      %9291 = vst [vmem:[%s170 + $0x70] sm:$0xff] %v9257
      %9292 = vst [vmem:[%s170 + $0x78] sm:$0xff] %v9258
      %9293 = vst [vmem:[%s170 + $0x80] sm:$0xff] %v9259
      %9294 = vst [vmem:[%s170 + $0x88] sm:$0xff] %v9260
      %9295 = vst [vmem:[%s170 + $0x90] sm:$0xff] %v9261
      %9296 = vst [vmem:[%s170 + $0x98] sm:$0xff] %v9262
      %9297 = vst [vmem:[%s170 + $0xa0] sm:$0xff] %v9263
      %9298 = vst [vmem:[%s170 + $0xa8] sm:$0xff] %v9264
      %9299 = vst [vmem:[%s170 + $0xb0] sm:$0xff] %v9265
      %9300 = vst [vmem:[%s170 + $0xb8] sm:$0xff] %v9266
      %9301 = vst [vmem:[%s170 + $0xc0] sm:$0xff] %v9267
      %9302 = vst [vmem:[%s170 + $0xc8] sm:$0xff] %v9268
      %9303 = vst [vmem:[%s170 + $0xd0] sm:$0xff] %v9269
      %9304 = vst [vmem:[%s170 + $0xd8] sm:$0xff] %v9270
      %9305 = vst [vmem:[%s170 + $0xe0] sm:$0xff] %v9271
      %9306 = vst [vmem:[%s170 + $0xe8] sm:$0xff] %v9272
      %9307 = vst [vmem:[%s170 + $0xf0] sm:$0xff] %v9273
      %9308 = vst [vmem:[%s170 + $0xf8] sm:$0xff] %v9274
      %9309 = vst [vmem:[%s170 + $0x100] sm:$0x3] %v9275
      %9310 = vst [vmem:[%s170 + $0x108] sm:$0x3] %v9276
      %p9311 = scmp.lt.s32.totalorder %s14, 1
      %s9312 = scalar_select %p9311, %s14, 1
      %s9313 = smul.addr %s9312, 34
      %s9314 = smul.addr %s9313, 8
      %s9315 = scalar_lea.vmem %s3, %s9314
      // Predicated region
      $region33: #{dilated_stack.1} parent=31 // pred_check
        %p9316 = pneg %p100
      $region34: #{dilated_stack.1} parent=31 // pred_check_branch
        %9318 = sbr.rel (%p9316) target = $region36
      $region35: #{dilated_stack.1} parent=31 // pred_region
        _
      $region36: #{dilated_stack.1} parent=31 // pred_fallthru
        _
    $region32: #{dilated_stack.1} parent=5 // pred_fallthru
      _
    %p9319 = scmp.le.s32.totalorder 2, %s9
    // Predicated region
    $region37: #{dilated_stack.1} parent=5 // pred_check
      %p9320 = pneg %p9319
    $region38: #{dilated_stack.1} parent=5 // pred_check_branch
      %9322 = sbr.rel (%p9320) target = $region40
    $region39: #{dilated_stack.1} parent=5 // pred_region
      %s9323 = ssub.s32 %s9, 2
      // Predicated region
      $region41: #{dilated_stack.1} parent=39 // pred_check
        %p9324 = pneg %p106
      $region42: #{dilated_stack.1} parent=39 // pred_check_branch
        %9326 = sbr.rel (%p9324) target = $region44
      $region43: #{dilated_stack.1} parent=39 // pred_region
        %p9327 = scmp.lt.s32.totalorder %s15, 1
        %s9328 = scalar_select %p9327, %s15, 1
        %s9329 = smul.addr %s9328, 34
        %s9330 = smul.addr %s9329, 8
        %s9331 = scalar_lea.vmem %s3, %s9330
      $region44: #{dilated_stack.1} parent=39 // pred_fallthru
        _
    $region40: #{dilated_stack.1} parent=5 // pred_fallthru
      _
  $region6: #{dilated_stack.1} parent=0 // loop_footer
    %s13 = sadd.s32 1, %s9
  $region7: #{dilated_stack.1} parent=0 // loop_footer_branch
    %8 = sbr.rel target = $region3
  $region8: #{dilated_stack.1} parent=0 // loop_exit
    _

</llo_original>
